<compile_context>
chip_gen: v5e
topology: v5e:2x2
jax: 0.10.0
libtpu: 0.0.40
codegen_flags: <defaults>
</compile_context>

<pallas_src>
import jax
import jax.numpy as jnp
from jax.experimental import pallas as pl
from jax.experimental.pallas import tpu as pltpu

DEPTH = 100        # number of 128->128 stride-1 conv layers (as in the PyTorch module)
C_SIZE = 128
N_CLASSES = 10
CIN0_PAD = 8       # single input channel zero-padded to 8 lanes (exact math, nicer layout)


# ---------------------------------------------------------------------------
# Fused  zero-pad(1) -> 3x3 conv (stride 1) -> +bias -> tanh   kernel (NHWC).
# ---------------------------------------------------------------------------
def _conv3x3_bias_tanh_kernel(x_ref, w_ref, b_ref, o_ref, xpad_ref):
    """One image per grid step.

    x_ref    : (1, H, W, Cin)      activation block (channels on lanes)
    w_ref    : (3, 3, Cin, Cout)   full filter bank, resident across grid steps
    b_ref    : (1, Cout)
    o_ref    : (1, H, W, Cout)
    xpad_ref : (1, H+2, W+2, Cin)  VMEM scratch: fused zero halo (never touches HBM)
    """
    _, H, W, Cin = x_ref.shape
    Cout = o_ref.shape[3]

    # Zero halo + one bulk interior store (no concatenates).
    xpad_ref[...] = jnp.zeros_like(xpad_ref)
    xpad_ref[:, 1:H + 1, 1:W + 1, :] = x_ref[...]

    bias = b_ref[...]                                              # (1, Cout)

    if W % 8 == 0:
        # im2col over the whole image: 9 tap matmuls of (H*W, Cin) @ (Cin, Cout).
        # The (H*W, Cin) reshape is layout-trivial because W is a multiple of 8.
        acc = jnp.zeros((H * W, Cout), jnp.float32)
        for kh in range(3):
            for kw in range(3):
                tap = xpad_ref[0, kh:kh + H, kw:kw + W, :]         # (H, W, Cin)
                acc = acc + jnp.dot(tap.reshape(H * W, Cin), w_ref[kh, kw],
                                    preferred_element_type=jnp.float32)
        out = jnp.tanh(acc + bias)
        o_ref[0] = out.reshape(H, W, Cout).astype(o_ref.dtype)
    else:
        # Small spatial maps (the 4x4 deep stack): row-wise 2-D matmuls, no reshapes.
        for h in range(H):
            acc = jnp.zeros((W, Cout), jnp.float32)
            for kh in range(3):
                for kw in range(3):
                    tap = xpad_ref[0, h + kh, kw:kw + W, :]        # (W, Cin)
                    acc = acc + jnp.dot(tap, w_ref[kh, kw],
                                        preferred_element_type=jnp.float32)
            o_ref[0, h] = jnp.tanh(acc + bias).astype(o_ref.dtype)


def conv3x3_same_tanh(x, w, b):
    """tanh(conv2d(x, w, stride=1, padding=1) + b), NHWC.

    x: (N, H, W, Cin) f32, w: (3, 3, Cin, Cout) f32, b: (Cout,) f32.
    """
    N, H, W, Cin = x.shape
    Cout = w.shape[-1]
    b2 = b.reshape(1, Cout)

    flops = 2 * N * H * W * 9 * Cin * Cout
    bytes_accessed = 4 * (x.size + w.size + b2.size + N * H * W * Cout)

    return pl.pallas_call(
        _conv3x3_bias_tanh_kernel,
        out_shape=jax.ShapeDtypeStruct((N, H, W, Cout), x.dtype),
        grid_spec=pltpu.PrefetchScalarGridSpec(
            num_scalar_prefetch=0,
            grid=(N,),                                             # >= 2 parallel steps
            in_specs=[
                pl.BlockSpec((1, H, W, Cin), lambda n: (n, 0, 0, 0)),
                pl.BlockSpec((3, 3, Cin, Cout), lambda n: (0, 0, 0, 0)),  # stays resident
                pl.BlockSpec((1, Cout), lambda n: (0, 0)),
            ],
            out_specs=pl.BlockSpec((1, H, W, Cout), lambda n: (n, 0, 0, 0)),
            scratch_shapes=[pltpu.VMEM((1, H + 2, W + 2, Cin), x.dtype)],
        ),
        compiler_params=pltpu.CompilerParams(dimension_semantics=("parallel",)),
        cost_estimate=pl.CostEstimate(
            flops=flops,
            transcendentals=N * H * W * Cout,
            bytes_accessed=bytes_accessed,
        ),
    )(x, w, b2)


def conv3x3_stride2_tanh(x, w, b):
    """tanh(conv2d(x, w, stride=2, padding=1) + b).

    A stride-2 3x3 conv with padding 1 equals the stride-1 conv evaluated at even output
    positions, so we reuse the fused kernel and decimate (tanh is elementwise).
    """
    # TODO(synk): fold the 2x decimation into the kernel via strided tap reads instead of XLA slicing.
    return conv3x3_same_tanh(x, w, b)[:, ::2, ::2, :]


# ---------------------------------------------------------------------------
# Head: global average pool over H,W fused with the Linear(128 -> 10) layer.
# ---------------------------------------------------------------------------
def _head_kernel(x_ref, w_ref, b_ref, o_ref):
    N, H, W, C = x_ref.shape
    x = x_ref[...].astype(jnp.float32)                             # (N, H, W, C)
    s = jnp.zeros((N, C), jnp.float32)
    for h in range(H):                                             # tiny unrolled reduction
        for ww in range(W):
            s = s + x[:, h, ww, :]
    pooled = s * (1.0 / float(H * W))                              # (N, C)
    logits = jnp.dot(pooled, w_ref[...], preferred_element_type=jnp.float32) + b_ref[...]
    o_ref[...] = logits.astype(o_ref.dtype)


def head_pool_linear(x, w_fc, b_fc):
    N, H, W, C = x.shape
    K = w_fc.shape[-1]
    return pl.pallas_call(
        _head_kernel,
        out_shape=jax.ShapeDtypeStruct((N, K), x.dtype),
        grid_spec=pltpu.PrefetchScalarGridSpec(
            num_scalar_prefetch=0,
            grid=(1,),
            in_specs=[
                pl.BlockSpec((N, H, W, C), lambda i: (0, 0, 0, 0)),
                pl.BlockSpec((C, K), lambda i: (0, 0)),
                pl.BlockSpec((1, K), lambda i: (0, 0)),
            ],
            out_specs=pl.BlockSpec((N, K), lambda i: (0, 0)),
        ),
    )(x, w_fc, b_fc.reshape(1, K))


# ---------------------------------------------------------------------------
# Full forward pass + parameters + pure-JAX reference.
# ---------------------------------------------------------------------------
def deep_cnn_forward(x_nchw, params):
    """DeepCNN.forward: x (N, 1, H, W) NCHW -> logits (N, 10)."""
    # Layout plumbing: NCHW -> NHWC so channels live on the 128-wide lane axis.
    x = jnp.transpose(x_nchw, (0, 2, 3, 1)).astype(jnp.float32)
    # Conv0's single input channel zero-padded to CIN0_PAD lanes (padded weights are zero,
    # so the math is identical to the 1-channel conv).
    x = jnp.pad(x, ((0, 0), (0, 0), (0, 0), (0, CIN0_PAD - x.shape[-1])))

    x = conv3x3_same_tanh(x, params["w0"], params["b0"])           # Conv0 + tanh
    x = conv3x3_stride2_tanh(x, params["w1"], params["b1"])        # Conv1 (stride 2) + tanh
    x = conv3x3_stride2_tanh(x, params["w2"], params["b2"])        # Conv2 (stride 2) + tanh

    # 100 identical 128->128 conv+tanh layers: scan so the Pallas kernel compiles once.
    def body(h, wb):
        w, b = wb
        return conv3x3_same_tanh(h, w, b), None

    x, _ = jax.lax.scan(body, x, (params["w_deep"], params["b_deep"]))

    return head_pool_linear(x, params["w_fc"], params["b_fc"])     # mean([2,3]) + fc


def init_params(key, depth=DEPTH, c=C_SIZE):
    """Random parameters with PyTorch-default-like U(-1/sqrt(fan_in), 1/sqrt(fan_in)) scale."""
    ks = jax.random.split(key, 10)

    def u(k, shape, fan_in):
        bound = 1.0 / float(fan_in) ** 0.5
        return jax.random.uniform(k, shape, jnp.float32, -bound, bound)

    p = {}
    w0 = u(ks[0], (3, 3, 1, c), 9 * 1)                             # true in_channels = 1
    p["w0"] = jnp.pad(w0, ((0, 0), (0, 0), (0, CIN0_PAD - 1), (0, 0)))
    p["b0"] = u(ks[1], (c,), 9 * 1)
    p["w1"] = u(ks[2], (3, 3, c, c), 9 * c)
    p["b1"] = u(ks[3], (c,), 9 * c)
    p["w2"] = u(ks[4], (3, 3, c, c), 9 * c)
    p["b2"] = u(ks[5], (c,), 9 * c)
    p["w_deep"] = u(ks[6], (depth, 3, 3, c, c), 9 * c)
    p["b_deep"] = u(ks[7], (depth, c), 9 * c)
    p["w_fc"] = u(ks[8], (c, N_CLASSES), c)
    p["b_fc"] = u(ks[9], (N_CLASSES,), c)
    return p


def _ref_conv_tanh(x, w, b, stride):
    y = jax.lax.conv_general_dilated(
        x, w, window_strides=(stride, stride), padding=((1, 1), (1, 1)),
        dimension_numbers=("NHWC", "HWIO", "NHWC"),
        precision=jax.lax.Precision.HIGHEST)
    return jnp.tanh(y + b)


def reference_forward(x_nchw, params):
    h = jnp.transpose(x_nchw, (0, 2, 3, 1)).astype(jnp.float32)
    h = jnp.pad(h, ((0, 0), (0, 0), (0, 0), (0, CIN0_PAD - h.shape[-1])))
    h = _ref_conv_tanh(h, params["w0"], params["b0"], 1)
    h = _ref_conv_tanh(h, params["w1"], params["b1"], 2)
    h = _ref_conv_tanh(h, params["w2"], params["b2"], 2)

    def body(hh, wb):
        w, b = wb
        return _ref_conv_tanh(hh, w, b, 1), None

    h, _ = jax.lax.scan(body, h, (params["w_deep"], params["b_deep"]))
    pooled = jnp.mean(h, axis=(1, 2))
    return jnp.dot(pooled, params["w_fc"],
                   precision=jax.lax.Precision.HIGHEST) + params["b_fc"]


if __name__ == "__main__":
    key = jax.random.PRNGKey(0)
    k_x, k_p = jax.random.split(key)

    x = jax.random.normal(k_x, (2, 1, 16, 16), dtype=jnp.float32)  # NCHW, like the PyTorch module
    params = init_params(k_p)

    # Full forward pass through the Pallas kernels.
    fwd = jax.jit(deep_cnn_forward)
    logits = jax.block_until_ready(fwd(x, params))
    assert logits.shape == (2, N_CLASSES), logits.shape
    assert bool(jnp.all(jnp.isfinite(logits)))

    # --- correctness checks against pure-JAX references --------------------
    x_nhwc = jnp.pad(jnp.transpose(x, (0, 2, 3, 1)),
                     ((0, 0), (0, 0), (0, 0), (0, CIN0_PAD - 1)))

    # (a) Conv0 (im2col path, 16x16, Cin padded to 8).
    got0 = conv3x3_same_tanh(x_nhwc, params["w0"], params["b0"])
    a0 = _ref_conv_tanh(x_nhwc, params["w0"], params["b0"], 1)
    assert jnp.allclose(got0, a0, atol=5e-3, rtol=5e-3), float(jnp.max(jnp.abs(got0 - a0)))

    # (b) stride-2 layer (Conv1): fused stride-1 kernel + decimation vs strided reference.
    got1 = conv3x3_stride2_tanh(a0, params["w1"], params["b1"])
    a1 = _ref_conv_tanh(a0, params["w1"], params["b1"], 2)
    assert jnp.allclose(got1, a1, atol=5e-3, rtol=5e-3), float(jnp.max(jnp.abs(got1 - a1)))

    # (c) one deep 4x4 layer (row-wise path).
    a2 = _ref_conv_tanh(a1, params["w2"], params["b2"], 2)         # (2, 4, 4, 128)
    got3 = conv3x3_same_tanh(a2, params["w_deep"][0], params["b_deep"][0])
    a3 = _ref_conv_tanh(a2, params["w_deep"][0], params["b_deep"][0], 1)
    assert jnp.allclose(got3, a3, atol=5e-3, rtol=5e-3), float(jnp.max(jnp.abs(got3 - a3)))

    # (d) pooling + fc head.
    goth = head_pool_linear(a2, params["w_fc"], params["b_fc"])
    refh = jnp.dot(jnp.mean(a2, axis=(1, 2)), params["w_fc"],
                   precision=jax.lax.Precision.HIGHEST) + params["b_fc"]
    assert jnp.allclose(goth, refh, atol=5e-3, rtol=5e-3), float(jnp.max(jnp.abs(goth - refh)))

    # (e) full model (loose tolerance: 103 stacked layers).
    ref_logits = reference_forward(x, params)
    assert jnp.allclose(logits, ref_logits, atol=1e-2, rtol=1e-2), \
        float(jnp.max(jnp.abs(logits - ref_logits)))

    print("KERNEL_OK")
</pallas_src>

<mosaic_0001>
module attributes {stable_mosaic.version = 11 : i64} {
  func.func @_conv3x3_bias_tanh_kernel(%arg0: i32, %arg1: memref<1x16x16x128xf32, #tpu.memory_space<vmem>>, %arg2: memref<3x3x128x128xf32, #tpu.memory_space<vmem>>, %arg3: memref<1x128xf32, #tpu.memory_space<vmem>>, %arg4: memref<1x16x16x128xf32, #tpu.memory_space<vmem>>, %arg5: memref<1x18x18x128xf32, #tpu.memory_space<vmem>>) attributes {dimension_semantics = [#tpu.dimension_semantics<parallel>], iteration_bounds = array<i64: 2>, scalar_prefetch = 0 : i64, scratch_operands = 1 : i64, tpu.core_type = #tpu.core_type<tc>, window_params = [{transform_indices = @transform_0, window_bounds = array<i64: 1, 16, 16, 128>}, {pipeline_mode = #tpu.pipeline_mode<synchronous>, transform_indices = @transform_1, window_bounds = array<i64: 3, 3, 128, 128>}, {pipeline_mode = #tpu.pipeline_mode<synchronous>, transform_indices = @transform_2, window_bounds = array<i64: 1, 128>}, {transform_indices = @transform_3, window_bounds = array<i64: 1, 16, 16, 128>}]} {
    %cst = arith.constant 0.000000e+00 : f32
    %0 = vector.broadcast %cst : f32 to vector<1x18x18x128xf32>
    %c0 = arith.constant 0 : index
    %c0_0 = arith.constant 0 : index
    %c0_1 = arith.constant 0 : index
    %c0_2 = arith.constant 0 : index
    %1 = vector.load %arg5[%c0, %c0_0, %c0_1, %c0_2] : memref<1x18x18x128xf32, #tpu.memory_space<vmem>>, vector<1x18x18x128xf32>
    tpu.vector_store %arg5[%c0, %c0_0, %c0_1, %c0_2], %0 {strides = array<i32>} : memref<1x18x18x128xf32, #tpu.memory_space<vmem>>, vector<1x18x18x128xf32>,
    %c0_3 = arith.constant 0 : index
    %c0_4 = arith.constant 0 : index
    %c0_5 = arith.constant 0 : index
    %c0_6 = arith.constant 0 : index
    %2 = vector.load %arg1[%c0_3, %c0_4, %c0_5, %c0_6] : memref<1x16x16x128xf32, #tpu.memory_space<vmem>>, vector<1x16x16x128xf32>
    %c0_7 = arith.constant 0 : index
    %c1 = arith.constant 1 : index
    %c1_8 = arith.constant 1 : index
    %c0_9 = arith.constant 0 : index
    %3 = vector.load %arg5[%c0_7, %c1, %c1_8, %c0_9] : memref<1x18x18x128xf32, #tpu.memory_space<vmem>>, vector<1x16x16x128xf32>
    tpu.vector_store %arg5[%c0_7, %c1, %c1_8, %c0_9], %2 {strides = array<i32>} : memref<1x18x18x128xf32, #tpu.memory_space<vmem>>, vector<1x16x16x128xf32>,
    %c0_10 = arith.constant 0 : index
    %c0_11 = arith.constant 0 : index
    %4 = vector.load %arg3[%c0_10, %c0_11] : memref<1x128xf32, #tpu.memory_space<vmem>>, vector<1x128xf32>
    %cst_12 = arith.constant 0.000000e+00 : f32
    %5 = vector.broadcast %cst_12 : f32 to vector<256x128xf32>
    %c0_13 = arith.constant 0 : index
    %c0_14 = arith.constant 0 : index
    %c0_15 = arith.constant 0 : index
    %c0_16 = arith.constant 0 : index
    %6 = vector.load %arg5[%c0_13, %c0_14, %c0_15, %c0_16] : memref<1x18x18x128xf32, #tpu.memory_space<vmem>>, vector<1x16x16x128xf32>
    %7 = vector.shape_cast %6 : vector<1x16x16x128xf32> to vector<16x16x128xf32>
    %8 = vector.shape_cast %7 : vector<16x16x128xf32> to vector<256x128xf32>
    %c0_17 = arith.constant 0 : index
    %c0_18 = arith.constant 0 : index
    %c0_19 = arith.constant 0 : index
    %c0_20 = arith.constant 0 : index
    %9 = vector.load %arg2[%c0_17, %c0_18, %c0_19, %c0_20] : memref<3x3x128x128xf32, #tpu.memory_space<vmem>>, vector<1x1x128x128xf32>
    %10 = vector.shape_cast %9 : vector<1x1x128x128xf32> to vector<128x128xf32>
    %cst_21 = arith.constant dense<0.000000e+00> : vector<256x128xf32>
    %11 = tpu.matmul %8, %10, %cst_21 {dimension_numbers = #tpu.dot_dimension_numbers<[1], [0], [0], [1], [0, 0, 1, 1], [], []>} : vector<256x128xf32>, vector<128x128xf32>, vector<256x128xf32> -> vector<256x128xf32>
    %12 = arith.addf %5, %11 : vector<256x128xf32>
    %c0_22 = arith.constant 0 : index
    %c0_23 = arith.constant 0 : index
    %c1_24 = arith.constant 1 : index
    %c0_25 = arith.constant 0 : index
    %13 = vector.load %arg5[%c0_22, %c0_23, %c1_24, %c0_25] : memref<1x18x18x128xf32, #tpu.memory_space<vmem>>, vector<1x16x16x128xf32>
    %14 = vector.shape_cast %13 : vector<1x16x16x128xf32> to vector<16x16x128xf32>
    %15 = vector.shape_cast %14 : vector<16x16x128xf32> to vector<256x128xf32>
    %c0_26 = arith.constant 0 : index
    %c1_27 = arith.constant 1 : index
    %c0_28 = arith.constant 0 : index
    %c0_29 = arith.constant 0 : index
    %16 = vector.load %arg2[%c0_26, %c1_27, %c0_28, %c0_29] : memref<3x3x128x128xf32, #tpu.memory_space<vmem>>, vector<1x1x128x128xf32>
    %17 = vector.shape_cast %16 : vector<1x1x128x128xf32> to vector<128x128xf32>
    %cst_30 = arith.constant dense<0.000000e+00> : vector<256x128xf32>
    %18 = tpu.matmul %15, %17, %cst_30 {dimension_numbers = #tpu.dot_dimension_numbers<[1], [0], [0], [1], [0, 0, 1, 1], [], []>} : vector<256x128xf32>, vector<128x128xf32>, vector<256x128xf32> -> vector<256x128xf32>
    %19 = arith.addf %12, %18 : vector<256x128xf32>
    %c0_31 = arith.constant 0 : index
    %c0_32 = arith.constant 0 : index
    %c2 = arith.constant 2 : index
    %c0_33 = arith.constant 0 : index
    %20 = vector.load %arg5[%c0_31, %c0_32, %c2, %c0_33] : memref<1x18x18x128xf32, #tpu.memory_space<vmem>>, vector<1x16x16x128xf32>
    %21 = vector.shape_cast %20 : vector<1x16x16x128xf32> to vector<16x16x128xf32>
    %22 = vector.shape_cast %21 : vector<16x16x128xf32> to vector<256x128xf32>
    %c0_34 = arith.constant 0 : index
    %c2_35 = arith.constant 2 : index
    %c0_36 = arith.constant 0 : index
    %c0_37 = arith.constant 0 : index
    %23 = vector.load %arg2[%c0_34, %c2_35, %c0_36, %c0_37] : memref<3x3x128x128xf32, #tpu.memory_space<vmem>>, vector<1x1x128x128xf32>
    %24 = vector.shape_cast %23 : vector<1x1x128x128xf32> to vector<128x128xf32>
    %cst_38 = arith.constant dense<0.000000e+00> : vector<256x128xf32>
    %25 = tpu.matmul %22, %24, %cst_38 {dimension_numbers = #tpu.dot_dimension_numbers<[1], [0], [0], [1], [0, 0, 1, 1], [], []>} : vector<256x128xf32>, vector<128x128xf32>, vector<256x128xf32> -> vector<256x128xf32>
    %26 = arith.addf %19, %25 : vector<256x128xf32>
    %c0_39 = arith.constant 0 : index
    %c1_40 = arith.constant 1 : index
    %c0_41 = arith.constant 0 : index
    %c0_42 = arith.constant 0 : index
    %27 = vector.load %arg5[%c0_39, %c1_40, %c0_41, %c0_42] : memref<1x18x18x128xf32, #tpu.memory_space<vmem>>, vector<1x16x16x128xf32>
    %28 = vector.shape_cast %27 : vector<1x16x16x128xf32> to vector<16x16x128xf32>
    %29 = vector.shape_cast %28 : vector<16x16x128xf32> to vector<256x128xf32>
    %c1_43 = arith.constant 1 : index
    %c0_44 = arith.constant 0 : index
    %c0_45 = arith.constant 0 : index
    %c0_46 = arith.constant 0 : index
    %30 = vector.load %arg2[%c1_43, %c0_44, %c0_45, %c0_46] : memref<3x3x128x128xf32, #tpu.memory_space<vmem>>, vector<1x1x128x128xf32>
    %31 = vector.shape_cast %30 : vector<1x1x128x128xf32> to vector<128x128xf32>
    %cst_47 = arith.constant dense<0.000000e+00> : vector<256x128xf32>
    %32 = tpu.matmul %29, %31, %cst_47 {dimension_numbers = #tpu.dot_dimension_numbers<[1], [0], [0], [1], [0, 0, 1, 1], [], []>} : vector<256x128xf32>, vector<128x128xf32>, vector<256x128xf32> -> vector<256x128xf32>
    %33 = arith.addf %26, %32 : vector<256x128xf32>
    %c0_48 = arith.constant 0 : index
    %c1_49 = arith.constant 1 : index
    %c1_50 = arith.constant 1 : index
    %c0_51 = arith.constant 0 : index
    %34 = vector.load %arg5[%c0_48, %c1_49, %c1_50, %c0_51] : memref<1x18x18x128xf32, #tpu.memory_space<vmem>>, vector<1x16x16x128xf32>
    %35 = vector.shape_cast %34 : vector<1x16x16x128xf32> to vector<16x16x128xf32>
    %36 = vector.shape_cast %35 : vector<16x16x128xf32> to vector<256x128xf32>
    %c1_52 = arith.constant 1 : index
    %c1_53 = arith.constant 1 : index
    %c0_54 = arith.constant 0 : index
    %c0_55 = arith.constant 0 : index
    %37 = vector.load %arg2[%c1_52, %c1_53, %c0_54, %c0_55] : memref<3x3x128x128xf32, #tpu.memory_space<vmem>>, vector<1x1x128x128xf32>
    %38 = vector.shape_cast %37 : vector<1x1x128x128xf32> to vector<128x128xf32>
    %cst_56 = arith.constant dense<0.000000e+00> : vector<256x128xf32>
    %39 = tpu.matmul %36, %38, %cst_56 {dimension_numbers = #tpu.dot_dimension_numbers<[1], [0], [0], [1], [0, 0, 1, 1], [], []>} : vector<256x128xf32>, vector<128x128xf32>, vector<256x128xf32> -> vector<256x128xf32>
    %40 = arith.addf %33, %39 : vector<256x128xf32>
    %c0_57 = arith.constant 0 : index
    %c1_58 = arith.constant 1 : index
    %c2_59 = arith.constant 2 : index
    %c0_60 = arith.constant 0 : index
    %41 = vector.load %arg5[%c0_57, %c1_58, %c2_59, %c0_60] : memref<1x18x18x128xf32, #tpu.memory_space<vmem>>, vector<1x16x16x128xf32>
    %42 = vector.shape_cast %41 : vector<1x16x16x128xf32> to vector<16x16x128xf32>
    %43 = vector.shape_cast %42 : vector<16x16x128xf32> to vector<256x128xf32>
    %c1_61 = arith.constant 1 : index
    %c2_62 = arith.constant 2 : index
    %c0_63 = arith.constant 0 : index
    %c0_64 = arith.constant 0 : index
    %44 = vector.load %arg2[%c1_61, %c2_62, %c0_63, %c0_64] : memref<3x3x128x128xf32, #tpu.memory_space<vmem>>, vector<1x1x128x128xf32>
    %45 = vector.shape_cast %44 : vector<1x1x128x128xf32> to vector<128x128xf32>
    %cst_65 = arith.constant dense<0.000000e+00> : vector<256x128xf32>
    %46 = tpu.matmul %43, %45, %cst_65 {dimension_numbers = #tpu.dot_dimension_numbers<[1], [0], [0], [1], [0, 0, 1, 1], [], []>} : vector<256x128xf32>, vector<128x128xf32>, vector<256x128xf32> -> vector<256x128xf32>
    %47 = arith.addf %40, %46 : vector<256x128xf32>
    %c0_66 = arith.constant 0 : index
    %c2_67 = arith.constant 2 : index
    %c0_68 = arith.constant 0 : index
    %c0_69 = arith.constant 0 : index
    %48 = vector.load %arg5[%c0_66, %c2_67, %c0_68, %c0_69] : memref<1x18x18x128xf32, #tpu.memory_space<vmem>>, vector<1x16x16x128xf32>
    %49 = vector.shape_cast %48 : vector<1x16x16x128xf32> to vector<16x16x128xf32>
    %50 = vector.shape_cast %49 : vector<16x16x128xf32> to vector<256x128xf32>
    %c2_70 = arith.constant 2 : index
    %c0_71 = arith.constant 0 : index
    %c0_72 = arith.constant 0 : index
    %c0_73 = arith.constant 0 : index
    %51 = vector.load %arg2[%c2_70, %c0_71, %c0_72, %c0_73] : memref<3x3x128x128xf32, #tpu.memory_space<vmem>>, vector<1x1x128x128xf32>
    %52 = vector.shape_cast %51 : vector<1x1x128x128xf32> to vector<128x128xf32>
    %cst_74 = arith.constant dense<0.000000e+00> : vector<256x128xf32>
    %53 = tpu.matmul %50, %52, %cst_74 {dimension_numbers = #tpu.dot_dimension_numbers<[1], [0], [0], [1], [0, 0, 1, 1], [], []>} : vector<256x128xf32>, vector<128x128xf32>, vector<256x128xf32> -> vector<256x128xf32>
    %54 = arith.addf %47, %53 : vector<256x128xf32>
    %c0_75 = arith.constant 0 : index
    %c2_76 = arith.constant 2 : index
    %c1_77 = arith.constant 1 : index
    %c0_78 = arith.constant 0 : index
    %55 = vector.load %arg5[%c0_75, %c2_76, %c1_77, %c0_78] : memref<1x18x18x128xf32, #tpu.memory_space<vmem>>, vector<1x16x16x128xf32>
    %56 = vector.shape_cast %55 : vector<1x16x16x128xf32> to vector<16x16x128xf32>
    %57 = vector.shape_cast %56 : vector<16x16x128xf32> to vector<256x128xf32>
    %c2_79 = arith.constant 2 : index
    %c1_80 = arith.constant 1 : index
    %c0_81 = arith.constant 0 : index
    %c0_82 = arith.constant 0 : index
    %58 = vector.load %arg2[%c2_79, %c1_80, %c0_81, %c0_82] : memref<3x3x128x128xf32, #tpu.memory_space<vmem>>, vector<1x1x128x128xf32>
    %59 = vector.shape_cast %58 : vector<1x1x128x128xf32> to vector<128x128xf32>
    %cst_83 = arith.constant dense<0.000000e+00> : vector<256x128xf32>
    %60 = tpu.matmul %57, %59, %cst_83 {dimension_numbers = #tpu.dot_dimension_numbers<[1], [0], [0], [1], [0, 0, 1, 1], [], []>} : vector<256x128xf32>, vector<128x128xf32>, vector<256x128xf32> -> vector<256x128xf32>
    %61 = arith.addf %54, %60 : vector<256x128xf32>
    %c0_84 = arith.constant 0 : index
    %c2_85 = arith.constant 2 : index
    %c2_86 = arith.constant 2 : index
    %c0_87 = arith.constant 0 : index
    %62 = vector.load %arg5[%c0_84, %c2_85, %c2_86, %c0_87] : memref<1x18x18x128xf32, #tpu.memory_space<vmem>>, vector<1x16x16x128xf32>
    %63 = vector.shape_cast %62 : vector<1x16x16x128xf32> to vector<16x16x128xf32>
    %64 = vector.shape_cast %63 : vector<16x16x128xf32> to vector<256x128xf32>
    %c2_88 = arith.constant 2 : index
    %c2_89 = arith.constant 2 : index
    %c0_90 = arith.constant 0 : index
    %c0_91 = arith.constant 0 : index
    %65 = vector.load %arg2[%c2_88, %c2_89, %c0_90, %c0_91] : memref<3x3x128x128xf32, #tpu.memory_space<vmem>>, vector<1x1x128x128xf32>
    %66 = vector.shape_cast %65 : vector<1x1x128x128xf32> to vector<128x128xf32>
    %cst_92 = arith.constant dense<0.000000e+00> : vector<256x128xf32>
    %67 = tpu.matmul %64, %66, %cst_92 {dimension_numbers = #tpu.dot_dimension_numbers<[1], [0], [0], [1], [0, 0, 1, 1], [], []>} : vector<256x128xf32>, vector<128x128xf32>, vector<256x128xf32> -> vector<256x128xf32>
    %68 = arith.addf %61, %67 : vector<256x128xf32>
    %69 = vector.broadcast %4 : vector<1x128xf32> to vector<256x128xf32>
    %70 = arith.addf %68, %69 : vector<256x128xf32>
    %71 = math.tanh %70 : vector<256x128xf32>
    %72 = vector.shape_cast %71 : vector<256x128xf32> to vector<16x16x128xf32>
    %c0_93 = arith.constant 0 : index
    %c0_94 = arith.constant 0 : index
    %c0_95 = arith.constant 0 : index
    %c0_96 = arith.constant 0 : index
    %73 = vector.load %arg4[%c0_93, %c0_94, %c0_95, %c0_96] : memref<1x16x16x128xf32, #tpu.memory_space<vmem>>, vector<1x16x16x128xf32>
    %74 = vector.shape_cast %73 : vector<1x16x16x128xf32> to vector<16x16x128xf32>
    %75 = vector.shape_cast %72 : vector<16x16x128xf32> to vector<1x16x16x128xf32>
    tpu.vector_store %arg4[%c0_93, %c0_94, %c0_95, %c0_96], %75 {strides = array<i32>} : memref<1x16x16x128xf32, #tpu.memory_space<vmem>>, vector<1x16x16x128xf32>,
    return
  }
  func.func @transform_0(%arg0: i32) -> (i32, i32, i32, i32) {
    %c0_i32 = arith.constant 0 : i32
    %c0_i32_0 = arith.constant 0 : i32
    %c0_i32_1 = arith.constant 0 : i32
    %c0_i32_2 = arith.constant 0 : i32
    return %arg0, %c0_i32, %c0_i32_0, %c0_i32_1 : i32, i32, i32, i32
  }
  func.func @transform_1(%arg0: i32) -> (i32, i32, i32, i32) {
    %c0_i32 = arith.constant 0 : i32
    %c0_i32_0 = arith.constant 0 : i32
    %c0_i32_1 = arith.constant 0 : i32
    %c0_i32_2 = arith.constant 0 : i32
    %c0_i32_3 = arith.constant 0 : i32
    return %c0_i32, %c0_i32_0, %c0_i32_1, %c0_i32_2 : i32, i32, i32, i32
  }
  func.func @transform_2(%arg0: i32) -> (i32, i32) {
    %c0_i32 = arith.constant 0 : i32
    %c0_i32_0 = arith.constant 0 : i32
    %c0_i32_1 = arith.constant 0 : i32
    return %c0_i32, %c0_i32_0 : i32, i32
  }
  func.func @transform_3(%arg0: i32) -> (i32, i32, i32, i32) {
    %c0_i32 = arith.constant 0 : i32
    %c0_i32_0 = arith.constant 0 : i32
    %c0_i32_1 = arith.constant 0 : i32
    %c0_i32_2 = arith.constant 0 : i32
    return %arg0, %c0_i32, %c0_i32_0, %c0_i32_1 : i32, i32, i32, i32
  }
}

module attributes {stable_mosaic.version = 11 : i64} {
  func.func @_conv3x3_bias_tanh_kernel(%arg0: i32, %arg1: memref<1x16x16x8xf32, #tpu.memory_space<vmem>>, %arg2: memref<3x3x8x128xf32, #tpu.memory_space<vmem>>, %arg3: memref<1x128xf32, #tpu.memory_space<vmem>>, %arg4: memref<1x16x16x128xf32, #tpu.memory_space<vmem>>, %arg5: memref<1x18x18x8xf32, #tpu.memory_space<vmem>>) attributes {dimension_semantics = [#tpu.dimension_semantics<parallel>], iteration_bounds = array<i64: 2>, scalar_prefetch = 0 : i64, scratch_operands = 1 : i64, tpu.core_type = #tpu.core_type<tc>, window_params = [{transform_indices = @transform_0, window_bounds = array<i64: 1, 16, 16, 8>}, {pipeline_mode = #tpu.pipeline_mode<synchronous>, transform_indices = @transform_1, window_bounds = array<i64: 3, 3, 8, 128>}, {pipeline_mode = #tpu.pipeline_mode<synchronous>, transform_indices = @transform_2, window_bounds = array<i64: 1, 128>}, {transform_indices = @transform_3, window_bounds = array<i64: 1, 16, 16, 128>}]} {
    %cst = arith.constant 0.000000e+00 : f32
    %0 = vector.broadcast %cst : f32 to vector<1x18x18x8xf32>
    %c0 = arith.constant 0 : index
    %c0_0 = arith.constant 0 : index
    %c0_1 = arith.constant 0 : index
    %c0_2 = arith.constant 0 : index
    %1 = vector.load %arg5[%c0, %c0_0, %c0_1, %c0_2] : memref<1x18x18x8xf32, #tpu.memory_space<vmem>>, vector<1x18x18x8xf32>
    tpu.vector_store %arg5[%c0, %c0_0, %c0_1, %c0_2], %0 {strides = array<i32>} : memref<1x18x18x8xf32, #tpu.memory_space<vmem>>, vector<1x18x18x8xf32>,
    %c0_3 = arith.constant 0 : index
    %c0_4 = arith.constant 0 : index
    %c0_5 = arith.constant 0 : index
    %c0_6 = arith.constant 0 : index
    %2 = vector.load %arg1[%c0_3, %c0_4, %c0_5, %c0_6] : memref<1x16x16x8xf32, #tpu.memory_space<vmem>>, vector<1x16x16x8xf32>
    %c0_7 = arith.constant 0 : index
    %c1 = arith.constant 1 : index
    %c1_8 = arith.constant 1 : index
    %c0_9 = arith.constant 0 : index
    %3 = vector.load %arg5[%c0_7, %c1, %c1_8, %c0_9] : memref<1x18x18x8xf32, #tpu.memory_space<vmem>>, vector<1x16x16x8xf32>
    tpu.vector_store %arg5[%c0_7, %c1, %c1_8, %c0_9], %2 {strides = array<i32>} : memref<1x18x18x8xf32, #tpu.memory_space<vmem>>, vector<1x16x16x8xf32>,
    %c0_10 = arith.constant 0 : index
    %c0_11 = arith.constant 0 : index
    %4 = vector.load %arg3[%c0_10, %c0_11] : memref<1x128xf32, #tpu.memory_space<vmem>>, vector<1x128xf32>
    %cst_12 = arith.constant 0.000000e+00 : f32
    %5 = vector.broadcast %cst_12 : f32 to vector<256x128xf32>
    %c0_13 = arith.constant 0 : index
    %c0_14 = arith.constant 0 : index
    %c0_15 = arith.constant 0 : index
    %c0_16 = arith.constant 0 : index
    %6 = vector.load %arg5[%c0_13, %c0_14, %c0_15, %c0_16] : memref<1x18x18x8xf32, #tpu.memory_space<vmem>>, vector<1x16x16x8xf32>
    %7 = vector.shape_cast %6 : vector<1x16x16x8xf32> to vector<16x16x8xf32>
    %8 = vector.shape_cast %7 : vector<16x16x8xf32> to vector<256x8xf32>
    %c0_17 = arith.constant 0 : index
    %c0_18 = arith.constant 0 : index
    %c0_19 = arith.constant 0 : index
    %c0_20 = arith.constant 0 : index
    %9 = vector.load %arg2[%c0_17, %c0_18, %c0_19, %c0_20] : memref<3x3x8x128xf32, #tpu.memory_space<vmem>>, vector<1x1x8x128xf32>
    %10 = vector.shape_cast %9 : vector<1x1x8x128xf32> to vector<8x128xf32>
    %cst_21 = arith.constant dense<0.000000e+00> : vector<256x128xf32>
    %11 = tpu.matmul %8, %10, %cst_21 {dimension_numbers = #tpu.dot_dimension_numbers<[1], [0], [0], [1], [0, 0, 1, 1], [], []>} : vector<256x8xf32>, vector<8x128xf32>, vector<256x128xf32> -> vector<256x128xf32>
    %12 = arith.addf %5, %11 : vector<256x128xf32>
    %c0_22 = arith.constant 0 : index
    %c0_23 = arith.constant 0 : index
    %c1_24 = arith.constant 1 : index
    %c0_25 = arith.constant 0 : index
    %13 = vector.load %arg5[%c0_22, %c0_23, %c1_24, %c0_25] : memref<1x18x18x8xf32, #tpu.memory_space<vmem>>, vector<1x16x16x8xf32>
    %14 = vector.shape_cast %13 : vector<1x16x16x8xf32> to vector<16x16x8xf32>
    %15 = vector.shape_cast %14 : vector<16x16x8xf32> to vector<256x8xf32>
    %c0_26 = arith.constant 0 : index
    %c1_27 = arith.constant 1 : index
    %c0_28 = arith.constant 0 : index
    %c0_29 = arith.constant 0 : index
    %16 = vector.load %arg2[%c0_26, %c1_27, %c0_28, %c0_29] : memref<3x3x8x128xf32, #tpu.memory_space<vmem>>, vector<1x1x8x128xf32>
    %17 = vector.shape_cast %16 : vector<1x1x8x128xf32> to vector<8x128xf32>
    %cst_30 = arith.constant dense<0.000000e+00> : vector<256x128xf32>
    %18 = tpu.matmul %15, %17, %cst_30 {dimension_numbers = #tpu.dot_dimension_numbers<[1], [0], [0], [1], [0, 0, 1, 1], [], []>} : vector<256x8xf32>, vector<8x128xf32>, vector<256x128xf32> -> vector<256x128xf32>
    %19 = arith.addf %12, %18 : vector<256x128xf32>
    %c0_31 = arith.constant 0 : index
    %c0_32 = arith.constant 0 : index
    %c2 = arith.constant 2 : index
    %c0_33 = arith.constant 0 : index
    %20 = vector.load %arg5[%c0_31, %c0_32, %c2, %c0_33] : memref<1x18x18x8xf32, #tpu.memory_space<vmem>>, vector<1x16x16x8xf32>
    %21 = vector.shape_cast %20 : vector<1x16x16x8xf32> to vector<16x16x8xf32>
    %22 = vector.shape_cast %21 : vector<16x16x8xf32> to vector<256x8xf32>
    %c0_34 = arith.constant 0 : index
    %c2_35 = arith.constant 2 : index
    %c0_36 = arith.constant 0 : index
    %c0_37 = arith.constant 0 : index
    %23 = vector.load %arg2[%c0_34, %c2_35, %c0_36, %c0_37] : memref<3x3x8x128xf32, #tpu.memory_space<vmem>>, vector<1x1x8x128xf32>
    %24 = vector.shape_cast %23 : vector<1x1x8x128xf32> to vector<8x128xf32>
    %cst_38 = arith.constant dense<0.000000e+00> : vector<256x128xf32>
    %25 = tpu.matmul %22, %24, %cst_38 {dimension_numbers = #tpu.dot_dimension_numbers<[1], [0], [0], [1], [0, 0, 1, 1], [], []>} : vector<256x8xf32>, vector<8x128xf32>, vector<256x128xf32> -> vector<256x128xf32>
    %26 = arith.addf %19, %25 : vector<256x128xf32>
    %c0_39 = arith.constant 0 : index
    %c1_40 = arith.constant 1 : index
    %c0_41 = arith.constant 0 : index
    %c0_42 = arith.constant 0 : index
    %27 = vector.load %arg5[%c0_39, %c1_40, %c0_41, %c0_42] : memref<1x18x18x8xf32, #tpu.memory_space<vmem>>, vector<1x16x16x8xf32>
    %28 = vector.shape_cast %27 : vector<1x16x16x8xf32> to vector<16x16x8xf32>
    %29 = vector.shape_cast %28 : vector<16x16x8xf32> to vector<256x8xf32>
    %c1_43 = arith.constant 1 : index
    %c0_44 = arith.constant 0 : index
    %c0_45 = arith.constant 0 : index
    %c0_46 = arith.constant 0 : index
    %30 = vector.load %arg2[%c1_43, %c0_44, %c0_45, %c0_46] : memref<3x3x8x128xf32, #tpu.memory_space<vmem>>, vector<1x1x8x128xf32>
    %31 = vector.shape_cast %30 : vector<1x1x8x128xf32> to vector<8x128xf32>
    %cst_47 = arith.constant dense<0.000000e+00> : vector<256x128xf32>
    %32 = tpu.matmul %29, %31, %cst_47 {dimension_numbers = #tpu.dot_dimension_numbers<[1], [0], [0], [1], [0, 0, 1, 1], [], []>} : vector<256x8xf32>, vector<8x128xf32>, vector<256x128xf32> -> vector<256x128xf32>
    %33 = arith.addf %26, %32 : vector<256x128xf32>
    %c0_48 = arith.constant 0 : index
    %c1_49 = arith.constant 1 : index
    %c1_50 = arith.constant 1 : index
    %c0_51 = arith.constant 0 : index
    %34 = vector.load %arg5[%c0_48, %c1_49, %c1_50, %c0_51] : memref<1x18x18x8xf32, #tpu.memory_space<vmem>>, vector<1x16x16x8xf32>
    %35 = vector.shape_cast %34 : vector<1x16x16x8xf32> to vector<16x16x8xf32>
    %36 = vector.shape_cast %35 : vector<16x16x8xf32> to vector<256x8xf32>
    %c1_52 = arith.constant 1 : index
    %c1_53 = arith.constant 1 : index
    %c0_54 = arith.constant 0 : index
    %c0_55 = arith.constant 0 : index
    %37 = vector.load %arg2[%c1_52, %c1_53, %c0_54, %c0_55] : memref<3x3x8x128xf32, #tpu.memory_space<vmem>>, vector<1x1x8x128xf32>
    %38 = vector.shape_cast %37 : vector<1x1x8x128xf32> to vector<8x128xf32>
    %cst_56 = arith.constant dense<0.000000e+00> : vector<256x128xf32>
    %39 = tpu.matmul %36, %38, %cst_56 {dimension_numbers = #tpu.dot_dimension_numbers<[1], [0], [0], [1], [0, 0, 1, 1], [], []>} : vector<256x8xf32>, vector<8x128xf32>, vector<256x128xf32> -> vector<256x128xf32>
    %40 = arith.addf %33, %39 : vector<256x128xf32>
    %c0_57 = arith.constant 0 : index
    %c1_58 = arith.constant 1 : index
    %c2_59 = arith.constant 2 : index
    %c0_60 = arith.constant 0 : index
    %41 = vector.load %arg5[%c0_57, %c1_58, %c2_59, %c0_60] : memref<1x18x18x8xf32, #tpu.memory_space<vmem>>, vector<1x16x16x8xf32>
    %42 = vector.shape_cast %41 : vector<1x16x16x8xf32> to vector<16x16x8xf32>
    %43 = vector.shape_cast %42 : vector<16x16x8xf32> to vector<256x8xf32>
    %c1_61 = arith.constant 1 : index
    %c2_62 = arith.constant 2 : index
    %c0_63 = arith.constant 0 : index
    %c0_64 = arith.constant 0 : index
    %44 = vector.load %arg2[%c1_61, %c2_62, %c0_63, %c0_64] : memref<3x3x8x128xf32, #tpu.memory_space<vmem>>, vector<1x1x8x128xf32>
    %45 = vector.shape_cast %44 : vector<1x1x8x128xf32> to vector<8x128xf32>
    %cst_65 = arith.constant dense<0.000000e+00> : vector<256x128xf32>
    %46 = tpu.matmul %43, %45, %cst_65 {dimension_numbers = #tpu.dot_dimension_numbers<[1], [0], [0], [1], [0, 0, 1, 1], [], []>} : vector<256x8xf32>, vector<8x128xf32>, vector<256x128xf32> -> vector<256x128xf32>
    %47 = arith.addf %40, %46 : vector<256x128xf32>
    %c0_66 = arith.constant 0 : index
    %c2_67 = arith.constant 2 : index
    %c0_68 = arith.constant 0 : index
    %c0_69 = arith.constant 0 : index
    %48 = vector.load %arg5[%c0_66, %c2_67, %c0_68, %c0_69] : memref<1x18x18x8xf32, #tpu.memory_space<vmem>>, vector<1x16x16x8xf32>
    %49 = vector.shape_cast %48 : vector<1x16x16x8xf32> to vector<16x16x8xf32>
    %50 = vector.shape_cast %49 : vector<16x16x8xf32> to vector<256x8xf32>
    %c2_70 = arith.constant 2 : index
    %c0_71 = arith.constant 0 : index
    %c0_72 = arith.constant 0 : index
    %c0_73 = arith.constant 0 : index
    %51 = vector.load %arg2[%c2_70, %c0_71, %c0_72, %c0_73] : memref<3x3x8x128xf32, #tpu.memory_space<vmem>>, vector<1x1x8x128xf32>
    %52 = vector.shape_cast %51 : vector<1x1x8x128xf32> to vector<8x128xf32>
    %cst_74 = arith.constant dense<0.000000e+00> : vector<256x128xf32>
    %53 = tpu.matmul %50, %52, %cst_74 {dimension_numbers = #tpu.dot_dimension_numbers<[1], [0], [0], [1], [0, 0, 1, 1], [], []>} : vector<256x8xf32>, vector<8x128xf32>, vector<256x128xf32> -> vector<256x128xf32>
    %54 = arith.addf %47, %53 : vector<256x128xf32>
    %c0_75 = arith.constant 0 : index
    %c2_76 = arith.constant 2 : index
    %c1_77 = arith.constant 1 : index
    %c0_78 = arith.constant 0 : index
    %55 = vector.load %arg5[%c0_75, %c2_76, %c1_77, %c0_78] : memref<1x18x18x8xf32, #tpu.memory_space<vmem>>, vector<1x16x16x8xf32>
    %56 = vector.shape_cast %55 : vector<1x16x16x8xf32> to vector<16x16x8xf32>
    %57 = vector.shape_cast %56 : vector<16x16x8xf32> to vector<256x8xf32>
    %c2_79 = arith.constant 2 : index
    %c1_80 = arith.constant 1 : index
    %c0_81 = arith.constant 0 : index
    %c0_82 = arith.constant 0 : index
    %58 = vector.load %arg2[%c2_79, %c1_80, %c0_81, %c0_82] : memref<3x3x8x128xf32, #tpu.memory_space<vmem>>, vector<1x1x8x128xf32>
    %59 = vector.shape_cast %58 : vector<1x1x8x128xf32> to vector<8x128xf32>
    %cst_83 = arith.constant dense<0.000000e+00> : vector<256x128xf32>
    %60 = tpu.matmul %57, %59, %cst_83 {dimension_numbers = #tpu.dot_dimension_numbers<[1], [0], [0], [1], [0, 0, 1, 1], [], []>} : vector<256x8xf32>, vector<8x128xf32>, vector<256x128xf32> -> vector<256x128xf32>
    %61 = arith.addf %54, %60 : vector<256x128xf32>
    %c0_84 = arith.constant 0 : index
    %c2_85 = arith.constant 2 : index
    %c2_86 = arith.constant 2 : index
    %c0_87 = arith.constant 0 : index
    %62 = vector.load %arg5[%c0_84, %c2_85, %c2_86, %c0_87] : memref<1x18x18x8xf32, #tpu.memory_space<vmem>>, vector<1x16x16x8xf32>
    %63 = vector.shape_cast %62 : vector<1x16x16x8xf32> to vector<16x16x8xf32>
    %64 = vector.shape_cast %63 : vector<16x16x8xf32> to vector<256x8xf32>
    %c2_88 = arith.constant 2 : index
    %c2_89 = arith.constant 2 : index
    %c0_90 = arith.constant 0 : index
    %c0_91 = arith.constant 0 : index
    %65 = vector.load %arg2[%c2_88, %c2_89, %c0_90, %c0_91] : memref<3x3x8x128xf32, #tpu.memory_space<vmem>>, vector<1x1x8x128xf32>
    %66 = vector.shape_cast %65 : vector<1x1x8x128xf32> to vector<8x128xf32>
    %cst_92 = arith.constant dense<0.000000e+00> : vector<256x128xf32>
    %67 = tpu.matmul %64, %66, %cst_92 {dimension_numbers = #tpu.dot_dimension_numbers<[1], [0], [0], [1], [0, 0, 1, 1], [], []>} : vector<256x8xf32>, vector<8x128xf32>, vector<256x128xf32> -> vector<256x128xf32>
    %68 = arith.addf %61, %67 : vector<256x128xf32>
    %69 = vector.broadcast %4 : vector<1x128xf32> to vector<256x128xf32>
    %70 = arith.addf %68, %69 : vector<256x128xf32>
    %71 = math.tanh %70 : vector<256x128xf32>
    %72 = vector.shape_cast %71 : vector<256x128xf32> to vector<16x16x128xf32>
    %c0_93 = arith.constant 0 : index
    %c0_94 = arith.constant 0 : index
    %c0_95 = arith.constant 0 : index
    %c0_96 = arith.constant 0 : index
    %73 = vector.load %arg4[%c0_93, %c0_94, %c0_95, %c0_96] : memref<1x16x16x128xf32, #tpu.memory_space<vmem>>, vector<1x16x16x128xf32>
    %74 = vector.shape_cast %73 : vector<1x16x16x128xf32> to vector<16x16x128xf32>
    %75 = vector.shape_cast %72 : vector<16x16x128xf32> to vector<1x16x16x128xf32>
    tpu.vector_store %arg4[%c0_93, %c0_94, %c0_95, %c0_96], %75 {strides = array<i32>} : memref<1x16x16x128xf32, #tpu.memory_space<vmem>>, vector<1x16x16x128xf32>,
    return
  }
  func.func @transform_0(%arg0: i32) -> (i32, i32, i32, i32) {
    %c0_i32 = arith.constant 0 : i32
    %c0_i32_0 = arith.constant 0 : i32
    %c0_i32_1 = arith.constant 0 : i32
    %c0_i32_2 = arith.constant 0 : i32
    return %arg0, %c0_i32, %c0_i32_0, %c0_i32_1 : i32, i32, i32, i32
  }
  func.func @transform_1(%arg0: i32) -> (i32, i32, i32, i32) {
    %c0_i32 = arith.constant 0 : i32
    %c0_i32_0 = arith.constant 0 : i32
    %c0_i32_1 = arith.constant 0 : i32
    %c0_i32_2 = arith.constant 0 : i32
    %c0_i32_3 = arith.constant 0 : i32
    return %c0_i32, %c0_i32_0, %c0_i32_1, %c0_i32_2 : i32, i32, i32, i32
  }
  func.func @transform_2(%arg0: i32) -> (i32, i32) {
    %c0_i32 = arith.constant 0 : i32
    %c0_i32_0 = arith.constant 0 : i32
    %c0_i32_1 = arith.constant 0 : i32
    return %c0_i32, %c0_i32_0 : i32, i32
  }
  func.func @transform_3(%arg0: i32) -> (i32, i32, i32, i32) {
    %c0_i32 = arith.constant 0 : i32
    %c0_i32_0 = arith.constant 0 : i32
    %c0_i32_1 = arith.constant 0 : i32
    %c0_i32_2 = arith.constant 0 : i32
    return %arg0, %c0_i32, %c0_i32_0, %c0_i32_1 : i32, i32, i32, i32
  }
}

module attributes {stable_mosaic.version = 11 : i64} {
  func.func @_conv3x3_bias_tanh_kernel(%arg0: i32, %arg1: memref<1x8x8x128xf32, #tpu.memory_space<vmem>>, %arg2: memref<3x3x128x128xf32, #tpu.memory_space<vmem>>, %arg3: memref<1x128xf32, #tpu.memory_space<vmem>>, %arg4: memref<1x8x8x128xf32, #tpu.memory_space<vmem>>, %arg5: memref<1x10x10x128xf32, #tpu.memory_space<vmem>>) attributes {dimension_semantics = [#tpu.dimension_semantics<parallel>], iteration_bounds = array<i64: 2>, scalar_prefetch = 0 : i64, scratch_operands = 1 : i64, tpu.core_type = #tpu.core_type<tc>, window_params = [{transform_indices = @transform_0, window_bounds = array<i64: 1, 8, 8, 128>}, {pipeline_mode = #tpu.pipeline_mode<synchronous>, transform_indices = @transform_1, window_bounds = array<i64: 3, 3, 128, 128>}, {pipeline_mode = #tpu.pipeline_mode<synchronous>, transform_indices = @transform_2, window_bounds = array<i64: 1, 128>}, {transform_indices = @transform_3, window_bounds = array<i64: 1, 8, 8, 128>}]} {
    %cst = arith.constant 0.000000e+00 : f32
    %0 = vector.broadcast %cst : f32 to vector<1x10x10x128xf32>
    %c0 = arith.constant 0 : index
    %c0_0 = arith.constant 0 : index
    %c0_1 = arith.constant 0 : index
    %c0_2 = arith.constant 0 : index
    %1 = vector.load %arg5[%c0, %c0_0, %c0_1, %c0_2] : memref<1x10x10x128xf32, #tpu.memory_space<vmem>>, vector<1x10x10x128xf32>
    tpu.vector_store %arg5[%c0, %c0_0, %c0_1, %c0_2], %0 {strides = array<i32>} : memref<1x10x10x128xf32, #tpu.memory_space<vmem>>, vector<1x10x10x128xf32>,
    %c0_3 = arith.constant 0 : index
    %c0_4 = arith.constant 0 : index
    %c0_5 = arith.constant 0 : index
    %c0_6 = arith.constant 0 : index
    %2 = vector.load %arg1[%c0_3, %c0_4, %c0_5, %c0_6] : memref<1x8x8x128xf32, #tpu.memory_space<vmem>>, vector<1x8x8x128xf32>
    %c0_7 = arith.constant 0 : index
    %c1 = arith.constant 1 : index
    %c1_8 = arith.constant 1 : index
    %c0_9 = arith.constant 0 : index
    %3 = vector.load %arg5[%c0_7, %c1, %c1_8, %c0_9] : memref<1x10x10x128xf32, #tpu.memory_space<vmem>>, vector<1x8x8x128xf32>
    tpu.vector_store %arg5[%c0_7, %c1, %c1_8, %c0_9], %2 {strides = array<i32>} : memref<1x10x10x128xf32, #tpu.memory_space<vmem>>, vector<1x8x8x128xf32>,
    %c0_10 = arith.constant 0 : index
    %c0_11 = arith.constant 0 : index
    %4 = vector.load %arg3[%c0_10, %c0_11] : memref<1x128xf32, #tpu.memory_space<vmem>>, vector<1x128xf32>
    %cst_12 = arith.constant 0.000000e+00 : f32
    %5 = vector.broadcast %cst_12 : f32 to vector<64x128xf32>
    %c0_13 = arith.constant 0 : index
    %c0_14 = arith.constant 0 : index
    %c0_15 = arith.constant 0 : index
    %c0_16 = arith.constant 0 : index
    %6 = vector.load %arg5[%c0_13, %c0_14, %c0_15, %c0_16] : memref<1x10x10x128xf32, #tpu.memory_space<vmem>>, vector<1x8x8x128xf32>
    %7 = vector.shape_cast %6 : vector<1x8x8x128xf32> to vector<8x8x128xf32>
    %8 = vector.shape_cast %7 : vector<8x8x128xf32> to vector<64x128xf32>
    %c0_17 = arith.constant 0 : index
    %c0_18 = arith.constant 0 : index
    %c0_19 = arith.constant 0 : index
    %c0_20 = arith.constant 0 : index
    %9 = vector.load %arg2[%c0_17, %c0_18, %c0_19, %c0_20] : memref<3x3x128x128xf32, #tpu.memory_space<vmem>>, vector<1x1x128x128xf32>
    %10 = vector.shape_cast %9 : vector<1x1x128x128xf32> to vector<128x128xf32>
    %cst_21 = arith.constant dense<0.000000e+00> : vector<64x128xf32>
    %11 = tpu.matmul %8, %10, %cst_21 {dimension_numbers = #tpu.dot_dimension_numbers<[1], [0], [0], [1], [0, 0, 1, 1], [], []>} : vector<64x128xf32>, vector<128x128xf32>, vector<64x128xf32> -> vector<64x128xf32>
    %12 = arith.addf %5, %11 : vector<64x128xf32>
    %c0_22 = arith.constant 0 : index
    %c0_23 = arith.constant 0 : index
    %c1_24 = arith.constant 1 : index
    %c0_25 = arith.constant 0 : index
    %13 = vector.load %arg5[%c0_22, %c0_23, %c1_24, %c0_25] : memref<1x10x10x128xf32, #tpu.memory_space<vmem>>, vector<1x8x8x128xf32>
    %14 = vector.shape_cast %13 : vector<1x8x8x128xf32> to vector<8x8x128xf32>
    %15 = vector.shape_cast %14 : vector<8x8x128xf32> to vector<64x128xf32>
    %c0_26 = arith.constant 0 : index
    %c1_27 = arith.constant 1 : index
    %c0_28 = arith.constant 0 : index
    %c0_29 = arith.constant 0 : index
    %16 = vector.load %arg2[%c0_26, %c1_27, %c0_28, %c0_29] : memref<3x3x128x128xf32, #tpu.memory_space<vmem>>, vector<1x1x128x128xf32>
    %17 = vector.shape_cast %16 : vector<1x1x128x128xf32> to vector<128x128xf32>
    %cst_30 = arith.constant dense<0.000000e+00> : vector<64x128xf32>
    %18 = tpu.matmul %15, %17, %cst_30 {dimension_numbers = #tpu.dot_dimension_numbers<[1], [0], [0], [1], [0, 0, 1, 1], [], []>} : vector<64x128xf32>, vector<128x128xf32>, vector<64x128xf32> -> vector<64x128xf32>
    %19 = arith.addf %12, %18 : vector<64x128xf32>
    %c0_31 = arith.constant 0 : index
    %c0_32 = arith.constant 0 : index
    %c2 = arith.constant 2 : index
    %c0_33 = arith.constant 0 : index
    %20 = vector.load %arg5[%c0_31, %c0_32, %c2, %c0_33] : memref<1x10x10x128xf32, #tpu.memory_space<vmem>>, vector<1x8x8x128xf32>
    %21 = vector.shape_cast %20 : vector<1x8x8x128xf32> to vector<8x8x128xf32>
    %22 = vector.shape_cast %21 : vector<8x8x128xf32> to vector<64x128xf32>
    %c0_34 = arith.constant 0 : index
    %c2_35 = arith.constant 2 : index
    %c0_36 = arith.constant 0 : index
    %c0_37 = arith.constant 0 : index
    %23 = vector.load %arg2[%c0_34, %c2_35, %c0_36, %c0_37] : memref<3x3x128x128xf32, #tpu.memory_space<vmem>>, vector<1x1x128x128xf32>
    %24 = vector.shape_cast %23 : vector<1x1x128x128xf32> to vector<128x128xf32>
    %cst_38 = arith.constant dense<0.000000e+00> : vector<64x128xf32>
    %25 = tpu.matmul %22, %24, %cst_38 {dimension_numbers = #tpu.dot_dimension_numbers<[1], [0], [0], [1], [0, 0, 1, 1], [], []>} : vector<64x128xf32>, vector<128x128xf32>, vector<64x128xf32> -> vector<64x128xf32>
    %26 = arith.addf %19, %25 : vector<64x128xf32>
    %c0_39 = arith.constant 0 : index
    %c1_40 = arith.constant 1 : index
    %c0_41 = arith.constant 0 : index
    %c0_42 = arith.constant 0 : index
    %27 = vector.load %arg5[%c0_39, %c1_40, %c0_41, %c0_42] : memref<1x10x10x128xf32, #tpu.memory_space<vmem>>, vector<1x8x8x128xf32>
    %28 = vector.shape_cast %27 : vector<1x8x8x128xf32> to vector<8x8x128xf32>
    %29 = vector.shape_cast %28 : vector<8x8x128xf32> to vector<64x128xf32>
    %c1_43 = arith.constant 1 : index
    %c0_44 = arith.constant 0 : index
    %c0_45 = arith.constant 0 : index
    %c0_46 = arith.constant 0 : index
    %30 = vector.load %arg2[%c1_43, %c0_44, %c0_45, %c0_46] : memref<3x3x128x128xf32, #tpu.memory_space<vmem>>, vector<1x1x128x128xf32>
    %31 = vector.shape_cast %30 : vector<1x1x128x128xf32> to vector<128x128xf32>
    %cst_47 = arith.constant dense<0.000000e+00> : vector<64x128xf32>
    %32 = tpu.matmul %29, %31, %cst_47 {dimension_numbers = #tpu.dot_dimension_numbers<[1], [0], [0], [1], [0, 0, 1, 1], [], []>} : vector<64x128xf32>, vector<128x128xf32>, vector<64x128xf32> -> vector<64x128xf32>
    %33 = arith.addf %26, %32 : vector<64x128xf32>
    %c0_48 = arith.constant 0 : index
    %c1_49 = arith.constant 1 : index
    %c1_50 = arith.constant 1 : index
    %c0_51 = arith.constant 0 : index
    %34 = vector.load %arg5[%c0_48, %c1_49, %c1_50, %c0_51] : memref<1x10x10x128xf32, #tpu.memory_space<vmem>>, vector<1x8x8x128xf32>
    %35 = vector.shape_cast %34 : vector<1x8x8x128xf32> to vector<8x8x128xf32>
    %36 = vector.shape_cast %35 : vector<8x8x128xf32> to vector<64x128xf32>
    %c1_52 = arith.constant 1 : index
    %c1_53 = arith.constant 1 : index
    %c0_54 = arith.constant 0 : index
    %c0_55 = arith.constant 0 : index
    %37 = vector.load %arg2[%c1_52, %c1_53, %c0_54, %c0_55] : memref<3x3x128x128xf32, #tpu.memory_space<vmem>>, vector<1x1x128x128xf32>
    %38 = vector.shape_cast %37 : vector<1x1x128x128xf32> to vector<128x128xf32>
    %cst_56 = arith.constant dense<0.000000e+00> : vector<64x128xf32>
    %39 = tpu.matmul %36, %38, %cst_56 {dimension_numbers = #tpu.dot_dimension_numbers<[1], [0], [0], [1], [0, 0, 1, 1], [], []>} : vector<64x128xf32>, vector<128x128xf32>, vector<64x128xf32> -> vector<64x128xf32>
    %40 = arith.addf %33, %39 : vector<64x128xf32>
    %c0_57 = arith.constant 0 : index
    %c1_58 = arith.constant 1 : index
    %c2_59 = arith.constant 2 : index
    %c0_60 = arith.constant 0 : index
    %41 = vector.load %arg5[%c0_57, %c1_58, %c2_59, %c0_60] : memref<1x10x10x128xf32, #tpu.memory_space<vmem>>, vector<1x8x8x128xf32>
    %42 = vector.shape_cast %41 : vector<1x8x8x128xf32> to vector<8x8x128xf32>
    %43 = vector.shape_cast %42 : vector<8x8x128xf32> to vector<64x128xf32>
    %c1_61 = arith.constant 1 : index
    %c2_62 = arith.constant 2 : index
    %c0_63 = arith.constant 0 : index
    %c0_64 = arith.constant 0 : index
    %44 = vector.load %arg2[%c1_61, %c2_62, %c0_63, %c0_64] : memref<3x3x128x128xf32, #tpu.memory_space<vmem>>, vector<1x1x128x128xf32>
    %45 = vector.shape_cast %44 : vector<1x1x128x128xf32> to vector<128x128xf32>
    %cst_65 = arith.constant dense<0.000000e+00> : vector<64x128xf32>
    %46 = tpu.matmul %43, %45, %cst_65 {dimension_numbers = #tpu.dot_dimension_numbers<[1], [0], [0], [1], [0, 0, 1, 1], [], []>} : vector<64x128xf32>, vector<128x128xf32>, vector<64x128xf32> -> vector<64x128xf32>
    %47 = arith.addf %40, %46 : vector<64x128xf32>
    %c0_66 = arith.constant 0 : index
    %c2_67 = arith.constant 2 : index
    %c0_68 = arith.constant 0 : index
    %c0_69 = arith.constant 0 : index
    %48 = vector.load %arg5[%c0_66, %c2_67, %c0_68, %c0_69] : memref<1x10x10x128xf32, #tpu.memory_space<vmem>>, vector<1x8x8x128xf32>
    %49 = vector.shape_cast %48 : vector<1x8x8x128xf32> to vector<8x8x128xf32>
    %50 = vector.shape_cast %49 : vector<8x8x128xf32> to vector<64x128xf32>
    %c2_70 = arith.constant 2 : index
    %c0_71 = arith.constant 0 : index
    %c0_72 = arith.constant 0 : index
    %c0_73 = arith.constant 0 : index
    %51 = vector.load %arg2[%c2_70, %c0_71, %c0_72, %c0_73] : memref<3x3x128x128xf32, #tpu.memory_space<vmem>>, vector<1x1x128x128xf32>
    %52 = vector.shape_cast %51 : vector<1x1x128x128xf32> to vector<128x128xf32>
    %cst_74 = arith.constant dense<0.000000e+00> : vector<64x128xf32>
    %53 = tpu.matmul %50, %52, %cst_74 {dimension_numbers = #tpu.dot_dimension_numbers<[1], [0], [0], [1], [0, 0, 1, 1], [], []>} : vector<64x128xf32>, vector<128x128xf32>, vector<64x128xf32> -> vector<64x128xf32>
    %54 = arith.addf %47, %53 : vector<64x128xf32>
    %c0_75 = arith.constant 0 : index
    %c2_76 = arith.constant 2 : index
    %c1_77 = arith.constant 1 : index
    %c0_78 = arith.constant 0 : index
    %55 = vector.load %arg5[%c0_75, %c2_76, %c1_77, %c0_78] : memref<1x10x10x128xf32, #tpu.memory_space<vmem>>, vector<1x8x8x128xf32>
    %56 = vector.shape_cast %55 : vector<1x8x8x128xf32> to vector<8x8x128xf32>
    %57 = vector.shape_cast %56 : vector<8x8x128xf32> to vector<64x128xf32>
    %c2_79 = arith.constant 2 : index
    %c1_80 = arith.constant 1 : index
    %c0_81 = arith.constant 0 : index
    %c0_82 = arith.constant 0 : index
    %58 = vector.load %arg2[%c2_79, %c1_80, %c0_81, %c0_82] : memref<3x3x128x128xf32, #tpu.memory_space<vmem>>, vector<1x1x128x128xf32>
    %59 = vector.shape_cast %58 : vector<1x1x128x128xf32> to vector<128x128xf32>
    %cst_83 = arith.constant dense<0.000000e+00> : vector<64x128xf32>
    %60 = tpu.matmul %57, %59, %cst_83 {dimension_numbers = #tpu.dot_dimension_numbers<[1], [0], [0], [1], [0, 0, 1, 1], [], []>} : vector<64x128xf32>, vector<128x128xf32>, vector<64x128xf32> -> vector<64x128xf32>
    %61 = arith.addf %54, %60 : vector<64x128xf32>
    %c0_84 = arith.constant 0 : index
    %c2_85 = arith.constant 2 : index
    %c2_86 = arith.constant 2 : index
    %c0_87 = arith.constant 0 : index
    %62 = vector.load %arg5[%c0_84, %c2_85, %c2_86, %c0_87] : memref<1x10x10x128xf32, #tpu.memory_space<vmem>>, vector<1x8x8x128xf32>
    %63 = vector.shape_cast %62 : vector<1x8x8x128xf32> to vector<8x8x128xf32>
    %64 = vector.shape_cast %63 : vector<8x8x128xf32> to vector<64x128xf32>
    %c2_88 = arith.constant 2 : index
    %c2_89 = arith.constant 2 : index
    %c0_90 = arith.constant 0 : index
    %c0_91 = arith.constant 0 : index
    %65 = vector.load %arg2[%c2_88, %c2_89, %c0_90, %c0_91] : memref<3x3x128x128xf32, #tpu.memory_space<vmem>>, vector<1x1x128x128xf32>
    %66 = vector.shape_cast %65 : vector<1x1x128x128xf32> to vector<128x128xf32>
    %cst_92 = arith.constant dense<0.000000e+00> : vector<64x128xf32>
    %67 = tpu.matmul %64, %66, %cst_92 {dimension_numbers = #tpu.dot_dimension_numbers<[1], [0], [0], [1], [0, 0, 1, 1], [], []>} : vector<64x128xf32>, vector<128x128xf32>, vector<64x128xf32> -> vector<64x128xf32>
    %68 = arith.addf %61, %67 : vector<64x128xf32>
    %69 = vector.broadcast %4 : vector<1x128xf32> to vector<64x128xf32>
    %70 = arith.addf %68, %69 : vector<64x128xf32>
    %71 = math.tanh %70 : vector<64x128xf32>
    %72 = vector.shape_cast %71 : vector<64x128xf32> to vector<8x8x128xf32>
    %c0_93 = arith.constant 0 : index
    %c0_94 = arith.constant 0 : index
    %c0_95 = arith.constant 0 : index
    %c0_96 = arith.constant 0 : index
    %73 = vector.load %arg4[%c0_93, %c0_94, %c0_95, %c0_96] : memref<1x8x8x128xf32, #tpu.memory_space<vmem>>, vector<1x8x8x128xf32>
    %74 = vector.shape_cast %73 : vector<1x8x8x128xf32> to vector<8x8x128xf32>
    %75 = vector.shape_cast %72 : vector<8x8x128xf32> to vector<1x8x8x128xf32>
    tpu.vector_store %arg4[%c0_93, %c0_94, %c0_95, %c0_96], %75 {strides = array<i32>} : memref<1x8x8x128xf32, #tpu.memory_space<vmem>>, vector<1x8x8x128xf32>,
    return
  }
  func.func @transform_0(%arg0: i32) -> (i32, i32, i32, i32) {
    %c0_i32 = arith.constant 0 : i32
    %c0_i32_0 = arith.constant 0 : i32
    %c0_i32_1 = arith.constant 0 : i32
    %c0_i32_2 = arith.constant 0 : i32
    return %arg0, %c0_i32, %c0_i32_0, %c0_i32_1 : i32, i32, i32, i32
  }
  func.func @transform_1(%arg0: i32) -> (i32, i32, i32, i32) {
    %c0_i32 = arith.constant 0 : i32
    %c0_i32_0 = arith.constant 0 : i32
    %c0_i32_1 = arith.constant 0 : i32
    %c0_i32_2 = arith.constant 0 : i32
    %c0_i32_3 = arith.constant 0 : i32
    return %c0_i32, %c0_i32_0, %c0_i32_1, %c0_i32_2 : i32, i32, i32, i32
  }
  func.func @transform_2(%arg0: i32) -> (i32, i32) {
    %c0_i32 = arith.constant 0 : i32
    %c0_i32_0 = arith.constant 0 : i32
    %c0_i32_1 = arith.constant 0 : i32
    return %c0_i32, %c0_i32_0 : i32, i32
  }
  func.func @transform_3(%arg0: i32) -> (i32, i32, i32, i32) {
    %c0_i32 = arith.constant 0 : i32
    %c0_i32_0 = arith.constant 0 : i32
    %c0_i32_1 = arith.constant 0 : i32
    %c0_i32_2 = arith.constant 0 : i32
    return %arg0, %c0_i32, %c0_i32_0, %c0_i32_1 : i32, i32, i32, i32
  }
}

module attributes {stable_mosaic.version = 11 : i64} {
  func.func @_conv3x3_bias_tanh_kernel(%arg0: i32, %arg1: memref<1x4x4x128xf32, #tpu.memory_space<vmem>>, %arg2: memref<3x3x128x128xf32, #tpu.memory_space<vmem>>, %arg3: memref<1x128xf32, #tpu.memory_space<vmem>>, %arg4: memref<1x4x4x128xf32, #tpu.memory_space<vmem>>, %arg5: memref<1x6x6x128xf32, #tpu.memory_space<vmem>>) attributes {dimension_semantics = [#tpu.dimension_semantics<parallel>], iteration_bounds = array<i64: 2>, scalar_prefetch = 0 : i64, scratch_operands = 1 : i64, tpu.core_type = #tpu.core_type<tc>, window_params = [{transform_indices = @transform_0, window_bounds = array<i64: 1, 4, 4, 128>}, {pipeline_mode = #tpu.pipeline_mode<synchronous>, transform_indices = @transform_1, window_bounds = array<i64: 3, 3, 128, 128>}, {pipeline_mode = #tpu.pipeline_mode<synchronous>, transform_indices = @transform_2, window_bounds = array<i64: 1, 128>}, {transform_indices = @transform_3, window_bounds = array<i64: 1, 4, 4, 128>}]} {
    %cst = arith.constant 0.000000e+00 : f32
    %0 = vector.broadcast %cst : f32 to vector<1x6x6x128xf32>
    %c0 = arith.constant 0 : index
    %c0_0 = arith.constant 0 : index
    %c0_1 = arith.constant 0 : index
    %c0_2 = arith.constant 0 : index
    %1 = vector.load %arg5[%c0, %c0_0, %c0_1, %c0_2] : memref<1x6x6x128xf32, #tpu.memory_space<vmem>>, vector<1x6x6x128xf32>
    tpu.vector_store %arg5[%c0, %c0_0, %c0_1, %c0_2], %0 {strides = array<i32>} : memref<1x6x6x128xf32, #tpu.memory_space<vmem>>, vector<1x6x6x128xf32>,
    %c0_3 = arith.constant 0 : index
    %c0_4 = arith.constant 0 : index
    %c0_5 = arith.constant 0 : index
    %c0_6 = arith.constant 0 : index
    %2 = vector.load %arg1[%c0_3, %c0_4, %c0_5, %c0_6] : memref<1x4x4x128xf32, #tpu.memory_space<vmem>>, vector<1x4x4x128xf32>
    %c0_7 = arith.constant 0 : index
    %c1 = arith.constant 1 : index
    %c1_8 = arith.constant 1 : index
    %c0_9 = arith.constant 0 : index
    %3 = vector.load %arg5[%c0_7, %c1, %c1_8, %c0_9] : memref<1x6x6x128xf32, #tpu.memory_space<vmem>>, vector<1x4x4x128xf32>
    tpu.vector_store %arg5[%c0_7, %c1, %c1_8, %c0_9], %2 {strides = array<i32>} : memref<1x6x6x128xf32, #tpu.memory_space<vmem>>, vector<1x4x4x128xf32>,
    %c0_10 = arith.constant 0 : index
    %c0_11 = arith.constant 0 : index
    %4 = vector.load %arg3[%c0_10, %c0_11] : memref<1x128xf32, #tpu.memory_space<vmem>>, vector<1x128xf32>
    %cst_12 = arith.constant 0.000000e+00 : f32
    %5 = vector.broadcast %cst_12 : f32 to vector<4x128xf32>
    %c0_13 = arith.constant 0 : index
    %c0_14 = arith.constant 0 : index
    %c0_15 = arith.constant 0 : index
    %c0_16 = arith.constant 0 : index
    %6 = vector.load %arg5[%c0_13, %c0_14, %c0_15, %c0_16] : memref<1x6x6x128xf32, #tpu.memory_space<vmem>>, vector<1x1x4x128xf32>
    %7 = vector.shape_cast %6 : vector<1x1x4x128xf32> to vector<4x128xf32>
    %c0_17 = arith.constant 0 : index
    %c0_18 = arith.constant 0 : index
    %c0_19 = arith.constant 0 : index
    %c0_20 = arith.constant 0 : index
    %8 = vector.load %arg2[%c0_17, %c0_18, %c0_19, %c0_20] : memref<3x3x128x128xf32, #tpu.memory_space<vmem>>, vector<1x1x128x128xf32>
    %9 = vector.shape_cast %8 : vector<1x1x128x128xf32> to vector<128x128xf32>
    %cst_21 = arith.constant dense<0.000000e+00> : vector<4x128xf32>
    %10 = tpu.matmul %7, %9, %cst_21 {dimension_numbers = #tpu.dot_dimension_numbers<[1], [0], [0], [1], [0, 0, 1, 1], [], []>} : vector<4x128xf32>, vector<128x128xf32>, vector<4x128xf32> -> vector<4x128xf32>
    %11 = arith.addf %5, %10 : vector<4x128xf32>
    %c0_22 = arith.constant 0 : index
    %c0_23 = arith.constant 0 : index
    %c1_24 = arith.constant 1 : index
    %c0_25 = arith.constant 0 : index
    %12 = vector.load %arg5[%c0_22, %c0_23, %c1_24, %c0_25] : memref<1x6x6x128xf32, #tpu.memory_space<vmem>>, vector<1x1x4x128xf32>
    %13 = vector.shape_cast %12 : vector<1x1x4x128xf32> to vector<4x128xf32>
    %c0_26 = arith.constant 0 : index
    %c1_27 = arith.constant 1 : index
    %c0_28 = arith.constant 0 : index
    %c0_29 = arith.constant 0 : index
    %14 = vector.load %arg2[%c0_26, %c1_27, %c0_28, %c0_29] : memref<3x3x128x128xf32, #tpu.memory_space<vmem>>, vector<1x1x128x128xf32>
    %15 = vector.shape_cast %14 : vector<1x1x128x128xf32> to vector<128x128xf32>
    %cst_30 = arith.constant dense<0.000000e+00> : vector<4x128xf32>
    %16 = tpu.matmul %13, %15, %cst_30 {dimension_numbers = #tpu.dot_dimension_numbers<[1], [0], [0], [1], [0, 0, 1, 1], [], []>} : vector<4x128xf32>, vector<128x128xf32>, vector<4x128xf32> -> vector<4x128xf32>
    %17 = arith.addf %11, %16 : vector<4x128xf32>
    %c0_31 = arith.constant 0 : index
    %c0_32 = arith.constant 0 : index
    %c2 = arith.constant 2 : index
    %c0_33 = arith.constant 0 : index
    %18 = vector.load %arg5[%c0_31, %c0_32, %c2, %c0_33] : memref<1x6x6x128xf32, #tpu.memory_space<vmem>>, vector<1x1x4x128xf32>
    %19 = vector.shape_cast %18 : vector<1x1x4x128xf32> to vector<4x128xf32>
    %c0_34 = arith.constant 0 : index
    %c2_35 = arith.constant 2 : index
    %c0_36 = arith.constant 0 : index
    %c0_37 = arith.constant 0 : index
    %20 = vector.load %arg2[%c0_34, %c2_35, %c0_36, %c0_37] : memref<3x3x128x128xf32, #tpu.memory_space<vmem>>, vector<1x1x128x128xf32>
    %21 = vector.shape_cast %20 : vector<1x1x128x128xf32> to vector<128x128xf32>
    %cst_38 = arith.constant dense<0.000000e+00> : vector<4x128xf32>
    %22 = tpu.matmul %19, %21, %cst_38 {dimension_numbers = #tpu.dot_dimension_numbers<[1], [0], [0], [1], [0, 0, 1, 1], [], []>} : vector<4x128xf32>, vector<128x128xf32>, vector<4x128xf32> -> vector<4x128xf32>
    %23 = arith.addf %17, %22 : vector<4x128xf32>
    %c0_39 = arith.constant 0 : index
    %c1_40 = arith.constant 1 : index
    %c0_41 = arith.constant 0 : index
    %c0_42 = arith.constant 0 : index
    %24 = vector.load %arg5[%c0_39, %c1_40, %c0_41, %c0_42] : memref<1x6x6x128xf32, #tpu.memory_space<vmem>>, vector<1x1x4x128xf32>
    %25 = vector.shape_cast %24 : vector<1x1x4x128xf32> to vector<4x128xf32>
    %c1_43 = arith.constant 1 : index
    %c0_44 = arith.constant 0 : index
    %c0_45 = arith.constant 0 : index
    %c0_46 = arith.constant 0 : index
    %26 = vector.load %arg2[%c1_43, %c0_44, %c0_45, %c0_46] : memref<3x3x128x128xf32, #tpu.memory_space<vmem>>, vector<1x1x128x128xf32>
    %27 = vector.shape_cast %26 : vector<1x1x128x128xf32> to vector<128x128xf32>
    %cst_47 = arith.constant dense<0.000000e+00> : vector<4x128xf32>
    %28 = tpu.matmul %25, %27, %cst_47 {dimension_numbers = #tpu.dot_dimension_numbers<[1], [0], [0], [1], [0, 0, 1, 1], [], []>} : vector<4x128xf32>, vector<128x128xf32>, vector<4x128xf32> -> vector<4x128xf32>
    %29 = arith.addf %23, %28 : vector<4x128xf32>
    %c0_48 = arith.constant 0 : index
    %c1_49 = arith.constant 1 : index
    %c1_50 = arith.constant 1 : index
    %c0_51 = arith.constant 0 : index
    %30 = vector.load %arg5[%c0_48, %c1_49, %c1_50, %c0_51] : memref<1x6x6x128xf32, #tpu.memory_space<vmem>>, vector<1x1x4x128xf32>
    %31 = vector.shape_cast %30 : vector<1x1x4x128xf32> to vector<4x128xf32>
    %c1_52 = arith.constant 1 : index
    %c1_53 = arith.constant 1 : index
    %c0_54 = arith.constant 0 : index
    %c0_55 = arith.constant 0 : index
    %32 = vector.load %arg2[%c1_52, %c1_53, %c0_54, %c0_55] : memref<3x3x128x128xf32, #tpu.memory_space<vmem>>, vector<1x1x128x128xf32>
    %33 = vector.shape_cast %32 : vector<1x1x128x128xf32> to vector<128x128xf32>
    %cst_56 = arith.constant dense<0.000000e+00> : vector<4x128xf32>
    %34 = tpu.matmul %31, %33, %cst_56 {dimension_numbers = #tpu.dot_dimension_numbers<[1], [0], [0], [1], [0, 0, 1, 1], [], []>} : vector<4x128xf32>, vector<128x128xf32>, vector<4x128xf32> -> vector<4x128xf32>
    %35 = arith.addf %29, %34 : vector<4x128xf32>
    %c0_57 = arith.constant 0 : index
    %c1_58 = arith.constant 1 : index
    %c2_59 = arith.constant 2 : index
    %c0_60 = arith.constant 0 : index
    %36 = vector.load %arg5[%c0_57, %c1_58, %c2_59, %c0_60] : memref<1x6x6x128xf32, #tpu.memory_space<vmem>>, vector<1x1x4x128xf32>
    %37 = vector.shape_cast %36 : vector<1x1x4x128xf32> to vector<4x128xf32>
    %c1_61 = arith.constant 1 : index
    %c2_62 = arith.constant 2 : index
    %c0_63 = arith.constant 0 : index
    %c0_64 = arith.constant 0 : index
    %38 = vector.load %arg2[%c1_61, %c2_62, %c0_63, %c0_64] : memref<3x3x128x128xf32, #tpu.memory_space<vmem>>, vector<1x1x128x128xf32>
    %39 = vector.shape_cast %38 : vector<1x1x128x128xf32> to vector<128x128xf32>
    %cst_65 = arith.constant dense<0.000000e+00> : vector<4x128xf32>
    %40 = tpu.matmul %37, %39, %cst_65 {dimension_numbers = #tpu.dot_dimension_numbers<[1], [0], [0], [1], [0, 0, 1, 1], [], []>} : vector<4x128xf32>, vector<128x128xf32>, vector<4x128xf32> -> vector<4x128xf32>
    %41 = arith.addf %35, %40 : vector<4x128xf32>
    %c0_66 = arith.constant 0 : index
    %c2_67 = arith.constant 2 : index
    %c0_68 = arith.constant 0 : index
    %c0_69 = arith.constant 0 : index
    %42 = vector.load %arg5[%c0_66, %c2_67, %c0_68, %c0_69] : memref<1x6x6x128xf32, #tpu.memory_space<vmem>>, vector<1x1x4x128xf32>
    %43 = vector.shape_cast %42 : vector<1x1x4x128xf32> to vector<4x128xf32>
    %c2_70 = arith.constant 2 : index
    %c0_71 = arith.constant 0 : index
    %c0_72 = arith.constant 0 : index
    %c0_73 = arith.constant 0 : index
    %44 = vector.load %arg2[%c2_70, %c0_71, %c0_72, %c0_73] : memref<3x3x128x128xf32, #tpu.memory_space<vmem>>, vector<1x1x128x128xf32>
    %45 = vector.shape_cast %44 : vector<1x1x128x128xf32> to vector<128x128xf32>
    %cst_74 = arith.constant dense<0.000000e+00> : vector<4x128xf32>
    %46 = tpu.matmul %43, %45, %cst_74 {dimension_numbers = #tpu.dot_dimension_numbers<[1], [0], [0], [1], [0, 0, 1, 1], [], []>} : vector<4x128xf32>, vector<128x128xf32>, vector<4x128xf32> -> vector<4x128xf32>
    %47 = arith.addf %41, %46 : vector<4x128xf32>
    %c0_75 = arith.constant 0 : index
    %c2_76 = arith.constant 2 : index
    %c1_77 = arith.constant 1 : index
    %c0_78 = arith.constant 0 : index
    %48 = vector.load %arg5[%c0_75, %c2_76, %c1_77, %c0_78] : memref<1x6x6x128xf32, #tpu.memory_space<vmem>>, vector<1x1x4x128xf32>
    %49 = vector.shape_cast %48 : vector<1x1x4x128xf32> to vector<4x128xf32>
    %c2_79 = arith.constant 2 : index
    %c1_80 = arith.constant 1 : index
    %c0_81 = arith.constant 0 : index
    %c0_82 = arith.constant 0 : index
    %50 = vector.load %arg2[%c2_79, %c1_80, %c0_81, %c0_82] : memref<3x3x128x128xf32, #tpu.memory_space<vmem>>, vector<1x1x128x128xf32>
    %51 = vector.shape_cast %50 : vector<1x1x128x128xf32> to vector<128x128xf32>
    %cst_83 = arith.constant dense<0.000000e+00> : vector<4x128xf32>
    %52 = tpu.matmul %49, %51, %cst_83 {dimension_numbers = #tpu.dot_dimension_numbers<[1], [0], [0], [1], [0, 0, 1, 1], [], []>} : vector<4x128xf32>, vector<128x128xf32>, vector<4x128xf32> -> vector<4x128xf32>
    %53 = arith.addf %47, %52 : vector<4x128xf32>
    %c0_84 = arith.constant 0 : index
    %c2_85 = arith.constant 2 : index
    %c2_86 = arith.constant 2 : index
    %c0_87 = arith.constant 0 : index
    %54 = vector.load %arg5[%c0_84, %c2_85, %c2_86, %c0_87] : memref<1x6x6x128xf32, #tpu.memory_space<vmem>>, vector<1x1x4x128xf32>
    %55 = vector.shape_cast %54 : vector<1x1x4x128xf32> to vector<4x128xf32>
    %c2_88 = arith.constant 2 : index
    %c2_89 = arith.constant 2 : index
    %c0_90 = arith.constant 0 : index
    %c0_91 = arith.constant 0 : index
    %56 = vector.load %arg2[%c2_88, %c2_89, %c0_90, %c0_91] : memref<3x3x128x128xf32, #tpu.memory_space<vmem>>, vector<1x1x128x128xf32>
    %57 = vector.shape_cast %56 : vector<1x1x128x128xf32> to vector<128x128xf32>
    %cst_92 = arith.constant dense<0.000000e+00> : vector<4x128xf32>
    %58 = tpu.matmul %55, %57, %cst_92 {dimension_numbers = #tpu.dot_dimension_numbers<[1], [0], [0], [1], [0, 0, 1, 1], [], []>} : vector<4x128xf32>, vector<128x128xf32>, vector<4x128xf32> -> vector<4x128xf32>
    %59 = arith.addf %53, %58 : vector<4x128xf32>
    %60 = vector.broadcast %4 : vector<1x128xf32> to vector<4x128xf32>
    %61 = arith.addf %59, %60 : vector<4x128xf32>
    %62 = math.tanh %61 : vector<4x128xf32>
    %c0_93 = arith.constant 0 : index
    %c0_94 = arith.constant 0 : index
    %c0_95 = arith.constant 0 : index
    %c0_96 = arith.constant 0 : index
    %63 = vector.load %arg4[%c0_93, %c0_94, %c0_95, %c0_96] : memref<1x4x4x128xf32, #tpu.memory_space<vmem>>, vector<1x1x4x128xf32>
    %64 = vector.shape_cast %63 : vector<1x1x4x128xf32> to vector<4x128xf32>
    %65 = vector.shape_cast %62 : vector<4x128xf32> to vector<1x1x4x128xf32>
    tpu.vector_store %arg4[%c0_93, %c0_94, %c0_95, %c0_96], %65 {strides = array<i32>} : memref<1x4x4x128xf32, #tpu.memory_space<vmem>>, vector<1x1x4x128xf32>,
    %cst_97 = arith.constant 0.000000e+00 : f32
    %66 = vector.broadcast %cst_97 : f32 to vector<4x128xf32>
    %c0_98 = arith.constant 0 : index
    %c1_99 = arith.constant 1 : index
    %c0_100 = arith.constant 0 : index
    %c0_101 = arith.constant 0 : index
    %67 = vector.load %arg5[%c0_98, %c1_99, %c0_100, %c0_101] : memref<1x6x6x128xf32, #tpu.memory_space<vmem>>, vector<1x1x4x128xf32>
    %68 = vector.shape_cast %67 : vector<1x1x4x128xf32> to vector<4x128xf32>
    %c0_102 = arith.constant 0 : index
    %c0_103 = arith.constant 0 : index
    %c0_104 = arith.constant 0 : index
    %c0_105 = arith.constant 0 : index
    %69 = vector.load %arg2[%c0_102, %c0_103, %c0_104, %c0_105] : memref<3x3x128x128xf32, #tpu.memory_space<vmem>>, vector<1x1x128x128xf32>
    %70 = vector.shape_cast %69 : vector<1x1x128x128xf32> to vector<128x128xf32>
    %cst_106 = arith.constant dense<0.000000e+00> : vector<4x128xf32>
    %71 = tpu.matmul %68, %70, %cst_106 {dimension_numbers = #tpu.dot_dimension_numbers<[1], [0], [0], [1], [0, 0, 1, 1], [], []>} : vector<4x128xf32>, vector<128x128xf32>, vector<4x128xf32> -> vector<4x128xf32>
    %72 = arith.addf %66, %71 : vector<4x128xf32>
    %c0_107 = arith.constant 0 : index
    %c1_108 = arith.constant 1 : index
    %c1_109 = arith.constant 1 : index
    %c0_110 = arith.constant 0 : index
    %73 = vector.load %arg5[%c0_107, %c1_108, %c1_109, %c0_110] : memref<1x6x6x128xf32, #tpu.memory_space<vmem>>, vector<1x1x4x128xf32>
    %74 = vector.shape_cast %73 : vector<1x1x4x128xf32> to vector<4x128xf32>
    %c0_111 = arith.constant 0 : index
    %c1_112 = arith.constant 1 : index
    %c0_113 = arith.constant 0 : index
    %c0_114 = arith.constant 0 : index
    %75 = vector.load %arg2[%c0_111, %c1_112, %c0_113, %c0_114] : memref<3x3x128x128xf32, #tpu.memory_space<vmem>>, vector<1x1x128x128xf32>
    %76 = vector.shape_cast %75 : vector<1x1x128x128xf32> to vector<128x128xf32>
    %cst_115 = arith.constant dense<0.000000e+00> : vector<4x128xf32>
    %77 = tpu.matmul %74, %76, %cst_115 {dimension_numbers = #tpu.dot_dimension_numbers<[1], [0], [0], [1], [0, 0, 1, 1], [], []>} : vector<4x128xf32>, vector<128x128xf32>, vector<4x128xf32> -> vector<4x128xf32>
    %78 = arith.addf %72, %77 : vector<4x128xf32>
    %c0_116 = arith.constant 0 : index
    %c1_117 = arith.constant 1 : index
    %c2_118 = arith.constant 2 : index
    %c0_119 = arith.constant 0 : index
    %79 = vector.load %arg5[%c0_116, %c1_117, %c2_118, %c0_119] : memref<1x6x6x128xf32, #tpu.memory_space<vmem>>, vector<1x1x4x128xf32>
    %80 = vector.shape_cast %79 : vector<1x1x4x128xf32> to vector<4x128xf32>
    %c0_120 = arith.constant 0 : index
    %c2_121 = arith.constant 2 : index
    %c0_122 = arith.constant 0 : index
    %c0_123 = arith.constant 0 : index
    %81 = vector.load %arg2[%c0_120, %c2_121, %c0_122, %c0_123] : memref<3x3x128x128xf32, #tpu.memory_space<vmem>>, vector<1x1x128x128xf32>
    %82 = vector.shape_cast %81 : vector<1x1x128x128xf32> to vector<128x128xf32>
    %cst_124 = arith.constant dense<0.000000e+00> : vector<4x128xf32>
    %83 = tpu.matmul %80, %82, %cst_124 {dimension_numbers = #tpu.dot_dimension_numbers<[1], [0], [0], [1], [0, 0, 1, 1], [], []>} : vector<4x128xf32>, vector<128x128xf32>, vector<4x128xf32> -> vector<4x128xf32>
    %84 = arith.addf %78, %83 : vector<4x128xf32>
    %c0_125 = arith.constant 0 : index
    %c2_126 = arith.constant 2 : index
    %c0_127 = arith.constant 0 : index
    %c0_128 = arith.constant 0 : index
    %85 = vector.load %arg5[%c0_125, %c2_126, %c0_127, %c0_128] : memref<1x6x6x128xf32, #tpu.memory_space<vmem>>, vector<1x1x4x128xf32>
    %86 = vector.shape_cast %85 : vector<1x1x4x128xf32> to vector<4x128xf32>
    %c1_129 = arith.constant 1 : index
    %c0_130 = arith.constant 0 : index
    %c0_131 = arith.constant 0 : index
    %c0_132 = arith.constant 0 : index
    %87 = vector.load %arg2[%c1_129, %c0_130, %c0_131, %c0_132] : memref<3x3x128x128xf32, #tpu.memory_space<vmem>>, vector<1x1x128x128xf32>
    %88 = vector.shape_cast %87 : vector<1x1x128x128xf32> to vector<128x128xf32>
    %cst_133 = arith.constant dense<0.000000e+00> : vector<4x128xf32>
    %89 = tpu.matmul %86, %88, %cst_133 {dimension_numbers = #tpu.dot_dimension_numbers<[1], [0], [0], [1], [0, 0, 1, 1], [], []>} : vector<4x128xf32>, vector<128x128xf32>, vector<4x128xf32> -> vector<4x128xf32>
    %90 = arith.addf %84, %89 : vector<4x128xf32>
    %c0_134 = arith.constant 0 : index
    %c2_135 = arith.constant 2 : index
    %c1_136 = arith.constant 1 : index
    %c0_137 = arith.constant 0 : index
    %91 = vector.load %arg5[%c0_134, %c2_135, %c1_136, %c0_137] : memref<1x6x6x128xf32, #tpu.memory_space<vmem>>, vector<1x1x4x128xf32>
    %92 = vector.shape_cast %91 : vector<1x1x4x128xf32> to vector<4x128xf32>
    %c1_138 = arith.constant 1 : index
    %c1_139 = arith.constant 1 : index
    %c0_140 = arith.constant 0 : index
    %c0_141 = arith.constant 0 : index
    %93 = vector.load %arg2[%c1_138, %c1_139, %c0_140, %c0_141] : memref<3x3x128x128xf32, #tpu.memory_space<vmem>>, vector<1x1x128x128xf32>
    %94 = vector.shape_cast %93 : vector<1x1x128x128xf32> to vector<128x128xf32>
    %cst_142 = arith.constant dense<0.000000e+00> : vector<4x128xf32>
    %95 = tpu.matmul %92, %94, %cst_142 {dimension_numbers = #tpu.dot_dimension_numbers<[1], [0], [0], [1], [0, 0, 1, 1], [], []>} : vector<4x128xf32>, vector<128x128xf32>, vector<4x128xf32> -> vector<4x128xf32>
    %96 = arith.addf %90, %95 : vector<4x128xf32>
    %c0_143 = arith.constant 0 : index
    %c2_144 = arith.constant 2 : index
    %c2_145 = arith.constant 2 : index
    %c0_146 = arith.constant 0 : index
    %97 = vector.load %arg5[%c0_143, %c2_144, %c2_145, %c0_146] : memref<1x6x6x128xf32, #tpu.memory_space<vmem>>, vector<1x1x4x128xf32>
    %98 = vector.shape_cast %97 : vector<1x1x4x128xf32> to vector<4x128xf32>
    %c1_147 = arith.constant 1 : index
    %c2_148 = arith.constant 2 : index
    %c0_149 = arith.constant 0 : index
    %c0_150 = arith.constant 0 : index
    %99 = vector.load %arg2[%c1_147, %c2_148, %c0_149, %c0_150] : memref<3x3x128x128xf32, #tpu.memory_space<vmem>>, vector<1x1x128x128xf32>
    %100 = vector.shape_cast %99 : vector<1x1x128x128xf32> to vector<128x128xf32>
    %cst_151 = arith.constant dense<0.000000e+00> : vector<4x128xf32>
    %101 = tpu.matmul %98, %100, %cst_151 {dimension_numbers = #tpu.dot_dimension_numbers<[1], [0], [0], [1], [0, 0, 1, 1], [], []>} : vector<4x128xf32>, vector<128x128xf32>, vector<4x128xf32> -> vector<4x128xf32>
    %102 = arith.addf %96, %101 : vector<4x128xf32>
    %c0_152 = arith.constant 0 : index
    %c3 = arith.constant 3 : index
    %c0_153 = arith.constant 0 : index
    %c0_154 = arith.constant 0 : index
    %103 = vector.load %arg5[%c0_152, %c3, %c0_153, %c0_154] : memref<1x6x6x128xf32, #tpu.memory_space<vmem>>, vector<1x1x4x128xf32>
    %104 = vector.shape_cast %103 : vector<1x1x4x128xf32> to vector<4x128xf32>
    %c2_155 = arith.constant 2 : index
    %c0_156 = arith.constant 0 : index
    %c0_157 = arith.constant 0 : index
    %c0_158 = arith.constant 0 : index
    %105 = vector.load %arg2[%c2_155, %c0_156, %c0_157, %c0_158] : memref<3x3x128x128xf32, #tpu.memory_space<vmem>>, vector<1x1x128x128xf32>
    %106 = vector.shape_cast %105 : vector<1x1x128x128xf32> to vector<128x128xf32>
    %cst_159 = arith.constant dense<0.000000e+00> : vector<4x128xf32>
    %107 = tpu.matmul %104, %106, %cst_159 {dimension_numbers = #tpu.dot_dimension_numbers<[1], [0], [0], [1], [0, 0, 1, 1], [], []>} : vector<4x128xf32>, vector<128x128xf32>, vector<4x128xf32> -> vector<4x128xf32>
    %108 = arith.addf %102, %107 : vector<4x128xf32>
    %c0_160 = arith.constant 0 : index
    %c3_161 = arith.constant 3 : index
    %c1_162 = arith.constant 1 : index
    %c0_163 = arith.constant 0 : index
    %109 = vector.load %arg5[%c0_160, %c3_161, %c1_162, %c0_163] : memref<1x6x6x128xf32, #tpu.memory_space<vmem>>, vector<1x1x4x128xf32>
    %110 = vector.shape_cast %109 : vector<1x1x4x128xf32> to vector<4x128xf32>
    %c2_164 = arith.constant 2 : index
    %c1_165 = arith.constant 1 : index
    %c0_166 = arith.constant 0 : index
    %c0_167 = arith.constant 0 : index
    %111 = vector.load %arg2[%c2_164, %c1_165, %c0_166, %c0_167] : memref<3x3x128x128xf32, #tpu.memory_space<vmem>>, vector<1x1x128x128xf32>
    %112 = vector.shape_cast %111 : vector<1x1x128x128xf32> to vector<128x128xf32>
    %cst_168 = arith.constant dense<0.000000e+00> : vector<4x128xf32>
    %113 = tpu.matmul %110, %112, %cst_168 {dimension_numbers = #tpu.dot_dimension_numbers<[1], [0], [0], [1], [0, 0, 1, 1], [], []>} : vector<4x128xf32>, vector<128x128xf32>, vector<4x128xf32> -> vector<4x128xf32>
    %114 = arith.addf %108, %113 : vector<4x128xf32>
    %c0_169 = arith.constant 0 : index
    %c3_170 = arith.constant 3 : index
    %c2_171 = arith.constant 2 : index
    %c0_172 = arith.constant 0 : index
    %115 = vector.load %arg5[%c0_169, %c3_170, %c2_171, %c0_172] : memref<1x6x6x128xf32, #tpu.memory_space<vmem>>, vector<1x1x4x128xf32>
    %116 = vector.shape_cast %115 : vector<1x1x4x128xf32> to vector<4x128xf32>
    %c2_173 = arith.constant 2 : index
    %c2_174 = arith.constant 2 : index
    %c0_175 = arith.constant 0 : index
    %c0_176 = arith.constant 0 : index
    %117 = vector.load %arg2[%c2_173, %c2_174, %c0_175, %c0_176] : memref<3x3x128x128xf32, #tpu.memory_space<vmem>>, vector<1x1x128x128xf32>
    %118 = vector.shape_cast %117 : vector<1x1x128x128xf32> to vector<128x128xf32>
    %cst_177 = arith.constant dense<0.000000e+00> : vector<4x128xf32>
    %119 = tpu.matmul %116, %118, %cst_177 {dimension_numbers = #tpu.dot_dimension_numbers<[1], [0], [0], [1], [0, 0, 1, 1], [], []>} : vector<4x128xf32>, vector<128x128xf32>, vector<4x128xf32> -> vector<4x128xf32>
    %120 = arith.addf %114, %119 : vector<4x128xf32>
    %121 = vector.broadcast %4 : vector<1x128xf32> to vector<4x128xf32>
    %122 = arith.addf %120, %121 : vector<4x128xf32>
    %123 = math.tanh %122 : vector<4x128xf32>
    %c0_178 = arith.constant 0 : index
    %c1_179 = arith.constant 1 : index
    %c0_180 = arith.constant 0 : index
    %c0_181 = arith.constant 0 : index
    %124 = vector.load %arg4[%c0_178, %c1_179, %c0_180, %c0_181] : memref<1x4x4x128xf32, #tpu.memory_space<vmem>>, vector<1x1x4x128xf32>
    %125 = vector.shape_cast %124 : vector<1x1x4x128xf32> to vector<4x128xf32>
    %126 = vector.shape_cast %123 : vector<4x128xf32> to vector<1x1x4x128xf32>
    tpu.vector_store %arg4[%c0_178, %c1_179, %c0_180, %c0_181], %126 {strides = array<i32>} : memref<1x4x4x128xf32, #tpu.memory_space<vmem>>, vector<1x1x4x128xf32>,
    %cst_182 = arith.constant 0.000000e+00 : f32
    %127 = vector.broadcast %cst_182 : f32 to vector<4x128xf32>
    %c0_183 = arith.constant 0 : index
    %c2_184 = arith.constant 2 : index
    %c0_185 = arith.constant 0 : index
    %c0_186 = arith.constant 0 : index
    %128 = vector.load %arg5[%c0_183, %c2_184, %c0_185, %c0_186] : memref<1x6x6x128xf32, #tpu.memory_space<vmem>>, vector<1x1x4x128xf32>
    %129 = vector.shape_cast %128 : vector<1x1x4x128xf32> to vector<4x128xf32>
    %c0_187 = arith.constant 0 : index
    %c0_188 = arith.constant 0 : index
    %c0_189 = arith.constant 0 : index
    %c0_190 = arith.constant 0 : index
    %130 = vector.load %arg2[%c0_187, %c0_188, %c0_189, %c0_190] : memref<3x3x128x128xf32, #tpu.memory_space<vmem>>, vector<1x1x128x128xf32>
    %131 = vector.shape_cast %130 : vector<1x1x128x128xf32> to vector<128x128xf32>
    %cst_191 = arith.constant dense<0.000000e+00> : vector<4x128xf32>
    %132 = tpu.matmul %129, %131, %cst_191 {dimension_numbers = #tpu.dot_dimension_numbers<[1], [0], [0], [1], [0, 0, 1, 1], [], []>} : vector<4x128xf32>, vector<128x128xf32>, vector<4x128xf32> -> vector<4x128xf32>
    %133 = arith.addf %127, %132 : vector<4x128xf32>
    %c0_192 = arith.constant 0 : index
    %c2_193 = arith.constant 2 : index
    %c1_194 = arith.constant 1 : index
    %c0_195 = arith.constant 0 : index
    %134 = vector.load %arg5[%c0_192, %c2_193, %c1_194, %c0_195] : memref<1x6x6x128xf32, #tpu.memory_space<vmem>>, vector<1x1x4x128xf32>
    %135 = vector.shape_cast %134 : vector<1x1x4x128xf32> to vector<4x128xf32>
    %c0_196 = arith.constant 0 : index
    %c1_197 = arith.constant 1 : index
    %c0_198 = arith.constant 0 : index
    %c0_199 = arith.constant 0 : index
    %136 = vector.load %arg2[%c0_196, %c1_197, %c0_198, %c0_199] : memref<3x3x128x128xf32, #tpu.memory_space<vmem>>, vector<1x1x128x128xf32>
    %137 = vector.shape_cast %136 : vector<1x1x128x128xf32> to vector<128x128xf32>
    %cst_200 = arith.constant dense<0.000000e+00> : vector<4x128xf32>
    %138 = tpu.matmul %135, %137, %cst_200 {dimension_numbers = #tpu.dot_dimension_numbers<[1], [0], [0], [1], [0, 0, 1, 1], [], []>} : vector<4x128xf32>, vector<128x128xf32>, vector<4x128xf32> -> vector<4x128xf32>
    %139 = arith.addf %133, %138 : vector<4x128xf32>
    %c0_201 = arith.constant 0 : index
    %c2_202 = arith.constant 2 : index
    %c2_203 = arith.constant 2 : index
    %c0_204 = arith.constant 0 : index
    %140 = vector.load %arg5[%c0_201, %c2_202, %c2_203, %c0_204] : memref<1x6x6x128xf32, #tpu.memory_space<vmem>>, vector<1x1x4x128xf32>
    %141 = vector.shape_cast %140 : vector<1x1x4x128xf32> to vector<4x128xf32>
    %c0_205 = arith.constant 0 : index
    %c2_206 = arith.constant 2 : index
    %c0_207 = arith.constant 0 : index
    %c0_208 = arith.constant 0 : index
    %142 = vector.load %arg2[%c0_205, %c2_206, %c0_207, %c0_208] : memref<3x3x128x128xf32, #tpu.memory_space<vmem>>, vector<1x1x128x128xf32>
    %143 = vector.shape_cast %142 : vector<1x1x128x128xf32> to vector<128x128xf32>
    %cst_209 = arith.constant dense<0.000000e+00> : vector<4x128xf32>
    %144 = tpu.matmul %141, %143, %cst_209 {dimension_numbers = #tpu.dot_dimension_numbers<[1], [0], [0], [1], [0, 0, 1, 1], [], []>} : vector<4x128xf32>, vector<128x128xf32>, vector<4x128xf32> -> vector<4x128xf32>
    %145 = arith.addf %139, %144 : vector<4x128xf32>
    %c0_210 = arith.constant 0 : index
    %c3_211 = arith.constant 3 : index
    %c0_212 = arith.constant 0 : index
    %c0_213 = arith.constant 0 : index
    %146 = vector.load %arg5[%c0_210, %c3_211, %c0_212, %c0_213] : memref<1x6x6x128xf32, #tpu.memory_space<vmem>>, vector<1x1x4x128xf32>
    %147 = vector.shape_cast %146 : vector<1x1x4x128xf32> to vector<4x128xf32>
    %c1_214 = arith.constant 1 : index
    %c0_215 = arith.constant 0 : index
    %c0_216 = arith.constant 0 : index
    %c0_217 = arith.constant 0 : index
    %148 = vector.load %arg2[%c1_214, %c0_215, %c0_216, %c0_217] : memref<3x3x128x128xf32, #tpu.memory_space<vmem>>, vector<1x1x128x128xf32>
    %149 = vector.shape_cast %148 : vector<1x1x128x128xf32> to vector<128x128xf32>
    %cst_218 = arith.constant dense<0.000000e+00> : vector<4x128xf32>
    %150 = tpu.matmul %147, %149, %cst_218 {dimension_numbers = #tpu.dot_dimension_numbers<[1], [0], [0], [1], [0, 0, 1, 1], [], []>} : vector<4x128xf32>, vector<128x128xf32>, vector<4x128xf32> -> vector<4x128xf32>
    %151 = arith.addf %145, %150 : vector<4x128xf32>
    %c0_219 = arith.constant 0 : index
    %c3_220 = arith.constant 3 : index
    %c1_221 = arith.constant 1 : index
    %c0_222 = arith.constant 0 : index
    %152 = vector.load %arg5[%c0_219, %c3_220, %c1_221, %c0_222] : memref<1x6x6x128xf32, #tpu.memory_space<vmem>>, vector<1x1x4x128xf32>
    %153 = vector.shape_cast %152 : vector<1x1x4x128xf32> to vector<4x128xf32>
    %c1_223 = arith.constant 1 : index
    %c1_224 = arith.constant 1 : index
    %c0_225 = arith.constant 0 : index
    %c0_226 = arith.constant 0 : index
    %154 = vector.load %arg2[%c1_223, %c1_224, %c0_225, %c0_226] : memref<3x3x128x128xf32, #tpu.memory_space<vmem>>, vector<1x1x128x128xf32>
    %155 = vector.shape_cast %154 : vector<1x1x128x128xf32> to vector<128x128xf32>
    %cst_227 = arith.constant dense<0.000000e+00> : vector<4x128xf32>
    %156 = tpu.matmul %153, %155, %cst_227 {dimension_numbers = #tpu.dot_dimension_numbers<[1], [0], [0], [1], [0, 0, 1, 1], [], []>} : vector<4x128xf32>, vector<128x128xf32>, vector<4x128xf32> -> vector<4x128xf32>
    %157 = arith.addf %151, %156 : vector<4x128xf32>
    %c0_228 = arith.constant 0 : index
    %c3_229 = arith.constant 3 : index
    %c2_230 = arith.constant 2 : index
    %c0_231 = arith.constant 0 : index
    %158 = vector.load %arg5[%c0_228, %c3_229, %c2_230, %c0_231] : memref<1x6x6x128xf32, #tpu.memory_space<vmem>>, vector<1x1x4x128xf32>
    %159 = vector.shape_cast %158 : vector<1x1x4x128xf32> to vector<4x128xf32>
    %c1_232 = arith.constant 1 : index
    %c2_233 = arith.constant 2 : index
    %c0_234 = arith.constant 0 : index
    %c0_235 = arith.constant 0 : index
    %160 = vector.load %arg2[%c1_232, %c2_233, %c0_234, %c0_235] : memref<3x3x128x128xf32, #tpu.memory_space<vmem>>, vector<1x1x128x128xf32>
    %161 = vector.shape_cast %160 : vector<1x1x128x128xf32> to vector<128x128xf32>
    %cst_236 = arith.constant dense<0.000000e+00> : vector<4x128xf32>
    %162 = tpu.matmul %159, %161, %cst_236 {dimension_numbers = #tpu.dot_dimension_numbers<[1], [0], [0], [1], [0, 0, 1, 1], [], []>} : vector<4x128xf32>, vector<128x128xf32>, vector<4x128xf32> -> vector<4x128xf32>
    %163 = arith.addf %157, %162 : vector<4x128xf32>
    %c0_237 = arith.constant 0 : index
    %c4 = arith.constant 4 : index
    %c0_238 = arith.constant 0 : index
    %c0_239 = arith.constant 0 : index
    %164 = vector.load %arg5[%c0_237, %c4, %c0_238, %c0_239] : memref<1x6x6x128xf32, #tpu.memory_space<vmem>>, vector<1x1x4x128xf32>
    %165 = vector.shape_cast %164 : vector<1x1x4x128xf32> to vector<4x128xf32>
    %c2_240 = arith.constant 2 : index
    %c0_241 = arith.constant 0 : index
    %c0_242 = arith.constant 0 : index
    %c0_243 = arith.constant 0 : index
    %166 = vector.load %arg2[%c2_240, %c0_241, %c0_242, %c0_243] : memref<3x3x128x128xf32, #tpu.memory_space<vmem>>, vector<1x1x128x128xf32>
    %167 = vector.shape_cast %166 : vector<1x1x128x128xf32> to vector<128x128xf32>
    %cst_244 = arith.constant dense<0.000000e+00> : vector<4x128xf32>
    %168 = tpu.matmul %165, %167, %cst_244 {dimension_numbers = #tpu.dot_dimension_numbers<[1], [0], [0], [1], [0, 0, 1, 1], [], []>} : vector<4x128xf32>, vector<128x128xf32>, vector<4x128xf32> -> vector<4x128xf32>
    %169 = arith.addf %163, %168 : vector<4x128xf32>
    %c0_245 = arith.constant 0 : index
    %c4_246 = arith.constant 4 : index
    %c1_247 = arith.constant 1 : index
    %c0_248 = arith.constant 0 : index
    %170 = vector.load %arg5[%c0_245, %c4_246, %c1_247, %c0_248] : memref<1x6x6x128xf32, #tpu.memory_space<vmem>>, vector<1x1x4x128xf32>
    %171 = vector.shape_cast %170 : vector<1x1x4x128xf32> to vector<4x128xf32>
    %c2_249 = arith.constant 2 : index
    %c1_250 = arith.constant 1 : index
    %c0_251 = arith.constant 0 : index
    %c0_252 = arith.constant 0 : index
    %172 = vector.load %arg2[%c2_249, %c1_250, %c0_251, %c0_252] : memref<3x3x128x128xf32, #tpu.memory_space<vmem>>, vector<1x1x128x128xf32>
    %173 = vector.shape_cast %172 : vector<1x1x128x128xf32> to vector<128x128xf32>
    %cst_253 = arith.constant dense<0.000000e+00> : vector<4x128xf32>
    %174 = tpu.matmul %171, %173, %cst_253 {dimension_numbers = #tpu.dot_dimension_numbers<[1], [0], [0], [1], [0, 0, 1, 1], [], []>} : vector<4x128xf32>, vector<128x128xf32>, vector<4x128xf32> -> vector<4x128xf32>
    %175 = arith.addf %169, %174 : vector<4x128xf32>
    %c0_254 = arith.constant 0 : index
    %c4_255 = arith.constant 4 : index
    %c2_256 = arith.constant 2 : index
    %c0_257 = arith.constant 0 : index
    %176 = vector.load %arg5[%c0_254, %c4_255, %c2_256, %c0_257] : memref<1x6x6x128xf32, #tpu.memory_space<vmem>>, vector<1x1x4x128xf32>
    %177 = vector.shape_cast %176 : vector<1x1x4x128xf32> to vector<4x128xf32>
    %c2_258 = arith.constant 2 : index
    %c2_259 = arith.constant 2 : index
    %c0_260 = arith.constant 0 : index
    %c0_261 = arith.constant 0 : index
    %178 = vector.load %arg2[%c2_258, %c2_259, %c0_260, %c0_261] : memref<3x3x128x128xf32, #tpu.memory_space<vmem>>, vector<1x1x128x128xf32>
    %179 = vector.shape_cast %178 : vector<1x1x128x128xf32> to vector<128x128xf32>
    %cst_262 = arith.constant dense<0.000000e+00> : vector<4x128xf32>
    %180 = tpu.matmul %177, %179, %cst_262 {dimension_numbers = #tpu.dot_dimension_numbers<[1], [0], [0], [1], [0, 0, 1, 1], [], []>} : vector<4x128xf32>, vector<128x128xf32>, vector<4x128xf32> -> vector<4x128xf32>
    %181 = arith.addf %175, %180 : vector<4x128xf32>
    %182 = vector.broadcast %4 : vector<1x128xf32> to vector<4x128xf32>
    %183 = arith.addf %181, %182 : vector<4x128xf32>
    %184 = math.tanh %183 : vector<4x128xf32>
    %c0_263 = arith.constant 0 : index
    %c2_264 = arith.constant 2 : index
    %c0_265 = arith.constant 0 : index
    %c0_266 = arith.constant 0 : index
    %185 = vector.load %arg4[%c0_263, %c2_264, %c0_265, %c0_266] : memref<1x4x4x128xf32, #tpu.memory_space<vmem>>, vector<1x1x4x128xf32>
    %186 = vector.shape_cast %185 : vector<1x1x4x128xf32> to vector<4x128xf32>
    %187 = vector.shape_cast %184 : vector<4x128xf32> to vector<1x1x4x128xf32>
    tpu.vector_store %arg4[%c0_263, %c2_264, %c0_265, %c0_266], %187 {strides = array<i32>} : memref<1x4x4x128xf32, #tpu.memory_space<vmem>>, vector<1x1x4x128xf32>,
    %cst_267 = arith.constant 0.000000e+00 : f32
    %188 = vector.broadcast %cst_267 : f32 to vector<4x128xf32>
    %c0_268 = arith.constant 0 : index
    %c3_269 = arith.constant 3 : index
    %c0_270 = arith.constant 0 : index
    %c0_271 = arith.constant 0 : index
    %189 = vector.load %arg5[%c0_268, %c3_269, %c0_270, %c0_271] : memref<1x6x6x128xf32, #tpu.memory_space<vmem>>, vector<1x1x4x128xf32>
    %190 = vector.shape_cast %189 : vector<1x1x4x128xf32> to vector<4x128xf32>
    %c0_272 = arith.constant 0 : index
    %c0_273 = arith.constant 0 : index
    %c0_274 = arith.constant 0 : index
    %c0_275 = arith.constant 0 : index
    %191 = vector.load %arg2[%c0_272, %c0_273, %c0_274, %c0_275] : memref<3x3x128x128xf32, #tpu.memory_space<vmem>>, vector<1x1x128x128xf32>
    %192 = vector.shape_cast %191 : vector<1x1x128x128xf32> to vector<128x128xf32>
    %cst_276 = arith.constant dense<0.000000e+00> : vector<4x128xf32>
    %193 = tpu.matmul %190, %192, %cst_276 {dimension_numbers = #tpu.dot_dimension_numbers<[1], [0], [0], [1], [0, 0, 1, 1], [], []>} : vector<4x128xf32>, vector<128x128xf32>, vector<4x128xf32> -> vector<4x128xf32>
    %194 = arith.addf %188, %193 : vector<4x128xf32>
    %c0_277 = arith.constant 0 : index
    %c3_278 = arith.constant 3 : index
    %c1_279 = arith.constant 1 : index
    %c0_280 = arith.constant 0 : index
    %195 = vector.load %arg5[%c0_277, %c3_278, %c1_279, %c0_280] : memref<1x6x6x128xf32, #tpu.memory_space<vmem>>, vector<1x1x4x128xf32>
    %196 = vector.shape_cast %195 : vector<1x1x4x128xf32> to vector<4x128xf32>
    %c0_281 = arith.constant 0 : index
    %c1_282 = arith.constant 1 : index
    %c0_283 = arith.constant 0 : index
    %c0_284 = arith.constant 0 : index
    %197 = vector.load %arg2[%c0_281, %c1_282, %c0_283, %c0_284] : memref<3x3x128x128xf32, #tpu.memory_space<vmem>>, vector<1x1x128x128xf32>
    %198 = vector.shape_cast %197 : vector<1x1x128x128xf32> to vector<128x128xf32>
    %cst_285 = arith.constant dense<0.000000e+00> : vector<4x128xf32>
    %199 = tpu.matmul %196, %198, %cst_285 {dimension_numbers = #tpu.dot_dimension_numbers<[1], [0], [0], [1], [0, 0, 1, 1], [], []>} : vector<4x128xf32>, vector<128x128xf32>, vector<4x128xf32> -> vector<4x128xf32>
    %200 = arith.addf %194, %199 : vector<4x128xf32>
    %c0_286 = arith.constant 0 : index
    %c3_287 = arith.constant 3 : index
    %c2_288 = arith.constant 2 : index
    %c0_289 = arith.constant 0 : index
    %201 = vector.load %arg5[%c0_286, %c3_287, %c2_288, %c0_289] : memref<1x6x6x128xf32, #tpu.memory_space<vmem>>, vector<1x1x4x128xf32>
    %202 = vector.shape_cast %201 : vector<1x1x4x128xf32> to vector<4x128xf32>
    %c0_290 = arith.constant 0 : index
    %c2_291 = arith.constant 2 : index
    %c0_292 = arith.constant 0 : index
    %c0_293 = arith.constant 0 : index
    %203 = vector.load %arg2[%c0_290, %c2_291, %c0_292, %c0_293] : memref<3x3x128x128xf32, #tpu.memory_space<vmem>>, vector<1x1x128x128xf32>
    %204 = vector.shape_cast %203 : vector<1x1x128x128xf32> to vector<128x128xf32>
    %cst_294 = arith.constant dense<0.000000e+00> : vector<4x128xf32>
    %205 = tpu.matmul %202, %204, %cst_294 {dimension_numbers = #tpu.dot_dimension_numbers<[1], [0], [0], [1], [0, 0, 1, 1], [], []>} : vector<4x128xf32>, vector<128x128xf32>, vector<4x128xf32> -> vector<4x128xf32>
    %206 = arith.addf %200, %205 : vector<4x128xf32>
    %c0_295 = arith.constant 0 : index
    %c4_296 = arith.constant 4 : index
    %c0_297 = arith.constant 0 : index
    %c0_298 = arith.constant 0 : index
    %207 = vector.load %arg5[%c0_295, %c4_296, %c0_297, %c0_298] : memref<1x6x6x128xf32, #tpu.memory_space<vmem>>, vector<1x1x4x128xf32>
    %208 = vector.shape_cast %207 : vector<1x1x4x128xf32> to vector<4x128xf32>
    %c1_299 = arith.constant 1 : index
    %c0_300 = arith.constant 0 : index
    %c0_301 = arith.constant 0 : index
    %c0_302 = arith.constant 0 : index
    %209 = vector.load %arg2[%c1_299, %c0_300, %c0_301, %c0_302] : memref<3x3x128x128xf32, #tpu.memory_space<vmem>>, vector<1x1x128x128xf32>
    %210 = vector.shape_cast %209 : vector<1x1x128x128xf32> to vector<128x128xf32>
    %cst_303 = arith.constant dense<0.000000e+00> : vector<4x128xf32>
    %211 = tpu.matmul %208, %210, %cst_303 {dimension_numbers = #tpu.dot_dimension_numbers<[1], [0], [0], [1], [0, 0, 1, 1], [], []>} : vector<4x128xf32>, vector<128x128xf32>, vector<4x128xf32> -> vector<4x128xf32>
    %212 = arith.addf %206, %211 : vector<4x128xf32>
    %c0_304 = arith.constant 0 : index
    %c4_305 = arith.constant 4 : index
    %c1_306 = arith.constant 1 : index
    %c0_307 = arith.constant 0 : index
    %213 = vector.load %arg5[%c0_304, %c4_305, %c1_306, %c0_307] : memref<1x6x6x128xf32, #tpu.memory_space<vmem>>, vector<1x1x4x128xf32>
    %214 = vector.shape_cast %213 : vector<1x1x4x128xf32> to vector<4x128xf32>
    %c1_308 = arith.constant 1 : index
    %c1_309 = arith.constant 1 : index
    %c0_310 = arith.constant 0 : index
    %c0_311 = arith.constant 0 : index
    %215 = vector.load %arg2[%c1_308, %c1_309, %c0_310, %c0_311] : memref<3x3x128x128xf32, #tpu.memory_space<vmem>>, vector<1x1x128x128xf32>
    %216 = vector.shape_cast %215 : vector<1x1x128x128xf32> to vector<128x128xf32>
    %cst_312 = arith.constant dense<0.000000e+00> : vector<4x128xf32>
    %217 = tpu.matmul %214, %216, %cst_312 {dimension_numbers = #tpu.dot_dimension_numbers<[1], [0], [0], [1], [0, 0, 1, 1], [], []>} : vector<4x128xf32>, vector<128x128xf32>, vector<4x128xf32> -> vector<4x128xf32>
    %218 = arith.addf %212, %217 : vector<4x128xf32>
    %c0_313 = arith.constant 0 : index
    %c4_314 = arith.constant 4 : index
    %c2_315 = arith.constant 2 : index
    %c0_316 = arith.constant 0 : index
    %219 = vector.load %arg5[%c0_313, %c4_314, %c2_315, %c0_316] : memref<1x6x6x128xf32, #tpu.memory_space<vmem>>, vector<1x1x4x128xf32>
    %220 = vector.shape_cast %219 : vector<1x1x4x128xf32> to vector<4x128xf32>
    %c1_317 = arith.constant 1 : index
    %c2_318 = arith.constant 2 : index
    %c0_319 = arith.constant 0 : index
    %c0_320 = arith.constant 0 : index
    %221 = vector.load %arg2[%c1_317, %c2_318, %c0_319, %c0_320] : memref<3x3x128x128xf32, #tpu.memory_space<vmem>>, vector<1x1x128x128xf32>
    %222 = vector.shape_cast %221 : vector<1x1x128x128xf32> to vector<128x128xf32>
    %cst_321 = arith.constant dense<0.000000e+00> : vector<4x128xf32>
    %223 = tpu.matmul %220, %222, %cst_321 {dimension_numbers = #tpu.dot_dimension_numbers<[1], [0], [0], [1], [0, 0, 1, 1], [], []>} : vector<4x128xf32>, vector<128x128xf32>, vector<4x128xf32> -> vector<4x128xf32>
    %224 = arith.addf %218, %223 : vector<4x128xf32>
    %c0_322 = arith.constant 0 : index
    %c5 = arith.constant 5 : index
    %c0_323 = arith.constant 0 : index
    %c0_324 = arith.constant 0 : index
    %225 = vector.load %arg5[%c0_322, %c5, %c0_323, %c0_324] : memref<1x6x6x128xf32, #tpu.memory_space<vmem>>, vector<1x1x4x128xf32>
    %226 = vector.shape_cast %225 : vector<1x1x4x128xf32> to vector<4x128xf32>
    %c2_325 = arith.constant 2 : index
    %c0_326 = arith.constant 0 : index
    %c0_327 = arith.constant 0 : index
    %c0_328 = arith.constant 0 : index
    %227 = vector.load %arg2[%c2_325, %c0_326, %c0_327, %c0_328] : memref<3x3x128x128xf32, #tpu.memory_space<vmem>>, vector<1x1x128x128xf32>
    %228 = vector.shape_cast %227 : vector<1x1x128x128xf32> to vector<128x128xf32>
    %cst_329 = arith.constant dense<0.000000e+00> : vector<4x128xf32>
    %229 = tpu.matmul %226, %228, %cst_329 {dimension_numbers = #tpu.dot_dimension_numbers<[1], [0], [0], [1], [0, 0, 1, 1], [], []>} : vector<4x128xf32>, vector<128x128xf32>, vector<4x128xf32> -> vector<4x128xf32>
    %230 = arith.addf %224, %229 : vector<4x128xf32>
    %c0_330 = arith.constant 0 : index
    %c5_331 = arith.constant 5 : index
    %c1_332 = arith.constant 1 : index
    %c0_333 = arith.constant 0 : index
    %231 = vector.load %arg5[%c0_330, %c5_331, %c1_332, %c0_333] : memref<1x6x6x128xf32, #tpu.memory_space<vmem>>, vector<1x1x4x128xf32>
    %232 = vector.shape_cast %231 : vector<1x1x4x128xf32> to vector<4x128xf32>
    %c2_334 = arith.constant 2 : index
    %c1_335 = arith.constant 1 : index
    %c0_336 = arith.constant 0 : index
    %c0_337 = arith.constant 0 : index
    %233 = vector.load %arg2[%c2_334, %c1_335, %c0_336, %c0_337] : memref<3x3x128x128xf32, #tpu.memory_space<vmem>>, vector<1x1x128x128xf32>
    %234 = vector.shape_cast %233 : vector<1x1x128x128xf32> to vector<128x128xf32>
    %cst_338 = arith.constant dense<0.000000e+00> : vector<4x128xf32>
    %235 = tpu.matmul %232, %234, %cst_338 {dimension_numbers = #tpu.dot_dimension_numbers<[1], [0], [0], [1], [0, 0, 1, 1], [], []>} : vector<4x128xf32>, vector<128x128xf32>, vector<4x128xf32> -> vector<4x128xf32>
    %236 = arith.addf %230, %235 : vector<4x128xf32>
    %c0_339 = arith.constant 0 : index
    %c5_340 = arith.constant 5 : index
    %c2_341 = arith.constant 2 : index
    %c0_342 = arith.constant 0 : index
    %237 = vector.load %arg5[%c0_339, %c5_340, %c2_341, %c0_342] : memref<1x6x6x128xf32, #tpu.memory_space<vmem>>, vector<1x1x4x128xf32>
    %238 = vector.shape_cast %237 : vector<1x1x4x128xf32> to vector<4x128xf32>
    %c2_343 = arith.constant 2 : index
    %c2_344 = arith.constant 2 : index
    %c0_345 = arith.constant 0 : index
    %c0_346 = arith.constant 0 : index
    %239 = vector.load %arg2[%c2_343, %c2_344, %c0_345, %c0_346] : memref<3x3x128x128xf32, #tpu.memory_space<vmem>>, vector<1x1x128x128xf32>
    %240 = vector.shape_cast %239 : vector<1x1x128x128xf32> to vector<128x128xf32>
    %cst_347 = arith.constant dense<0.000000e+00> : vector<4x128xf32>
    %241 = tpu.matmul %238, %240, %cst_347 {dimension_numbers = #tpu.dot_dimension_numbers<[1], [0], [0], [1], [0, 0, 1, 1], [], []>} : vector<4x128xf32>, vector<128x128xf32>, vector<4x128xf32> -> vector<4x128xf32>
    %242 = arith.addf %236, %241 : vector<4x128xf32>
    %243 = vector.broadcast %4 : vector<1x128xf32> to vector<4x128xf32>
    %244 = arith.addf %242, %243 : vector<4x128xf32>
    %245 = math.tanh %244 : vector<4x128xf32>
    %c0_348 = arith.constant 0 : index
    %c3_349 = arith.constant 3 : index
    %c0_350 = arith.constant 0 : index
    %c0_351 = arith.constant 0 : index
    %246 = vector.load %arg4[%c0_348, %c3_349, %c0_350, %c0_351] : memref<1x4x4x128xf32, #tpu.memory_space<vmem>>, vector<1x1x4x128xf32>
    %247 = vector.shape_cast %246 : vector<1x1x4x128xf32> to vector<4x128xf32>
    %248 = vector.shape_cast %245 : vector<4x128xf32> to vector<1x1x4x128xf32>
    tpu.vector_store %arg4[%c0_348, %c3_349, %c0_350, %c0_351], %248 {strides = array<i32>} : memref<1x4x4x128xf32, #tpu.memory_space<vmem>>, vector<1x1x4x128xf32>,
    return
  }
  func.func @transform_0(%arg0: i32) -> (i32, i32, i32, i32) {
    %c0_i32 = arith.constant 0 : i32
    %c0_i32_0 = arith.constant 0 : i32
    %c0_i32_1 = arith.constant 0 : i32
    %c0_i32_2 = arith.constant 0 : i32
    return %arg0, %c0_i32, %c0_i32_0, %c0_i32_1 : i32, i32, i32, i32
  }
  func.func @transform_1(%arg0: i32) -> (i32, i32, i32, i32) {
    %c0_i32 = arith.constant 0 : i32
    %c0_i32_0 = arith.constant 0 : i32
    %c0_i32_1 = arith.constant 0 : i32
    %c0_i32_2 = arith.constant 0 : i32
    %c0_i32_3 = arith.constant 0 : i32
    return %c0_i32, %c0_i32_0, %c0_i32_1, %c0_i32_2 : i32, i32, i32, i32
  }
  func.func @transform_2(%arg0: i32) -> (i32, i32) {
    %c0_i32 = arith.constant 0 : i32
    %c0_i32_0 = arith.constant 0 : i32
    %c0_i32_1 = arith.constant 0 : i32
    return %c0_i32, %c0_i32_0 : i32, i32
  }
  func.func @transform_3(%arg0: i32) -> (i32, i32, i32, i32) {
    %c0_i32 = arith.constant 0 : i32
    %c0_i32_0 = arith.constant 0 : i32
    %c0_i32_1 = arith.constant 0 : i32
    %c0_i32_2 = arith.constant 0 : i32
    return %arg0, %c0_i32, %c0_i32_0, %c0_i32_1 : i32, i32, i32, i32
  }
}

module attributes {stable_mosaic.version = 11 : i64} {
  func.func @_head_kernel(%arg0: i32, %arg1: memref<2x4x4x128xf32, #tpu.memory_space<vmem>>, %arg2: memref<128x10xf32, #tpu.memory_space<vmem>>, %arg3: memref<1x10xf32, #tpu.memory_space<vmem>>, %arg4: memref<2x10xf32, #tpu.memory_space<vmem>>) attributes {dimension_semantics = [#tpu.dimension_semantics<arbitrary>], iteration_bounds = array<i64: 1>, scalar_prefetch = 0 : i64, scratch_operands = 0 : i64, tpu.core_type = #tpu.core_type<tc>, window_params = [{pipeline_mode = #tpu.pipeline_mode<synchronous>, transform_indices = @transform_0, window_bounds = array<i64: 2, 4, 4, 128>}, {pipeline_mode = #tpu.pipeline_mode<synchronous>, transform_indices = @transform_1, window_bounds = array<i64: 128, 10>}, {pipeline_mode = #tpu.pipeline_mode<synchronous>, transform_indices = @transform_2, window_bounds = array<i64: 1, 10>}, {pipeline_mode = #tpu.pipeline_mode<synchronous>, transform_indices = @transform_3, window_bounds = array<i64: 2, 10>}]} {
    %c0 = arith.constant 0 : index
    %c0_0 = arith.constant 0 : index
    %c0_1 = arith.constant 0 : index
    %c0_2 = arith.constant 0 : index
    %0 = vector.load %arg1[%c0, %c0_0, %c0_1, %c0_2] : memref<2x4x4x128xf32, #tpu.memory_space<vmem>>, vector<2x4x4x128xf32>
    %cst = arith.constant 0.000000e+00 : f32
    %1 = vector.broadcast %cst : f32 to vector<2x128xf32>
    %2 = vector.extract_strided_slice %0 {offsets = [0, 0, 0, 0], sizes = [2, 1, 1, 128], strides = [1, 1, 1, 1]} : vector<2x4x4x128xf32> to vector<2x1x1x128xf32>
    %3 = vector.shape_cast %2 : vector<2x1x1x128xf32> to vector<2x128xf32>
    %4 = arith.addf %1, %3 : vector<2x128xf32>
    %5 = vector.extract_strided_slice %0 {offsets = [0, 0, 1, 0], sizes = [2, 1, 1, 128], strides = [1, 1, 1, 1]} : vector<2x4x4x128xf32> to vector<2x1x1x128xf32>
    %6 = vector.shape_cast %5 : vector<2x1x1x128xf32> to vector<2x128xf32>
    %7 = arith.addf %4, %6 : vector<2x128xf32>
    %8 = vector.extract_strided_slice %0 {offsets = [0, 0, 2, 0], sizes = [2, 1, 1, 128], strides = [1, 1, 1, 1]} : vector<2x4x4x128xf32> to vector<2x1x1x128xf32>
    %9 = vector.shape_cast %8 : vector<2x1x1x128xf32> to vector<2x128xf32>
    %10 = arith.addf %7, %9 : vector<2x128xf32>
    %11 = vector.extract_strided_slice %0 {offsets = [0, 0, 3, 0], sizes = [2, 1, 1, 128], strides = [1, 1, 1, 1]} : vector<2x4x4x128xf32> to vector<2x1x1x128xf32>
    %12 = vector.shape_cast %11 : vector<2x1x1x128xf32> to vector<2x128xf32>
    %13 = arith.addf %10, %12 : vector<2x128xf32>
    %14 = vector.extract_strided_slice %0 {offsets = [0, 1, 0, 0], sizes = [2, 1, 1, 128], strides = [1, 1, 1, 1]} : vector<2x4x4x128xf32> to vector<2x1x1x128xf32>
    %15 = vector.shape_cast %14 : vector<2x1x1x128xf32> to vector<2x128xf32>
    %16 = arith.addf %13, %15 : vector<2x128xf32>
    %17 = vector.extract_strided_slice %0 {offsets = [0, 1, 1, 0], sizes = [2, 1, 1, 128], strides = [1, 1, 1, 1]} : vector<2x4x4x128xf32> to vector<2x1x1x128xf32>
    %18 = vector.shape_cast %17 : vector<2x1x1x128xf32> to vector<2x128xf32>
    %19 = arith.addf %16, %18 : vector<2x128xf32>
    %20 = vector.extract_strided_slice %0 {offsets = [0, 1, 2, 0], sizes = [2, 1, 1, 128], strides = [1, 1, 1, 1]} : vector<2x4x4x128xf32> to vector<2x1x1x128xf32>
    %21 = vector.shape_cast %20 : vector<2x1x1x128xf32> to vector<2x128xf32>
    %22 = arith.addf %19, %21 : vector<2x128xf32>
    %23 = vector.extract_strided_slice %0 {offsets = [0, 1, 3, 0], sizes = [2, 1, 1, 128], strides = [1, 1, 1, 1]} : vector<2x4x4x128xf32> to vector<2x1x1x128xf32>
    %24 = vector.shape_cast %23 : vector<2x1x1x128xf32> to vector<2x128xf32>
    %25 = arith.addf %22, %24 : vector<2x128xf32>
    %26 = vector.extract_strided_slice %0 {offsets = [0, 2, 0, 0], sizes = [2, 1, 1, 128], strides = [1, 1, 1, 1]} : vector<2x4x4x128xf32> to vector<2x1x1x128xf32>
    %27 = vector.shape_cast %26 : vector<2x1x1x128xf32> to vector<2x128xf32>
    %28 = arith.addf %25, %27 : vector<2x128xf32>
    %29 = vector.extract_strided_slice %0 {offsets = [0, 2, 1, 0], sizes = [2, 1, 1, 128], strides = [1, 1, 1, 1]} : vector<2x4x4x128xf32> to vector<2x1x1x128xf32>
    %30 = vector.shape_cast %29 : vector<2x1x1x128xf32> to vector<2x128xf32>
    %31 = arith.addf %28, %30 : vector<2x128xf32>
    %32 = vector.extract_strided_slice %0 {offsets = [0, 2, 2, 0], sizes = [2, 1, 1, 128], strides = [1, 1, 1, 1]} : vector<2x4x4x128xf32> to vector<2x1x1x128xf32>
    %33 = vector.shape_cast %32 : vector<2x1x1x128xf32> to vector<2x128xf32>
    %34 = arith.addf %31, %33 : vector<2x128xf32>
    %35 = vector.extract_strided_slice %0 {offsets = [0, 2, 3, 0], sizes = [2, 1, 1, 128], strides = [1, 1, 1, 1]} : vector<2x4x4x128xf32> to vector<2x1x1x128xf32>
    %36 = vector.shape_cast %35 : vector<2x1x1x128xf32> to vector<2x128xf32>
    %37 = arith.addf %34, %36 : vector<2x128xf32>
    %38 = vector.extract_strided_slice %0 {offsets = [0, 3, 0, 0], sizes = [2, 1, 1, 128], strides = [1, 1, 1, 1]} : vector<2x4x4x128xf32> to vector<2x1x1x128xf32>
    %39 = vector.shape_cast %38 : vector<2x1x1x128xf32> to vector<2x128xf32>
    %40 = arith.addf %37, %39 : vector<2x128xf32>
    %41 = vector.extract_strided_slice %0 {offsets = [0, 3, 1, 0], sizes = [2, 1, 1, 128], strides = [1, 1, 1, 1]} : vector<2x4x4x128xf32> to vector<2x1x1x128xf32>
    %42 = vector.shape_cast %41 : vector<2x1x1x128xf32> to vector<2x128xf32>
    %43 = arith.addf %40, %42 : vector<2x128xf32>
    %44 = vector.extract_strided_slice %0 {offsets = [0, 3, 2, 0], sizes = [2, 1, 1, 128], strides = [1, 1, 1, 1]} : vector<2x4x4x128xf32> to vector<2x1x1x128xf32>
    %45 = vector.shape_cast %44 : vector<2x1x1x128xf32> to vector<2x128xf32>
    %46 = arith.addf %43, %45 : vector<2x128xf32>
    %47 = vector.extract_strided_slice %0 {offsets = [0, 3, 3, 0], sizes = [2, 1, 1, 128], strides = [1, 1, 1, 1]} : vector<2x4x4x128xf32> to vector<2x1x1x128xf32>
    %48 = vector.shape_cast %47 : vector<2x1x1x128xf32> to vector<2x128xf32>
    %49 = arith.addf %46, %48 : vector<2x128xf32>
    %cst_3 = arith.constant 6.250000e-02 : f32
    %50 = vector.broadcast %cst_3 : f32 to vector<2x128xf32>
    %51 = arith.mulf %49, %50 : vector<2x128xf32>
    %c0_4 = arith.constant 0 : index
    %c0_5 = arith.constant 0 : index
    %52 = vector.load %arg2[%c0_4, %c0_5] : memref<128x10xf32, #tpu.memory_space<vmem>>, vector<128x10xf32>
    %cst_6 = arith.constant dense<0.000000e+00> : vector<2x10xf32>
    %53 = tpu.matmul %51, %52, %cst_6 {dimension_numbers = #tpu.dot_dimension_numbers<[1], [0], [0], [1], [0, 0, 1, 1], [], []>} : vector<2x128xf32>, vector<128x10xf32>, vector<2x10xf32> -> vector<2x10xf32>
    %c0_7 = arith.constant 0 : index
    %c0_8 = arith.constant 0 : index
    %54 = vector.load %arg3[%c0_7, %c0_8] : memref<1x10xf32, #tpu.memory_space<vmem>>, vector<1x10xf32>
    %55 = vector.broadcast %54 : vector<1x10xf32> to vector<2x10xf32>
    %56 = arith.addf %53, %55 : vector<2x10xf32>
    %c0_9 = arith.constant 0 : index
    %c0_10 = arith.constant 0 : index
    %57 = vector.load %arg4[%c0_9, %c0_10] : memref<2x10xf32, #tpu.memory_space<vmem>>, vector<2x10xf32>
    tpu.vector_store %arg4[%c0_9, %c0_10], %56 {strides = array<i32>} : memref<2x10xf32, #tpu.memory_space<vmem>>, vector<2x10xf32>,
    return
  }
  func.func @transform_0(%arg0: i32) -> (i32, i32, i32, i32) {
    %c0_i32 = arith.constant 0 : i32
    %c0_i32_0 = arith.constant 0 : i32
    %c0_i32_1 = arith.constant 0 : i32
    %c0_i32_2 = arith.constant 0 : i32
    %c0_i32_3 = arith.constant 0 : i32
    return %c0_i32, %c0_i32_0, %c0_i32_1, %c0_i32_2 : i32, i32, i32, i32
  }
  func.func @transform_1(%arg0: i32) -> (i32, i32) {
    %c0_i32 = arith.constant 0 : i32
    %c0_i32_0 = arith.constant 0 : i32
    %c0_i32_1 = arith.constant 0 : i32
    return %c0_i32, %c0_i32_0 : i32, i32
  }
  func.func @transform_2(%arg0: i32) -> (i32, i32) {
    %c0_i32 = arith.constant 0 : i32
    %c0_i32_0 = arith.constant 0 : i32
    %c0_i32_1 = arith.constant 0 : i32
    return %c0_i32, %c0_i32_0 : i32, i32
  }
  func.func @transform_3(%arg0: i32) -> (i32, i32) {
    %c0_i32 = arith.constant 0 : i32
    %c0_i32_0 = arith.constant 0 : i32
    %c0_i32_1 = arith.constant 0 : i32
    return %c0_i32, %c0_i32_0 : i32, i32
  }
}

</mosaic_0001>

<llo_original>
// kernel: deep_cnn_forward.5
$region0: #{deep_cnn_forward.5}
  #allocation0 [shape = 'u32[]', space=smem, size = 0x4, offset = 0x4, fixed_abs, tag = 'smem constant byte address 0x4 - core index']
  #allocation1 [shape = 'u32[72,128]{1,0:T(1,128)}', space=vmem, size = 0x9000, scoped, tag = 'internal scratch']
  #allocation2 [shape = 'f32[1,18,18,128]{3,2,1,0:T(8,128)}', space=vmem, size = 0x36000, scoped, tag = 'scratch operand']
  %s0 = inlined_call_operand.vmem [shape: f32[2,16,16,128], index: 0, kind: input, shape index: {}]
  %s1 = inlined_call_operand.hbm [shape: f32[3,3,128,128], index: 1, kind: input, shape index: {}]
  %s2 = inlined_call_operand.hbm [shape: f32[1,128], index: 2, kind: input, shape index: {}]
  %s3 = inlined_call_operand.vmem [shape: f32[2,16,16,128], index: 3, kind: output, shape index: {}]
  %s4 = sld [smem:[#allocation0]]
  $region53: #{deep_cnn_forward.5} parent=0
    _
  %s6 = ssub.s32 1, %s4
  %s7 = scalar_select 0, %s6, %s4
  $region1: #{deep_cnn_forward.5} parent=0
    #allocation3 [shape = 'u8[589824]{0}', space=vmem, size = 0x90000, scoped, tag = 'input window, operand 1, single buffered']
    #allocation4 [shape = 's32[2]{0}', space=sflag, size = 0x8, scoped, tag = 'scoped memory for deep_cnn_forward.5']
    #allocation5 [shape = 'u8[512]{0}', space=vmem, size = 0x400, scoped, tag = 'input window, operand 2, single buffered']
    #allocation6 [shape = 's32[1]{0}', space=sflag, size = 0x4, scoped, tag = 'scoped memory for deep_cnn_forward.5']
    %8 = vsyncpa [#allocation4], 0
    %9 = vsyncpa [#allocation6], 0
    loop: start=0, step=1, limit=4
    $region2: #{deep_cnn_forward.5} parent=1 // loop_pre_header
      _
    $region3: #{deep_cnn_forward.5} parent=1 // loop_header
      %s11 = sphi 0, %s15
      %p12 = scmp.ge.s32.totalorder %s11, 4
      %s21 = sphi 0, %s23
      %s24 = sphi 0, %s21
      %s25 = sphi 0, %s24
      %s41 = sphi 0, %s25
      %s45 = sphi 0, %s45
      %s47 = sphi 0, %s45
      %s48 = sphi 0, %s47
      %s62 = sphi 0, %s48
      %s66 = sphi 0, %s66
      %s68 = sphi 0, %s66
      %s69 = sphi 0, %s68
      %s83 = sphi 0, %s69
      %s89 = sphi 0, %s91
      %s92 = sphi 0, %s89
      %s93 = sphi 0, %s92
      %s109 = sphi 0, %s93
    $region4: #{deep_cnn_forward.5} parent=1 // loop_header_branch
      %14 = sbr.rel (%p12) target = $region8
    $region5: #{deep_cnn_forward.5} parent=1 // loop_body
      %s16 = ssub.s32 %s11, 1
      %s17 = ssub.s32 %s11, 2
      %s18 = sadd.s32 %s11, 1
      %s19 = ssub.s32 %s11, %s18
      %p20 = scmp.eq.s32.totalorder %s19, 0
      %s22 = sadd.s32 %s21, 1
      %s23 = scalar_select %p20, %s21, %s22
      %p26 = pneg %p20
      %p27 = scmp.eq.s32.totalorder %s11, 1
      %p28 = por %p26, %p27
      %p29 = scmp.ne.s32.totalorder %s21, %s24
      %p30 = scmp.eq.s32.totalorder %s11, 0
      %p31 = por %p29, %p30
      %p32 = scmp.ne.s32.totalorder %s21, %s24
      %p33 = scmp.eq.s32.totalorder %s16, 1
      %p34 = por %p32, %p33
      %p35 = scmp.ne.s32.totalorder %s24, %s25
      %p36 = scmp.eq.s32.totalorder %s16, 0
      %p37 = por %p35, %p36
      %p38 = scmp.ne.s32.totalorder %s24, %s25
      %p39 = scmp.eq.s32.totalorder %s17, 1
      %p40 = por %p38, %p39
      %p42 = scmp.ne.s32.totalorder %s25, %s41
      %p43 = scmp.eq.s32.totalorder %s17, 0
      %p44 = por %p42, %p43
      %s46 = sadd.s32 %s45, 1
      %p49 = scmp.eq.s32.totalorder %s11, 1
      %p50 = scmp.ne.s32.totalorder %s45, %s47
      %p51 = scmp.eq.s32.totalorder %s11, 0
      %p52 = por %p50, %p51
      %p53 = scmp.ne.s32.totalorder %s45, %s47
      %p54 = scmp.eq.s32.totalorder %s16, 1
      %p55 = por %p53, %p54
      %p56 = scmp.ne.s32.totalorder %s47, %s48
      %p57 = scmp.eq.s32.totalorder %s16, 0
      %p58 = por %p56, %p57
      %p59 = scmp.ne.s32.totalorder %s47, %s48
      %p60 = scmp.eq.s32.totalorder %s17, 1
      %p61 = por %p59, %p60
      %p63 = scmp.ne.s32.totalorder %s48, %s62
      %p64 = scmp.eq.s32.totalorder %s17, 0
      %p65 = por %p63, %p64
      %s67 = sadd.s32 %s66, 1
      %p70 = scmp.eq.s32.totalorder %s11, 1
      %p71 = scmp.ne.s32.totalorder %s66, %s68
      %p72 = scmp.eq.s32.totalorder %s11, 0
      %p73 = por %p71, %p72
      %p74 = scmp.ne.s32.totalorder %s66, %s68
      %p75 = scmp.eq.s32.totalorder %s16, 1
      %p76 = por %p74, %p75
      %p77 = scmp.ne.s32.totalorder %s68, %s69
      %p78 = scmp.eq.s32.totalorder %s16, 0
      %p79 = por %p77, %p78
      %p80 = scmp.ne.s32.totalorder %s68, %s69
      %p81 = scmp.eq.s32.totalorder %s17, 1
      %p82 = por %p80, %p81
      %p84 = scmp.ne.s32.totalorder %s69, %s83
      %p85 = scmp.eq.s32.totalorder %s17, 0
      %p86 = por %p84, %p85
      %s87 = ssub.s32 %s11, %s18
      %p88 = scmp.eq.s32.totalorder %s87, 0
      %s90 = sadd.s32 %s89, 1
      %s91 = scalar_select %p88, %s89, %s90
      %p94 = pneg %p88
      %p95 = scmp.eq.s32.totalorder %s11, 1
      %p96 = por %p94, %p95
      %p97 = scmp.ne.s32.totalorder %s89, %s92
      %p98 = scmp.eq.s32.totalorder %s11, 0
      %p99 = por %p97, %p98
      %p100 = scmp.ne.s32.totalorder %s89, %s92
      %p101 = scmp.eq.s32.totalorder %s16, 1
      %p102 = por %p100, %p101
      %p103 = scmp.ne.s32.totalorder %s92, %s93
      %p104 = scmp.eq.s32.totalorder %s16, 0
      %p105 = por %p103, %p104
      %p106 = scmp.ne.s32.totalorder %s92, %s93
      %p107 = scmp.eq.s32.totalorder %s17, 1
      %p108 = por %p106, %p107
      %p110 = scmp.ne.s32.totalorder %s93, %s109
      %p111 = scmp.eq.s32.totalorder %s17, 0
      %p112 = por %p110, %p111
      %p113 = scmp.le.s32.totalorder 1, %s11
      %p114 = scmp.lt.s32.totalorder %s11, 3
      %p115 = pnand %p113, %p114
      %p116 = pneg %p115
      // Predicated region
      $region9: #{deep_cnn_forward.5} parent=5 // pred_check
        _
      $region10: #{deep_cnn_forward.5} parent=5 // pred_check_branch
        %118 = sbr.rel (%p115) target = $region12
      $region11: #{deep_cnn_forward.5} parent=5 // pred_region
        %s119 = ssub.s32 %s11, 1
        // Predicated region
        $region13: #{deep_cnn_forward.5} parent=11 // pred_check
          %p120 = pneg %p58
        $region14: #{deep_cnn_forward.5} parent=11 // pred_check_branch
          %122 = sbr.rel (%p120) target = $region16
        $region15: #{deep_cnn_forward.5} parent=11 // pred_region
          %124 = vsyncadd [#allocation4], 0
          %s125 = sshll.u32 %s1, 4
          %s126 = int_to_ptr.hbm [resolvable:$true] %s125
          %s127 = sshll.u32 [#allocation3], 4
          %s128 = int_to_ptr.vmem [resolvable:$true] %s127
          %133 = dma.hbm_to_vmem [thread:$0]  %s126, 18432, %s128, [#allocation4], 128, 128, 8
        $region16: #{deep_cnn_forward.5} parent=11 // pred_fallthru
          _
        // Predicated region
        $region17: #{deep_cnn_forward.5} parent=11 // pred_check
          %p134 = pneg %p79
        $region18: #{deep_cnn_forward.5} parent=11 // pred_check_branch
          %136 = sbr.rel (%p134) target = $region20
        $region19: #{deep_cnn_forward.5} parent=11 // pred_region
          %138 = vsyncadd [#allocation6], 0
          %s140 = sshll.u32 %s2, 4
          %s141 = int_to_ptr.hbm [resolvable:$true] %s140
          %s142 = sshll.u32 [#allocation5], 4
          %s143 = int_to_ptr.vmem [resolvable:$true] %s142
          %145 = dma.hbm_to_vmem [thread:$0]  %s141, 16, %s143, [#allocation6]
        $region20: #{deep_cnn_forward.5} parent=11 // pred_fallthru
          _
      $region12: #{deep_cnn_forward.5} parent=5 // pred_fallthru
        _
      %p146 = scmp.lt.s32.totalorder %s11, 2
      // Predicated region
      $region21: #{deep_cnn_forward.5} parent=5 // pred_check
        %p147 = pneg %p146
      $region22: #{deep_cnn_forward.5} parent=5 // pred_check_branch
        %149 = sbr.rel (%p147) target = $region24
      $region23: #{deep_cnn_forward.5} parent=5 // pred_region
        // Predicated region
        $region25: #{deep_cnn_forward.5} parent=23 // pred_check
          %p150 = pneg %p31
        $region26: #{deep_cnn_forward.5} parent=23 // pred_check_branch
          %152 = sbr.rel (%p150) target = $region28
        $region27: #{deep_cnn_forward.5} parent=23 // pred_region
          %p153 = scmp.lt.s32.totalorder %s11, 1
          %s154 = scalar_select %p153, %s11, 1
          %s155 = smul.addr %s154, 32
          %s156 = smul.addr %s155, 8
          %s157 = scalar_lea.vmem %s0, %s156
        $region28: #{deep_cnn_forward.5} parent=23 // pred_fallthru
          _
      $region24: #{deep_cnn_forward.5} parent=5 // pred_fallthru
        _
      %p158 = scmp.le.s32.totalorder 1, %s11
      %p159 = scmp.lt.s32.totalorder %s11, 3
      %p160 = pnand %p158, %p159
      %p161 = pneg %p160
      // Predicated region
      $region29: #{deep_cnn_forward.5} parent=5 // pred_check
        _
      $region30: #{deep_cnn_forward.5} parent=5 // pred_check_branch
        %163 = sbr.rel (%p160) target = $region32
      $region31: #{deep_cnn_forward.5} parent=5 // pred_region
        %s164 = ssub.s32 %s11, 1
        // Predicated region
        $region33: #{deep_cnn_forward.5} parent=31 // pred_check
          %p165 = pneg %p58
        $region34: #{deep_cnn_forward.5} parent=31 // pred_check_branch
          %167 = sbr.rel (%p165) target = $region36
        $region35: #{deep_cnn_forward.5} parent=31 // pred_region
          %169 = dma.done [#allocation4], 18432
        $region36: #{deep_cnn_forward.5} parent=31 // pred_fallthru
          _
        // Predicated region
        $region37: #{deep_cnn_forward.5} parent=31 // pred_check
          %p170 = pneg %p79
        $region38: #{deep_cnn_forward.5} parent=31 // pred_check_branch
          %172 = sbr.rel (%p170) target = $region40
        $region39: #{deep_cnn_forward.5} parent=31 // pred_region
          %174 = dma.done [#allocation6], 16
        $region40: #{deep_cnn_forward.5} parent=31 // pred_fallthru
          _
        %p175 = scmp.lt.s32.totalorder %s16, 1
        %s176 = scalar_select %p175, %s16, 1
        %s177 = smul.addr %s176, 32
        %s178 = smul.addr %s177, 8
        %s179 = scalar_lea.vmem %s0, %s178
        %p180 = pneg %p37
        %p181 = pneg %p34
        %p182 = pneg %p58
        %p183 = pneg %p55
        %p184 = pneg %p79
        %p185 = pneg %p76
        %p186 = pneg %p105
        %p187 = pneg %p102
        %p188 = scmp.lt.s32.totalorder %s16, 1
        %s189 = scalar_select %p188, %s16, 1
        %s190 = smul.addr %s189, 32
        %s191 = smul.addr %s190, 8
        %s192 = scalar_lea.vmem %s3, %s191
        %p193 = scmp.lt.s32.totalorder %s16, 1
        %s194 = scalar_select %p193, %s16, 1
        %s195 = smul.addr %s194, 32
        %s196 = smul.addr %s195, 8
        %s197 = scalar_lea.vmem %s0, %s196
        %p198 = scmp.lt.s32.totalorder %s16, 1
        %s199 = scalar_select %p198, %s16, 1
        %s200 = smul.addr %s199, 32
        %s201 = smul.addr %s200, 8
        %s202 = scalar_lea.vmem %s3, %s201
        %203 = vst [vmem:[#allocation2] sm:$0xff] 0.0
        %204 = vst [vmem:[#allocation2 + $0x8] sm:$0xff] 0.0
        %205 = vst [vmem:[#allocation2 + $0x10] sm:$0x3] 0.0
        %206 = vst [vmem:[#allocation2 + $0x18] sm:$0xff] 0.0
        %207 = vst [vmem:[#allocation2 + $0x20] sm:$0xff] 0.0
        %208 = vst [vmem:[#allocation2 + $0x28] sm:$0x3] 0.0
        %209 = vst [vmem:[#allocation2 + $0x30] sm:$0xff] 0.0
        %210 = vst [vmem:[#allocation2 + $0x38] sm:$0xff] 0.0
        %211 = vst [vmem:[#allocation2 + $0x40] sm:$0x3] 0.0
        %212 = vst [vmem:[#allocation2 + $0x48] sm:$0xff] 0.0
        %213 = vst [vmem:[#allocation2 + $0x50] sm:$0xff] 0.0
        %214 = vst [vmem:[#allocation2 + $0x58] sm:$0x3] 0.0
        %215 = vst [vmem:[#allocation2 + $0x60] sm:$0xff] 0.0
        %216 = vst [vmem:[#allocation2 + $0x68] sm:$0xff] 0.0
        %217 = vst [vmem:[#allocation2 + $0x70] sm:$0x3] 0.0
        %218 = vst [vmem:[#allocation2 + $0x78] sm:$0xff] 0.0
        %219 = vst [vmem:[#allocation2 + $0x80] sm:$0xff] 0.0
        %220 = vst [vmem:[#allocation2 + $0x88] sm:$0x3] 0.0
        %221 = vst [vmem:[#allocation2 + $0x90] sm:$0xff] 0.0
        %222 = vst [vmem:[#allocation2 + $0x98] sm:$0xff] 0.0
        %223 = vst [vmem:[#allocation2 + $0xa0] sm:$0x3] 0.0
        %224 = vst [vmem:[#allocation2 + $0xa8] sm:$0xff] 0.0
        %225 = vst [vmem:[#allocation2 + $0xb0] sm:$0xff] 0.0
        %226 = vst [vmem:[#allocation2 + $0xb8] sm:$0x3] 0.0
        %227 = vst [vmem:[#allocation2 + $0xc0] sm:$0xff] 0.0
        %228 = vst [vmem:[#allocation2 + $0xc8] sm:$0xff] 0.0
        %229 = vst [vmem:[#allocation2 + $0xd0] sm:$0x3] 0.0
        %230 = vst [vmem:[#allocation2 + $0xd8] sm:$0xff] 0.0
        %231 = vst [vmem:[#allocation2 + $0xe0] sm:$0xff] 0.0
        %232 = vst [vmem:[#allocation2 + $0xe8] sm:$0x3] 0.0
        %233 = vst [vmem:[#allocation2 + $0xf0] sm:$0xff] 0.0
        %234 = vst [vmem:[#allocation2 + $0xf8] sm:$0xff] 0.0
        %235 = vst [vmem:[#allocation2 + $0x100] sm:$0x3] 0.0
        %236 = vst [vmem:[#allocation2 + $0x108] sm:$0xff] 0.0
        %237 = vst [vmem:[#allocation2 + $0x110] sm:$0xff] 0.0
        %238 = vst [vmem:[#allocation2 + $0x118] sm:$0x3] 0.0
        %239 = vst [vmem:[#allocation2 + $0x120] sm:$0xff] 0.0
        %240 = vst [vmem:[#allocation2 + $0x128] sm:$0xff] 0.0
        %241 = vst [vmem:[#allocation2 + $0x130] sm:$0x3] 0.0
        %242 = vst [vmem:[#allocation2 + $0x138] sm:$0xff] 0.0
        %243 = vst [vmem:[#allocation2 + $0x140] sm:$0xff] 0.0
        %244 = vst [vmem:[#allocation2 + $0x148] sm:$0x3] 0.0
        %245 = vst [vmem:[#allocation2 + $0x150] sm:$0xff] 0.0
        %246 = vst [vmem:[#allocation2 + $0x158] sm:$0xff] 0.0
        %247 = vst [vmem:[#allocation2 + $0x160] sm:$0x3] 0.0
        %248 = vst [vmem:[#allocation2 + $0x168] sm:$0xff] 0.0
        %249 = vst [vmem:[#allocation2 + $0x170] sm:$0xff] 0.0
        %250 = vst [vmem:[#allocation2 + $0x178] sm:$0x3] 0.0
        %251 = vst [vmem:[#allocation2 + $0x180] sm:$0xff] 0.0
        %252 = vst [vmem:[#allocation2 + $0x188] sm:$0xff] 0.0
        %253 = vst [vmem:[#allocation2 + $0x190] sm:$0x3] 0.0
        %254 = vst [vmem:[#allocation2 + $0x198] sm:$0xff] 0.0
        %255 = vst [vmem:[#allocation2 + $0x1a0] sm:$0xff] 0.0
        %256 = vst [vmem:[#allocation2 + $0x1a8] sm:$0x3] 0.0
        %v257 = vld [vmem:[%s197] sm:$0xff]
        %v258 = vld [vmem:[%s197 + $0x8] sm:$0xff]
        %v259 = vld [vmem:[%s197 + $0x10] sm:$0xff]
        %v260 = vld [vmem:[%s197 + $0x18] sm:$0xff]
        %v261 = vld [vmem:[%s197 + $0x20] sm:$0xff]
        %v262 = vld [vmem:[%s197 + $0x28] sm:$0xff]
        %v263 = vld [vmem:[%s197 + $0x30] sm:$0xff]
        %v264 = vld [vmem:[%s197 + $0x38] sm:$0xff]
        %v265 = vld [vmem:[%s197 + $0x40] sm:$0xff]
        %v266 = vld [vmem:[%s197 + $0x48] sm:$0xff]
        %v267 = vld [vmem:[%s197 + $0x50] sm:$0xff]
        %v268 = vld [vmem:[%s197 + $0x58] sm:$0xff]
        %v269 = vld [vmem:[%s197 + $0x60] sm:$0xff]
        %v270 = vld [vmem:[%s197 + $0x68] sm:$0xff]
        %v271 = vld [vmem:[%s197 + $0x70] sm:$0xff]
        %v272 = vld [vmem:[%s197 + $0x78] sm:$0xff]
        %v273 = vld [vmem:[%s197 + $0x80] sm:$0xff]
        %v274 = vld [vmem:[%s197 + $0x88] sm:$0xff]
        %v275 = vld [vmem:[%s197 + $0x90] sm:$0xff]
        %v276 = vld [vmem:[%s197 + $0x98] sm:$0xff]
        %v277 = vld [vmem:[%s197 + $0xa0] sm:$0xff]
        %v278 = vld [vmem:[%s197 + $0xa8] sm:$0xff]
        %v279 = vld [vmem:[%s197 + $0xb0] sm:$0xff]
        %v280 = vld [vmem:[%s197 + $0xb8] sm:$0xff]
        %v281 = vld [vmem:[%s197 + $0xc0] sm:$0xff]
        %v282 = vld [vmem:[%s197 + $0xc8] sm:$0xff]
        %v283 = vld [vmem:[%s197 + $0xd0] sm:$0xff]
        %v284 = vld [vmem:[%s197 + $0xd8] sm:$0xff]
        %v285 = vld [vmem:[%s197 + $0xe0] sm:$0xff]
        %v286 = vld [vmem:[%s197 + $0xe8] sm:$0xff]
        %v287 = vld [vmem:[%s197 + $0xf0] sm:$0xff]
        %v288 = vld [vmem:[%s197 + $0xf8] sm:$0xff]
        %s289 = scalar_lea.vmem [#allocation2], 24
        %290 = vst [vmem:[%s289 + $0x1] sm:$0xff] %v257
        %291 = vst [vmem:[%s289 + $0x9] sm:$0xff] %v258
        %292 = vst [vmem:[%s289 + $0x19] sm:$0xff] %v259
        %293 = vst [vmem:[%s289 + $0x21] sm:$0xff] %v260
        %294 = vst [vmem:[%s289 + $0x31] sm:$0xff] %v261
        %295 = vst [vmem:[%s289 + $0x39] sm:$0xff] %v262
        %296 = vst [vmem:[%s289 + $0x49] sm:$0xff] %v263
        %297 = vst [vmem:[%s289 + $0x51] sm:$0xff] %v264
        %298 = vst [vmem:[%s289 + $0x61] sm:$0xff] %v265
        %299 = vst [vmem:[%s289 + $0x69] sm:$0xff] %v266
        %300 = vst [vmem:[%s289 + $0x79] sm:$0xff] %v267
        %301 = vst [vmem:[%s289 + $0x81] sm:$0xff] %v268
        %302 = vst [vmem:[%s289 + $0x91] sm:$0xff] %v269
        %303 = vst [vmem:[%s289 + $0x99] sm:$0xff] %v270
        %304 = vst [vmem:[%s289 + $0xa9] sm:$0xff] %v271
        %305 = vst [vmem:[%s289 + $0xb1] sm:$0xff] %v272
        %306 = vst [vmem:[%s289 + $0xc1] sm:$0xff] %v273
        %307 = vst [vmem:[%s289 + $0xc9] sm:$0xff] %v274
        %308 = vst [vmem:[%s289 + $0xd9] sm:$0xff] %v275
        %309 = vst [vmem:[%s289 + $0xe1] sm:$0xff] %v276
        %310 = vst [vmem:[%s289 + $0xf1] sm:$0xff] %v277
        %311 = vst [vmem:[%s289 + $0xf9] sm:$0xff] %v278
        %312 = vst [vmem:[%s289 + $0x109] sm:$0xff] %v279
        %313 = vst [vmem:[%s289 + $0x111] sm:$0xff] %v280
        %314 = vst [vmem:[%s289 + $0x121] sm:$0xff] %v281
        %315 = vst [vmem:[%s289 + $0x129] sm:$0xff] %v282
        %316 = vst [vmem:[%s289 + $0x139] sm:$0xff] %v283
        %317 = vst [vmem:[%s289 + $0x141] sm:$0xff] %v284
        %318 = vst [vmem:[%s289 + $0x151] sm:$0xff] %v285
        %319 = vst [vmem:[%s289 + $0x159] sm:$0xff] %v286
        %320 = vst [vmem:[%s289 + $0x169] sm:$0xff] %v287
        %321 = vst [vmem:[%s289 + $0x171] sm:$0xff] %v288
        %v322 = vld [vmem:[#allocation5] sm:$0x1]
        %v323 = vld [vmem:[#allocation2] sm:$0xff]
        %v324 = vld [vmem:[#allocation2 + $0x8] sm:$0xff]
        %v325 = vld [vmem:[#allocation2 + $0x18] sm:$0xff]
        %v326 = vld [vmem:[#allocation2 + $0x20] sm:$0xff]
        %v327 = vld [vmem:[#allocation2 + $0x30] sm:$0xff]
        %v328 = vld [vmem:[#allocation2 + $0x38] sm:$0xff]
        %v329 = vld [vmem:[#allocation2 + $0x48] sm:$0xff]
        %v330 = vld [vmem:[#allocation2 + $0x50] sm:$0xff]
        %v331 = vld [vmem:[#allocation2 + $0x60] sm:$0xff]
        %v332 = vld [vmem:[#allocation2 + $0x68] sm:$0xff]
        %v333 = vld [vmem:[#allocation2 + $0x78] sm:$0xff]
        %v334 = vld [vmem:[#allocation2 + $0x80] sm:$0xff]
        %v335 = vld [vmem:[#allocation2 + $0x90] sm:$0xff]
        %v336 = vld [vmem:[#allocation2 + $0x98] sm:$0xff]
        %v337 = vld [vmem:[#allocation2 + $0xa8] sm:$0xff]
        %v338 = vld [vmem:[#allocation2 + $0xb0] sm:$0xff]
        %v339 = vld [vmem:[#allocation2 + $0xc0] sm:$0xff]
        %v340 = vld [vmem:[#allocation2 + $0xc8] sm:$0xff]
        %v341 = vld [vmem:[#allocation2 + $0xd8] sm:$0xff]
        %v342 = vld [vmem:[#allocation2 + $0xe0] sm:$0xff]
        %v343 = vld [vmem:[#allocation2 + $0xf0] sm:$0xff]
        %v344 = vld [vmem:[#allocation2 + $0xf8] sm:$0xff]
        %v345 = vld [vmem:[#allocation2 + $0x108] sm:$0xff]
        %v346 = vld [vmem:[#allocation2 + $0x110] sm:$0xff]
        %v347 = vld [vmem:[#allocation2 + $0x120] sm:$0xff]
        %v348 = vld [vmem:[#allocation2 + $0x128] sm:$0xff]
        %v349 = vld [vmem:[#allocation2 + $0x138] sm:$0xff]
        %v350 = vld [vmem:[#allocation2 + $0x140] sm:$0xff]
        %v351 = vld [vmem:[#allocation2 + $0x150] sm:$0xff]
        %v352 = vld [vmem:[#allocation2 + $0x158] sm:$0xff]
        %v353 = vld [vmem:[#allocation2 + $0x168] sm:$0xff]
        %v354 = vld [vmem:[#allocation2 + $0x170] sm:$0xff]
        %v355 = vld [vmem:[#allocation3] sm:$0xff]
        %v356 = vld [vmem:[#allocation3 + $0x8] sm:$0xff]
        %v357 = vld [vmem:[#allocation3 + $0x10] sm:$0xff]
        %v358 = vld [vmem:[#allocation3 + $0x18] sm:$0xff]
        %v359 = vld [vmem:[#allocation3 + $0x20] sm:$0xff]
        %v360 = vld [vmem:[#allocation3 + $0x28] sm:$0xff]
        %v361 = vld [vmem:[#allocation3 + $0x30] sm:$0xff]
        %v362 = vld [vmem:[#allocation3 + $0x38] sm:$0xff]
        %v363 = vld [vmem:[#allocation3 + $0x40] sm:$0xff]
        %v364 = vld [vmem:[#allocation3 + $0x48] sm:$0xff]
        %v365 = vld [vmem:[#allocation3 + $0x50] sm:$0xff]
        %v366 = vld [vmem:[#allocation3 + $0x58] sm:$0xff]
        %v367 = vld [vmem:[#allocation3 + $0x60] sm:$0xff]
        %v368 = vld [vmem:[#allocation3 + $0x68] sm:$0xff]
        %v369 = vld [vmem:[#allocation3 + $0x70] sm:$0xff]
        %v370 = vld [vmem:[#allocation3 + $0x78] sm:$0xff]
        %v371 = vld [vmem:[#allocation2 + $0x1] sm:$0xff]
        %v372 = vld [vmem:[#allocation2 + $0x9] sm:$0xff]
        %v373 = vld [vmem:[#allocation2 + $0x19] sm:$0xff]
        %v374 = vld [vmem:[#allocation2 + $0x21] sm:$0xff]
        %v375 = vld [vmem:[#allocation2 + $0x31] sm:$0xff]
        %v376 = vld [vmem:[#allocation2 + $0x39] sm:$0xff]
        %v377 = vld [vmem:[#allocation2 + $0x49] sm:$0xff]
        %v378 = vld [vmem:[#allocation2 + $0x51] sm:$0xff]
        %v379 = vld [vmem:[#allocation2 + $0x61] sm:$0xff]
        %v380 = vld [vmem:[#allocation2 + $0x69] sm:$0xff]
        %v381 = vld [vmem:[#allocation2 + $0x79] sm:$0xff]
        %v382 = vld [vmem:[#allocation2 + $0x81] sm:$0xff]
        %v383 = vld [vmem:[#allocation2 + $0x91] sm:$0xff]
        %v384 = vld [vmem:[#allocation2 + $0x99] sm:$0xff]
        %v385 = vld [vmem:[#allocation2 + $0xa9] sm:$0xff]
        %v386 = vld [vmem:[#allocation2 + $0xb1] sm:$0xff]
        %v387 = vld [vmem:[#allocation2 + $0xc1] sm:$0xff]
        %v388 = vld [vmem:[#allocation2 + $0xc9] sm:$0xff]
        %v389 = vld [vmem:[#allocation2 + $0xd9] sm:$0xff]
        %v390 = vld [vmem:[#allocation2 + $0xe1] sm:$0xff]
        %v391 = vld [vmem:[#allocation2 + $0xf1] sm:$0xff]
        %v392 = vld [vmem:[#allocation2 + $0xf9] sm:$0xff]
        %v393 = vld [vmem:[#allocation2 + $0x109] sm:$0xff]
        %v394 = vld [vmem:[#allocation2 + $0x111] sm:$0xff]
        %v395 = vld [vmem:[#allocation2 + $0x121] sm:$0xff]
        %v396 = vld [vmem:[#allocation2 + $0x129] sm:$0xff]
        %v397 = vld [vmem:[#allocation2 + $0x139] sm:$0xff]
        %v398 = vld [vmem:[#allocation2 + $0x141] sm:$0xff]
        %v399 = vld [vmem:[#allocation2 + $0x151] sm:$0xff]
        %v400 = vld [vmem:[#allocation2 + $0x159] sm:$0xff]
        %v401 = vld [vmem:[#allocation2 + $0x169] sm:$0xff]
        %v402 = vld [vmem:[#allocation2 + $0x171] sm:$0xff]
        %s403 = scalar_lea.vmem [#allocation3], 128
        %v404 = vld [vmem:[%s403] sm:$0xff]
        %v405 = vld [vmem:[%s403 + $0x8] sm:$0xff]
        %v406 = vld [vmem:[%s403 + $0x10] sm:$0xff]
        %v407 = vld [vmem:[%s403 + $0x18] sm:$0xff]
        %v408 = vld [vmem:[%s403 + $0x20] sm:$0xff]
        %v409 = vld [vmem:[%s403 + $0x28] sm:$0xff]
        %v410 = vld [vmem:[%s403 + $0x30] sm:$0xff]
        %v411 = vld [vmem:[%s403 + $0x38] sm:$0xff]
        %v412 = vld [vmem:[%s403 + $0x40] sm:$0xff]
        %v413 = vld [vmem:[%s403 + $0x48] sm:$0xff]
        %v414 = vld [vmem:[%s403 + $0x50] sm:$0xff]
        %v415 = vld [vmem:[%s403 + $0x58] sm:$0xff]
        %v416 = vld [vmem:[%s403 + $0x60] sm:$0xff]
        %v417 = vld [vmem:[%s403 + $0x68] sm:$0xff]
        %v418 = vld [vmem:[%s403 + $0x70] sm:$0xff]
        %v419 = vld [vmem:[%s403 + $0x78] sm:$0xff]
        %420 = vmatpush.msra.mxu0 %v419
        %421 = vmatpush.msra.mxu0 %v418
        %422 = vmatpush.msra.mxu0 %v417
        %423 = vmatpush.msra.mxu0 %v416
        %424 = vmatpush.msra.mxu0 %v415
        %425 = vmatpush.msra.mxu0 %v414
        %426 = vmatpush.msra.mxu0 %v413
        %427 = vmatpush.msra.mxu0 %v412
        %428 = vmatpush.msra.mxu0 %v411
        %429 = vmatpush.msra.mxu0 %v410
        %430 = vmatpush.msra.mxu0 %v409
        %431 = vmatpush.msra.mxu0 %v408
        %432 = vmatpush.msra.mxu0 %v407
        %433 = vmatpush.msra.mxu0 %v406
        %434 = vmatpush.msra.mxu0 %v405
        %435 = vmatpush.msra.mxu0 %v404
        %436 = vmatmul.f32.gmra.mxu0 %v371
        %v437 = vpop.f32.mrf.mxu0
        %v438 = vadd.f32 0.0, %v437
        %439 = vmatmul.f32.gmra.mxu0 %v372
        %v440 = vpop.f32.mrf.mxu0
        %v441 = vadd.f32 0.0, %v440
        %442 = vmatmul.f32.gmra.mxu0 %v373
        %v443 = vpop.f32.mrf.mxu0
        %v444 = vadd.f32 0.0, %v443
        %445 = vmatmul.f32.gmra.mxu0 %v374
        %v446 = vpop.f32.mrf.mxu0
        %v447 = vadd.f32 0.0, %v446
        %448 = vmatmul.f32.gmra.mxu0 %v375
        %v449 = vpop.f32.mrf.mxu0
        %v450 = vadd.f32 0.0, %v449
        %451 = vmatmul.f32.gmra.mxu0 %v376
        %v452 = vpop.f32.mrf.mxu0
        %v453 = vadd.f32 0.0, %v452
        %454 = vmatmul.f32.gmra.mxu0 %v377
        %v455 = vpop.f32.mrf.mxu0
        %v456 = vadd.f32 0.0, %v455
        %457 = vmatmul.f32.gmra.mxu0 %v378
        %v458 = vpop.f32.mrf.mxu0
        %v459 = vadd.f32 0.0, %v458
        %460 = vmatmul.f32.gmra.mxu0 %v379
        %v461 = vpop.f32.mrf.mxu0
        %v462 = vadd.f32 0.0, %v461
        %463 = vmatmul.f32.gmra.mxu0 %v380
        %v464 = vpop.f32.mrf.mxu0
        %v465 = vadd.f32 0.0, %v464
        %466 = vmatmul.f32.gmra.mxu0 %v381
        %v467 = vpop.f32.mrf.mxu0
        %v468 = vadd.f32 0.0, %v467
        %469 = vmatmul.f32.gmra.mxu0 %v382
        %v470 = vpop.f32.mrf.mxu0
        %v471 = vadd.f32 0.0, %v470
        %472 = vmatmul.f32.gmra.mxu0 %v383
        %v473 = vpop.f32.mrf.mxu0
        %v474 = vadd.f32 0.0, %v473
        %475 = vmatmul.f32.gmra.mxu0 %v384
        %v476 = vpop.f32.mrf.mxu0
        %v477 = vadd.f32 0.0, %v476
        %478 = vmatmul.f32.gmra.mxu0 %v385
        %v479 = vpop.f32.mrf.mxu0
        %v480 = vadd.f32 0.0, %v479
        %481 = vmatmul.f32.gmra.mxu0 %v386
        %v482 = vpop.f32.mrf.mxu0
        %v483 = vadd.f32 0.0, %v482
        %484 = vmatmul.f32.gmra.mxu0 %v387
        %v485 = vpop.f32.mrf.mxu0
        %v486 = vadd.f32 0.0, %v485
        %487 = vmatmul.f32.gmra.mxu0 %v388
        %v488 = vpop.f32.mrf.mxu0
        %v489 = vadd.f32 0.0, %v488
        %490 = vmatmul.f32.gmra.mxu0 %v389
        %v491 = vpop.f32.mrf.mxu0
        %v492 = vadd.f32 0.0, %v491
        %493 = vmatmul.f32.gmra.mxu0 %v390
        %v494 = vpop.f32.mrf.mxu0
        %v495 = vadd.f32 0.0, %v494
        %496 = vmatmul.f32.gmra.mxu0 %v391
        %v497 = vpop.f32.mrf.mxu0
        %v498 = vadd.f32 0.0, %v497
        %499 = vmatmul.f32.gmra.mxu0 %v392
        %v500 = vpop.f32.mrf.mxu0
        %v501 = vadd.f32 0.0, %v500
        %502 = vmatmul.f32.gmra.mxu0 %v393
        %v503 = vpop.f32.mrf.mxu0
        %v504 = vadd.f32 0.0, %v503
        %505 = vmatmul.f32.gmra.mxu0 %v394
        %v506 = vpop.f32.mrf.mxu0
        %v507 = vadd.f32 0.0, %v506
        %508 = vmatmul.f32.gmra.mxu0 %v395
        %v509 = vpop.f32.mrf.mxu0
        %v510 = vadd.f32 0.0, %v509
        %511 = vmatmul.f32.gmra.mxu0 %v396
        %v512 = vpop.f32.mrf.mxu0
        %v513 = vadd.f32 0.0, %v512
        %514 = vmatmul.f32.gmra.mxu0 %v397
        %v515 = vpop.f32.mrf.mxu0
        %v516 = vadd.f32 0.0, %v515
        %517 = vmatmul.f32.gmra.mxu0 %v398
        %v518 = vpop.f32.mrf.mxu0
        %v519 = vadd.f32 0.0, %v518
        %520 = vmatmul.f32.gmra.mxu0 %v399
        %v521 = vpop.f32.mrf.mxu0
        %v522 = vadd.f32 0.0, %v521
        %523 = vmatmul.f32.gmra.mxu0 %v400
        %v524 = vpop.f32.mrf.mxu0
        %v525 = vadd.f32 0.0, %v524
        %526 = vmatmul.f32.gmra.mxu0 %v401
        %v527 = vpop.f32.mrf.mxu0
        %v528 = vadd.f32 0.0, %v527
        %529 = vmatmul.f32.gmra.mxu0 %v402
        %v530 = vpop.f32.mrf.mxu0
        %v531 = vadd.f32 0.0, %v530
        %532 = vdwg.mxu0
        %533 = vmatpush.msra.mxu0 %v370
        %534 = vmatpush.msra.mxu0 %v369
        %535 = vmatpush.msra.mxu0 %v368
        %536 = vmatpush.msra.mxu0 %v367
        %537 = vmatpush.msra.mxu0 %v366
        %538 = vmatpush.msra.mxu0 %v365
        %539 = vmatpush.msra.mxu0 %v364
        %540 = vmatpush.msra.mxu0 %v363
        %541 = vmatpush.msra.mxu0 %v362
        %542 = vmatpush.msra.mxu0 %v361
        %543 = vmatpush.msra.mxu0 %v360
        %544 = vmatpush.msra.mxu0 %v359
        %545 = vmatpush.msra.mxu0 %v358
        %546 = vmatpush.msra.mxu0 %v357
        %547 = vmatpush.msra.mxu0 %v356
        %548 = vmatpush.msra.mxu0 %v355
        %549 = vmatmul.f32.gmra.mxu0 %v323
        %v550 = vpop.f32.mrf.mxu0
        %v551 = vadd.f32 %v438, %v550
        %552 = vmatmul.f32.gmra.mxu0 %v324
        %v553 = vpop.f32.mrf.mxu0
        %v554 = vadd.f32 %v441, %v553
        %555 = vmatmul.f32.gmra.mxu0 %v325
        %v556 = vpop.f32.mrf.mxu0
        %v557 = vadd.f32 %v444, %v556
        %558 = vmatmul.f32.gmra.mxu0 %v326
        %v559 = vpop.f32.mrf.mxu0
        %v560 = vadd.f32 %v447, %v559
        %561 = vmatmul.f32.gmra.mxu0 %v327
        %v562 = vpop.f32.mrf.mxu0
        %v563 = vadd.f32 %v450, %v562
        %564 = vmatmul.f32.gmra.mxu0 %v328
        %v565 = vpop.f32.mrf.mxu0
        %v566 = vadd.f32 %v453, %v565
        %567 = vmatmul.f32.gmra.mxu0 %v329
        %v568 = vpop.f32.mrf.mxu0
        %v569 = vadd.f32 %v456, %v568
        %570 = vmatmul.f32.gmra.mxu0 %v330
        %v571 = vpop.f32.mrf.mxu0
        %v572 = vadd.f32 %v459, %v571
        %573 = vmatmul.f32.gmra.mxu0 %v331
        %v574 = vpop.f32.mrf.mxu0
        %v575 = vadd.f32 %v462, %v574
        %576 = vmatmul.f32.gmra.mxu0 %v332
        %v577 = vpop.f32.mrf.mxu0
        %v578 = vadd.f32 %v465, %v577
        %579 = vmatmul.f32.gmra.mxu0 %v333
        %v580 = vpop.f32.mrf.mxu0
        %v581 = vadd.f32 %v468, %v580
        %582 = vmatmul.f32.gmra.mxu0 %v334
        %v583 = vpop.f32.mrf.mxu0
        %v584 = vadd.f32 %v471, %v583
        %585 = vmatmul.f32.gmra.mxu0 %v335
        %v586 = vpop.f32.mrf.mxu0
        %v587 = vadd.f32 %v474, %v586
        %588 = vmatmul.f32.gmra.mxu0 %v336
        %v589 = vpop.f32.mrf.mxu0
        %v590 = vadd.f32 %v477, %v589
        %591 = vmatmul.f32.gmra.mxu0 %v337
        %v592 = vpop.f32.mrf.mxu0
        %v593 = vadd.f32 %v480, %v592
        %594 = vmatmul.f32.gmra.mxu0 %v338
        %v595 = vpop.f32.mrf.mxu0
        %v596 = vadd.f32 %v483, %v595
        %597 = vmatmul.f32.gmra.mxu0 %v339
        %v598 = vpop.f32.mrf.mxu0
        %v599 = vadd.f32 %v486, %v598
        %600 = vmatmul.f32.gmra.mxu0 %v340
        %v601 = vpop.f32.mrf.mxu0
        %v602 = vadd.f32 %v489, %v601
        %603 = vmatmul.f32.gmra.mxu0 %v341
        %v604 = vpop.f32.mrf.mxu0
        %v605 = vadd.f32 %v492, %v604
        %606 = vmatmul.f32.gmra.mxu0 %v342
        %v607 = vpop.f32.mrf.mxu0
        %v608 = vadd.f32 %v495, %v607
        %609 = vmatmul.f32.gmra.mxu0 %v343
        %v610 = vpop.f32.mrf.mxu0
        %v611 = vadd.f32 %v498, %v610
        %612 = vmatmul.f32.gmra.mxu0 %v344
        %v613 = vpop.f32.mrf.mxu0
        %v614 = vadd.f32 %v501, %v613
        %615 = vmatmul.f32.gmra.mxu0 %v345
        %v616 = vpop.f32.mrf.mxu0
        %v617 = vadd.f32 %v504, %v616
        %618 = vmatmul.f32.gmra.mxu0 %v346
        %v619 = vpop.f32.mrf.mxu0
        %v620 = vadd.f32 %v507, %v619
        %621 = vmatmul.f32.gmra.mxu0 %v347
        %v622 = vpop.f32.mrf.mxu0
        %v623 = vadd.f32 %v510, %v622
        %624 = vmatmul.f32.gmra.mxu0 %v348
        %v625 = vpop.f32.mrf.mxu0
        %v626 = vadd.f32 %v513, %v625
        %627 = vmatmul.f32.gmra.mxu0 %v349
        %v628 = vpop.f32.mrf.mxu0
        %v629 = vadd.f32 %v516, %v628
        %630 = vmatmul.f32.gmra.mxu0 %v350
        %v631 = vpop.f32.mrf.mxu0
        %v632 = vadd.f32 %v519, %v631
        %633 = vmatmul.f32.gmra.mxu0 %v351
        %v634 = vpop.f32.mrf.mxu0
        %v635 = vadd.f32 %v522, %v634
        %636 = vmatmul.f32.gmra.mxu0 %v352
        %v637 = vpop.f32.mrf.mxu0
        %v638 = vadd.f32 %v525, %v637
        %639 = vmatmul.f32.gmra.mxu0 %v353
        %v640 = vpop.f32.mrf.mxu0
        %v641 = vadd.f32 %v528, %v640
        %642 = vmatmul.f32.gmra.mxu0 %v354
        %v643 = vpop.f32.mrf.mxu0
        %v644 = vadd.f32 %v531, %v643
        %645 = vdwg.mxu0
        %v646 = vld [vmem:[#allocation2 + $0x2] sm:$0xff]
        %v647 = vld [vmem:[#allocation2 + $0xa] sm:$0xff]
        %v648 = vld [vmem:[#allocation2 + $0x1a] sm:$0xff]
        %v649 = vld [vmem:[#allocation2 + $0x22] sm:$0xff]
        %v650 = vld [vmem:[#allocation2 + $0x32] sm:$0xff]
        %v651 = vld [vmem:[#allocation2 + $0x3a] sm:$0xff]
        %v652 = vld [vmem:[#allocation2 + $0x4a] sm:$0xff]
        %v653 = vld [vmem:[#allocation2 + $0x52] sm:$0xff]
        %v654 = vld [vmem:[#allocation2 + $0x62] sm:$0xff]
        %v655 = vld [vmem:[#allocation2 + $0x6a] sm:$0xff]
        %v656 = vld [vmem:[#allocation2 + $0x7a] sm:$0xff]
        %v657 = vld [vmem:[#allocation2 + $0x82] sm:$0xff]
        %v658 = vld [vmem:[#allocation2 + $0x92] sm:$0xff]
        %v659 = vld [vmem:[#allocation2 + $0x9a] sm:$0xff]
        %v660 = vld [vmem:[#allocation2 + $0xaa] sm:$0xff]
        %v661 = vld [vmem:[#allocation2 + $0xb2] sm:$0xff]
        %v662 = vld [vmem:[#allocation2 + $0xc2] sm:$0xff]
        %v663 = vld [vmem:[#allocation2 + $0xca] sm:$0xff]
        %v664 = vld [vmem:[#allocation2 + $0xda] sm:$0xff]
        %v665 = vld [vmem:[#allocation2 + $0xe2] sm:$0xff]
        %v666 = vld [vmem:[#allocation2 + $0xf2] sm:$0xff]
        %v667 = vld [vmem:[#allocation2 + $0xfa] sm:$0xff]
        %v668 = vld [vmem:[#allocation2 + $0x10a] sm:$0xff]
        %v669 = vld [vmem:[#allocation2 + $0x112] sm:$0xff]
        %v670 = vld [vmem:[#allocation2 + $0x122] sm:$0xff]
        %v671 = vld [vmem:[#allocation2 + $0x12a] sm:$0xff]
        %v672 = vld [vmem:[#allocation2 + $0x13a] sm:$0xff]
        %v673 = vld [vmem:[#allocation2 + $0x142] sm:$0xff]
        %v674 = vld [vmem:[#allocation2 + $0x152] sm:$0xff]
        %v675 = vld [vmem:[#allocation2 + $0x15a] sm:$0xff]
        %v676 = vld [vmem:[#allocation2 + $0x16a] sm:$0xff]
        %v677 = vld [vmem:[#allocation2 + $0x172] sm:$0xff]
        %s678 = scalar_lea.vmem [#allocation3], 256
        %v679 = vld [vmem:[%s678] sm:$0xff]
        %v680 = vld [vmem:[%s678 + $0x8] sm:$0xff]
        %v681 = vld [vmem:[%s678 + $0x10] sm:$0xff]
        %v682 = vld [vmem:[%s678 + $0x18] sm:$0xff]
        %v683 = vld [vmem:[%s678 + $0x20] sm:$0xff]
        %v684 = vld [vmem:[%s678 + $0x28] sm:$0xff]
        %v685 = vld [vmem:[%s678 + $0x30] sm:$0xff]
        %v686 = vld [vmem:[%s678 + $0x38] sm:$0xff]
        %v687 = vld [vmem:[%s678 + $0x40] sm:$0xff]
        %v688 = vld [vmem:[%s678 + $0x48] sm:$0xff]
        %v689 = vld [vmem:[%s678 + $0x50] sm:$0xff]
        %v690 = vld [vmem:[%s678 + $0x58] sm:$0xff]
        %v691 = vld [vmem:[%s678 + $0x60] sm:$0xff]
        %v692 = vld [vmem:[%s678 + $0x68] sm:$0xff]
        %v693 = vld [vmem:[%s678 + $0x70] sm:$0xff]
        %v694 = vld [vmem:[%s678 + $0x78] sm:$0xff]
        %695 = vmatpush.msra.mxu0 %v694
        %696 = vmatpush.msra.mxu0 %v693
        %697 = vmatpush.msra.mxu0 %v692
        %698 = vmatpush.msra.mxu0 %v691
        %699 = vmatpush.msra.mxu0 %v690
        %700 = vmatpush.msra.mxu0 %v689
        %701 = vmatpush.msra.mxu0 %v688
        %702 = vmatpush.msra.mxu0 %v687
        %703 = vmatpush.msra.mxu0 %v686
        %704 = vmatpush.msra.mxu0 %v685
        %705 = vmatpush.msra.mxu0 %v684
        %706 = vmatpush.msra.mxu0 %v683
        %707 = vmatpush.msra.mxu0 %v682
        %708 = vmatpush.msra.mxu0 %v681
        %709 = vmatpush.msra.mxu0 %v680
        %710 = vmatpush.msra.mxu0 %v679
        %711 = vmatmul.f32.gmra.mxu0 %v646
        %v712 = vpop.f32.mrf.mxu0
        %v713 = vadd.f32 0.0, %v712
        %714 = vmatmul.f32.gmra.mxu0 %v647
        %v715 = vpop.f32.mrf.mxu0
        %v716 = vadd.f32 0.0, %v715
        %717 = vmatmul.f32.gmra.mxu0 %v648
        %v718 = vpop.f32.mrf.mxu0
        %v719 = vadd.f32 0.0, %v718
        %720 = vmatmul.f32.gmra.mxu0 %v649
        %v721 = vpop.f32.mrf.mxu0
        %v722 = vadd.f32 0.0, %v721
        %723 = vmatmul.f32.gmra.mxu0 %v650
        %v724 = vpop.f32.mrf.mxu0
        %v725 = vadd.f32 0.0, %v724
        %726 = vmatmul.f32.gmra.mxu0 %v651
        %v727 = vpop.f32.mrf.mxu0
        %v728 = vadd.f32 0.0, %v727
        %729 = vmatmul.f32.gmra.mxu0 %v652
        %v730 = vpop.f32.mrf.mxu0
        %v731 = vadd.f32 0.0, %v730
        %732 = vmatmul.f32.gmra.mxu0 %v653
        %v733 = vpop.f32.mrf.mxu0
        %v734 = vadd.f32 0.0, %v733
        %735 = vmatmul.f32.gmra.mxu0 %v654
        %v736 = vpop.f32.mrf.mxu0
        %v737 = vadd.f32 0.0, %v736
        %738 = vmatmul.f32.gmra.mxu0 %v655
        %v739 = vpop.f32.mrf.mxu0
        %v740 = vadd.f32 0.0, %v739
        %741 = vmatmul.f32.gmra.mxu0 %v656
        %v742 = vpop.f32.mrf.mxu0
        %v743 = vadd.f32 0.0, %v742
        %744 = vmatmul.f32.gmra.mxu0 %v657
        %v745 = vpop.f32.mrf.mxu0
        %v746 = vadd.f32 0.0, %v745
        %747 = vmatmul.f32.gmra.mxu0 %v658
        %v748 = vpop.f32.mrf.mxu0
        %v749 = vadd.f32 0.0, %v748
        %750 = vmatmul.f32.gmra.mxu0 %v659
        %v751 = vpop.f32.mrf.mxu0
        %v752 = vadd.f32 0.0, %v751
        %753 = vmatmul.f32.gmra.mxu0 %v660
        %v754 = vpop.f32.mrf.mxu0
        %v755 = vadd.f32 0.0, %v754
        %756 = vmatmul.f32.gmra.mxu0 %v661
        %v757 = vpop.f32.mrf.mxu0
        %v758 = vadd.f32 0.0, %v757
        %759 = vmatmul.f32.gmra.mxu0 %v662
        %v760 = vpop.f32.mrf.mxu0
        %v761 = vadd.f32 0.0, %v760
        %762 = vmatmul.f32.gmra.mxu0 %v663
        %v763 = vpop.f32.mrf.mxu0
        %v764 = vadd.f32 0.0, %v763
        %765 = vmatmul.f32.gmra.mxu0 %v664
        %v766 = vpop.f32.mrf.mxu0
        %v767 = vadd.f32 0.0, %v766
        %768 = vmatmul.f32.gmra.mxu0 %v665
        %v769 = vpop.f32.mrf.mxu0
        %v770 = vadd.f32 0.0, %v769
        %771 = vmatmul.f32.gmra.mxu0 %v666
        %v772 = vpop.f32.mrf.mxu0
        %v773 = vadd.f32 0.0, %v772
        %774 = vmatmul.f32.gmra.mxu0 %v667
        %v775 = vpop.f32.mrf.mxu0
        %v776 = vadd.f32 0.0, %v775
        %777 = vmatmul.f32.gmra.mxu0 %v668
        %v778 = vpop.f32.mrf.mxu0
        %v779 = vadd.f32 0.0, %v778
        %780 = vmatmul.f32.gmra.mxu0 %v669
        %v781 = vpop.f32.mrf.mxu0
        %v782 = vadd.f32 0.0, %v781
        %783 = vmatmul.f32.gmra.mxu0 %v670
        %v784 = vpop.f32.mrf.mxu0
        %v785 = vadd.f32 0.0, %v784
        %786 = vmatmul.f32.gmra.mxu0 %v671
        %v787 = vpop.f32.mrf.mxu0
        %v788 = vadd.f32 0.0, %v787
        %789 = vmatmul.f32.gmra.mxu0 %v672
        %v790 = vpop.f32.mrf.mxu0
        %v791 = vadd.f32 0.0, %v790
        %792 = vmatmul.f32.gmra.mxu0 %v673
        %v793 = vpop.f32.mrf.mxu0
        %v794 = vadd.f32 0.0, %v793
        %795 = vmatmul.f32.gmra.mxu0 %v674
        %v796 = vpop.f32.mrf.mxu0
        %v797 = vadd.f32 0.0, %v796
        %798 = vmatmul.f32.gmra.mxu0 %v675
        %v799 = vpop.f32.mrf.mxu0
        %v800 = vadd.f32 0.0, %v799
        %801 = vmatmul.f32.gmra.mxu0 %v676
        %v802 = vpop.f32.mrf.mxu0
        %v803 = vadd.f32 0.0, %v802
        %804 = vmatmul.f32.gmra.mxu0 %v677
        %v805 = vpop.f32.mrf.mxu0
        %v806 = vadd.f32 0.0, %v805
        %807 = vdwg.mxu0
        %v808 = vadd.f32 %v551, %v713
        %v809 = vadd.f32 %v554, %v716
        %v810 = vadd.f32 %v557, %v719
        %v811 = vadd.f32 %v560, %v722
        %v812 = vadd.f32 %v563, %v725
        %v813 = vadd.f32 %v566, %v728
        %v814 = vadd.f32 %v569, %v731
        %v815 = vadd.f32 %v572, %v734
        %v816 = vadd.f32 %v575, %v737
        %v817 = vadd.f32 %v578, %v740
        %v818 = vadd.f32 %v581, %v743
        %v819 = vadd.f32 %v584, %v746
        %v820 = vadd.f32 %v587, %v749
        %v821 = vadd.f32 %v590, %v752
        %v822 = vadd.f32 %v593, %v755
        %v823 = vadd.f32 %v596, %v758
        %v824 = vadd.f32 %v599, %v761
        %v825 = vadd.f32 %v602, %v764
        %v826 = vadd.f32 %v605, %v767
        %v827 = vadd.f32 %v608, %v770
        %v828 = vadd.f32 %v611, %v773
        %v829 = vadd.f32 %v614, %v776
        %v830 = vadd.f32 %v617, %v779
        %v831 = vadd.f32 %v620, %v782
        %v832 = vadd.f32 %v623, %v785
        %v833 = vadd.f32 %v626, %v788
        %v834 = vadd.f32 %v629, %v791
        %v835 = vadd.f32 %v632, %v794
        %v836 = vadd.f32 %v635, %v797
        %v837 = vadd.f32 %v638, %v800
        %v838 = vadd.f32 %v641, %v803
        %v839 = vadd.f32 %v644, %v806
        %v840 = vld [vmem:[%s289] sm:$0xff]
        %v841 = vld [vmem:[%s289 + $0x8] sm:$0xff]
        %v842 = vld [vmem:[%s289 + $0x18] sm:$0xff]
        %v843 = vld [vmem:[%s289 + $0x20] sm:$0xff]
        %v844 = vld [vmem:[%s289 + $0x30] sm:$0xff]
        %v845 = vld [vmem:[%s289 + $0x38] sm:$0xff]
        %v846 = vld [vmem:[%s289 + $0x48] sm:$0xff]
        %v847 = vld [vmem:[%s289 + $0x50] sm:$0xff]
        %v848 = vld [vmem:[%s289 + $0x60] sm:$0xff]
        %v849 = vld [vmem:[%s289 + $0x68] sm:$0xff]
        %v850 = vld [vmem:[%s289 + $0x78] sm:$0xff]
        %v851 = vld [vmem:[%s289 + $0x80] sm:$0xff]
        %v852 = vld [vmem:[%s289 + $0x90] sm:$0xff]
        %v853 = vld [vmem:[%s289 + $0x98] sm:$0xff]
        %v854 = vld [vmem:[%s289 + $0xa8] sm:$0xff]
        %v855 = vld [vmem:[%s289 + $0xb0] sm:$0xff]
        %v856 = vld [vmem:[%s289 + $0xc0] sm:$0xff]
        %v857 = vld [vmem:[%s289 + $0xc8] sm:$0xff]
        %v858 = vld [vmem:[%s289 + $0xd8] sm:$0xff]
        %v859 = vld [vmem:[%s289 + $0xe0] sm:$0xff]
        %v860 = vld [vmem:[%s289 + $0xf0] sm:$0xff]
        %v861 = vld [vmem:[%s289 + $0xf8] sm:$0xff]
        %v862 = vld [vmem:[%s289 + $0x108] sm:$0xff]
        %v863 = vld [vmem:[%s289 + $0x110] sm:$0xff]
        %v864 = vld [vmem:[%s289 + $0x120] sm:$0xff]
        %v865 = vld [vmem:[%s289 + $0x128] sm:$0xff]
        %v866 = vld [vmem:[%s289 + $0x138] sm:$0xff]
        %v867 = vld [vmem:[%s289 + $0x140] sm:$0xff]
        %v868 = vld [vmem:[%s289 + $0x150] sm:$0xff]
        %v869 = vld [vmem:[%s289 + $0x158] sm:$0xff]
        %v870 = vld [vmem:[%s289 + $0x168] sm:$0xff]
        %v871 = vld [vmem:[%s289 + $0x170] sm:$0xff]
        %s872 = scalar_lea.vmem [#allocation3], 384
        %v873 = vld [vmem:[%s872] sm:$0xff]
        %v874 = vld [vmem:[%s872 + $0x8] sm:$0xff]
        %v875 = vld [vmem:[%s872 + $0x10] sm:$0xff]
        %v876 = vld [vmem:[%s872 + $0x18] sm:$0xff]
        %v877 = vld [vmem:[%s872 + $0x20] sm:$0xff]
        %v878 = vld [vmem:[%s872 + $0x28] sm:$0xff]
        %v879 = vld [vmem:[%s872 + $0x30] sm:$0xff]
        %v880 = vld [vmem:[%s872 + $0x38] sm:$0xff]
        %v881 = vld [vmem:[%s872 + $0x40] sm:$0xff]
        %v882 = vld [vmem:[%s872 + $0x48] sm:$0xff]
        %v883 = vld [vmem:[%s872 + $0x50] sm:$0xff]
        %v884 = vld [vmem:[%s872 + $0x58] sm:$0xff]
        %v885 = vld [vmem:[%s872 + $0x60] sm:$0xff]
        %v886 = vld [vmem:[%s872 + $0x68] sm:$0xff]
        %v887 = vld [vmem:[%s872 + $0x70] sm:$0xff]
        %v888 = vld [vmem:[%s872 + $0x78] sm:$0xff]
        %889 = vmatpush.msra.mxu0 %v888
        %890 = vmatpush.msra.mxu0 %v887
        %891 = vmatpush.msra.mxu0 %v886
        %892 = vmatpush.msra.mxu0 %v885
        %893 = vmatpush.msra.mxu0 %v884
        %894 = vmatpush.msra.mxu0 %v883
        %895 = vmatpush.msra.mxu0 %v882
        %896 = vmatpush.msra.mxu0 %v881
        %897 = vmatpush.msra.mxu0 %v880
        %898 = vmatpush.msra.mxu0 %v879
        %899 = vmatpush.msra.mxu0 %v878
        %900 = vmatpush.msra.mxu0 %v877
        %901 = vmatpush.msra.mxu0 %v876
        %902 = vmatpush.msra.mxu0 %v875
        %903 = vmatpush.msra.mxu0 %v874
        %904 = vmatpush.msra.mxu0 %v873
        %905 = vmatmul.f32.gmra.mxu0 %v840
        %v906 = vpop.f32.mrf.mxu0
        %v907 = vadd.f32 0.0, %v906
        %908 = vmatmul.f32.gmra.mxu0 %v841
        %v909 = vpop.f32.mrf.mxu0
        %v910 = vadd.f32 0.0, %v909
        %911 = vmatmul.f32.gmra.mxu0 %v842
        %v912 = vpop.f32.mrf.mxu0
        %v913 = vadd.f32 0.0, %v912
        %914 = vmatmul.f32.gmra.mxu0 %v843
        %v915 = vpop.f32.mrf.mxu0
        %v916 = vadd.f32 0.0, %v915
        %917 = vmatmul.f32.gmra.mxu0 %v844
        %v918 = vpop.f32.mrf.mxu0
        %v919 = vadd.f32 0.0, %v918
        %920 = vmatmul.f32.gmra.mxu0 %v845
        %v921 = vpop.f32.mrf.mxu0
        %v922 = vadd.f32 0.0, %v921
        %923 = vmatmul.f32.gmra.mxu0 %v846
        %v924 = vpop.f32.mrf.mxu0
        %v925 = vadd.f32 0.0, %v924
        %926 = vmatmul.f32.gmra.mxu0 %v847
        %v927 = vpop.f32.mrf.mxu0
        %v928 = vadd.f32 0.0, %v927
        %929 = vmatmul.f32.gmra.mxu0 %v848
        %v930 = vpop.f32.mrf.mxu0
        %v931 = vadd.f32 0.0, %v930
        %932 = vmatmul.f32.gmra.mxu0 %v849
        %v933 = vpop.f32.mrf.mxu0
        %v934 = vadd.f32 0.0, %v933
        %935 = vmatmul.f32.gmra.mxu0 %v850
        %v936 = vpop.f32.mrf.mxu0
        %v937 = vadd.f32 0.0, %v936
        %938 = vmatmul.f32.gmra.mxu0 %v851
        %v939 = vpop.f32.mrf.mxu0
        %v940 = vadd.f32 0.0, %v939
        %941 = vmatmul.f32.gmra.mxu0 %v852
        %v942 = vpop.f32.mrf.mxu0
        %v943 = vadd.f32 0.0, %v942
        %944 = vmatmul.f32.gmra.mxu0 %v853
        %v945 = vpop.f32.mrf.mxu0
        %v946 = vadd.f32 0.0, %v945
        %947 = vmatmul.f32.gmra.mxu0 %v854
        %v948 = vpop.f32.mrf.mxu0
        %v949 = vadd.f32 0.0, %v948
        %950 = vmatmul.f32.gmra.mxu0 %v855
        %v951 = vpop.f32.mrf.mxu0
        %v952 = vadd.f32 0.0, %v951
        %953 = vmatmul.f32.gmra.mxu0 %v856
        %v954 = vpop.f32.mrf.mxu0
        %v955 = vadd.f32 0.0, %v954
        %956 = vmatmul.f32.gmra.mxu0 %v857
        %v957 = vpop.f32.mrf.mxu0
        %v958 = vadd.f32 0.0, %v957
        %959 = vmatmul.f32.gmra.mxu0 %v858
        %v960 = vpop.f32.mrf.mxu0
        %v961 = vadd.f32 0.0, %v960
        %962 = vmatmul.f32.gmra.mxu0 %v859
        %v963 = vpop.f32.mrf.mxu0
        %v964 = vadd.f32 0.0, %v963
        %965 = vmatmul.f32.gmra.mxu0 %v860
        %v966 = vpop.f32.mrf.mxu0
        %v967 = vadd.f32 0.0, %v966
        %968 = vmatmul.f32.gmra.mxu0 %v861
        %v969 = vpop.f32.mrf.mxu0
        %v970 = vadd.f32 0.0, %v969
        %971 = vmatmul.f32.gmra.mxu0 %v862
        %v972 = vpop.f32.mrf.mxu0
        %v973 = vadd.f32 0.0, %v972
        %974 = vmatmul.f32.gmra.mxu0 %v863
        %v975 = vpop.f32.mrf.mxu0
        %v976 = vadd.f32 0.0, %v975
        %977 = vmatmul.f32.gmra.mxu0 %v864
        %v978 = vpop.f32.mrf.mxu0
        %v979 = vadd.f32 0.0, %v978
        %980 = vmatmul.f32.gmra.mxu0 %v865
        %v981 = vpop.f32.mrf.mxu0
        %v982 = vadd.f32 0.0, %v981
        %983 = vmatmul.f32.gmra.mxu0 %v866
        %v984 = vpop.f32.mrf.mxu0
        %v985 = vadd.f32 0.0, %v984
        %986 = vmatmul.f32.gmra.mxu0 %v867
        %v987 = vpop.f32.mrf.mxu0
        %v988 = vadd.f32 0.0, %v987
        %989 = vmatmul.f32.gmra.mxu0 %v868
        %v990 = vpop.f32.mrf.mxu0
        %v991 = vadd.f32 0.0, %v990
        %992 = vmatmul.f32.gmra.mxu0 %v869
        %v993 = vpop.f32.mrf.mxu0
        %v994 = vadd.f32 0.0, %v993
        %995 = vmatmul.f32.gmra.mxu0 %v870
        %v996 = vpop.f32.mrf.mxu0
        %v997 = vadd.f32 0.0, %v996
        %998 = vmatmul.f32.gmra.mxu0 %v871
        %v999 = vpop.f32.mrf.mxu0
        %v1000 = vadd.f32 0.0, %v999
        %1001 = vdwg.mxu0
        %v1002 = vadd.f32 %v808, %v907
        %v1003 = vadd.f32 %v809, %v910
        %v1004 = vadd.f32 %v810, %v913
        %v1005 = vadd.f32 %v811, %v916
        %v1006 = vadd.f32 %v812, %v919
        %v1007 = vadd.f32 %v813, %v922
        %v1008 = vadd.f32 %v814, %v925
        %v1009 = vadd.f32 %v815, %v928
        %v1010 = vadd.f32 %v816, %v931
        %v1011 = vadd.f32 %v817, %v934
        %v1012 = vadd.f32 %v818, %v937
        %v1013 = vadd.f32 %v819, %v940
        %v1014 = vadd.f32 %v820, %v943
        %v1015 = vadd.f32 %v821, %v946
        %v1016 = vadd.f32 %v822, %v949
        %v1017 = vadd.f32 %v823, %v952
        %v1018 = vadd.f32 %v824, %v955
        %v1019 = vadd.f32 %v825, %v958
        %v1020 = vadd.f32 %v826, %v961
        %v1021 = vadd.f32 %v827, %v964
        %v1022 = vadd.f32 %v828, %v967
        %v1023 = vadd.f32 %v829, %v970
        %v1024 = vadd.f32 %v830, %v973
        %v1025 = vadd.f32 %v831, %v976
        %v1026 = vadd.f32 %v832, %v979
        %v1027 = vadd.f32 %v833, %v982
        %v1028 = vadd.f32 %v834, %v985
        %v1029 = vadd.f32 %v835, %v988
        %v1030 = vadd.f32 %v836, %v991
        %v1031 = vadd.f32 %v837, %v994
        %v1032 = vadd.f32 %v838, %v997
        %v1033 = vadd.f32 %v839, %v1000
        %v1034 = vld [vmem:[%s289 + $0x1] sm:$0xff]
        %v1035 = vld [vmem:[%s289 + $0x9] sm:$0xff]
        %v1036 = vld [vmem:[%s289 + $0x19] sm:$0xff]
        %v1037 = vld [vmem:[%s289 + $0x21] sm:$0xff]
        %v1038 = vld [vmem:[%s289 + $0x31] sm:$0xff]
        %v1039 = vld [vmem:[%s289 + $0x39] sm:$0xff]
        %v1040 = vld [vmem:[%s289 + $0x49] sm:$0xff]
        %v1041 = vld [vmem:[%s289 + $0x51] sm:$0xff]
        %v1042 = vld [vmem:[%s289 + $0x61] sm:$0xff]
        %v1043 = vld [vmem:[%s289 + $0x69] sm:$0xff]
        %v1044 = vld [vmem:[%s289 + $0x79] sm:$0xff]
        %v1045 = vld [vmem:[%s289 + $0x81] sm:$0xff]
        %v1046 = vld [vmem:[%s289 + $0x91] sm:$0xff]
        %v1047 = vld [vmem:[%s289 + $0x99] sm:$0xff]
        %v1048 = vld [vmem:[%s289 + $0xa9] sm:$0xff]
        %v1049 = vld [vmem:[%s289 + $0xb1] sm:$0xff]
        %v1050 = vld [vmem:[%s289 + $0xc1] sm:$0xff]
        %v1051 = vld [vmem:[%s289 + $0xc9] sm:$0xff]
        %v1052 = vld [vmem:[%s289 + $0xd9] sm:$0xff]
        %v1053 = vld [vmem:[%s289 + $0xe1] sm:$0xff]
        %v1054 = vld [vmem:[%s289 + $0xf1] sm:$0xff]
        %v1055 = vld [vmem:[%s289 + $0xf9] sm:$0xff]
        %v1056 = vld [vmem:[%s289 + $0x109] sm:$0xff]
        %v1057 = vld [vmem:[%s289 + $0x111] sm:$0xff]
        %v1058 = vld [vmem:[%s289 + $0x121] sm:$0xff]
        %v1059 = vld [vmem:[%s289 + $0x129] sm:$0xff]
        %v1060 = vld [vmem:[%s289 + $0x139] sm:$0xff]
        %v1061 = vld [vmem:[%s289 + $0x141] sm:$0xff]
        %v1062 = vld [vmem:[%s289 + $0x151] sm:$0xff]
        %v1063 = vld [vmem:[%s289 + $0x159] sm:$0xff]
        %v1064 = vld [vmem:[%s289 + $0x169] sm:$0xff]
        %v1065 = vld [vmem:[%s289 + $0x171] sm:$0xff]
        %s1066 = scalar_lea.vmem [#allocation3], 512
        %v1067 = vld [vmem:[%s1066] sm:$0xff]
        %v1068 = vld [vmem:[%s1066 + $0x8] sm:$0xff]
        %v1069 = vld [vmem:[%s1066 + $0x10] sm:$0xff]
        %v1070 = vld [vmem:[%s1066 + $0x18] sm:$0xff]
        %v1071 = vld [vmem:[%s1066 + $0x20] sm:$0xff]
        %v1072 = vld [vmem:[%s1066 + $0x28] sm:$0xff]
        %v1073 = vld [vmem:[%s1066 + $0x30] sm:$0xff]
        %v1074 = vld [vmem:[%s1066 + $0x38] sm:$0xff]
        %v1075 = vld [vmem:[%s1066 + $0x40] sm:$0xff]
        %v1076 = vld [vmem:[%s1066 + $0x48] sm:$0xff]
        %v1077 = vld [vmem:[%s1066 + $0x50] sm:$0xff]
        %v1078 = vld [vmem:[%s1066 + $0x58] sm:$0xff]
        %v1079 = vld [vmem:[%s1066 + $0x60] sm:$0xff]
        %v1080 = vld [vmem:[%s1066 + $0x68] sm:$0xff]
        %v1081 = vld [vmem:[%s1066 + $0x70] sm:$0xff]
        %v1082 = vld [vmem:[%s1066 + $0x78] sm:$0xff]
        %1083 = vmatpush.msra.mxu0 %v1082
        %1084 = vmatpush.msra.mxu0 %v1081
        %1085 = vmatpush.msra.mxu0 %v1080
        %1086 = vmatpush.msra.mxu0 %v1079
        %1087 = vmatpush.msra.mxu0 %v1078
        %1088 = vmatpush.msra.mxu0 %v1077
        %1089 = vmatpush.msra.mxu0 %v1076
        %1090 = vmatpush.msra.mxu0 %v1075
        %1091 = vmatpush.msra.mxu0 %v1074
        %1092 = vmatpush.msra.mxu0 %v1073
        %1093 = vmatpush.msra.mxu0 %v1072
        %1094 = vmatpush.msra.mxu0 %v1071
        %1095 = vmatpush.msra.mxu0 %v1070
        %1096 = vmatpush.msra.mxu0 %v1069
        %1097 = vmatpush.msra.mxu0 %v1068
        %1098 = vmatpush.msra.mxu0 %v1067
        %1099 = vmatmul.f32.gmra.mxu0 %v1034
        %v1100 = vpop.f32.mrf.mxu0
        %v1101 = vadd.f32 0.0, %v1100
        %1102 = vmatmul.f32.gmra.mxu0 %v1035
        %v1103 = vpop.f32.mrf.mxu0
        %v1104 = vadd.f32 0.0, %v1103
        %1105 = vmatmul.f32.gmra.mxu0 %v1036
        %v1106 = vpop.f32.mrf.mxu0
        %v1107 = vadd.f32 0.0, %v1106
        %1108 = vmatmul.f32.gmra.mxu0 %v1037
        %v1109 = vpop.f32.mrf.mxu0
        %v1110 = vadd.f32 0.0, %v1109
        %1111 = vmatmul.f32.gmra.mxu0 %v1038
        %v1112 = vpop.f32.mrf.mxu0
        %v1113 = vadd.f32 0.0, %v1112
        %1114 = vmatmul.f32.gmra.mxu0 %v1039
        %v1115 = vpop.f32.mrf.mxu0
        %v1116 = vadd.f32 0.0, %v1115
        %1117 = vmatmul.f32.gmra.mxu0 %v1040
        %v1118 = vpop.f32.mrf.mxu0
        %v1119 = vadd.f32 0.0, %v1118
        %1120 = vmatmul.f32.gmra.mxu0 %v1041
        %v1121 = vpop.f32.mrf.mxu0
        %v1122 = vadd.f32 0.0, %v1121
        %1123 = vmatmul.f32.gmra.mxu0 %v1042
        %v1124 = vpop.f32.mrf.mxu0
        %v1125 = vadd.f32 0.0, %v1124
        %1126 = vmatmul.f32.gmra.mxu0 %v1043
        %v1127 = vpop.f32.mrf.mxu0
        %v1128 = vadd.f32 0.0, %v1127
        %1129 = vmatmul.f32.gmra.mxu0 %v1044
        %v1130 = vpop.f32.mrf.mxu0
        %v1131 = vadd.f32 0.0, %v1130
        %1132 = vmatmul.f32.gmra.mxu0 %v1045
        %v1133 = vpop.f32.mrf.mxu0
        %v1134 = vadd.f32 0.0, %v1133
        %1135 = vmatmul.f32.gmra.mxu0 %v1046
        %v1136 = vpop.f32.mrf.mxu0
        %v1137 = vadd.f32 0.0, %v1136
        %1138 = vmatmul.f32.gmra.mxu0 %v1047
        %v1139 = vpop.f32.mrf.mxu0
        %v1140 = vadd.f32 0.0, %v1139
        %1141 = vmatmul.f32.gmra.mxu0 %v1048
        %v1142 = vpop.f32.mrf.mxu0
        %v1143 = vadd.f32 0.0, %v1142
        %1144 = vmatmul.f32.gmra.mxu0 %v1049
        %v1145 = vpop.f32.mrf.mxu0
        %v1146 = vadd.f32 0.0, %v1145
        %1147 = vmatmul.f32.gmra.mxu0 %v1050
        %v1148 = vpop.f32.mrf.mxu0
        %v1149 = vadd.f32 0.0, %v1148
        %1150 = vmatmul.f32.gmra.mxu0 %v1051
        %v1151 = vpop.f32.mrf.mxu0
        %v1152 = vadd.f32 0.0, %v1151
        %1153 = vmatmul.f32.gmra.mxu0 %v1052
        %v1154 = vpop.f32.mrf.mxu0
        %v1155 = vadd.f32 0.0, %v1154
        %1156 = vmatmul.f32.gmra.mxu0 %v1053
        %v1157 = vpop.f32.mrf.mxu0
        %v1158 = vadd.f32 0.0, %v1157
        %1159 = vmatmul.f32.gmra.mxu0 %v1054
        %v1160 = vpop.f32.mrf.mxu0
        %v1161 = vadd.f32 0.0, %v1160
        %1162 = vmatmul.f32.gmra.mxu0 %v1055
        %v1163 = vpop.f32.mrf.mxu0
        %v1164 = vadd.f32 0.0, %v1163
        %1165 = vmatmul.f32.gmra.mxu0 %v1056
        %v1166 = vpop.f32.mrf.mxu0
        %v1167 = vadd.f32 0.0, %v1166
        %1168 = vmatmul.f32.gmra.mxu0 %v1057
        %v1169 = vpop.f32.mrf.mxu0
        %v1170 = vadd.f32 0.0, %v1169
        %1171 = vmatmul.f32.gmra.mxu0 %v1058
        %v1172 = vpop.f32.mrf.mxu0
        %v1173 = vadd.f32 0.0, %v1172
        %1174 = vmatmul.f32.gmra.mxu0 %v1059
        %v1175 = vpop.f32.mrf.mxu0
        %v1176 = vadd.f32 0.0, %v1175
        %1177 = vmatmul.f32.gmra.mxu0 %v1060
        %v1178 = vpop.f32.mrf.mxu0
        %v1179 = vadd.f32 0.0, %v1178
        %1180 = vmatmul.f32.gmra.mxu0 %v1061
        %v1181 = vpop.f32.mrf.mxu0
        %v1182 = vadd.f32 0.0, %v1181
        %1183 = vmatmul.f32.gmra.mxu0 %v1062
        %v1184 = vpop.f32.mrf.mxu0
        %v1185 = vadd.f32 0.0, %v1184
        %1186 = vmatmul.f32.gmra.mxu0 %v1063
        %v1187 = vpop.f32.mrf.mxu0
        %v1188 = vadd.f32 0.0, %v1187
        %1189 = vmatmul.f32.gmra.mxu0 %v1064
        %v1190 = vpop.f32.mrf.mxu0
        %v1191 = vadd.f32 0.0, %v1190
        %1192 = vmatmul.f32.gmra.mxu0 %v1065
        %v1193 = vpop.f32.mrf.mxu0
        %v1194 = vadd.f32 0.0, %v1193
        %1195 = vdwg.mxu0
        %v1196 = vadd.f32 %v1002, %v1101
        %v1197 = vadd.f32 %v1003, %v1104
        %v1198 = vadd.f32 %v1004, %v1107
        %v1199 = vadd.f32 %v1005, %v1110
        %v1200 = vadd.f32 %v1006, %v1113
        %v1201 = vadd.f32 %v1007, %v1116
        %v1202 = vadd.f32 %v1008, %v1119
        %v1203 = vadd.f32 %v1009, %v1122
        %v1204 = vadd.f32 %v1010, %v1125
        %v1205 = vadd.f32 %v1011, %v1128
        %v1206 = vadd.f32 %v1012, %v1131
        %v1207 = vadd.f32 %v1013, %v1134
        %v1208 = vadd.f32 %v1014, %v1137
        %v1209 = vadd.f32 %v1015, %v1140
        %v1210 = vadd.f32 %v1016, %v1143
        %v1211 = vadd.f32 %v1017, %v1146
        %v1212 = vadd.f32 %v1018, %v1149
        %v1213 = vadd.f32 %v1019, %v1152
        %v1214 = vadd.f32 %v1020, %v1155
        %v1215 = vadd.f32 %v1021, %v1158
        %v1216 = vadd.f32 %v1022, %v1161
        %v1217 = vadd.f32 %v1023, %v1164
        %v1218 = vadd.f32 %v1024, %v1167
        %v1219 = vadd.f32 %v1025, %v1170
        %v1220 = vadd.f32 %v1026, %v1173
        %v1221 = vadd.f32 %v1027, %v1176
        %v1222 = vadd.f32 %v1028, %v1179
        %v1223 = vadd.f32 %v1029, %v1182
        %v1224 = vadd.f32 %v1030, %v1185
        %v1225 = vadd.f32 %v1031, %v1188
        %v1226 = vadd.f32 %v1032, %v1191
        %v1227 = vadd.f32 %v1033, %v1194
        %v1228 = vld [vmem:[%s289 + $0x2] sm:$0xff]
        %v1229 = vld [vmem:[%s289 + $0xa] sm:$0xff]
        %v1230 = vld [vmem:[%s289 + $0x1a] sm:$0xff]
        %v1231 = vld [vmem:[%s289 + $0x22] sm:$0xff]
        %v1232 = vld [vmem:[%s289 + $0x32] sm:$0xff]
        %v1233 = vld [vmem:[%s289 + $0x3a] sm:$0xff]
        %v1234 = vld [vmem:[%s289 + $0x4a] sm:$0xff]
        %v1235 = vld [vmem:[%s289 + $0x52] sm:$0xff]
        %v1236 = vld [vmem:[%s289 + $0x62] sm:$0xff]
        %v1237 = vld [vmem:[%s289 + $0x6a] sm:$0xff]
        %v1238 = vld [vmem:[%s289 + $0x7a] sm:$0xff]
        %v1239 = vld [vmem:[%s289 + $0x82] sm:$0xff]
        %v1240 = vld [vmem:[%s289 + $0x92] sm:$0xff]
        %v1241 = vld [vmem:[%s289 + $0x9a] sm:$0xff]
        %v1242 = vld [vmem:[%s289 + $0xaa] sm:$0xff]
        %v1243 = vld [vmem:[%s289 + $0xb2] sm:$0xff]
        %v1244 = vld [vmem:[%s289 + $0xc2] sm:$0xff]
        %v1245 = vld [vmem:[%s289 + $0xca] sm:$0xff]
        %v1246 = vld [vmem:[%s289 + $0xda] sm:$0xff]
        %v1247 = vld [vmem:[%s289 + $0xe2] sm:$0xff]
        %v1248 = vld [vmem:[%s289 + $0xf2] sm:$0xff]
        %v1249 = vld [vmem:[%s289 + $0xfa] sm:$0xff]
        %v1250 = vld [vmem:[%s289 + $0x10a] sm:$0xff]
        %v1251 = vld [vmem:[%s289 + $0x112] sm:$0xff]
        %v1252 = vld [vmem:[%s289 + $0x122] sm:$0xff]
        %v1253 = vld [vmem:[%s289 + $0x12a] sm:$0xff]
        %v1254 = vld [vmem:[%s289 + $0x13a] sm:$0xff]
        %v1255 = vld [vmem:[%s289 + $0x142] sm:$0xff]
        %v1256 = vld [vmem:[%s289 + $0x152] sm:$0xff]
        %v1257 = vld [vmem:[%s289 + $0x15a] sm:$0xff]
        %v1258 = vld [vmem:[%s289 + $0x16a] sm:$0xff]
        %v1259 = vld [vmem:[%s289 + $0x172] sm:$0xff]
        %s1260 = scalar_lea.vmem [#allocation3], 640
        %v1261 = vld [vmem:[%s1260] sm:$0xff]
        %v1262 = vld [vmem:[%s1260 + $0x8] sm:$0xff]
        %v1263 = vld [vmem:[%s1260 + $0x10] sm:$0xff]
        %v1264 = vld [vmem:[%s1260 + $0x18] sm:$0xff]
        %v1265 = vld [vmem:[%s1260 + $0x20] sm:$0xff]
        %v1266 = vld [vmem:[%s1260 + $0x28] sm:$0xff]
        %v1267 = vld [vmem:[%s1260 + $0x30] sm:$0xff]
        %v1268 = vld [vmem:[%s1260 + $0x38] sm:$0xff]
        %v1269 = vld [vmem:[%s1260 + $0x40] sm:$0xff]
        %v1270 = vld [vmem:[%s1260 + $0x48] sm:$0xff]
        %v1271 = vld [vmem:[%s1260 + $0x50] sm:$0xff]
        %v1272 = vld [vmem:[%s1260 + $0x58] sm:$0xff]
        %v1273 = vld [vmem:[%s1260 + $0x60] sm:$0xff]
        %v1274 = vld [vmem:[%s1260 + $0x68] sm:$0xff]
        %v1275 = vld [vmem:[%s1260 + $0x70] sm:$0xff]
        %v1276 = vld [vmem:[%s1260 + $0x78] sm:$0xff]
        %1277 = vmatpush.msra.mxu0 %v1276
        %1278 = vmatpush.msra.mxu0 %v1275
        %1279 = vmatpush.msra.mxu0 %v1274
        %1280 = vmatpush.msra.mxu0 %v1273
        %1281 = vmatpush.msra.mxu0 %v1272
        %1282 = vmatpush.msra.mxu0 %v1271
        %1283 = vmatpush.msra.mxu0 %v1270
        %1284 = vmatpush.msra.mxu0 %v1269
        %1285 = vmatpush.msra.mxu0 %v1268
        %1286 = vmatpush.msra.mxu0 %v1267
        %1287 = vmatpush.msra.mxu0 %v1266
        %1288 = vmatpush.msra.mxu0 %v1265
        %1289 = vmatpush.msra.mxu0 %v1264
        %1290 = vmatpush.msra.mxu0 %v1263
        %1291 = vmatpush.msra.mxu0 %v1262
        %1292 = vmatpush.msra.mxu0 %v1261
        %1293 = vmatmul.f32.gmra.mxu0 %v1228
        %v1294 = vpop.f32.mrf.mxu0
        %v1295 = vadd.f32 0.0, %v1294
        %1296 = vmatmul.f32.gmra.mxu0 %v1229
        %v1297 = vpop.f32.mrf.mxu0
        %v1298 = vadd.f32 0.0, %v1297
        %1299 = vmatmul.f32.gmra.mxu0 %v1230
        %v1300 = vpop.f32.mrf.mxu0
        %v1301 = vadd.f32 0.0, %v1300
        %1302 = vmatmul.f32.gmra.mxu0 %v1231
        %v1303 = vpop.f32.mrf.mxu0
        %v1304 = vadd.f32 0.0, %v1303
        %1305 = vmatmul.f32.gmra.mxu0 %v1232
        %v1306 = vpop.f32.mrf.mxu0
        %v1307 = vadd.f32 0.0, %v1306
        %1308 = vmatmul.f32.gmra.mxu0 %v1233
        %v1309 = vpop.f32.mrf.mxu0
        %v1310 = vadd.f32 0.0, %v1309
        %1311 = vmatmul.f32.gmra.mxu0 %v1234
        %v1312 = vpop.f32.mrf.mxu0
        %v1313 = vadd.f32 0.0, %v1312
        %1314 = vmatmul.f32.gmra.mxu0 %v1235
        %v1315 = vpop.f32.mrf.mxu0
        %v1316 = vadd.f32 0.0, %v1315
        %1317 = vmatmul.f32.gmra.mxu0 %v1236
        %v1318 = vpop.f32.mrf.mxu0
        %v1319 = vadd.f32 0.0, %v1318
        %1320 = vmatmul.f32.gmra.mxu0 %v1237
        %v1321 = vpop.f32.mrf.mxu0
        %v1322 = vadd.f32 0.0, %v1321
        %1323 = vmatmul.f32.gmra.mxu0 %v1238
        %v1324 = vpop.f32.mrf.mxu0
        %v1325 = vadd.f32 0.0, %v1324
        %1326 = vmatmul.f32.gmra.mxu0 %v1239
        %v1327 = vpop.f32.mrf.mxu0
        %v1328 = vadd.f32 0.0, %v1327
        %1329 = vmatmul.f32.gmra.mxu0 %v1240
        %v1330 = vpop.f32.mrf.mxu0
        %v1331 = vadd.f32 0.0, %v1330
        %1332 = vmatmul.f32.gmra.mxu0 %v1241
        %v1333 = vpop.f32.mrf.mxu0
        %v1334 = vadd.f32 0.0, %v1333
        %1335 = vmatmul.f32.gmra.mxu0 %v1242
        %v1336 = vpop.f32.mrf.mxu0
        %v1337 = vadd.f32 0.0, %v1336
        %1338 = vmatmul.f32.gmra.mxu0 %v1243
        %v1339 = vpop.f32.mrf.mxu0
        %v1340 = vadd.f32 0.0, %v1339
        %1341 = vmatmul.f32.gmra.mxu0 %v1244
        %v1342 = vpop.f32.mrf.mxu0
        %v1343 = vadd.f32 0.0, %v1342
        %1344 = vmatmul.f32.gmra.mxu0 %v1245
        %v1345 = vpop.f32.mrf.mxu0
        %v1346 = vadd.f32 0.0, %v1345
        %1347 = vmatmul.f32.gmra.mxu0 %v1246
        %v1348 = vpop.f32.mrf.mxu0
        %v1349 = vadd.f32 0.0, %v1348
        %1350 = vmatmul.f32.gmra.mxu0 %v1247
        %v1351 = vpop.f32.mrf.mxu0
        %v1352 = vadd.f32 0.0, %v1351
        %1353 = vmatmul.f32.gmra.mxu0 %v1248
        %v1354 = vpop.f32.mrf.mxu0
        %v1355 = vadd.f32 0.0, %v1354
        %1356 = vmatmul.f32.gmra.mxu0 %v1249
        %v1357 = vpop.f32.mrf.mxu0
        %v1358 = vadd.f32 0.0, %v1357
        %1359 = vmatmul.f32.gmra.mxu0 %v1250
        %v1360 = vpop.f32.mrf.mxu0
        %v1361 = vadd.f32 0.0, %v1360
        %1362 = vmatmul.f32.gmra.mxu0 %v1251
        %v1363 = vpop.f32.mrf.mxu0
        %v1364 = vadd.f32 0.0, %v1363
        %1365 = vmatmul.f32.gmra.mxu0 %v1252
        %v1366 = vpop.f32.mrf.mxu0
        %v1367 = vadd.f32 0.0, %v1366
        %1368 = vmatmul.f32.gmra.mxu0 %v1253
        %v1369 = vpop.f32.mrf.mxu0
        %v1370 = vadd.f32 0.0, %v1369
        %1371 = vmatmul.f32.gmra.mxu0 %v1254
        %v1372 = vpop.f32.mrf.mxu0
        %v1373 = vadd.f32 0.0, %v1372
        %1374 = vmatmul.f32.gmra.mxu0 %v1255
        %v1375 = vpop.f32.mrf.mxu0
        %v1376 = vadd.f32 0.0, %v1375
        %1377 = vmatmul.f32.gmra.mxu0 %v1256
        %v1378 = vpop.f32.mrf.mxu0
        %v1379 = vadd.f32 0.0, %v1378
        %1380 = vmatmul.f32.gmra.mxu0 %v1257
        %v1381 = vpop.f32.mrf.mxu0
        %v1382 = vadd.f32 0.0, %v1381
        %1383 = vmatmul.f32.gmra.mxu0 %v1258
        %v1384 = vpop.f32.mrf.mxu0
        %v1385 = vadd.f32 0.0, %v1384
        %1386 = vmatmul.f32.gmra.mxu0 %v1259
        %v1387 = vpop.f32.mrf.mxu0
        %v1388 = vadd.f32 0.0, %v1387
        %1389 = vdwg.mxu0
        %v1390 = vadd.f32 %v1196, %v1295
        %v1391 = vadd.f32 %v1197, %v1298
        %v1392 = vadd.f32 %v1198, %v1301
        %v1393 = vadd.f32 %v1199, %v1304
        %v1394 = vadd.f32 %v1200, %v1307
        %v1395 = vadd.f32 %v1201, %v1310
        %v1396 = vadd.f32 %v1202, %v1313
        %v1397 = vadd.f32 %v1203, %v1316
        %v1398 = vadd.f32 %v1204, %v1319
        %v1399 = vadd.f32 %v1205, %v1322
        %v1400 = vadd.f32 %v1206, %v1325
        %v1401 = vadd.f32 %v1207, %v1328
        %v1402 = vadd.f32 %v1208, %v1331
        %v1403 = vadd.f32 %v1209, %v1334
        %v1404 = vadd.f32 %v1210, %v1337
        %v1405 = vadd.f32 %v1211, %v1340
        %v1406 = vadd.f32 %v1212, %v1343
        %v1407 = vadd.f32 %v1213, %v1346
        %v1408 = vadd.f32 %v1214, %v1349
        %v1409 = vadd.f32 %v1215, %v1352
        %v1410 = vadd.f32 %v1216, %v1355
        %v1411 = vadd.f32 %v1217, %v1358
        %v1412 = vadd.f32 %v1218, %v1361
        %v1413 = vadd.f32 %v1219, %v1364
        %v1414 = vadd.f32 %v1220, %v1367
        %v1415 = vadd.f32 %v1221, %v1370
        %v1416 = vadd.f32 %v1222, %v1373
        %v1417 = vadd.f32 %v1223, %v1376
        %v1418 = vadd.f32 %v1224, %v1379
        %v1419 = vadd.f32 %v1225, %v1382
        %v1420 = vadd.f32 %v1226, %v1385
        %v1421 = vadd.f32 %v1227, %v1388
        %s1422 = scalar_lea.vmem [#allocation2], 48
        %v1423 = vld [vmem:[%s1422] sm:$0xff]
        %v1424 = vld [vmem:[%s1422 + $0x8] sm:$0xff]
        %v1425 = vld [vmem:[%s1422 + $0x18] sm:$0xff]
        %v1426 = vld [vmem:[%s1422 + $0x20] sm:$0xff]
        %v1427 = vld [vmem:[%s1422 + $0x30] sm:$0xff]
        %v1428 = vld [vmem:[%s1422 + $0x38] sm:$0xff]
        %v1429 = vld [vmem:[%s1422 + $0x48] sm:$0xff]
        %v1430 = vld [vmem:[%s1422 + $0x50] sm:$0xff]
        %v1431 = vld [vmem:[%s1422 + $0x60] sm:$0xff]
        %v1432 = vld [vmem:[%s1422 + $0x68] sm:$0xff]
        %v1433 = vld [vmem:[%s1422 + $0x78] sm:$0xff]
        %v1434 = vld [vmem:[%s1422 + $0x80] sm:$0xff]
        %v1435 = vld [vmem:[%s1422 + $0x90] sm:$0xff]
        %v1436 = vld [vmem:[%s1422 + $0x98] sm:$0xff]
        %v1437 = vld [vmem:[%s1422 + $0xa8] sm:$0xff]
        %v1438 = vld [vmem:[%s1422 + $0xb0] sm:$0xff]
        %v1439 = vld [vmem:[%s1422 + $0xc0] sm:$0xff]
        %v1440 = vld [vmem:[%s1422 + $0xc8] sm:$0xff]
        %v1441 = vld [vmem:[%s1422 + $0xd8] sm:$0xff]
        %v1442 = vld [vmem:[%s1422 + $0xe0] sm:$0xff]
        %v1443 = vld [vmem:[%s1422 + $0xf0] sm:$0xff]
        %v1444 = vld [vmem:[%s1422 + $0xf8] sm:$0xff]
        %v1445 = vld [vmem:[%s1422 + $0x108] sm:$0xff]
        %v1446 = vld [vmem:[%s1422 + $0x110] sm:$0xff]
        %v1447 = vld [vmem:[%s1422 + $0x120] sm:$0xff]
        %v1448 = vld [vmem:[%s1422 + $0x128] sm:$0xff]
        %v1449 = vld [vmem:[%s1422 + $0x138] sm:$0xff]
        %v1450 = vld [vmem:[%s1422 + $0x140] sm:$0xff]
        %v1451 = vld [vmem:[%s1422 + $0x150] sm:$0xff]
        %v1452 = vld [vmem:[%s1422 + $0x158] sm:$0xff]
        %v1453 = vld [vmem:[%s1422 + $0x168] sm:$0xff]
        %v1454 = vld [vmem:[%s1422 + $0x170] sm:$0xff]
        %s1455 = scalar_lea.vmem [#allocation3], 768
        %v1456 = vld [vmem:[%s1455] sm:$0xff]
        %v1457 = vld [vmem:[%s1455 + $0x8] sm:$0xff]
        %v1458 = vld [vmem:[%s1455 + $0x10] sm:$0xff]
        %v1459 = vld [vmem:[%s1455 + $0x18] sm:$0xff]
        %v1460 = vld [vmem:[%s1455 + $0x20] sm:$0xff]
        %v1461 = vld [vmem:[%s1455 + $0x28] sm:$0xff]
        %v1462 = vld [vmem:[%s1455 + $0x30] sm:$0xff]
        %v1463 = vld [vmem:[%s1455 + $0x38] sm:$0xff]
        %v1464 = vld [vmem:[%s1455 + $0x40] sm:$0xff]
        %v1465 = vld [vmem:[%s1455 + $0x48] sm:$0xff]
        %v1466 = vld [vmem:[%s1455 + $0x50] sm:$0xff]
        %v1467 = vld [vmem:[%s1455 + $0x58] sm:$0xff]
        %v1468 = vld [vmem:[%s1455 + $0x60] sm:$0xff]
        %v1469 = vld [vmem:[%s1455 + $0x68] sm:$0xff]
        %v1470 = vld [vmem:[%s1455 + $0x70] sm:$0xff]
        %v1471 = vld [vmem:[%s1455 + $0x78] sm:$0xff]
        %1472 = vmatpush.msra.mxu0 %v1471
        %1473 = vmatpush.msra.mxu0 %v1470
        %1474 = vmatpush.msra.mxu0 %v1469
        %1475 = vmatpush.msra.mxu0 %v1468
        %1476 = vmatpush.msra.mxu0 %v1467
        %1477 = vmatpush.msra.mxu0 %v1466
        %1478 = vmatpush.msra.mxu0 %v1465
        %1479 = vmatpush.msra.mxu0 %v1464
        %1480 = vmatpush.msra.mxu0 %v1463
        %1481 = vmatpush.msra.mxu0 %v1462
        %1482 = vmatpush.msra.mxu0 %v1461
        %1483 = vmatpush.msra.mxu0 %v1460
        %1484 = vmatpush.msra.mxu0 %v1459
        %1485 = vmatpush.msra.mxu0 %v1458
        %1486 = vmatpush.msra.mxu0 %v1457
        %1487 = vmatpush.msra.mxu0 %v1456
        %1488 = vmatmul.f32.gmra.mxu0 %v1423
        %v1489 = vpop.f32.mrf.mxu0
        %v1490 = vadd.f32 0.0, %v1489
        %1491 = vmatmul.f32.gmra.mxu0 %v1424
        %v1492 = vpop.f32.mrf.mxu0
        %v1493 = vadd.f32 0.0, %v1492
        %1494 = vmatmul.f32.gmra.mxu0 %v1425
        %v1495 = vpop.f32.mrf.mxu0
        %v1496 = vadd.f32 0.0, %v1495
        %1497 = vmatmul.f32.gmra.mxu0 %v1426
        %v1498 = vpop.f32.mrf.mxu0
        %v1499 = vadd.f32 0.0, %v1498
        %1500 = vmatmul.f32.gmra.mxu0 %v1427
        %v1501 = vpop.f32.mrf.mxu0
        %v1502 = vadd.f32 0.0, %v1501
        %1503 = vmatmul.f32.gmra.mxu0 %v1428
        %v1504 = vpop.f32.mrf.mxu0
        %v1505 = vadd.f32 0.0, %v1504
        %1506 = vmatmul.f32.gmra.mxu0 %v1429
        %v1507 = vpop.f32.mrf.mxu0
        %v1508 = vadd.f32 0.0, %v1507
        %1509 = vmatmul.f32.gmra.mxu0 %v1430
        %v1510 = vpop.f32.mrf.mxu0
        %v1511 = vadd.f32 0.0, %v1510
        %1512 = vmatmul.f32.gmra.mxu0 %v1431
        %v1513 = vpop.f32.mrf.mxu0
        %v1514 = vadd.f32 0.0, %v1513
        %1515 = vmatmul.f32.gmra.mxu0 %v1432
        %v1516 = vpop.f32.mrf.mxu0
        %v1517 = vadd.f32 0.0, %v1516
        %1518 = vmatmul.f32.gmra.mxu0 %v1433
        %v1519 = vpop.f32.mrf.mxu0
        %v1520 = vadd.f32 0.0, %v1519
        %1521 = vmatmul.f32.gmra.mxu0 %v1434
        %v1522 = vpop.f32.mrf.mxu0
        %v1523 = vadd.f32 0.0, %v1522
        %1524 = vmatmul.f32.gmra.mxu0 %v1435
        %v1525 = vpop.f32.mrf.mxu0
        %v1526 = vadd.f32 0.0, %v1525
        %1527 = vmatmul.f32.gmra.mxu0 %v1436
        %v1528 = vpop.f32.mrf.mxu0
        %v1529 = vadd.f32 0.0, %v1528
        %1530 = vmatmul.f32.gmra.mxu0 %v1437
        %v1531 = vpop.f32.mrf.mxu0
        %v1532 = vadd.f32 0.0, %v1531
        %1533 = vmatmul.f32.gmra.mxu0 %v1438
        %v1534 = vpop.f32.mrf.mxu0
        %v1535 = vadd.f32 0.0, %v1534
        %1536 = vmatmul.f32.gmra.mxu0 %v1439
        %v1537 = vpop.f32.mrf.mxu0
        %v1538 = vadd.f32 0.0, %v1537
        %1539 = vmatmul.f32.gmra.mxu0 %v1440
        %v1540 = vpop.f32.mrf.mxu0
        %v1541 = vadd.f32 0.0, %v1540
        %1542 = vmatmul.f32.gmra.mxu0 %v1441
        %v1543 = vpop.f32.mrf.mxu0
        %v1544 = vadd.f32 0.0, %v1543
        %1545 = vmatmul.f32.gmra.mxu0 %v1442
        %v1546 = vpop.f32.mrf.mxu0
        %v1547 = vadd.f32 0.0, %v1546
        %1548 = vmatmul.f32.gmra.mxu0 %v1443
        %v1549 = vpop.f32.mrf.mxu0
        %v1550 = vadd.f32 0.0, %v1549
        %1551 = vmatmul.f32.gmra.mxu0 %v1444
        %v1552 = vpop.f32.mrf.mxu0
        %v1553 = vadd.f32 0.0, %v1552
        %1554 = vmatmul.f32.gmra.mxu0 %v1445
        %v1555 = vpop.f32.mrf.mxu0
        %v1556 = vadd.f32 0.0, %v1555
        %1557 = vmatmul.f32.gmra.mxu0 %v1446
        %v1558 = vpop.f32.mrf.mxu0
        %v1559 = vadd.f32 0.0, %v1558
        %1560 = vmatmul.f32.gmra.mxu0 %v1447
        %v1561 = vpop.f32.mrf.mxu0
        %v1562 = vadd.f32 0.0, %v1561
        %1563 = vmatmul.f32.gmra.mxu0 %v1448
        %v1564 = vpop.f32.mrf.mxu0
        %v1565 = vadd.f32 0.0, %v1564
        %1566 = vmatmul.f32.gmra.mxu0 %v1449
        %v1567 = vpop.f32.mrf.mxu0
        %v1568 = vadd.f32 0.0, %v1567
        %1569 = vmatmul.f32.gmra.mxu0 %v1450
        %v1570 = vpop.f32.mrf.mxu0
        %v1571 = vadd.f32 0.0, %v1570
        %1572 = vmatmul.f32.gmra.mxu0 %v1451
        %v1573 = vpop.f32.mrf.mxu0
        %v1574 = vadd.f32 0.0, %v1573
        %1575 = vmatmul.f32.gmra.mxu0 %v1452
        %v1576 = vpop.f32.mrf.mxu0
        %v1577 = vadd.f32 0.0, %v1576
        %1578 = vmatmul.f32.gmra.mxu0 %v1453
        %v1579 = vpop.f32.mrf.mxu0
        %v1580 = vadd.f32 0.0, %v1579
        %1581 = vmatmul.f32.gmra.mxu0 %v1454
        %v1582 = vpop.f32.mrf.mxu0
        %v1583 = vadd.f32 0.0, %v1582
        %1584 = vdwg.mxu0
        %v1585 = vadd.f32 %v1390, %v1490
        %v1586 = vadd.f32 %v1391, %v1493
        %v1587 = vadd.f32 %v1392, %v1496
        %v1588 = vadd.f32 %v1393, %v1499
        %v1589 = vadd.f32 %v1394, %v1502
        %v1590 = vadd.f32 %v1395, %v1505
        %v1591 = vadd.f32 %v1396, %v1508
        %v1592 = vadd.f32 %v1397, %v1511
        %v1593 = vadd.f32 %v1398, %v1514
        %v1594 = vadd.f32 %v1399, %v1517
        %v1595 = vadd.f32 %v1400, %v1520
        %v1596 = vadd.f32 %v1401, %v1523
        %v1597 = vadd.f32 %v1402, %v1526
        %v1598 = vadd.f32 %v1403, %v1529
        %v1599 = vadd.f32 %v1404, %v1532
        %v1600 = vadd.f32 %v1405, %v1535
        %v1601 = vadd.f32 %v1406, %v1538
        %v1602 = vadd.f32 %v1407, %v1541
        %v1603 = vadd.f32 %v1408, %v1544
        %v1604 = vadd.f32 %v1409, %v1547
        %v1605 = vadd.f32 %v1410, %v1550
        %v1606 = vadd.f32 %v1411, %v1553
        %v1607 = vadd.f32 %v1412, %v1556
        %v1608 = vadd.f32 %v1413, %v1559
        %v1609 = vadd.f32 %v1414, %v1562
        %v1610 = vadd.f32 %v1415, %v1565
        %v1611 = vadd.f32 %v1416, %v1568
        %v1612 = vadd.f32 %v1417, %v1571
        %v1613 = vadd.f32 %v1418, %v1574
        %v1614 = vadd.f32 %v1419, %v1577
        %v1615 = vadd.f32 %v1420, %v1580
        %v1616 = vadd.f32 %v1421, %v1583
        %v1617 = vld [vmem:[%s1422 + $0x1] sm:$0xff]
        %v1618 = vld [vmem:[%s1422 + $0x9] sm:$0xff]
        %v1619 = vld [vmem:[%s1422 + $0x19] sm:$0xff]
        %v1620 = vld [vmem:[%s1422 + $0x21] sm:$0xff]
        %v1621 = vld [vmem:[%s1422 + $0x31] sm:$0xff]
        %v1622 = vld [vmem:[%s1422 + $0x39] sm:$0xff]
        %v1623 = vld [vmem:[%s1422 + $0x49] sm:$0xff]
        %v1624 = vld [vmem:[%s1422 + $0x51] sm:$0xff]
        %v1625 = vld [vmem:[%s1422 + $0x61] sm:$0xff]
        %v1626 = vld [vmem:[%s1422 + $0x69] sm:$0xff]
        %v1627 = vld [vmem:[%s1422 + $0x79] sm:$0xff]
        %v1628 = vld [vmem:[%s1422 + $0x81] sm:$0xff]
        %v1629 = vld [vmem:[%s1422 + $0x91] sm:$0xff]
        %v1630 = vld [vmem:[%s1422 + $0x99] sm:$0xff]
        %v1631 = vld [vmem:[%s1422 + $0xa9] sm:$0xff]
        %v1632 = vld [vmem:[%s1422 + $0xb1] sm:$0xff]
        %v1633 = vld [vmem:[%s1422 + $0xc1] sm:$0xff]
        %v1634 = vld [vmem:[%s1422 + $0xc9] sm:$0xff]
        %v1635 = vld [vmem:[%s1422 + $0xd9] sm:$0xff]
        %v1636 = vld [vmem:[%s1422 + $0xe1] sm:$0xff]
        %v1637 = vld [vmem:[%s1422 + $0xf1] sm:$0xff]
        %v1638 = vld [vmem:[%s1422 + $0xf9] sm:$0xff]
        %v1639 = vld [vmem:[%s1422 + $0x109] sm:$0xff]
        %v1640 = vld [vmem:[%s1422 + $0x111] sm:$0xff]
        %v1641 = vld [vmem:[%s1422 + $0x121] sm:$0xff]
        %v1642 = vld [vmem:[%s1422 + $0x129] sm:$0xff]
        %v1643 = vld [vmem:[%s1422 + $0x139] sm:$0xff]
        %v1644 = vld [vmem:[%s1422 + $0x141] sm:$0xff]
        %v1645 = vld [vmem:[%s1422 + $0x151] sm:$0xff]
        %v1646 = vld [vmem:[%s1422 + $0x159] sm:$0xff]
        %v1647 = vld [vmem:[%s1422 + $0x169] sm:$0xff]
        %v1648 = vld [vmem:[%s1422 + $0x171] sm:$0xff]
        %s1649 = scalar_lea.vmem [#allocation3], 896
        %v1650 = vld [vmem:[%s1649] sm:$0xff]
        %v1651 = vld [vmem:[%s1649 + $0x8] sm:$0xff]
        %v1652 = vld [vmem:[%s1649 + $0x10] sm:$0xff]
        %v1653 = vld [vmem:[%s1649 + $0x18] sm:$0xff]
        %v1654 = vld [vmem:[%s1649 + $0x20] sm:$0xff]
        %v1655 = vld [vmem:[%s1649 + $0x28] sm:$0xff]
        %v1656 = vld [vmem:[%s1649 + $0x30] sm:$0xff]
        %v1657 = vld [vmem:[%s1649 + $0x38] sm:$0xff]
        %v1658 = vld [vmem:[%s1649 + $0x40] sm:$0xff]
        %v1659 = vld [vmem:[%s1649 + $0x48] sm:$0xff]
        %v1660 = vld [vmem:[%s1649 + $0x50] sm:$0xff]
        %v1661 = vld [vmem:[%s1649 + $0x58] sm:$0xff]
        %v1662 = vld [vmem:[%s1649 + $0x60] sm:$0xff]
        %v1663 = vld [vmem:[%s1649 + $0x68] sm:$0xff]
        %v1664 = vld [vmem:[%s1649 + $0x70] sm:$0xff]
        %v1665 = vld [vmem:[%s1649 + $0x78] sm:$0xff]
        %1666 = vmatpush.msra.mxu0 %v1665
        %1667 = vmatpush.msra.mxu0 %v1664
        %1668 = vmatpush.msra.mxu0 %v1663
        %1669 = vmatpush.msra.mxu0 %v1662
        %1670 = vmatpush.msra.mxu0 %v1661
        %1671 = vmatpush.msra.mxu0 %v1660
        %1672 = vmatpush.msra.mxu0 %v1659
        %1673 = vmatpush.msra.mxu0 %v1658
        %1674 = vmatpush.msra.mxu0 %v1657
        %1675 = vmatpush.msra.mxu0 %v1656
        %1676 = vmatpush.msra.mxu0 %v1655
        %1677 = vmatpush.msra.mxu0 %v1654
        %1678 = vmatpush.msra.mxu0 %v1653
        %1679 = vmatpush.msra.mxu0 %v1652
        %1680 = vmatpush.msra.mxu0 %v1651
        %1681 = vmatpush.msra.mxu0 %v1650
        %1682 = vmatmul.f32.gmra.mxu0 %v1617
        %v1683 = vpop.f32.mrf.mxu0
        %v1684 = vadd.f32 0.0, %v1683
        %1685 = vmatmul.f32.gmra.mxu0 %v1618
        %v1686 = vpop.f32.mrf.mxu0
        %v1687 = vadd.f32 0.0, %v1686
        %1688 = vmatmul.f32.gmra.mxu0 %v1619
        %v1689 = vpop.f32.mrf.mxu0
        %v1690 = vadd.f32 0.0, %v1689
        %1691 = vmatmul.f32.gmra.mxu0 %v1620
        %v1692 = vpop.f32.mrf.mxu0
        %v1693 = vadd.f32 0.0, %v1692
        %1694 = vmatmul.f32.gmra.mxu0 %v1621
        %v1695 = vpop.f32.mrf.mxu0
        %v1696 = vadd.f32 0.0, %v1695
        %1697 = vmatmul.f32.gmra.mxu0 %v1622
        %v1698 = vpop.f32.mrf.mxu0
        %v1699 = vadd.f32 0.0, %v1698
        %1700 = vmatmul.f32.gmra.mxu0 %v1623
        %v1701 = vpop.f32.mrf.mxu0
        %v1702 = vadd.f32 0.0, %v1701
        %1703 = vmatmul.f32.gmra.mxu0 %v1624
        %v1704 = vpop.f32.mrf.mxu0
        %v1705 = vadd.f32 0.0, %v1704
        %1706 = vmatmul.f32.gmra.mxu0 %v1625
        %v1707 = vpop.f32.mrf.mxu0
        %v1708 = vadd.f32 0.0, %v1707
        %1709 = vmatmul.f32.gmra.mxu0 %v1626
        %v1710 = vpop.f32.mrf.mxu0
        %v1711 = vadd.f32 0.0, %v1710
        %1712 = vmatmul.f32.gmra.mxu0 %v1627
        %v1713 = vpop.f32.mrf.mxu0
        %v1714 = vadd.f32 0.0, %v1713
        %1715 = vmatmul.f32.gmra.mxu0 %v1628
        %v1716 = vpop.f32.mrf.mxu0
        %v1717 = vadd.f32 0.0, %v1716
        %1718 = vmatmul.f32.gmra.mxu0 %v1629
        %v1719 = vpop.f32.mrf.mxu0
        %v1720 = vadd.f32 0.0, %v1719
        %1721 = vmatmul.f32.gmra.mxu0 %v1630
        %v1722 = vpop.f32.mrf.mxu0
        %v1723 = vadd.f32 0.0, %v1722
        %1724 = vmatmul.f32.gmra.mxu0 %v1631
        %v1725 = vpop.f32.mrf.mxu0
        %v1726 = vadd.f32 0.0, %v1725
        %1727 = vmatmul.f32.gmra.mxu0 %v1632
        %v1728 = vpop.f32.mrf.mxu0
        %v1729 = vadd.f32 0.0, %v1728
        %1730 = vmatmul.f32.gmra.mxu0 %v1633
        %v1731 = vpop.f32.mrf.mxu0
        %v1732 = vadd.f32 0.0, %v1731
        %1733 = vmatmul.f32.gmra.mxu0 %v1634
        %v1734 = vpop.f32.mrf.mxu0
        %v1735 = vadd.f32 0.0, %v1734
        %1736 = vmatmul.f32.gmra.mxu0 %v1635
        %v1737 = vpop.f32.mrf.mxu0
        %v1738 = vadd.f32 0.0, %v1737
        %1739 = vmatmul.f32.gmra.mxu0 %v1636
        %v1740 = vpop.f32.mrf.mxu0
        %v1741 = vadd.f32 0.0, %v1740
        %1742 = vmatmul.f32.gmra.mxu0 %v1637
        %v1743 = vpop.f32.mrf.mxu0
        %v1744 = vadd.f32 0.0, %v1743
        %1745 = vmatmul.f32.gmra.mxu0 %v1638
        %v1746 = vpop.f32.mrf.mxu0
        %v1747 = vadd.f32 0.0, %v1746
        %1748 = vmatmul.f32.gmra.mxu0 %v1639
        %v1749 = vpop.f32.mrf.mxu0
        %v1750 = vadd.f32 0.0, %v1749
        %1751 = vmatmul.f32.gmra.mxu0 %v1640
        %v1752 = vpop.f32.mrf.mxu0
        %v1753 = vadd.f32 0.0, %v1752
        %1754 = vmatmul.f32.gmra.mxu0 %v1641
        %v1755 = vpop.f32.mrf.mxu0
        %v1756 = vadd.f32 0.0, %v1755
        %1757 = vmatmul.f32.gmra.mxu0 %v1642
        %v1758 = vpop.f32.mrf.mxu0
        %v1759 = vadd.f32 0.0, %v1758
        %1760 = vmatmul.f32.gmra.mxu0 %v1643
        %v1761 = vpop.f32.mrf.mxu0
        %v1762 = vadd.f32 0.0, %v1761
        %1763 = vmatmul.f32.gmra.mxu0 %v1644
        %v1764 = vpop.f32.mrf.mxu0
        %v1765 = vadd.f32 0.0, %v1764
        %1766 = vmatmul.f32.gmra.mxu0 %v1645
        %v1767 = vpop.f32.mrf.mxu0
        %v1768 = vadd.f32 0.0, %v1767
        %1769 = vmatmul.f32.gmra.mxu0 %v1646
        %v1770 = vpop.f32.mrf.mxu0
        %v1771 = vadd.f32 0.0, %v1770
        %1772 = vmatmul.f32.gmra.mxu0 %v1647
        %v1773 = vpop.f32.mrf.mxu0
        %v1774 = vadd.f32 0.0, %v1773
        %1775 = vmatmul.f32.gmra.mxu0 %v1648
        %v1776 = vpop.f32.mrf.mxu0
        %v1777 = vadd.f32 0.0, %v1776
        %1778 = vdwg.mxu0
        %v1779 = vadd.f32 %v1585, %v1684
        %v1780 = vadd.f32 %v1586, %v1687
        %v1781 = vadd.f32 %v1587, %v1690
        %v1782 = vadd.f32 %v1588, %v1693
        %v1783 = vadd.f32 %v1589, %v1696
        %v1784 = vadd.f32 %v1590, %v1699
        %v1785 = vadd.f32 %v1591, %v1702
        %v1786 = vadd.f32 %v1592, %v1705
        %v1787 = vadd.f32 %v1593, %v1708
        %v1788 = vadd.f32 %v1594, %v1711
        %v1789 = vadd.f32 %v1595, %v1714
        %v1790 = vadd.f32 %v1596, %v1717
        %v1791 = vadd.f32 %v1597, %v1720
        %v1792 = vadd.f32 %v1598, %v1723
        %v1793 = vadd.f32 %v1599, %v1726
        %v1794 = vadd.f32 %v1600, %v1729
        %v1795 = vadd.f32 %v1601, %v1732
        %v1796 = vadd.f32 %v1602, %v1735
        %v1797 = vadd.f32 %v1603, %v1738
        %v1798 = vadd.f32 %v1604, %v1741
        %v1799 = vadd.f32 %v1605, %v1744
        %v1800 = vadd.f32 %v1606, %v1747
        %v1801 = vadd.f32 %v1607, %v1750
        %v1802 = vadd.f32 %v1608, %v1753
        %v1803 = vadd.f32 %v1609, %v1756
        %v1804 = vadd.f32 %v1610, %v1759
        %v1805 = vadd.f32 %v1611, %v1762
        %v1806 = vadd.f32 %v1612, %v1765
        %v1807 = vadd.f32 %v1613, %v1768
        %v1808 = vadd.f32 %v1614, %v1771
        %v1809 = vadd.f32 %v1615, %v1774
        %v1810 = vadd.f32 %v1616, %v1777
        %v1811 = vld [vmem:[%s1422 + $0x2] sm:$0xff]
        %v1812 = vld [vmem:[%s1422 + $0xa] sm:$0xff]
        %v1813 = vld [vmem:[%s1422 + $0x1a] sm:$0xff]
        %v1814 = vld [vmem:[%s1422 + $0x22] sm:$0xff]
        %v1815 = vld [vmem:[%s1422 + $0x32] sm:$0xff]
        %v1816 = vld [vmem:[%s1422 + $0x3a] sm:$0xff]
        %v1817 = vld [vmem:[%s1422 + $0x4a] sm:$0xff]
        %v1818 = vld [vmem:[%s1422 + $0x52] sm:$0xff]
        %v1819 = vld [vmem:[%s1422 + $0x62] sm:$0xff]
        %v1820 = vld [vmem:[%s1422 + $0x6a] sm:$0xff]
        %v1821 = vld [vmem:[%s1422 + $0x7a] sm:$0xff]
        %v1822 = vld [vmem:[%s1422 + $0x82] sm:$0xff]
        %v1823 = vld [vmem:[%s1422 + $0x92] sm:$0xff]
        %v1824 = vld [vmem:[%s1422 + $0x9a] sm:$0xff]
        %v1825 = vld [vmem:[%s1422 + $0xaa] sm:$0xff]
        %v1826 = vld [vmem:[%s1422 + $0xb2] sm:$0xff]
        %v1827 = vld [vmem:[%s1422 + $0xc2] sm:$0xff]
        %v1828 = vld [vmem:[%s1422 + $0xca] sm:$0xff]
        %v1829 = vld [vmem:[%s1422 + $0xda] sm:$0xff]
        %v1830 = vld [vmem:[%s1422 + $0xe2] sm:$0xff]
        %v1831 = vld [vmem:[%s1422 + $0xf2] sm:$0xff]
        %v1832 = vld [vmem:[%s1422 + $0xfa] sm:$0xff]
        %v1833 = vld [vmem:[%s1422 + $0x10a] sm:$0xff]
        %v1834 = vld [vmem:[%s1422 + $0x112] sm:$0xff]
        %v1835 = vld [vmem:[%s1422 + $0x122] sm:$0xff]
        %v1836 = vld [vmem:[%s1422 + $0x12a] sm:$0xff]
        %v1837 = vld [vmem:[%s1422 + $0x13a] sm:$0xff]
        %v1838 = vld [vmem:[%s1422 + $0x142] sm:$0xff]
        %v1839 = vld [vmem:[%s1422 + $0x152] sm:$0xff]
        %v1840 = vld [vmem:[%s1422 + $0x15a] sm:$0xff]
        %v1841 = vld [vmem:[%s1422 + $0x16a] sm:$0xff]
        %v1842 = vld [vmem:[%s1422 + $0x172] sm:$0xff]
        %s1843 = scalar_lea.vmem [#allocation3], 1024
        %v1844 = vld [vmem:[%s1843] sm:$0xff]
        %v1845 = vld [vmem:[%s1843 + $0x8] sm:$0xff]
        %v1846 = vld [vmem:[%s1843 + $0x10] sm:$0xff]
        %v1847 = vld [vmem:[%s1843 + $0x18] sm:$0xff]
        %v1848 = vld [vmem:[%s1843 + $0x20] sm:$0xff]
        %v1849 = vld [vmem:[%s1843 + $0x28] sm:$0xff]
        %v1850 = vld [vmem:[%s1843 + $0x30] sm:$0xff]
        %v1851 = vld [vmem:[%s1843 + $0x38] sm:$0xff]
        %v1852 = vld [vmem:[%s1843 + $0x40] sm:$0xff]
        %v1853 = vld [vmem:[%s1843 + $0x48] sm:$0xff]
        %v1854 = vld [vmem:[%s1843 + $0x50] sm:$0xff]
        %v1855 = vld [vmem:[%s1843 + $0x58] sm:$0xff]
        %v1856 = vld [vmem:[%s1843 + $0x60] sm:$0xff]
        %v1857 = vld [vmem:[%s1843 + $0x68] sm:$0xff]
        %v1858 = vld [vmem:[%s1843 + $0x70] sm:$0xff]
        %v1859 = vld [vmem:[%s1843 + $0x78] sm:$0xff]
        %1860 = vmatpush.msra.mxu0 %v1859
        %1861 = vmatpush.msra.mxu0 %v1858
        %1862 = vmatpush.msra.mxu0 %v1857
        %1863 = vmatpush.msra.mxu0 %v1856
        %1864 = vmatpush.msra.mxu0 %v1855
        %1865 = vmatpush.msra.mxu0 %v1854
        %1866 = vmatpush.msra.mxu0 %v1853
        %1867 = vmatpush.msra.mxu0 %v1852
        %1868 = vmatpush.msra.mxu0 %v1851
        %1869 = vmatpush.msra.mxu0 %v1850
        %1870 = vmatpush.msra.mxu0 %v1849
        %1871 = vmatpush.msra.mxu0 %v1848
        %1872 = vmatpush.msra.mxu0 %v1847
        %1873 = vmatpush.msra.mxu0 %v1846
        %1874 = vmatpush.msra.mxu0 %v1845
        %1875 = vmatpush.msra.mxu0 %v1844
        %1876 = vmatmul.f32.gmra.mxu0 %v1811
        %v1877 = vpop.f32.mrf.mxu0
        %v1878 = vadd.f32 0.0, %v1877
        %1879 = vmatmul.f32.gmra.mxu0 %v1812
        %v1880 = vpop.f32.mrf.mxu0
        %v1881 = vadd.f32 0.0, %v1880
        %1882 = vmatmul.f32.gmra.mxu0 %v1813
        %v1883 = vpop.f32.mrf.mxu0
        %v1884 = vadd.f32 0.0, %v1883
        %1885 = vmatmul.f32.gmra.mxu0 %v1814
        %v1886 = vpop.f32.mrf.mxu0
        %v1887 = vadd.f32 0.0, %v1886
        %1888 = vmatmul.f32.gmra.mxu0 %v1815
        %v1889 = vpop.f32.mrf.mxu0
        %v1890 = vadd.f32 0.0, %v1889
        %1891 = vmatmul.f32.gmra.mxu0 %v1816
        %v1892 = vpop.f32.mrf.mxu0
        %v1893 = vadd.f32 0.0, %v1892
        %1894 = vmatmul.f32.gmra.mxu0 %v1817
        %v1895 = vpop.f32.mrf.mxu0
        %v1896 = vadd.f32 0.0, %v1895
        %1897 = vmatmul.f32.gmra.mxu0 %v1818
        %v1898 = vpop.f32.mrf.mxu0
        %v1899 = vadd.f32 0.0, %v1898
        %1900 = vmatmul.f32.gmra.mxu0 %v1819
        %v1901 = vpop.f32.mrf.mxu0
        %v1902 = vadd.f32 0.0, %v1901
        %1903 = vmatmul.f32.gmra.mxu0 %v1820
        %v1904 = vpop.f32.mrf.mxu0
        %v1905 = vadd.f32 0.0, %v1904
        %1906 = vmatmul.f32.gmra.mxu0 %v1821
        %v1907 = vpop.f32.mrf.mxu0
        %v1908 = vadd.f32 0.0, %v1907
        %1909 = vmatmul.f32.gmra.mxu0 %v1822
        %v1910 = vpop.f32.mrf.mxu0
        %v1911 = vadd.f32 0.0, %v1910
        %1912 = vmatmul.f32.gmra.mxu0 %v1823
        %v1913 = vpop.f32.mrf.mxu0
        %v1914 = vadd.f32 0.0, %v1913
        %1915 = vmatmul.f32.gmra.mxu0 %v1824
        %v1916 = vpop.f32.mrf.mxu0
        %v1917 = vadd.f32 0.0, %v1916
        %1918 = vmatmul.f32.gmra.mxu0 %v1825
        %v1919 = vpop.f32.mrf.mxu0
        %v1920 = vadd.f32 0.0, %v1919
        %1921 = vmatmul.f32.gmra.mxu0 %v1826
        %v1922 = vpop.f32.mrf.mxu0
        %v1923 = vadd.f32 0.0, %v1922
        %1924 = vmatmul.f32.gmra.mxu0 %v1827
        %v1925 = vpop.f32.mrf.mxu0
        %v1926 = vadd.f32 0.0, %v1925
        %1927 = vmatmul.f32.gmra.mxu0 %v1828
        %v1928 = vpop.f32.mrf.mxu0
        %v1929 = vadd.f32 0.0, %v1928
        %1930 = vmatmul.f32.gmra.mxu0 %v1829
        %v1931 = vpop.f32.mrf.mxu0
        %v1932 = vadd.f32 0.0, %v1931
        %1933 = vmatmul.f32.gmra.mxu0 %v1830
        %v1934 = vpop.f32.mrf.mxu0
        %v1935 = vadd.f32 0.0, %v1934
        %1936 = vmatmul.f32.gmra.mxu0 %v1831
        %v1937 = vpop.f32.mrf.mxu0
        %v1938 = vadd.f32 0.0, %v1937
        %1939 = vmatmul.f32.gmra.mxu0 %v1832
        %v1940 = vpop.f32.mrf.mxu0
        %v1941 = vadd.f32 0.0, %v1940
        %1942 = vmatmul.f32.gmra.mxu0 %v1833
        %v1943 = vpop.f32.mrf.mxu0
        %v1944 = vadd.f32 0.0, %v1943
        %1945 = vmatmul.f32.gmra.mxu0 %v1834
        %v1946 = vpop.f32.mrf.mxu0
        %v1947 = vadd.f32 0.0, %v1946
        %1948 = vmatmul.f32.gmra.mxu0 %v1835
        %v1949 = vpop.f32.mrf.mxu0
        %v1950 = vadd.f32 0.0, %v1949
        %1951 = vmatmul.f32.gmra.mxu0 %v1836
        %v1952 = vpop.f32.mrf.mxu0
        %v1953 = vadd.f32 0.0, %v1952
        %1954 = vmatmul.f32.gmra.mxu0 %v1837
        %v1955 = vpop.f32.mrf.mxu0
        %v1956 = vadd.f32 0.0, %v1955
        %1957 = vmatmul.f32.gmra.mxu0 %v1838
        %v1958 = vpop.f32.mrf.mxu0
        %v1959 = vadd.f32 0.0, %v1958
        %1960 = vmatmul.f32.gmra.mxu0 %v1839
        %v1961 = vpop.f32.mrf.mxu0
        %v1962 = vadd.f32 0.0, %v1961
        %1963 = vmatmul.f32.gmra.mxu0 %v1840
        %v1964 = vpop.f32.mrf.mxu0
        %v1965 = vadd.f32 0.0, %v1964
        %1966 = vmatmul.f32.gmra.mxu0 %v1841
        %v1967 = vpop.f32.mrf.mxu0
        %v1968 = vadd.f32 0.0, %v1967
        %1969 = vmatmul.f32.gmra.mxu0 %v1842
        %v1970 = vpop.f32.mrf.mxu0
        %v1971 = vadd.f32 0.0, %v1970
        %1972 = vdwg.mxu0
        %v1973 = vadd.f32 %v1779, %v1878
        %v1974 = vadd.f32 %v1780, %v1881
        %v1975 = vadd.f32 %v1781, %v1884
        %v1976 = vadd.f32 %v1782, %v1887
        %v1977 = vadd.f32 %v1783, %v1890
        %v1978 = vadd.f32 %v1784, %v1893
        %v1979 = vadd.f32 %v1785, %v1896
        %v1980 = vadd.f32 %v1786, %v1899
        %v1981 = vadd.f32 %v1787, %v1902
        %v1982 = vadd.f32 %v1788, %v1905
        %v1983 = vadd.f32 %v1789, %v1908
        %v1984 = vadd.f32 %v1790, %v1911
        %v1985 = vadd.f32 %v1791, %v1914
        %v1986 = vadd.f32 %v1792, %v1917
        %v1987 = vadd.f32 %v1793, %v1920
        %v1988 = vadd.f32 %v1794, %v1923
        %v1989 = vadd.f32 %v1795, %v1926
        %v1990 = vadd.f32 %v1796, %v1929
        %v1991 = vadd.f32 %v1797, %v1932
        %v1992 = vadd.f32 %v1798, %v1935
        %v1993 = vadd.f32 %v1799, %v1938
        %v1994 = vadd.f32 %v1800, %v1941
        %v1995 = vadd.f32 %v1801, %v1944
        %v1996 = vadd.f32 %v1802, %v1947
        %v1997 = vadd.f32 %v1803, %v1950
        %v1998 = vadd.f32 %v1804, %v1953
        %v1999 = vadd.f32 %v1805, %v1956
        %v2000 = vadd.f32 %v1806, %v1959
        %v2001 = vadd.f32 %v1807, %v1962
        %v2002 = vadd.f32 %v1808, %v1965
        %v2003 = vadd.f32 %v1809, %v1968
        %v2004 = vadd.f32 %v1810, %v1971
        %v2006 = vperm.slane %v322, 0
        %v2008 = vadd.f32 %v1973, %v2006
        %v2009 = vadd.f32 %v1974, %v2006
        %v2010 = vadd.f32 %v1975, %v2006
        %v2011 = vadd.f32 %v1976, %v2006
        %v2012 = vadd.f32 %v1977, %v2006
        %v2013 = vadd.f32 %v1978, %v2006
        %v2014 = vadd.f32 %v1979, %v2006
        %v2015 = vadd.f32 %v1980, %v2006
        %v2016 = vadd.f32 %v1981, %v2006
        %v2017 = vadd.f32 %v1982, %v2006
        %v2018 = vadd.f32 %v1983, %v2006
        %v2019 = vadd.f32 %v1984, %v2006
        %v2020 = vadd.f32 %v1985, %v2006
        %v2021 = vadd.f32 %v1986, %v2006
        %v2022 = vadd.f32 %v1987, %v2006
        %v2023 = vadd.f32 %v1988, %v2006
        %v2024 = vadd.f32 %v1989, %v2006
        %v2025 = vadd.f32 %v1990, %v2006
        %v2026 = vadd.f32 %v1991, %v2006
        %v2027 = vadd.f32 %v1992, %v2006
        %v2028 = vadd.f32 %v1993, %v2006
        %v2029 = vadd.f32 %v1994, %v2006
        %v2030 = vadd.f32 %v1995, %v2006
        %v2031 = vadd.f32 %v1996, %v2006
        %v2032 = vadd.f32 %v1997, %v2006
        %v2033 = vadd.f32 %v1998, %v2006
        %v2034 = vadd.f32 %v1999, %v2006
        %v2035 = vadd.f32 %v2000, %v2006
        %v2036 = vadd.f32 %v2001, %v2006
        %v2037 = vadd.f32 %v2002, %v2006
        %v2038 = vadd.f32 %v2003, %v2006
        %v2039 = vadd.f32 %v2004, %v2006
        %v2040 = vtanh.pop %v2008
        %v2041 = vtanh.pop %v2009
        %v2042 = vtanh.pop %v2010
        %v2043 = vtanh.pop %v2011
        %v2044 = vtanh.pop %v2012
        %v2045 = vtanh.pop %v2013
        %v2046 = vtanh.pop %v2014
        %v2047 = vtanh.pop %v2015
        %v2048 = vtanh.pop %v2016
        %v2049 = vtanh.pop %v2017
        %v2050 = vtanh.pop %v2018
        %v2051 = vtanh.pop %v2019
        %v2052 = vtanh.pop %v2020
        %v2053 = vtanh.pop %v2021
        %v2054 = vtanh.pop %v2022
        %v2055 = vtanh.pop %v2023
        %v2056 = vtanh.pop %v2024
        %v2057 = vtanh.pop %v2025
        %v2058 = vtanh.pop %v2026
        %v2059 = vtanh.pop %v2027
        %v2060 = vtanh.pop %v2028
        %v2061 = vtanh.pop %v2029
        %v2062 = vtanh.pop %v2030
        %v2063 = vtanh.pop %v2031
        %v2064 = vtanh.pop %v2032
        %v2065 = vtanh.pop %v2033
        %v2066 = vtanh.pop %v2034
        %v2067 = vtanh.pop %v2035
        %v2068 = vtanh.pop %v2036
        %v2069 = vtanh.pop %v2037
        %v2070 = vtanh.pop %v2038
        %v2071 = vtanh.pop %v2039
        %2072 = vst [vmem:[%s202] sm:$0xff] %v2040
        %2073 = vst [vmem:[%s202 + $0x8] sm:$0xff] %v2041
        %2074 = vst [vmem:[%s202 + $0x10] sm:$0xff] %v2042
        %2075 = vst [vmem:[%s202 + $0x18] sm:$0xff] %v2043
        %2076 = vst [vmem:[%s202 + $0x20] sm:$0xff] %v2044
        %2077 = vst [vmem:[%s202 + $0x28] sm:$0xff] %v2045
        %2078 = vst [vmem:[%s202 + $0x30] sm:$0xff] %v2046
        %2079 = vst [vmem:[%s202 + $0x38] sm:$0xff] %v2047
        %2080 = vst [vmem:[%s202 + $0x40] sm:$0xff] %v2048
        %2081 = vst [vmem:[%s202 + $0x48] sm:$0xff] %v2049
        %2082 = vst [vmem:[%s202 + $0x50] sm:$0xff] %v2050
        %2083 = vst [vmem:[%s202 + $0x58] sm:$0xff] %v2051
        %2084 = vst [vmem:[%s202 + $0x60] sm:$0xff] %v2052
        %2085 = vst [vmem:[%s202 + $0x68] sm:$0xff] %v2053
        %2086 = vst [vmem:[%s202 + $0x70] sm:$0xff] %v2054
        %2087 = vst [vmem:[%s202 + $0x78] sm:$0xff] %v2055
        %2088 = vst [vmem:[%s202 + $0x80] sm:$0xff] %v2056
        %2089 = vst [vmem:[%s202 + $0x88] sm:$0xff] %v2057
        %2090 = vst [vmem:[%s202 + $0x90] sm:$0xff] %v2058
        %2091 = vst [vmem:[%s202 + $0x98] sm:$0xff] %v2059
        %2092 = vst [vmem:[%s202 + $0xa0] sm:$0xff] %v2060
        %2093 = vst [vmem:[%s202 + $0xa8] sm:$0xff] %v2061
        %2094 = vst [vmem:[%s202 + $0xb0] sm:$0xff] %v2062
        %2095 = vst [vmem:[%s202 + $0xb8] sm:$0xff] %v2063
        %2096 = vst [vmem:[%s202 + $0xc0] sm:$0xff] %v2064
        %2097 = vst [vmem:[%s202 + $0xc8] sm:$0xff] %v2065
        %2098 = vst [vmem:[%s202 + $0xd0] sm:$0xff] %v2066
        %2099 = vst [vmem:[%s202 + $0xd8] sm:$0xff] %v2067
        %2100 = vst [vmem:[%s202 + $0xe0] sm:$0xff] %v2068
        %2101 = vst [vmem:[%s202 + $0xe8] sm:$0xff] %v2069
        %2102 = vst [vmem:[%s202 + $0xf0] sm:$0xff] %v2070
        %2103 = vst [vmem:[%s202 + $0xf8] sm:$0xff] %v2071
        %p2104 = scmp.lt.s32.totalorder %s16, 1
        %s2105 = scalar_select %p2104, %s16, 1
        %s2106 = smul.addr %s2105, 32
        %s2107 = smul.addr %s2106, 8
        %s2108 = scalar_lea.vmem %s3, %s2107
        // Predicated region
        $region41: #{deep_cnn_forward.5} parent=31 // pred_check
          %p2109 = pneg %p102
        $region42: #{deep_cnn_forward.5} parent=31 // pred_check_branch
          %2111 = sbr.rel (%p2109) target = $region44
        $region43: #{deep_cnn_forward.5} parent=31 // pred_region
          _
        $region44: #{deep_cnn_forward.5} parent=31 // pred_fallthru
          _
      $region32: #{deep_cnn_forward.5} parent=5 // pred_fallthru
        _
      %p2112 = scmp.le.s32.totalorder 2, %s11
      // Predicated region
      $region45: #{deep_cnn_forward.5} parent=5 // pred_check
        %p2113 = pneg %p2112
      $region46: #{deep_cnn_forward.5} parent=5 // pred_check_branch
        %2115 = sbr.rel (%p2113) target = $region48
      $region47: #{deep_cnn_forward.5} parent=5 // pred_region
        %s2116 = ssub.s32 %s11, 2
        // Predicated region
        $region49: #{deep_cnn_forward.5} parent=47 // pred_check
          %p2117 = pneg %p108
        $region50: #{deep_cnn_forward.5} parent=47 // pred_check_branch
          %2119 = sbr.rel (%p2117) target = $region52
        $region51: #{deep_cnn_forward.5} parent=47 // pred_region
          %p2120 = scmp.lt.s32.totalorder %s17, 1
          %s2121 = scalar_select %p2120, %s17, 1
          %s2122 = smul.addr %s2121, 32
          %s2123 = smul.addr %s2122, 8
          %s2124 = scalar_lea.vmem %s3, %s2123
        $region52: #{deep_cnn_forward.5} parent=47 // pred_fallthru
          _
      $region48: #{deep_cnn_forward.5} parent=5 // pred_fallthru
        _
    $region6: #{deep_cnn_forward.5} parent=1 // loop_footer
      %s15 = sadd.s32 1, %s11
    $region7: #{deep_cnn_forward.5} parent=1 // loop_footer_branch
      %10 = sbr.rel target = $region3
    $region8: #{deep_cnn_forward.5} parent=1 // loop_exit
      _
    %2125 = vsyncpa [#allocation4], 1
    %s2126 = scalar_lea.sflag [#allocation4], 1
    %2127 = vsyncpa %s2126, 1
    %2128 = vsyncpa [#allocation6], 1

// kernel: deep_cnn_forward.6
$region0: #{deep_cnn_forward.6}
  #allocation0 [shape = 'u32[]', space=smem, size = 0x4, offset = 0x4, fixed_abs, tag = 'smem constant byte address 0x4 - core index']
  #allocation1 [shape = 'u32[72,128]{1,0:T(1,128)}', space=vmem, size = 0x9000, scoped, tag = 'internal scratch']
  #allocation2 [shape = 'f32[1,10,10,128]{3,2,1,0:T(8,128)}', space=vmem, size = 0x14000, scoped, tag = 'scratch operand']
  %s0 = inlined_call_operand.vmem [shape: f32[2,8,8,128], index: 0, kind: input, shape index: {}]
  %s1 = inlined_call_operand.hbm [shape: f32[3,3,128,128], index: 1, kind: input, shape index: {}]
  %s2 = inlined_call_operand.hbm [shape: f32[1,128], index: 2, kind: input, shape index: {}]
  %s3 = inlined_call_operand.vmem [shape: f32[2,8,8,128], index: 3, kind: output, shape index: {}]
  %s4 = sld [smem:[#allocation0]]
  $region53: #{deep_cnn_forward.6} parent=0
    _
  %s6 = ssub.s32 1, %s4
  %s7 = scalar_select 0, %s6, %s4
  $region1: #{deep_cnn_forward.6} parent=0
    #allocation3 [shape = 'u8[589824]{0}', space=vmem, size = 0x90000, scoped, tag = 'input window, operand 1, single buffered']
    #allocation4 [shape = 's32[2]{0}', space=sflag, size = 0x8, scoped, tag = 'scoped memory for deep_cnn_forward.6']
    #allocation5 [shape = 'u8[512]{0}', space=vmem, size = 0x400, scoped, tag = 'input window, operand 2, single buffered']
    #allocation6 [shape = 's32[1]{0}', space=sflag, size = 0x4, scoped, tag = 'scoped memory for deep_cnn_forward.6']
    %8 = vsyncpa [#allocation4], 0
    %9 = vsyncpa [#allocation6], 0
    loop: start=0, step=1, limit=4
    $region2: #{deep_cnn_forward.6} parent=1 // loop_pre_header
      _
    $region3: #{deep_cnn_forward.6} parent=1 // loop_header
      %s11 = sphi 0, %s15
      %p12 = scmp.ge.s32.totalorder %s11, 4
      %s21 = sphi 0, %s23
      %s24 = sphi 0, %s21
      %s25 = sphi 0, %s24
      %s41 = sphi 0, %s25
      %s45 = sphi 0, %s45
      %s47 = sphi 0, %s45
      %s48 = sphi 0, %s47
      %s62 = sphi 0, %s48
      %s66 = sphi 0, %s66
      %s68 = sphi 0, %s66
      %s69 = sphi 0, %s68
      %s83 = sphi 0, %s69
      %s89 = sphi 0, %s91
      %s92 = sphi 0, %s89
      %s93 = sphi 0, %s92
      %s109 = sphi 0, %s93
    $region4: #{deep_cnn_forward.6} parent=1 // loop_header_branch
      %14 = sbr.rel (%p12) target = $region8
    $region5: #{deep_cnn_forward.6} parent=1 // loop_body
      %s16 = ssub.s32 %s11, 1
      %s17 = ssub.s32 %s11, 2
      %s18 = sadd.s32 %s11, 1
      %s19 = ssub.s32 %s11, %s18
      %p20 = scmp.eq.s32.totalorder %s19, 0
      %s22 = sadd.s32 %s21, 1
      %s23 = scalar_select %p20, %s21, %s22
      %p26 = pneg %p20
      %p27 = scmp.eq.s32.totalorder %s11, 1
      %p28 = por %p26, %p27
      %p29 = scmp.ne.s32.totalorder %s21, %s24
      %p30 = scmp.eq.s32.totalorder %s11, 0
      %p31 = por %p29, %p30
      %p32 = scmp.ne.s32.totalorder %s21, %s24
      %p33 = scmp.eq.s32.totalorder %s16, 1
      %p34 = por %p32, %p33
      %p35 = scmp.ne.s32.totalorder %s24, %s25
      %p36 = scmp.eq.s32.totalorder %s16, 0
      %p37 = por %p35, %p36
      %p38 = scmp.ne.s32.totalorder %s24, %s25
      %p39 = scmp.eq.s32.totalorder %s17, 1
      %p40 = por %p38, %p39
      %p42 = scmp.ne.s32.totalorder %s25, %s41
      %p43 = scmp.eq.s32.totalorder %s17, 0
      %p44 = por %p42, %p43
      %s46 = sadd.s32 %s45, 1
      %p49 = scmp.eq.s32.totalorder %s11, 1
      %p50 = scmp.ne.s32.totalorder %s45, %s47
      %p51 = scmp.eq.s32.totalorder %s11, 0
      %p52 = por %p50, %p51
      %p53 = scmp.ne.s32.totalorder %s45, %s47
      %p54 = scmp.eq.s32.totalorder %s16, 1
      %p55 = por %p53, %p54
      %p56 = scmp.ne.s32.totalorder %s47, %s48
      %p57 = scmp.eq.s32.totalorder %s16, 0
      %p58 = por %p56, %p57
      %p59 = scmp.ne.s32.totalorder %s47, %s48
      %p60 = scmp.eq.s32.totalorder %s17, 1
      %p61 = por %p59, %p60
      %p63 = scmp.ne.s32.totalorder %s48, %s62
      %p64 = scmp.eq.s32.totalorder %s17, 0
      %p65 = por %p63, %p64
      %s67 = sadd.s32 %s66, 1
      %p70 = scmp.eq.s32.totalorder %s11, 1
      %p71 = scmp.ne.s32.totalorder %s66, %s68
      %p72 = scmp.eq.s32.totalorder %s11, 0
      %p73 = por %p71, %p72
      %p74 = scmp.ne.s32.totalorder %s66, %s68
      %p75 = scmp.eq.s32.totalorder %s16, 1
      %p76 = por %p74, %p75
      %p77 = scmp.ne.s32.totalorder %s68, %s69
      %p78 = scmp.eq.s32.totalorder %s16, 0
      %p79 = por %p77, %p78
      %p80 = scmp.ne.s32.totalorder %s68, %s69
      %p81 = scmp.eq.s32.totalorder %s17, 1
      %p82 = por %p80, %p81
      %p84 = scmp.ne.s32.totalorder %s69, %s83
      %p85 = scmp.eq.s32.totalorder %s17, 0
      %p86 = por %p84, %p85
      %s87 = ssub.s32 %s11, %s18
      %p88 = scmp.eq.s32.totalorder %s87, 0
      %s90 = sadd.s32 %s89, 1
      %s91 = scalar_select %p88, %s89, %s90
      %p94 = pneg %p88
      %p95 = scmp.eq.s32.totalorder %s11, 1
      %p96 = por %p94, %p95
      %p97 = scmp.ne.s32.totalorder %s89, %s92
      %p98 = scmp.eq.s32.totalorder %s11, 0
      %p99 = por %p97, %p98
      %p100 = scmp.ne.s32.totalorder %s89, %s92
      %p101 = scmp.eq.s32.totalorder %s16, 1
      %p102 = por %p100, %p101
      %p103 = scmp.ne.s32.totalorder %s92, %s93
      %p104 = scmp.eq.s32.totalorder %s16, 0
      %p105 = por %p103, %p104
      %p106 = scmp.ne.s32.totalorder %s92, %s93
      %p107 = scmp.eq.s32.totalorder %s17, 1
      %p108 = por %p106, %p107
      %p110 = scmp.ne.s32.totalorder %s93, %s109
      %p111 = scmp.eq.s32.totalorder %s17, 0
      %p112 = por %p110, %p111
      %p113 = scmp.le.s32.totalorder 1, %s11
      %p114 = scmp.lt.s32.totalorder %s11, 3
      %p115 = pnand %p113, %p114
      %p116 = pneg %p115
      // Predicated region
      $region9: #{deep_cnn_forward.6} parent=5 // pred_check
        _
      $region10: #{deep_cnn_forward.6} parent=5 // pred_check_branch
        %118 = sbr.rel (%p115) target = $region12
      $region11: #{deep_cnn_forward.6} parent=5 // pred_region
        %s119 = ssub.s32 %s11, 1
        // Predicated region
        $region13: #{deep_cnn_forward.6} parent=11 // pred_check
          %p120 = pneg %p58
        $region14: #{deep_cnn_forward.6} parent=11 // pred_check_branch
          %122 = sbr.rel (%p120) target = $region16
        $region15: #{deep_cnn_forward.6} parent=11 // pred_region
          %124 = vsyncadd [#allocation4], 0
          %s125 = sshll.u32 %s1, 4
          %s126 = int_to_ptr.hbm [resolvable:$true] %s125
          %s127 = sshll.u32 [#allocation3], 4
          %s128 = int_to_ptr.vmem [resolvable:$true] %s127
          %133 = dma.hbm_to_vmem [thread:$0]  %s126, 18432, %s128, [#allocation4], 128, 128, 8
        $region16: #{deep_cnn_forward.6} parent=11 // pred_fallthru
          _
        // Predicated region
        $region17: #{deep_cnn_forward.6} parent=11 // pred_check
          %p134 = pneg %p79
        $region18: #{deep_cnn_forward.6} parent=11 // pred_check_branch
          %136 = sbr.rel (%p134) target = $region20
        $region19: #{deep_cnn_forward.6} parent=11 // pred_region
          %138 = vsyncadd [#allocation6], 0
          %s140 = sshll.u32 %s2, 4
          %s141 = int_to_ptr.hbm [resolvable:$true] %s140
          %s142 = sshll.u32 [#allocation5], 4
          %s143 = int_to_ptr.vmem [resolvable:$true] %s142
          %145 = dma.hbm_to_vmem [thread:$0]  %s141, 16, %s143, [#allocation6]
        $region20: #{deep_cnn_forward.6} parent=11 // pred_fallthru
          _
      $region12: #{deep_cnn_forward.6} parent=5 // pred_fallthru
        _
      %p146 = scmp.lt.s32.totalorder %s11, 2
      // Predicated region
      $region21: #{deep_cnn_forward.6} parent=5 // pred_check
        %p147 = pneg %p146
      $region22: #{deep_cnn_forward.6} parent=5 // pred_check_branch
        %149 = sbr.rel (%p147) target = $region24
      $region23: #{deep_cnn_forward.6} parent=5 // pred_region
        // Predicated region
        $region25: #{deep_cnn_forward.6} parent=23 // pred_check
          %p150 = pneg %p31
        $region26: #{deep_cnn_forward.6} parent=23 // pred_check_branch
          %152 = sbr.rel (%p150) target = $region28
        $region27: #{deep_cnn_forward.6} parent=23 // pred_region
          %p153 = scmp.lt.s32.totalorder %s11, 1
          %s154 = scalar_select %p153, %s11, 1
          %s155 = smul.addr %s154, 8
          %s156 = smul.addr %s155, 8
          %s157 = scalar_lea.vmem %s0, %s156
        $region28: #{deep_cnn_forward.6} parent=23 // pred_fallthru
          _
      $region24: #{deep_cnn_forward.6} parent=5 // pred_fallthru
        _
      %p158 = scmp.le.s32.totalorder 1, %s11
      %p159 = scmp.lt.s32.totalorder %s11, 3
      %p160 = pnand %p158, %p159
      %p161 = pneg %p160
      // Predicated region
      $region29: #{deep_cnn_forward.6} parent=5 // pred_check
        _
      $region30: #{deep_cnn_forward.6} parent=5 // pred_check_branch
        %163 = sbr.rel (%p160) target = $region32
      $region31: #{deep_cnn_forward.6} parent=5 // pred_region
        %s164 = ssub.s32 %s11, 1
        // Predicated region
        $region33: #{deep_cnn_forward.6} parent=31 // pred_check
          %p165 = pneg %p58
        $region34: #{deep_cnn_forward.6} parent=31 // pred_check_branch
          %167 = sbr.rel (%p165) target = $region36
        $region35: #{deep_cnn_forward.6} parent=31 // pred_region
          %169 = dma.done [#allocation4], 18432
        $region36: #{deep_cnn_forward.6} parent=31 // pred_fallthru
          _
        // Predicated region
        $region37: #{deep_cnn_forward.6} parent=31 // pred_check
          %p170 = pneg %p79
        $region38: #{deep_cnn_forward.6} parent=31 // pred_check_branch
          %172 = sbr.rel (%p170) target = $region40
        $region39: #{deep_cnn_forward.6} parent=31 // pred_region
          %174 = dma.done [#allocation6], 16
        $region40: #{deep_cnn_forward.6} parent=31 // pred_fallthru
          _
        %p175 = scmp.lt.s32.totalorder %s16, 1
        %s176 = scalar_select %p175, %s16, 1
        %s177 = smul.addr %s176, 8
        %s178 = smul.addr %s177, 8
        %s179 = scalar_lea.vmem %s0, %s178
        %p180 = pneg %p37
        %p181 = pneg %p34
        %p182 = pneg %p58
        %p183 = pneg %p55
        %p184 = pneg %p79
        %p185 = pneg %p76
        %p186 = pneg %p105
        %p187 = pneg %p102
        %p188 = scmp.lt.s32.totalorder %s16, 1
        %s189 = scalar_select %p188, %s16, 1
        %s190 = smul.addr %s189, 8
        %s191 = smul.addr %s190, 8
        %s192 = scalar_lea.vmem %s3, %s191
        %p193 = scmp.lt.s32.totalorder %s16, 1
        %s194 = scalar_select %p193, %s16, 1
        %s195 = smul.addr %s194, 8
        %s196 = smul.addr %s195, 8
        %s197 = scalar_lea.vmem %s0, %s196
        %p198 = scmp.lt.s32.totalorder %s16, 1
        %s199 = scalar_select %p198, %s16, 1
        %s200 = smul.addr %s199, 8
        %s201 = smul.addr %s200, 8
        %s202 = scalar_lea.vmem %s3, %s201
        %203 = vst [vmem:[#allocation2] sm:$0xff] 0.0
        %204 = vst [vmem:[#allocation2 + $0x8] sm:$0x3] 0.0
        %205 = vst [vmem:[#allocation2 + $0x10] sm:$0xff] 0.0
        %206 = vst [vmem:[#allocation2 + $0x18] sm:$0x3] 0.0
        %207 = vst [vmem:[#allocation2 + $0x20] sm:$0xff] 0.0
        %208 = vst [vmem:[#allocation2 + $0x28] sm:$0x3] 0.0
        %209 = vst [vmem:[#allocation2 + $0x30] sm:$0xff] 0.0
        %210 = vst [vmem:[#allocation2 + $0x38] sm:$0x3] 0.0
        %211 = vst [vmem:[#allocation2 + $0x40] sm:$0xff] 0.0
        %212 = vst [vmem:[#allocation2 + $0x48] sm:$0x3] 0.0
        %213 = vst [vmem:[#allocation2 + $0x50] sm:$0xff] 0.0
        %214 = vst [vmem:[#allocation2 + $0x58] sm:$0x3] 0.0
        %215 = vst [vmem:[#allocation2 + $0x60] sm:$0xff] 0.0
        %216 = vst [vmem:[#allocation2 + $0x68] sm:$0x3] 0.0
        %217 = vst [vmem:[#allocation2 + $0x70] sm:$0xff] 0.0
        %218 = vst [vmem:[#allocation2 + $0x78] sm:$0x3] 0.0
        %219 = vst [vmem:[#allocation2 + $0x80] sm:$0xff] 0.0
        %220 = vst [vmem:[#allocation2 + $0x88] sm:$0x3] 0.0
        %221 = vst [vmem:[#allocation2 + $0x90] sm:$0xff] 0.0
        %222 = vst [vmem:[#allocation2 + $0x98] sm:$0x3] 0.0
        %v223 = vld [vmem:[%s197] sm:$0xff]
        %v224 = vld [vmem:[%s197 + $0x8] sm:$0xff]
        %v225 = vld [vmem:[%s197 + $0x10] sm:$0xff]
        %v226 = vld [vmem:[%s197 + $0x18] sm:$0xff]
        %v227 = vld [vmem:[%s197 + $0x20] sm:$0xff]
        %v228 = vld [vmem:[%s197 + $0x28] sm:$0xff]
        %v229 = vld [vmem:[%s197 + $0x30] sm:$0xff]
        %v230 = vld [vmem:[%s197 + $0x38] sm:$0xff]
        %s231 = scalar_lea.vmem [#allocation2], 16
        %232 = vst [vmem:[%s231 + $0x1] sm:$0xff] %v223
        %233 = vst [vmem:[%s231 + $0x11] sm:$0xff] %v224
        %234 = vst [vmem:[%s231 + $0x21] sm:$0xff] %v225
        %235 = vst [vmem:[%s231 + $0x31] sm:$0xff] %v226
        %236 = vst [vmem:[%s231 + $0x41] sm:$0xff] %v227
        %237 = vst [vmem:[%s231 + $0x51] sm:$0xff] %v228
        %238 = vst [vmem:[%s231 + $0x61] sm:$0xff] %v229
        %239 = vst [vmem:[%s231 + $0x71] sm:$0xff] %v230
        %v240 = vld [vmem:[#allocation5] sm:$0x1]
        %v241 = vld [vmem:[#allocation2] sm:$0xff]
        %v242 = vld [vmem:[#allocation2 + $0x10] sm:$0xff]
        %v243 = vld [vmem:[#allocation2 + $0x20] sm:$0xff]
        %v244 = vld [vmem:[#allocation2 + $0x30] sm:$0xff]
        %v245 = vld [vmem:[#allocation2 + $0x40] sm:$0xff]
        %v246 = vld [vmem:[#allocation2 + $0x50] sm:$0xff]
        %v247 = vld [vmem:[#allocation2 + $0x60] sm:$0xff]
        %v248 = vld [vmem:[#allocation2 + $0x70] sm:$0xff]
        %v249 = vld [vmem:[#allocation3] sm:$0xff]
        %v250 = vld [vmem:[#allocation3 + $0x8] sm:$0xff]
        %v251 = vld [vmem:[#allocation3 + $0x10] sm:$0xff]
        %v252 = vld [vmem:[#allocation3 + $0x18] sm:$0xff]
        %v253 = vld [vmem:[#allocation3 + $0x20] sm:$0xff]
        %v254 = vld [vmem:[#allocation3 + $0x28] sm:$0xff]
        %v255 = vld [vmem:[#allocation3 + $0x30] sm:$0xff]
        %v256 = vld [vmem:[#allocation3 + $0x38] sm:$0xff]
        %v257 = vld [vmem:[#allocation3 + $0x40] sm:$0xff]
        %v258 = vld [vmem:[#allocation3 + $0x48] sm:$0xff]
        %v259 = vld [vmem:[#allocation3 + $0x50] sm:$0xff]
        %v260 = vld [vmem:[#allocation3 + $0x58] sm:$0xff]
        %v261 = vld [vmem:[#allocation3 + $0x60] sm:$0xff]
        %v262 = vld [vmem:[#allocation3 + $0x68] sm:$0xff]
        %v263 = vld [vmem:[#allocation3 + $0x70] sm:$0xff]
        %v264 = vld [vmem:[#allocation3 + $0x78] sm:$0xff]
        %v265 = vld [vmem:[#allocation2 + $0x1] sm:$0xff]
        %v266 = vld [vmem:[#allocation2 + $0x11] sm:$0xff]
        %v267 = vld [vmem:[#allocation2 + $0x21] sm:$0xff]
        %v268 = vld [vmem:[#allocation2 + $0x31] sm:$0xff]
        %v269 = vld [vmem:[#allocation2 + $0x41] sm:$0xff]
        %v270 = vld [vmem:[#allocation2 + $0x51] sm:$0xff]
        %v271 = vld [vmem:[#allocation2 + $0x61] sm:$0xff]
        %v272 = vld [vmem:[#allocation2 + $0x71] sm:$0xff]
        %s273 = scalar_lea.vmem [#allocation3], 128
        %v274 = vld [vmem:[%s273] sm:$0xff]
        %v275 = vld [vmem:[%s273 + $0x8] sm:$0xff]
        %v276 = vld [vmem:[%s273 + $0x10] sm:$0xff]
        %v277 = vld [vmem:[%s273 + $0x18] sm:$0xff]
        %v278 = vld [vmem:[%s273 + $0x20] sm:$0xff]
        %v279 = vld [vmem:[%s273 + $0x28] sm:$0xff]
        %v280 = vld [vmem:[%s273 + $0x30] sm:$0xff]
        %v281 = vld [vmem:[%s273 + $0x38] sm:$0xff]
        %v282 = vld [vmem:[%s273 + $0x40] sm:$0xff]
        %v283 = vld [vmem:[%s273 + $0x48] sm:$0xff]
        %v284 = vld [vmem:[%s273 + $0x50] sm:$0xff]
        %v285 = vld [vmem:[%s273 + $0x58] sm:$0xff]
        %v286 = vld [vmem:[%s273 + $0x60] sm:$0xff]
        %v287 = vld [vmem:[%s273 + $0x68] sm:$0xff]
        %v288 = vld [vmem:[%s273 + $0x70] sm:$0xff]
        %v289 = vld [vmem:[%s273 + $0x78] sm:$0xff]
        %290 = vmatpush.msra.mxu0 %v289
        %291 = vmatpush.msra.mxu0 %v288
        %292 = vmatpush.msra.mxu0 %v287
        %293 = vmatpush.msra.mxu0 %v286
        %294 = vmatpush.msra.mxu0 %v285
        %295 = vmatpush.msra.mxu0 %v284
        %296 = vmatpush.msra.mxu0 %v283
        %297 = vmatpush.msra.mxu0 %v282
        %298 = vmatpush.msra.mxu0 %v281
        %299 = vmatpush.msra.mxu0 %v280
        %300 = vmatpush.msra.mxu0 %v279
        %301 = vmatpush.msra.mxu0 %v278
        %302 = vmatpush.msra.mxu0 %v277
        %303 = vmatpush.msra.mxu0 %v276
        %304 = vmatpush.msra.mxu0 %v275
        %305 = vmatpush.msra.mxu0 %v274
        %306 = vmatmul.f32.gmra.mxu0 %v265
        %v307 = vpop.f32.mrf.mxu0
        %v308 = vadd.f32 0.0, %v307
        %309 = vmatmul.f32.gmra.mxu0 %v266
        %v310 = vpop.f32.mrf.mxu0
        %v311 = vadd.f32 0.0, %v310
        %312 = vmatmul.f32.gmra.mxu0 %v267
        %v313 = vpop.f32.mrf.mxu0
        %v314 = vadd.f32 0.0, %v313
        %315 = vmatmul.f32.gmra.mxu0 %v268
        %v316 = vpop.f32.mrf.mxu0
        %v317 = vadd.f32 0.0, %v316
        %318 = vmatmul.f32.gmra.mxu0 %v269
        %v319 = vpop.f32.mrf.mxu0
        %v320 = vadd.f32 0.0, %v319
        %321 = vmatmul.f32.gmra.mxu0 %v270
        %v322 = vpop.f32.mrf.mxu0
        %v323 = vadd.f32 0.0, %v322
        %324 = vmatmul.f32.gmra.mxu0 %v271
        %v325 = vpop.f32.mrf.mxu0
        %v326 = vadd.f32 0.0, %v325
        %327 = vmatmul.f32.gmra.mxu0 %v272
        %v328 = vpop.f32.mrf.mxu0
        %v329 = vadd.f32 0.0, %v328
        %330 = vdwg.mxu0
        %331 = vmatpush.msra.mxu0 %v264
        %332 = vmatpush.msra.mxu0 %v263
        %333 = vmatpush.msra.mxu0 %v262
        %334 = vmatpush.msra.mxu0 %v261
        %335 = vmatpush.msra.mxu0 %v260
        %336 = vmatpush.msra.mxu0 %v259
        %337 = vmatpush.msra.mxu0 %v258
        %338 = vmatpush.msra.mxu0 %v257
        %339 = vmatpush.msra.mxu0 %v256
        %340 = vmatpush.msra.mxu0 %v255
        %341 = vmatpush.msra.mxu0 %v254
        %342 = vmatpush.msra.mxu0 %v253
        %343 = vmatpush.msra.mxu0 %v252
        %344 = vmatpush.msra.mxu0 %v251
        %345 = vmatpush.msra.mxu0 %v250
        %346 = vmatpush.msra.mxu0 %v249
        %347 = vmatmul.f32.gmra.mxu0 %v241
        %v348 = vpop.f32.mrf.mxu0
        %v349 = vadd.f32 %v308, %v348
        %350 = vmatmul.f32.gmra.mxu0 %v242
        %v351 = vpop.f32.mrf.mxu0
        %v352 = vadd.f32 %v311, %v351
        %353 = vmatmul.f32.gmra.mxu0 %v243
        %v354 = vpop.f32.mrf.mxu0
        %v355 = vadd.f32 %v314, %v354
        %356 = vmatmul.f32.gmra.mxu0 %v244
        %v357 = vpop.f32.mrf.mxu0
        %v358 = vadd.f32 %v317, %v357
        %359 = vmatmul.f32.gmra.mxu0 %v245
        %v360 = vpop.f32.mrf.mxu0
        %v361 = vadd.f32 %v320, %v360
        %362 = vmatmul.f32.gmra.mxu0 %v246
        %v363 = vpop.f32.mrf.mxu0
        %v364 = vadd.f32 %v323, %v363
        %365 = vmatmul.f32.gmra.mxu0 %v247
        %v366 = vpop.f32.mrf.mxu0
        %v367 = vadd.f32 %v326, %v366
        %368 = vmatmul.f32.gmra.mxu0 %v248
        %v369 = vpop.f32.mrf.mxu0
        %v370 = vadd.f32 %v329, %v369
        %371 = vdwg.mxu0
        %v372 = vld [vmem:[#allocation2 + $0x2] sm:$0xff]
        %v373 = vld [vmem:[#allocation2 + $0x12] sm:$0xff]
        %v374 = vld [vmem:[#allocation2 + $0x22] sm:$0xff]
        %v375 = vld [vmem:[#allocation2 + $0x32] sm:$0xff]
        %v376 = vld [vmem:[#allocation2 + $0x42] sm:$0xff]
        %v377 = vld [vmem:[#allocation2 + $0x52] sm:$0xff]
        %v378 = vld [vmem:[#allocation2 + $0x62] sm:$0xff]
        %v379 = vld [vmem:[#allocation2 + $0x72] sm:$0xff]
        %s380 = scalar_lea.vmem [#allocation3], 256
        %v381 = vld [vmem:[%s380] sm:$0xff]
        %v382 = vld [vmem:[%s380 + $0x8] sm:$0xff]
        %v383 = vld [vmem:[%s380 + $0x10] sm:$0xff]
        %v384 = vld [vmem:[%s380 + $0x18] sm:$0xff]
        %v385 = vld [vmem:[%s380 + $0x20] sm:$0xff]
        %v386 = vld [vmem:[%s380 + $0x28] sm:$0xff]
        %v387 = vld [vmem:[%s380 + $0x30] sm:$0xff]
        %v388 = vld [vmem:[%s380 + $0x38] sm:$0xff]
        %v389 = vld [vmem:[%s380 + $0x40] sm:$0xff]
        %v390 = vld [vmem:[%s380 + $0x48] sm:$0xff]
        %v391 = vld [vmem:[%s380 + $0x50] sm:$0xff]
        %v392 = vld [vmem:[%s380 + $0x58] sm:$0xff]
        %v393 = vld [vmem:[%s380 + $0x60] sm:$0xff]
        %v394 = vld [vmem:[%s380 + $0x68] sm:$0xff]
        %v395 = vld [vmem:[%s380 + $0x70] sm:$0xff]
        %v396 = vld [vmem:[%s380 + $0x78] sm:$0xff]
        %397 = vmatpush.msra.mxu0 %v396
        %398 = vmatpush.msra.mxu0 %v395
        %399 = vmatpush.msra.mxu0 %v394
        %400 = vmatpush.msra.mxu0 %v393
        %401 = vmatpush.msra.mxu0 %v392
        %402 = vmatpush.msra.mxu0 %v391
        %403 = vmatpush.msra.mxu0 %v390
        %404 = vmatpush.msra.mxu0 %v389
        %405 = vmatpush.msra.mxu0 %v388
        %406 = vmatpush.msra.mxu0 %v387
        %407 = vmatpush.msra.mxu0 %v386
        %408 = vmatpush.msra.mxu0 %v385
        %409 = vmatpush.msra.mxu0 %v384
        %410 = vmatpush.msra.mxu0 %v383
        %411 = vmatpush.msra.mxu0 %v382
        %412 = vmatpush.msra.mxu0 %v381
        %413 = vmatmul.f32.gmra.mxu0 %v372
        %v414 = vpop.f32.mrf.mxu0
        %v415 = vadd.f32 0.0, %v414
        %416 = vmatmul.f32.gmra.mxu0 %v373
        %v417 = vpop.f32.mrf.mxu0
        %v418 = vadd.f32 0.0, %v417
        %419 = vmatmul.f32.gmra.mxu0 %v374
        %v420 = vpop.f32.mrf.mxu0
        %v421 = vadd.f32 0.0, %v420
        %422 = vmatmul.f32.gmra.mxu0 %v375
        %v423 = vpop.f32.mrf.mxu0
        %v424 = vadd.f32 0.0, %v423
        %425 = vmatmul.f32.gmra.mxu0 %v376
        %v426 = vpop.f32.mrf.mxu0
        %v427 = vadd.f32 0.0, %v426
        %428 = vmatmul.f32.gmra.mxu0 %v377
        %v429 = vpop.f32.mrf.mxu0
        %v430 = vadd.f32 0.0, %v429
        %431 = vmatmul.f32.gmra.mxu0 %v378
        %v432 = vpop.f32.mrf.mxu0
        %v433 = vadd.f32 0.0, %v432
        %434 = vmatmul.f32.gmra.mxu0 %v379
        %v435 = vpop.f32.mrf.mxu0
        %v436 = vadd.f32 0.0, %v435
        %437 = vdwg.mxu0
        %v438 = vadd.f32 %v349, %v415
        %v439 = vadd.f32 %v352, %v418
        %v440 = vadd.f32 %v355, %v421
        %v441 = vadd.f32 %v358, %v424
        %v442 = vadd.f32 %v361, %v427
        %v443 = vadd.f32 %v364, %v430
        %v444 = vadd.f32 %v367, %v433
        %v445 = vadd.f32 %v370, %v436
        %v446 = vld [vmem:[%s231] sm:$0xff]
        %v447 = vld [vmem:[%s231 + $0x10] sm:$0xff]
        %v448 = vld [vmem:[%s231 + $0x20] sm:$0xff]
        %v449 = vld [vmem:[%s231 + $0x30] sm:$0xff]
        %v450 = vld [vmem:[%s231 + $0x40] sm:$0xff]
        %v451 = vld [vmem:[%s231 + $0x50] sm:$0xff]
        %v452 = vld [vmem:[%s231 + $0x60] sm:$0xff]
        %v453 = vld [vmem:[%s231 + $0x70] sm:$0xff]
        %s454 = scalar_lea.vmem [#allocation3], 384
        %v455 = vld [vmem:[%s454] sm:$0xff]
        %v456 = vld [vmem:[%s454 + $0x8] sm:$0xff]
        %v457 = vld [vmem:[%s454 + $0x10] sm:$0xff]
        %v458 = vld [vmem:[%s454 + $0x18] sm:$0xff]
        %v459 = vld [vmem:[%s454 + $0x20] sm:$0xff]
        %v460 = vld [vmem:[%s454 + $0x28] sm:$0xff]
        %v461 = vld [vmem:[%s454 + $0x30] sm:$0xff]
        %v462 = vld [vmem:[%s454 + $0x38] sm:$0xff]
        %v463 = vld [vmem:[%s454 + $0x40] sm:$0xff]
        %v464 = vld [vmem:[%s454 + $0x48] sm:$0xff]
        %v465 = vld [vmem:[%s454 + $0x50] sm:$0xff]
        %v466 = vld [vmem:[%s454 + $0x58] sm:$0xff]
        %v467 = vld [vmem:[%s454 + $0x60] sm:$0xff]
        %v468 = vld [vmem:[%s454 + $0x68] sm:$0xff]
        %v469 = vld [vmem:[%s454 + $0x70] sm:$0xff]
        %v470 = vld [vmem:[%s454 + $0x78] sm:$0xff]
        %471 = vmatpush.msra.mxu0 %v470
        %472 = vmatpush.msra.mxu0 %v469
        %473 = vmatpush.msra.mxu0 %v468
        %474 = vmatpush.msra.mxu0 %v467
        %475 = vmatpush.msra.mxu0 %v466
        %476 = vmatpush.msra.mxu0 %v465
        %477 = vmatpush.msra.mxu0 %v464
        %478 = vmatpush.msra.mxu0 %v463
        %479 = vmatpush.msra.mxu0 %v462
        %480 = vmatpush.msra.mxu0 %v461
        %481 = vmatpush.msra.mxu0 %v460
        %482 = vmatpush.msra.mxu0 %v459
        %483 = vmatpush.msra.mxu0 %v458
        %484 = vmatpush.msra.mxu0 %v457
        %485 = vmatpush.msra.mxu0 %v456
        %486 = vmatpush.msra.mxu0 %v455
        %487 = vmatmul.f32.gmra.mxu0 %v446
        %v488 = vpop.f32.mrf.mxu0
        %v489 = vadd.f32 0.0, %v488
        %490 = vmatmul.f32.gmra.mxu0 %v447
        %v491 = vpop.f32.mrf.mxu0
        %v492 = vadd.f32 0.0, %v491
        %493 = vmatmul.f32.gmra.mxu0 %v448
        %v494 = vpop.f32.mrf.mxu0
        %v495 = vadd.f32 0.0, %v494
        %496 = vmatmul.f32.gmra.mxu0 %v449
        %v497 = vpop.f32.mrf.mxu0
        %v498 = vadd.f32 0.0, %v497
        %499 = vmatmul.f32.gmra.mxu0 %v450
        %v500 = vpop.f32.mrf.mxu0
        %v501 = vadd.f32 0.0, %v500
        %502 = vmatmul.f32.gmra.mxu0 %v451
        %v503 = vpop.f32.mrf.mxu0
        %v504 = vadd.f32 0.0, %v503
        %505 = vmatmul.f32.gmra.mxu0 %v452
        %v506 = vpop.f32.mrf.mxu0
        %v507 = vadd.f32 0.0, %v506
        %508 = vmatmul.f32.gmra.mxu0 %v453
        %v509 = vpop.f32.mrf.mxu0
        %v510 = vadd.f32 0.0, %v509
        %511 = vdwg.mxu0
        %v512 = vadd.f32 %v438, %v489
        %v513 = vadd.f32 %v439, %v492
        %v514 = vadd.f32 %v440, %v495
        %v515 = vadd.f32 %v441, %v498
        %v516 = vadd.f32 %v442, %v501
        %v517 = vadd.f32 %v443, %v504
        %v518 = vadd.f32 %v444, %v507
        %v519 = vadd.f32 %v445, %v510
        %v520 = vld [vmem:[%s231 + $0x1] sm:$0xff]
        %v521 = vld [vmem:[%s231 + $0x11] sm:$0xff]
        %v522 = vld [vmem:[%s231 + $0x21] sm:$0xff]
        %v523 = vld [vmem:[%s231 + $0x31] sm:$0xff]
        %v524 = vld [vmem:[%s231 + $0x41] sm:$0xff]
        %v525 = vld [vmem:[%s231 + $0x51] sm:$0xff]
        %v526 = vld [vmem:[%s231 + $0x61] sm:$0xff]
        %v527 = vld [vmem:[%s231 + $0x71] sm:$0xff]
        %s528 = scalar_lea.vmem [#allocation3], 512
        %v529 = vld [vmem:[%s528] sm:$0xff]
        %v530 = vld [vmem:[%s528 + $0x8] sm:$0xff]
        %v531 = vld [vmem:[%s528 + $0x10] sm:$0xff]
        %v532 = vld [vmem:[%s528 + $0x18] sm:$0xff]
        %v533 = vld [vmem:[%s528 + $0x20] sm:$0xff]
        %v534 = vld [vmem:[%s528 + $0x28] sm:$0xff]
        %v535 = vld [vmem:[%s528 + $0x30] sm:$0xff]
        %v536 = vld [vmem:[%s528 + $0x38] sm:$0xff]
        %v537 = vld [vmem:[%s528 + $0x40] sm:$0xff]
        %v538 = vld [vmem:[%s528 + $0x48] sm:$0xff]
        %v539 = vld [vmem:[%s528 + $0x50] sm:$0xff]
        %v540 = vld [vmem:[%s528 + $0x58] sm:$0xff]
        %v541 = vld [vmem:[%s528 + $0x60] sm:$0xff]
        %v542 = vld [vmem:[%s528 + $0x68] sm:$0xff]
        %v543 = vld [vmem:[%s528 + $0x70] sm:$0xff]
        %v544 = vld [vmem:[%s528 + $0x78] sm:$0xff]
        %545 = vmatpush.msra.mxu0 %v544
        %546 = vmatpush.msra.mxu0 %v543
        %547 = vmatpush.msra.mxu0 %v542
        %548 = vmatpush.msra.mxu0 %v541
        %549 = vmatpush.msra.mxu0 %v540
        %550 = vmatpush.msra.mxu0 %v539
        %551 = vmatpush.msra.mxu0 %v538
        %552 = vmatpush.msra.mxu0 %v537
        %553 = vmatpush.msra.mxu0 %v536
        %554 = vmatpush.msra.mxu0 %v535
        %555 = vmatpush.msra.mxu0 %v534
        %556 = vmatpush.msra.mxu0 %v533
        %557 = vmatpush.msra.mxu0 %v532
        %558 = vmatpush.msra.mxu0 %v531
        %559 = vmatpush.msra.mxu0 %v530
        %560 = vmatpush.msra.mxu0 %v529
        %561 = vmatmul.f32.gmra.mxu0 %v520
        %v562 = vpop.f32.mrf.mxu0
        %v563 = vadd.f32 0.0, %v562
        %564 = vmatmul.f32.gmra.mxu0 %v521
        %v565 = vpop.f32.mrf.mxu0
        %v566 = vadd.f32 0.0, %v565
        %567 = vmatmul.f32.gmra.mxu0 %v522
        %v568 = vpop.f32.mrf.mxu0
        %v569 = vadd.f32 0.0, %v568
        %570 = vmatmul.f32.gmra.mxu0 %v523
        %v571 = vpop.f32.mrf.mxu0
        %v572 = vadd.f32 0.0, %v571
        %573 = vmatmul.f32.gmra.mxu0 %v524
        %v574 = vpop.f32.mrf.mxu0
        %v575 = vadd.f32 0.0, %v574
        %576 = vmatmul.f32.gmra.mxu0 %v525
        %v577 = vpop.f32.mrf.mxu0
        %v578 = vadd.f32 0.0, %v577
        %579 = vmatmul.f32.gmra.mxu0 %v526
        %v580 = vpop.f32.mrf.mxu0
        %v581 = vadd.f32 0.0, %v580
        %582 = vmatmul.f32.gmra.mxu0 %v527
        %v583 = vpop.f32.mrf.mxu0
        %v584 = vadd.f32 0.0, %v583
        %585 = vdwg.mxu0
        %v586 = vadd.f32 %v512, %v563
        %v587 = vadd.f32 %v513, %v566
        %v588 = vadd.f32 %v514, %v569
        %v589 = vadd.f32 %v515, %v572
        %v590 = vadd.f32 %v516, %v575
        %v591 = vadd.f32 %v517, %v578
        %v592 = vadd.f32 %v518, %v581
        %v593 = vadd.f32 %v519, %v584
        %v594 = vld [vmem:[%s231 + $0x2] sm:$0xff]
        %v595 = vld [vmem:[%s231 + $0x12] sm:$0xff]
        %v596 = vld [vmem:[%s231 + $0x22] sm:$0xff]
        %v597 = vld [vmem:[%s231 + $0x32] sm:$0xff]
        %v598 = vld [vmem:[%s231 + $0x42] sm:$0xff]
        %v599 = vld [vmem:[%s231 + $0x52] sm:$0xff]
        %v600 = vld [vmem:[%s231 + $0x62] sm:$0xff]
        %v601 = vld [vmem:[%s231 + $0x72] sm:$0xff]
        %s602 = scalar_lea.vmem [#allocation3], 640
        %v603 = vld [vmem:[%s602] sm:$0xff]
        %v604 = vld [vmem:[%s602 + $0x8] sm:$0xff]
        %v605 = vld [vmem:[%s602 + $0x10] sm:$0xff]
        %v606 = vld [vmem:[%s602 + $0x18] sm:$0xff]
        %v607 = vld [vmem:[%s602 + $0x20] sm:$0xff]
        %v608 = vld [vmem:[%s602 + $0x28] sm:$0xff]
        %v609 = vld [vmem:[%s602 + $0x30] sm:$0xff]
        %v610 = vld [vmem:[%s602 + $0x38] sm:$0xff]
        %v611 = vld [vmem:[%s602 + $0x40] sm:$0xff]
        %v612 = vld [vmem:[%s602 + $0x48] sm:$0xff]
        %v613 = vld [vmem:[%s602 + $0x50] sm:$0xff]
        %v614 = vld [vmem:[%s602 + $0x58] sm:$0xff]
        %v615 = vld [vmem:[%s602 + $0x60] sm:$0xff]
        %v616 = vld [vmem:[%s602 + $0x68] sm:$0xff]
        %v617 = vld [vmem:[%s602 + $0x70] sm:$0xff]
        %v618 = vld [vmem:[%s602 + $0x78] sm:$0xff]
        %619 = vmatpush.msra.mxu0 %v618
        %620 = vmatpush.msra.mxu0 %v617
        %621 = vmatpush.msra.mxu0 %v616
        %622 = vmatpush.msra.mxu0 %v615
        %623 = vmatpush.msra.mxu0 %v614
        %624 = vmatpush.msra.mxu0 %v613
        %625 = vmatpush.msra.mxu0 %v612
        %626 = vmatpush.msra.mxu0 %v611
        %627 = vmatpush.msra.mxu0 %v610
        %628 = vmatpush.msra.mxu0 %v609
        %629 = vmatpush.msra.mxu0 %v608
        %630 = vmatpush.msra.mxu0 %v607
        %631 = vmatpush.msra.mxu0 %v606
        %632 = vmatpush.msra.mxu0 %v605
        %633 = vmatpush.msra.mxu0 %v604
        %634 = vmatpush.msra.mxu0 %v603
        %635 = vmatmul.f32.gmra.mxu0 %v594
        %v636 = vpop.f32.mrf.mxu0
        %v637 = vadd.f32 0.0, %v636
        %638 = vmatmul.f32.gmra.mxu0 %v595
        %v639 = vpop.f32.mrf.mxu0
        %v640 = vadd.f32 0.0, %v639
        %641 = vmatmul.f32.gmra.mxu0 %v596
        %v642 = vpop.f32.mrf.mxu0
        %v643 = vadd.f32 0.0, %v642
        %644 = vmatmul.f32.gmra.mxu0 %v597
        %v645 = vpop.f32.mrf.mxu0
        %v646 = vadd.f32 0.0, %v645
        %647 = vmatmul.f32.gmra.mxu0 %v598
        %v648 = vpop.f32.mrf.mxu0
        %v649 = vadd.f32 0.0, %v648
        %650 = vmatmul.f32.gmra.mxu0 %v599
        %v651 = vpop.f32.mrf.mxu0
        %v652 = vadd.f32 0.0, %v651
        %653 = vmatmul.f32.gmra.mxu0 %v600
        %v654 = vpop.f32.mrf.mxu0
        %v655 = vadd.f32 0.0, %v654
        %656 = vmatmul.f32.gmra.mxu0 %v601
        %v657 = vpop.f32.mrf.mxu0
        %v658 = vadd.f32 0.0, %v657
        %659 = vdwg.mxu0
        %v660 = vadd.f32 %v586, %v637
        %v661 = vadd.f32 %v587, %v640
        %v662 = vadd.f32 %v588, %v643
        %v663 = vadd.f32 %v589, %v646
        %v664 = vadd.f32 %v590, %v649
        %v665 = vadd.f32 %v591, %v652
        %v666 = vadd.f32 %v592, %v655
        %v667 = vadd.f32 %v593, %v658
        %s668 = scalar_lea.vmem [#allocation2], 32
        %v669 = vld [vmem:[%s668] sm:$0xff]
        %v670 = vld [vmem:[%s668 + $0x10] sm:$0xff]
        %v671 = vld [vmem:[%s668 + $0x20] sm:$0xff]
        %v672 = vld [vmem:[%s668 + $0x30] sm:$0xff]
        %v673 = vld [vmem:[%s668 + $0x40] sm:$0xff]
        %v674 = vld [vmem:[%s668 + $0x50] sm:$0xff]
        %v675 = vld [vmem:[%s668 + $0x60] sm:$0xff]
        %v676 = vld [vmem:[%s668 + $0x70] sm:$0xff]
        %s677 = scalar_lea.vmem [#allocation3], 768
        %v678 = vld [vmem:[%s677] sm:$0xff]
        %v679 = vld [vmem:[%s677 + $0x8] sm:$0xff]
        %v680 = vld [vmem:[%s677 + $0x10] sm:$0xff]
        %v681 = vld [vmem:[%s677 + $0x18] sm:$0xff]
        %v682 = vld [vmem:[%s677 + $0x20] sm:$0xff]
        %v683 = vld [vmem:[%s677 + $0x28] sm:$0xff]
        %v684 = vld [vmem:[%s677 + $0x30] sm:$0xff]
        %v685 = vld [vmem:[%s677 + $0x38] sm:$0xff]
        %v686 = vld [vmem:[%s677 + $0x40] sm:$0xff]
        %v687 = vld [vmem:[%s677 + $0x48] sm:$0xff]
        %v688 = vld [vmem:[%s677 + $0x50] sm:$0xff]
        %v689 = vld [vmem:[%s677 + $0x58] sm:$0xff]
        %v690 = vld [vmem:[%s677 + $0x60] sm:$0xff]
        %v691 = vld [vmem:[%s677 + $0x68] sm:$0xff]
        %v692 = vld [vmem:[%s677 + $0x70] sm:$0xff]
        %v693 = vld [vmem:[%s677 + $0x78] sm:$0xff]
        %694 = vmatpush.msra.mxu0 %v693
        %695 = vmatpush.msra.mxu0 %v692
        %696 = vmatpush.msra.mxu0 %v691
        %697 = vmatpush.msra.mxu0 %v690
        %698 = vmatpush.msra.mxu0 %v689
        %699 = vmatpush.msra.mxu0 %v688
        %700 = vmatpush.msra.mxu0 %v687
        %701 = vmatpush.msra.mxu0 %v686
        %702 = vmatpush.msra.mxu0 %v685
        %703 = vmatpush.msra.mxu0 %v684
        %704 = vmatpush.msra.mxu0 %v683
        %705 = vmatpush.msra.mxu0 %v682
        %706 = vmatpush.msra.mxu0 %v681
        %707 = vmatpush.msra.mxu0 %v680
        %708 = vmatpush.msra.mxu0 %v679
        %709 = vmatpush.msra.mxu0 %v678
        %710 = vmatmul.f32.gmra.mxu0 %v669
        %v711 = vpop.f32.mrf.mxu0
        %v712 = vadd.f32 0.0, %v711
        %713 = vmatmul.f32.gmra.mxu0 %v670
        %v714 = vpop.f32.mrf.mxu0
        %v715 = vadd.f32 0.0, %v714
        %716 = vmatmul.f32.gmra.mxu0 %v671
        %v717 = vpop.f32.mrf.mxu0
        %v718 = vadd.f32 0.0, %v717
        %719 = vmatmul.f32.gmra.mxu0 %v672
        %v720 = vpop.f32.mrf.mxu0
        %v721 = vadd.f32 0.0, %v720
        %722 = vmatmul.f32.gmra.mxu0 %v673
        %v723 = vpop.f32.mrf.mxu0
        %v724 = vadd.f32 0.0, %v723
        %725 = vmatmul.f32.gmra.mxu0 %v674
        %v726 = vpop.f32.mrf.mxu0
        %v727 = vadd.f32 0.0, %v726
        %728 = vmatmul.f32.gmra.mxu0 %v675
        %v729 = vpop.f32.mrf.mxu0
        %v730 = vadd.f32 0.0, %v729
        %731 = vmatmul.f32.gmra.mxu0 %v676
        %v732 = vpop.f32.mrf.mxu0
        %v733 = vadd.f32 0.0, %v732
        %734 = vdwg.mxu0
        %v735 = vadd.f32 %v660, %v712
        %v736 = vadd.f32 %v661, %v715
        %v737 = vadd.f32 %v662, %v718
        %v738 = vadd.f32 %v663, %v721
        %v739 = vadd.f32 %v664, %v724
        %v740 = vadd.f32 %v665, %v727
        %v741 = vadd.f32 %v666, %v730
        %v742 = vadd.f32 %v667, %v733
        %v743 = vld [vmem:[%s668 + $0x1] sm:$0xff]
        %v744 = vld [vmem:[%s668 + $0x11] sm:$0xff]
        %v745 = vld [vmem:[%s668 + $0x21] sm:$0xff]
        %v746 = vld [vmem:[%s668 + $0x31] sm:$0xff]
        %v747 = vld [vmem:[%s668 + $0x41] sm:$0xff]
        %v748 = vld [vmem:[%s668 + $0x51] sm:$0xff]
        %v749 = vld [vmem:[%s668 + $0x61] sm:$0xff]
        %v750 = vld [vmem:[%s668 + $0x71] sm:$0xff]
        %s751 = scalar_lea.vmem [#allocation3], 896
        %v752 = vld [vmem:[%s751] sm:$0xff]
        %v753 = vld [vmem:[%s751 + $0x8] sm:$0xff]
        %v754 = vld [vmem:[%s751 + $0x10] sm:$0xff]
        %v755 = vld [vmem:[%s751 + $0x18] sm:$0xff]
        %v756 = vld [vmem:[%s751 + $0x20] sm:$0xff]
        %v757 = vld [vmem:[%s751 + $0x28] sm:$0xff]
        %v758 = vld [vmem:[%s751 + $0x30] sm:$0xff]
        %v759 = vld [vmem:[%s751 + $0x38] sm:$0xff]
        %v760 = vld [vmem:[%s751 + $0x40] sm:$0xff]
        %v761 = vld [vmem:[%s751 + $0x48] sm:$0xff]
        %v762 = vld [vmem:[%s751 + $0x50] sm:$0xff]
        %v763 = vld [vmem:[%s751 + $0x58] sm:$0xff]
        %v764 = vld [vmem:[%s751 + $0x60] sm:$0xff]
        %v765 = vld [vmem:[%s751 + $0x68] sm:$0xff]
        %v766 = vld [vmem:[%s751 + $0x70] sm:$0xff]
        %v767 = vld [vmem:[%s751 + $0x78] sm:$0xff]
        %768 = vmatpush.msra.mxu0 %v767
        %769 = vmatpush.msra.mxu0 %v766
        %770 = vmatpush.msra.mxu0 %v765
        %771 = vmatpush.msra.mxu0 %v764
        %772 = vmatpush.msra.mxu0 %v763
        %773 = vmatpush.msra.mxu0 %v762
        %774 = vmatpush.msra.mxu0 %v761
        %775 = vmatpush.msra.mxu0 %v760
        %776 = vmatpush.msra.mxu0 %v759
        %777 = vmatpush.msra.mxu0 %v758
        %778 = vmatpush.msra.mxu0 %v757
        %779 = vmatpush.msra.mxu0 %v756
        %780 = vmatpush.msra.mxu0 %v755
        %781 = vmatpush.msra.mxu0 %v754
        %782 = vmatpush.msra.mxu0 %v753
        %783 = vmatpush.msra.mxu0 %v752
        %784 = vmatmul.f32.gmra.mxu0 %v743
        %v785 = vpop.f32.mrf.mxu0
        %v786 = vadd.f32 0.0, %v785
        %787 = vmatmul.f32.gmra.mxu0 %v744
        %v788 = vpop.f32.mrf.mxu0
        %v789 = vadd.f32 0.0, %v788
        %790 = vmatmul.f32.gmra.mxu0 %v745
        %v791 = vpop.f32.mrf.mxu0
        %v792 = vadd.f32 0.0, %v791
        %793 = vmatmul.f32.gmra.mxu0 %v746
        %v794 = vpop.f32.mrf.mxu0
        %v795 = vadd.f32 0.0, %v794
        %796 = vmatmul.f32.gmra.mxu0 %v747
        %v797 = vpop.f32.mrf.mxu0
        %v798 = vadd.f32 0.0, %v797
        %799 = vmatmul.f32.gmra.mxu0 %v748
        %v800 = vpop.f32.mrf.mxu0
        %v801 = vadd.f32 0.0, %v800
        %802 = vmatmul.f32.gmra.mxu0 %v749
        %v803 = vpop.f32.mrf.mxu0
        %v804 = vadd.f32 0.0, %v803
        %805 = vmatmul.f32.gmra.mxu0 %v750
        %v806 = vpop.f32.mrf.mxu0
        %v807 = vadd.f32 0.0, %v806
        %808 = vdwg.mxu0
        %v809 = vadd.f32 %v735, %v786
        %v810 = vadd.f32 %v736, %v789
        %v811 = vadd.f32 %v737, %v792
        %v812 = vadd.f32 %v738, %v795
        %v813 = vadd.f32 %v739, %v798
        %v814 = vadd.f32 %v740, %v801
        %v815 = vadd.f32 %v741, %v804
        %v816 = vadd.f32 %v742, %v807
        %v817 = vld [vmem:[%s668 + $0x2] sm:$0xff]
        %v818 = vld [vmem:[%s668 + $0x12] sm:$0xff]
        %v819 = vld [vmem:[%s668 + $0x22] sm:$0xff]
        %v820 = vld [vmem:[%s668 + $0x32] sm:$0xff]
        %v821 = vld [vmem:[%s668 + $0x42] sm:$0xff]
        %v822 = vld [vmem:[%s668 + $0x52] sm:$0xff]
        %v823 = vld [vmem:[%s668 + $0x62] sm:$0xff]
        %v824 = vld [vmem:[%s668 + $0x72] sm:$0xff]
        %s825 = scalar_lea.vmem [#allocation3], 1024
        %v826 = vld [vmem:[%s825] sm:$0xff]
        %v827 = vld [vmem:[%s825 + $0x8] sm:$0xff]
        %v828 = vld [vmem:[%s825 + $0x10] sm:$0xff]
        %v829 = vld [vmem:[%s825 + $0x18] sm:$0xff]
        %v830 = vld [vmem:[%s825 + $0x20] sm:$0xff]
        %v831 = vld [vmem:[%s825 + $0x28] sm:$0xff]
        %v832 = vld [vmem:[%s825 + $0x30] sm:$0xff]
        %v833 = vld [vmem:[%s825 + $0x38] sm:$0xff]
        %v834 = vld [vmem:[%s825 + $0x40] sm:$0xff]
        %v835 = vld [vmem:[%s825 + $0x48] sm:$0xff]
        %v836 = vld [vmem:[%s825 + $0x50] sm:$0xff]
        %v837 = vld [vmem:[%s825 + $0x58] sm:$0xff]
        %v838 = vld [vmem:[%s825 + $0x60] sm:$0xff]
        %v839 = vld [vmem:[%s825 + $0x68] sm:$0xff]
        %v840 = vld [vmem:[%s825 + $0x70] sm:$0xff]
        %v841 = vld [vmem:[%s825 + $0x78] sm:$0xff]
        %842 = vmatpush.msra.mxu0 %v841
        %843 = vmatpush.msra.mxu0 %v840
        %844 = vmatpush.msra.mxu0 %v839
        %845 = vmatpush.msra.mxu0 %v838
        %846 = vmatpush.msra.mxu0 %v837
        %847 = vmatpush.msra.mxu0 %v836
        %848 = vmatpush.msra.mxu0 %v835
        %849 = vmatpush.msra.mxu0 %v834
        %850 = vmatpush.msra.mxu0 %v833
        %851 = vmatpush.msra.mxu0 %v832
        %852 = vmatpush.msra.mxu0 %v831
        %853 = vmatpush.msra.mxu0 %v830
        %854 = vmatpush.msra.mxu0 %v829
        %855 = vmatpush.msra.mxu0 %v828
        %856 = vmatpush.msra.mxu0 %v827
        %857 = vmatpush.msra.mxu0 %v826
        %858 = vmatmul.f32.gmra.mxu0 %v817
        %v859 = vpop.f32.mrf.mxu0
        %v860 = vadd.f32 0.0, %v859
        %861 = vmatmul.f32.gmra.mxu0 %v818
        %v862 = vpop.f32.mrf.mxu0
        %v863 = vadd.f32 0.0, %v862
        %864 = vmatmul.f32.gmra.mxu0 %v819
        %v865 = vpop.f32.mrf.mxu0
        %v866 = vadd.f32 0.0, %v865
        %867 = vmatmul.f32.gmra.mxu0 %v820
        %v868 = vpop.f32.mrf.mxu0
        %v869 = vadd.f32 0.0, %v868
        %870 = vmatmul.f32.gmra.mxu0 %v821
        %v871 = vpop.f32.mrf.mxu0
        %v872 = vadd.f32 0.0, %v871
        %873 = vmatmul.f32.gmra.mxu0 %v822
        %v874 = vpop.f32.mrf.mxu0
        %v875 = vadd.f32 0.0, %v874
        %876 = vmatmul.f32.gmra.mxu0 %v823
        %v877 = vpop.f32.mrf.mxu0
        %v878 = vadd.f32 0.0, %v877
        %879 = vmatmul.f32.gmra.mxu0 %v824
        %v880 = vpop.f32.mrf.mxu0
        %v881 = vadd.f32 0.0, %v880
        %882 = vdwg.mxu0
        %v883 = vadd.f32 %v809, %v860
        %v884 = vadd.f32 %v810, %v863
        %v885 = vadd.f32 %v811, %v866
        %v886 = vadd.f32 %v812, %v869
        %v887 = vadd.f32 %v813, %v872
        %v888 = vadd.f32 %v814, %v875
        %v889 = vadd.f32 %v815, %v878
        %v890 = vadd.f32 %v816, %v881
        %v892 = vperm.slane %v240, 0
        %v894 = vadd.f32 %v883, %v892
        %v895 = vadd.f32 %v884, %v892
        %v896 = vadd.f32 %v885, %v892
        %v897 = vadd.f32 %v886, %v892
        %v898 = vadd.f32 %v887, %v892
        %v899 = vadd.f32 %v888, %v892
        %v900 = vadd.f32 %v889, %v892
        %v901 = vadd.f32 %v890, %v892
        %v902 = vtanh.pop %v894
        %v903 = vtanh.pop %v895
        %v904 = vtanh.pop %v896
        %v905 = vtanh.pop %v897
        %v906 = vtanh.pop %v898
        %v907 = vtanh.pop %v899
        %v908 = vtanh.pop %v900
        %v909 = vtanh.pop %v901
        %910 = vst [vmem:[%s202] sm:$0xff] %v902
        %911 = vst [vmem:[%s202 + $0x8] sm:$0xff] %v903
        %912 = vst [vmem:[%s202 + $0x10] sm:$0xff] %v904
        %913 = vst [vmem:[%s202 + $0x18] sm:$0xff] %v905
        %914 = vst [vmem:[%s202 + $0x20] sm:$0xff] %v906
        %915 = vst [vmem:[%s202 + $0x28] sm:$0xff] %v907
        %916 = vst [vmem:[%s202 + $0x30] sm:$0xff] %v908
        %917 = vst [vmem:[%s202 + $0x38] sm:$0xff] %v909
        %p918 = scmp.lt.s32.totalorder %s16, 1
        %s919 = scalar_select %p918, %s16, 1
        %s920 = smul.addr %s919, 8
        %s921 = smul.addr %s920, 8
        %s922 = scalar_lea.vmem %s3, %s921
        // Predicated region
        $region41: #{deep_cnn_forward.6} parent=31 // pred_check
          %p923 = pneg %p102
        $region42: #{deep_cnn_forward.6} parent=31 // pred_check_branch
          %925 = sbr.rel (%p923) target = $region44
        $region43: #{deep_cnn_forward.6} parent=31 // pred_region
          _
        $region44: #{deep_cnn_forward.6} parent=31 // pred_fallthru
          _
      $region32: #{deep_cnn_forward.6} parent=5 // pred_fallthru
        _
      %p926 = scmp.le.s32.totalorder 2, %s11
      // Predicated region
      $region45: #{deep_cnn_forward.6} parent=5 // pred_check
        %p927 = pneg %p926
      $region46: #{deep_cnn_forward.6} parent=5 // pred_check_branch
        %929 = sbr.rel (%p927) target = $region48
      $region47: #{deep_cnn_forward.6} parent=5 // pred_region
        %s930 = ssub.s32 %s11, 2
        // Predicated region
        $region49: #{deep_cnn_forward.6} parent=47 // pred_check
          %p931 = pneg %p108
        $region50: #{deep_cnn_forward.6} parent=47 // pred_check_branch
          %933 = sbr.rel (%p931) target = $region52
        $region51: #{deep_cnn_forward.6} parent=47 // pred_region
          %p934 = scmp.lt.s32.totalorder %s17, 1
          %s935 = scalar_select %p934, %s17, 1
          %s936 = smul.addr %s935, 8
          %s937 = smul.addr %s936, 8
          %s938 = scalar_lea.vmem %s3, %s937
        $region52: #{deep_cnn_forward.6} parent=47 // pred_fallthru
          _
      $region48: #{deep_cnn_forward.6} parent=5 // pred_fallthru
        _
    $region6: #{deep_cnn_forward.6} parent=1 // loop_footer
      %s15 = sadd.s32 1, %s11
    $region7: #{deep_cnn_forward.6} parent=1 // loop_footer_branch
      %10 = sbr.rel target = $region3
    $region8: #{deep_cnn_forward.6} parent=1 // loop_exit
      _
    %939 = vsyncpa [#allocation4], 1
    %s940 = scalar_lea.sflag [#allocation4], 1
    %941 = vsyncpa %s940, 1
    %942 = vsyncpa [#allocation6], 1

// kernel: deep_cnn_forward.4
$region0: #{deep_cnn_forward.4}
  #allocation0 [shape = 'u32[]', space=smem, size = 0x4, offset = 0x4, fixed_abs, tag = 'smem constant byte address 0x4 - core index']
  #allocation1 [shape = 'u32[72,128]{1,0:T(1,128)}', space=vmem, size = 0x9000, scoped, tag = 'internal scratch']
  #allocation2 [shape = 'f32[1,18,18,8]{3,2,1,0:T(8,128)}', space=vmem, size = 0x36000, scoped, tag = 'scratch operand']
  %s0 = inlined_call_operand.vmem [shape: f32[2,16,16,8], index: 0, kind: input, shape index: {}]
  %s1 = inlined_call_operand.hbm [shape: f32[3,3,8,128], index: 1, kind: input, shape index: {}]
  %s2 = inlined_call_operand.hbm [shape: f32[1,128], index: 2, kind: input, shape index: {}]
  %s3 = inlined_call_operand.vmem [shape: f32[2,16,16,128], index: 3, kind: output, shape index: {}]
  %s4 = sld [smem:[#allocation0]]
  $region53: #{deep_cnn_forward.4} parent=0
    _
  %s6 = ssub.s32 1, %s4
  %s7 = scalar_select 0, %s6, %s4
  $region1: #{deep_cnn_forward.4} parent=0
    #allocation3 [shape = 'u8[36864]{0}', space=vmem, size = 0x9000, scoped, tag = 'input window, operand 1, single buffered']
    #allocation4 [shape = 's32[2]{0}', space=sflag, size = 0x8, scoped, tag = 'scoped memory for deep_cnn_forward.4']
    #allocation5 [shape = 'u8[512]{0}', space=vmem, size = 0x400, scoped, tag = 'input window, operand 2, single buffered']
    #allocation6 [shape = 's32[1]{0}', space=sflag, size = 0x4, scoped, tag = 'scoped memory for deep_cnn_forward.4']
    %8 = vsyncpa [#allocation4], 0
    %9 = vsyncpa [#allocation6], 0
    loop: start=0, step=1, limit=4
    $region2: #{deep_cnn_forward.4} parent=1 // loop_pre_header
      _
    $region3: #{deep_cnn_forward.4} parent=1 // loop_header
      %s11 = sphi 0, %s15
      %p12 = scmp.ge.s32.totalorder %s11, 4
      %s21 = sphi 0, %s23
      %s24 = sphi 0, %s21
      %s25 = sphi 0, %s24
      %s41 = sphi 0, %s25
      %s45 = sphi 0, %s45
      %s47 = sphi 0, %s45
      %s48 = sphi 0, %s47
      %s62 = sphi 0, %s48
      %s66 = sphi 0, %s66
      %s68 = sphi 0, %s66
      %s69 = sphi 0, %s68
      %s83 = sphi 0, %s69
      %s89 = sphi 0, %s91
      %s92 = sphi 0, %s89
      %s93 = sphi 0, %s92
      %s109 = sphi 0, %s93
    $region4: #{deep_cnn_forward.4} parent=1 // loop_header_branch
      %14 = sbr.rel (%p12) target = $region8
    $region5: #{deep_cnn_forward.4} parent=1 // loop_body
      %s16 = ssub.s32 %s11, 1
      %s17 = ssub.s32 %s11, 2
      %s18 = sadd.s32 %s11, 1
      %s19 = ssub.s32 %s11, %s18
      %p20 = scmp.eq.s32.totalorder %s19, 0
      %s22 = sadd.s32 %s21, 1
      %s23 = scalar_select %p20, %s21, %s22
      %p26 = pneg %p20
      %p27 = scmp.eq.s32.totalorder %s11, 1
      %p28 = por %p26, %p27
      %p29 = scmp.ne.s32.totalorder %s21, %s24
      %p30 = scmp.eq.s32.totalorder %s11, 0
      %p31 = por %p29, %p30
      %p32 = scmp.ne.s32.totalorder %s21, %s24
      %p33 = scmp.eq.s32.totalorder %s16, 1
      %p34 = por %p32, %p33
      %p35 = scmp.ne.s32.totalorder %s24, %s25
      %p36 = scmp.eq.s32.totalorder %s16, 0
      %p37 = por %p35, %p36
      %p38 = scmp.ne.s32.totalorder %s24, %s25
      %p39 = scmp.eq.s32.totalorder %s17, 1
      %p40 = por %p38, %p39
      %p42 = scmp.ne.s32.totalorder %s25, %s41
      %p43 = scmp.eq.s32.totalorder %s17, 0
      %p44 = por %p42, %p43
      %s46 = sadd.s32 %s45, 1
      %p49 = scmp.eq.s32.totalorder %s11, 1
      %p50 = scmp.ne.s32.totalorder %s45, %s47
      %p51 = scmp.eq.s32.totalorder %s11, 0
      %p52 = por %p50, %p51
      %p53 = scmp.ne.s32.totalorder %s45, %s47
      %p54 = scmp.eq.s32.totalorder %s16, 1
      %p55 = por %p53, %p54
      %p56 = scmp.ne.s32.totalorder %s47, %s48
      %p57 = scmp.eq.s32.totalorder %s16, 0
      %p58 = por %p56, %p57
      %p59 = scmp.ne.s32.totalorder %s47, %s48
      %p60 = scmp.eq.s32.totalorder %s17, 1
      %p61 = por %p59, %p60
      %p63 = scmp.ne.s32.totalorder %s48, %s62
      %p64 = scmp.eq.s32.totalorder %s17, 0
      %p65 = por %p63, %p64
      %s67 = sadd.s32 %s66, 1
      %p70 = scmp.eq.s32.totalorder %s11, 1
      %p71 = scmp.ne.s32.totalorder %s66, %s68
      %p72 = scmp.eq.s32.totalorder %s11, 0
      %p73 = por %p71, %p72
      %p74 = scmp.ne.s32.totalorder %s66, %s68
      %p75 = scmp.eq.s32.totalorder %s16, 1
      %p76 = por %p74, %p75
      %p77 = scmp.ne.s32.totalorder %s68, %s69
      %p78 = scmp.eq.s32.totalorder %s16, 0
      %p79 = por %p77, %p78
      %p80 = scmp.ne.s32.totalorder %s68, %s69
      %p81 = scmp.eq.s32.totalorder %s17, 1
      %p82 = por %p80, %p81
      %p84 = scmp.ne.s32.totalorder %s69, %s83
      %p85 = scmp.eq.s32.totalorder %s17, 0
      %p86 = por %p84, %p85
      %s87 = ssub.s32 %s11, %s18
      %p88 = scmp.eq.s32.totalorder %s87, 0
      %s90 = sadd.s32 %s89, 1
      %s91 = scalar_select %p88, %s89, %s90
      %p94 = pneg %p88
      %p95 = scmp.eq.s32.totalorder %s11, 1
      %p96 = por %p94, %p95
      %p97 = scmp.ne.s32.totalorder %s89, %s92
      %p98 = scmp.eq.s32.totalorder %s11, 0
      %p99 = por %p97, %p98
      %p100 = scmp.ne.s32.totalorder %s89, %s92
      %p101 = scmp.eq.s32.totalorder %s16, 1
      %p102 = por %p100, %p101
      %p103 = scmp.ne.s32.totalorder %s92, %s93
      %p104 = scmp.eq.s32.totalorder %s16, 0
      %p105 = por %p103, %p104
      %p106 = scmp.ne.s32.totalorder %s92, %s93
      %p107 = scmp.eq.s32.totalorder %s17, 1
      %p108 = por %p106, %p107
      %p110 = scmp.ne.s32.totalorder %s93, %s109
      %p111 = scmp.eq.s32.totalorder %s17, 0
      %p112 = por %p110, %p111
      %p113 = scmp.le.s32.totalorder 1, %s11
      %p114 = scmp.lt.s32.totalorder %s11, 3
      %p115 = pnand %p113, %p114
      %p116 = pneg %p115
      // Predicated region
      $region9: #{deep_cnn_forward.4} parent=5 // pred_check
        _
      $region10: #{deep_cnn_forward.4} parent=5 // pred_check_branch
        %118 = sbr.rel (%p115) target = $region12
      $region11: #{deep_cnn_forward.4} parent=5 // pred_region
        %s119 = ssub.s32 %s11, 1
        // Predicated region
        $region13: #{deep_cnn_forward.4} parent=11 // pred_check
          %p120 = pneg %p58
        $region14: #{deep_cnn_forward.4} parent=11 // pred_check_branch
          %122 = sbr.rel (%p120) target = $region16
        $region15: #{deep_cnn_forward.4} parent=11 // pred_region
          %124 = vsyncadd [#allocation4], 0
          %s125 = sshll.u32 %s1, 4
          %s126 = int_to_ptr.hbm [resolvable:$true] %s125
          %s127 = sshll.u32 [#allocation3], 4
          %s128 = int_to_ptr.vmem [resolvable:$true] %s127
          %133 = dma.hbm_to_vmem [thread:$0]  %s126, 1152, %s128, [#allocation4], 128, 128, 8
        $region16: #{deep_cnn_forward.4} parent=11 // pred_fallthru
          _
        // Predicated region
        $region17: #{deep_cnn_forward.4} parent=11 // pred_check
          %p134 = pneg %p79
        $region18: #{deep_cnn_forward.4} parent=11 // pred_check_branch
          %136 = sbr.rel (%p134) target = $region20
        $region19: #{deep_cnn_forward.4} parent=11 // pred_region
          %138 = vsyncadd [#allocation6], 0
          %s140 = sshll.u32 %s2, 4
          %s141 = int_to_ptr.hbm [resolvable:$true] %s140
          %s142 = sshll.u32 [#allocation5], 4
          %s143 = int_to_ptr.vmem [resolvable:$true] %s142
          %145 = dma.hbm_to_vmem [thread:$0]  %s141, 16, %s143, [#allocation6]
        $region20: #{deep_cnn_forward.4} parent=11 // pred_fallthru
          _
      $region12: #{deep_cnn_forward.4} parent=5 // pred_fallthru
        _
      %p146 = scmp.lt.s32.totalorder %s11, 2
      // Predicated region
      $region21: #{deep_cnn_forward.4} parent=5 // pred_check
        %p147 = pneg %p146
      $region22: #{deep_cnn_forward.4} parent=5 // pred_check_branch
        %149 = sbr.rel (%p147) target = $region24
      $region23: #{deep_cnn_forward.4} parent=5 // pred_region
        // Predicated region
        $region25: #{deep_cnn_forward.4} parent=23 // pred_check
          %p150 = pneg %p31
        $region26: #{deep_cnn_forward.4} parent=23 // pred_check_branch
          %152 = sbr.rel (%p150) target = $region28
        $region27: #{deep_cnn_forward.4} parent=23 // pred_region
          %p153 = scmp.lt.s32.totalorder %s11, 1
          %s154 = scalar_select %p153, %s11, 1
          %s155 = smul.addr %s154, 32
          %s156 = smul.addr %s155, 8
          %s157 = scalar_lea.vmem %s0, %s156
        $region28: #{deep_cnn_forward.4} parent=23 // pred_fallthru
          _
      $region24: #{deep_cnn_forward.4} parent=5 // pred_fallthru
        _
      %p158 = scmp.le.s32.totalorder 1, %s11
      %p159 = scmp.lt.s32.totalorder %s11, 3
      %p160 = pnand %p158, %p159
      %p161 = pneg %p160
      // Predicated region
      $region29: #{deep_cnn_forward.4} parent=5 // pred_check
        _
      $region30: #{deep_cnn_forward.4} parent=5 // pred_check_branch
        %163 = sbr.rel (%p160) target = $region32
      $region31: #{deep_cnn_forward.4} parent=5 // pred_region
        %s164 = ssub.s32 %s11, 1
        // Predicated region
        $region33: #{deep_cnn_forward.4} parent=31 // pred_check
          %p165 = pneg %p58
        $region34: #{deep_cnn_forward.4} parent=31 // pred_check_branch
          %167 = sbr.rel (%p165) target = $region36
        $region35: #{deep_cnn_forward.4} parent=31 // pred_region
          %169 = dma.done [#allocation4], 1152
        $region36: #{deep_cnn_forward.4} parent=31 // pred_fallthru
          _
        // Predicated region
        $region37: #{deep_cnn_forward.4} parent=31 // pred_check
          %p170 = pneg %p79
        $region38: #{deep_cnn_forward.4} parent=31 // pred_check_branch
          %172 = sbr.rel (%p170) target = $region40
        $region39: #{deep_cnn_forward.4} parent=31 // pred_region
          %174 = dma.done [#allocation6], 16
        $region40: #{deep_cnn_forward.4} parent=31 // pred_fallthru
          _
        %p175 = scmp.lt.s32.totalorder %s16, 1
        %s176 = scalar_select %p175, %s16, 1
        %s177 = smul.addr %s176, 32
        %s178 = smul.addr %s177, 8
        %s179 = scalar_lea.vmem %s0, %s178
        %p180 = pneg %p37
        %p181 = pneg %p34
        %p182 = pneg %p58
        %p183 = pneg %p55
        %p184 = pneg %p79
        %p185 = pneg %p76
        %p186 = pneg %p105
        %p187 = pneg %p102
        %p188 = scmp.lt.s32.totalorder %s16, 1
        %s189 = scalar_select %p188, %s16, 1
        %s190 = smul.addr %s189, 32
        %s191 = smul.addr %s190, 8
        %s192 = scalar_lea.vmem %s3, %s191
        %p193 = scmp.lt.s32.totalorder %s16, 1
        %s194 = scalar_select %p193, %s16, 1
        %s195 = smul.addr %s194, 32
        %s196 = smul.addr %s195, 8
        %s197 = scalar_lea.vmem %s0, %s196
        %p198 = scmp.lt.s32.totalorder %s16, 1
        %s199 = scalar_select %p198, %s16, 1
        %s200 = smul.addr %s199, 32
        %s201 = smul.addr %s200, 8
        %s202 = scalar_lea.vmem %s3, %s201
        %vm203 = vcmask 64512
        %204 = vst.msk [vmem:[#allocation2] sm:$0xff] %vm203, 0.0
        %205 = vst.msk [vmem:[#allocation2 + $0x8] sm:$0xff] %vm203, 0.0
        %vm206 = vcmask 58368
        %207 = vst.msk [vmem:[#allocation2 + $0x10] sm:$0x3] %vm206, 0.0
        %208 = vst.msk [vmem:[#allocation2 + $0x18] sm:$0xff] %vm203, 0.0
        %209 = vst.msk [vmem:[#allocation2 + $0x20] sm:$0xff] %vm203, 0.0
        %210 = vst.msk [vmem:[#allocation2 + $0x28] sm:$0x3] %vm206, 0.0
        %211 = vst.msk [vmem:[#allocation2 + $0x30] sm:$0xff] %vm203, 0.0
        %212 = vst.msk [vmem:[#allocation2 + $0x38] sm:$0xff] %vm203, 0.0
        %213 = vst.msk [vmem:[#allocation2 + $0x40] sm:$0x3] %vm206, 0.0
        %214 = vst.msk [vmem:[#allocation2 + $0x48] sm:$0xff] %vm203, 0.0
        %215 = vst.msk [vmem:[#allocation2 + $0x50] sm:$0xff] %vm203, 0.0
        %216 = vst.msk [vmem:[#allocation2 + $0x58] sm:$0x3] %vm206, 0.0
        %217 = vst.msk [vmem:[#allocation2 + $0x60] sm:$0xff] %vm203, 0.0
        %218 = vst.msk [vmem:[#allocation2 + $0x68] sm:$0xff] %vm203, 0.0
        %219 = vst.msk [vmem:[#allocation2 + $0x70] sm:$0x3] %vm206, 0.0
        %220 = vst.msk [vmem:[#allocation2 + $0x78] sm:$0xff] %vm203, 0.0
        %221 = vst.msk [vmem:[#allocation2 + $0x80] sm:$0xff] %vm203, 0.0
        %222 = vst.msk [vmem:[#allocation2 + $0x88] sm:$0x3] %vm206, 0.0
        %223 = vst.msk [vmem:[#allocation2 + $0x90] sm:$0xff] %vm203, 0.0
        %224 = vst.msk [vmem:[#allocation2 + $0x98] sm:$0xff] %vm203, 0.0
        %225 = vst.msk [vmem:[#allocation2 + $0xa0] sm:$0x3] %vm206, 0.0
        %226 = vst.msk [vmem:[#allocation2 + $0xa8] sm:$0xff] %vm203, 0.0
        %227 = vst.msk [vmem:[#allocation2 + $0xb0] sm:$0xff] %vm203, 0.0
        %228 = vst.msk [vmem:[#allocation2 + $0xb8] sm:$0x3] %vm206, 0.0
        %229 = vst.msk [vmem:[#allocation2 + $0xc0] sm:$0xff] %vm203, 0.0
        %230 = vst.msk [vmem:[#allocation2 + $0xc8] sm:$0xff] %vm203, 0.0
        %231 = vst.msk [vmem:[#allocation2 + $0xd0] sm:$0x3] %vm206, 0.0
        %232 = vst.msk [vmem:[#allocation2 + $0xd8] sm:$0xff] %vm203, 0.0
        %233 = vst.msk [vmem:[#allocation2 + $0xe0] sm:$0xff] %vm203, 0.0
        %234 = vst.msk [vmem:[#allocation2 + $0xe8] sm:$0x3] %vm206, 0.0
        %235 = vst.msk [vmem:[#allocation2 + $0xf0] sm:$0xff] %vm203, 0.0
        %236 = vst.msk [vmem:[#allocation2 + $0xf8] sm:$0xff] %vm203, 0.0
        %237 = vst.msk [vmem:[#allocation2 + $0x100] sm:$0x3] %vm206, 0.0
        %238 = vst.msk [vmem:[#allocation2 + $0x108] sm:$0xff] %vm203, 0.0
        %239 = vst.msk [vmem:[#allocation2 + $0x110] sm:$0xff] %vm203, 0.0
        %240 = vst.msk [vmem:[#allocation2 + $0x118] sm:$0x3] %vm206, 0.0
        %241 = vst.msk [vmem:[#allocation2 + $0x120] sm:$0xff] %vm203, 0.0
        %242 = vst.msk [vmem:[#allocation2 + $0x128] sm:$0xff] %vm203, 0.0
        %243 = vst.msk [vmem:[#allocation2 + $0x130] sm:$0x3] %vm206, 0.0
        %244 = vst.msk [vmem:[#allocation2 + $0x138] sm:$0xff] %vm203, 0.0
        %245 = vst.msk [vmem:[#allocation2 + $0x140] sm:$0xff] %vm203, 0.0
        %246 = vst.msk [vmem:[#allocation2 + $0x148] sm:$0x3] %vm206, 0.0
        %247 = vst.msk [vmem:[#allocation2 + $0x150] sm:$0xff] %vm203, 0.0
        %248 = vst.msk [vmem:[#allocation2 + $0x158] sm:$0xff] %vm203, 0.0
        %249 = vst.msk [vmem:[#allocation2 + $0x160] sm:$0x3] %vm206, 0.0
        %250 = vst.msk [vmem:[#allocation2 + $0x168] sm:$0xff] %vm203, 0.0
        %251 = vst.msk [vmem:[#allocation2 + $0x170] sm:$0xff] %vm203, 0.0
        %252 = vst.msk [vmem:[#allocation2 + $0x178] sm:$0x3] %vm206, 0.0
        %253 = vst.msk [vmem:[#allocation2 + $0x180] sm:$0xff] %vm203, 0.0
        %254 = vst.msk [vmem:[#allocation2 + $0x188] sm:$0xff] %vm203, 0.0
        %255 = vst.msk [vmem:[#allocation2 + $0x190] sm:$0x3] %vm206, 0.0
        %256 = vst.msk [vmem:[#allocation2 + $0x198] sm:$0xff] %vm203, 0.0
        %257 = vst.msk [vmem:[#allocation2 + $0x1a0] sm:$0xff] %vm203, 0.0
        %258 = vst.msk [vmem:[#allocation2 + $0x1a8] sm:$0x3] %vm206, 0.0
        %v259 = vld [vmem:[%s197] sm:$0xff]
        %v260 = vld [vmem:[%s197 + $0x8] sm:$0xff]
        %v261 = vld [vmem:[%s197 + $0x10] sm:$0xff]
        %v262 = vld [vmem:[%s197 + $0x18] sm:$0xff]
        %v263 = vld [vmem:[%s197 + $0x20] sm:$0xff]
        %v264 = vld [vmem:[%s197 + $0x28] sm:$0xff]
        %v265 = vld [vmem:[%s197 + $0x30] sm:$0xff]
        %v266 = vld [vmem:[%s197 + $0x38] sm:$0xff]
        %v267 = vld [vmem:[%s197 + $0x40] sm:$0xff]
        %v268 = vld [vmem:[%s197 + $0x48] sm:$0xff]
        %v269 = vld [vmem:[%s197 + $0x50] sm:$0xff]
        %v270 = vld [vmem:[%s197 + $0x58] sm:$0xff]
        %v271 = vld [vmem:[%s197 + $0x60] sm:$0xff]
        %v272 = vld [vmem:[%s197 + $0x68] sm:$0xff]
        %v273 = vld [vmem:[%s197 + $0x70] sm:$0xff]
        %v274 = vld [vmem:[%s197 + $0x78] sm:$0xff]
        %v275 = vld [vmem:[%s197 + $0x80] sm:$0xff]
        %v276 = vld [vmem:[%s197 + $0x88] sm:$0xff]
        %v277 = vld [vmem:[%s197 + $0x90] sm:$0xff]
        %v278 = vld [vmem:[%s197 + $0x98] sm:$0xff]
        %v279 = vld [vmem:[%s197 + $0xa0] sm:$0xff]
        %v280 = vld [vmem:[%s197 + $0xa8] sm:$0xff]
        %v281 = vld [vmem:[%s197 + $0xb0] sm:$0xff]
        %v282 = vld [vmem:[%s197 + $0xb8] sm:$0xff]
        %v283 = vld [vmem:[%s197 + $0xc0] sm:$0xff]
        %v284 = vld [vmem:[%s197 + $0xc8] sm:$0xff]
        %v285 = vld [vmem:[%s197 + $0xd0] sm:$0xff]
        %v286 = vld [vmem:[%s197 + $0xd8] sm:$0xff]
        %v287 = vld [vmem:[%s197 + $0xe0] sm:$0xff]
        %v288 = vld [vmem:[%s197 + $0xe8] sm:$0xff]
        %v289 = vld [vmem:[%s197 + $0xf0] sm:$0xff]
        %v290 = vld [vmem:[%s197 + $0xf8] sm:$0xff]
        %s291 = scalar_lea.vmem [#allocation2], 24
        %292 = vst.msk [vmem:[%s291 + $0x1] sm:$0xff] %vm203, %v259
        %293 = vst.msk [vmem:[%s291 + $0x9] sm:$0xff] %vm203, %v260
        %294 = vst.msk [vmem:[%s291 + $0x19] sm:$0xff] %vm203, %v261
        %295 = vst.msk [vmem:[%s291 + $0x21] sm:$0xff] %vm203, %v262
        %296 = vst.msk [vmem:[%s291 + $0x31] sm:$0xff] %vm203, %v263
        %297 = vst.msk [vmem:[%s291 + $0x39] sm:$0xff] %vm203, %v264
        %298 = vst.msk [vmem:[%s291 + $0x49] sm:$0xff] %vm203, %v265
        %299 = vst.msk [vmem:[%s291 + $0x51] sm:$0xff] %vm203, %v266
        %300 = vst.msk [vmem:[%s291 + $0x61] sm:$0xff] %vm203, %v267
        %301 = vst.msk [vmem:[%s291 + $0x69] sm:$0xff] %vm203, %v268
        %302 = vst.msk [vmem:[%s291 + $0x79] sm:$0xff] %vm203, %v269
        %303 = vst.msk [vmem:[%s291 + $0x81] sm:$0xff] %vm203, %v270
        %304 = vst.msk [vmem:[%s291 + $0x91] sm:$0xff] %vm203, %v271
        %305 = vst.msk [vmem:[%s291 + $0x99] sm:$0xff] %vm203, %v272
        %306 = vst.msk [vmem:[%s291 + $0xa9] sm:$0xff] %vm203, %v273
        %307 = vst.msk [vmem:[%s291 + $0xb1] sm:$0xff] %vm203, %v274
        %308 = vst.msk [vmem:[%s291 + $0xc1] sm:$0xff] %vm203, %v275
        %309 = vst.msk [vmem:[%s291 + $0xc9] sm:$0xff] %vm203, %v276
        %310 = vst.msk [vmem:[%s291 + $0xd9] sm:$0xff] %vm203, %v277
        %311 = vst.msk [vmem:[%s291 + $0xe1] sm:$0xff] %vm203, %v278
        %312 = vst.msk [vmem:[%s291 + $0xf1] sm:$0xff] %vm203, %v279
        %313 = vst.msk [vmem:[%s291 + $0xf9] sm:$0xff] %vm203, %v280
        %314 = vst.msk [vmem:[%s291 + $0x109] sm:$0xff] %vm203, %v281
        %315 = vst.msk [vmem:[%s291 + $0x111] sm:$0xff] %vm203, %v282
        %316 = vst.msk [vmem:[%s291 + $0x121] sm:$0xff] %vm203, %v283
        %317 = vst.msk [vmem:[%s291 + $0x129] sm:$0xff] %vm203, %v284
        %318 = vst.msk [vmem:[%s291 + $0x139] sm:$0xff] %vm203, %v285
        %319 = vst.msk [vmem:[%s291 + $0x141] sm:$0xff] %vm203, %v286
        %320 = vst.msk [vmem:[%s291 + $0x151] sm:$0xff] %vm203, %v287
        %321 = vst.msk [vmem:[%s291 + $0x159] sm:$0xff] %vm203, %v288
        %322 = vst.msk [vmem:[%s291 + $0x169] sm:$0xff] %vm203, %v289
        %323 = vst.msk [vmem:[%s291 + $0x171] sm:$0xff] %vm203, %v290
        %v324 = vld [vmem:[#allocation5] sm:$0x1]
        %v325 = vld [vmem:[#allocation2] sm:$0xff]
        %v326 = vld [vmem:[#allocation2 + $0x8] sm:$0xff]
        %v327 = vld [vmem:[#allocation2 + $0x18] sm:$0xff]
        %v328 = vld [vmem:[#allocation2 + $0x20] sm:$0xff]
        %v329 = vld [vmem:[#allocation2 + $0x30] sm:$0xff]
        %v330 = vld [vmem:[#allocation2 + $0x38] sm:$0xff]
        %v331 = vld [vmem:[#allocation2 + $0x48] sm:$0xff]
        %v332 = vld [vmem:[#allocation2 + $0x50] sm:$0xff]
        %v333 = vld [vmem:[#allocation2 + $0x60] sm:$0xff]
        %v334 = vld [vmem:[#allocation2 + $0x68] sm:$0xff]
        %v335 = vld [vmem:[#allocation2 + $0x78] sm:$0xff]
        %v336 = vld [vmem:[#allocation2 + $0x80] sm:$0xff]
        %v337 = vld [vmem:[#allocation2 + $0x90] sm:$0xff]
        %v338 = vld [vmem:[#allocation2 + $0x98] sm:$0xff]
        %v339 = vld [vmem:[#allocation2 + $0xa8] sm:$0xff]
        %v340 = vld [vmem:[#allocation2 + $0xb0] sm:$0xff]
        %v341 = vld [vmem:[#allocation2 + $0xc0] sm:$0xff]
        %v342 = vld [vmem:[#allocation2 + $0xc8] sm:$0xff]
        %v343 = vld [vmem:[#allocation2 + $0xd8] sm:$0xff]
        %v344 = vld [vmem:[#allocation2 + $0xe0] sm:$0xff]
        %v345 = vld [vmem:[#allocation2 + $0xf0] sm:$0xff]
        %v346 = vld [vmem:[#allocation2 + $0xf8] sm:$0xff]
        %v347 = vld [vmem:[#allocation2 + $0x108] sm:$0xff]
        %v348 = vld [vmem:[#allocation2 + $0x110] sm:$0xff]
        %v349 = vld [vmem:[#allocation2 + $0x120] sm:$0xff]
        %v350 = vld [vmem:[#allocation2 + $0x128] sm:$0xff]
        %v351 = vld [vmem:[#allocation2 + $0x138] sm:$0xff]
        %v352 = vld [vmem:[#allocation2 + $0x140] sm:$0xff]
        %v353 = vld [vmem:[#allocation2 + $0x150] sm:$0xff]
        %v354 = vld [vmem:[#allocation2 + $0x158] sm:$0xff]
        %v355 = vld [vmem:[#allocation2 + $0x168] sm:$0xff]
        %v356 = vld [vmem:[#allocation2 + $0x170] sm:$0xff]
        %v357 = vld [vmem:[#allocation3] sm:$0xff]
        %v358 = vld [vmem:[#allocation2 + $0x1] sm:$0xff]
        %v359 = vld [vmem:[#allocation2 + $0x9] sm:$0xff]
        %v360 = vld [vmem:[#allocation2 + $0x19] sm:$0xff]
        %v361 = vld [vmem:[#allocation2 + $0x21] sm:$0xff]
        %v362 = vld [vmem:[#allocation2 + $0x31] sm:$0xff]
        %v363 = vld [vmem:[#allocation2 + $0x39] sm:$0xff]
        %v364 = vld [vmem:[#allocation2 + $0x49] sm:$0xff]
        %v365 = vld [vmem:[#allocation2 + $0x51] sm:$0xff]
        %v366 = vld [vmem:[#allocation2 + $0x61] sm:$0xff]
        %v367 = vld [vmem:[#allocation2 + $0x69] sm:$0xff]
        %v368 = vld [vmem:[#allocation2 + $0x79] sm:$0xff]
        %v369 = vld [vmem:[#allocation2 + $0x81] sm:$0xff]
        %v370 = vld [vmem:[#allocation2 + $0x91] sm:$0xff]
        %v371 = vld [vmem:[#allocation2 + $0x99] sm:$0xff]
        %v372 = vld [vmem:[#allocation2 + $0xa9] sm:$0xff]
        %v373 = vld [vmem:[#allocation2 + $0xb1] sm:$0xff]
        %v374 = vld [vmem:[#allocation2 + $0xc1] sm:$0xff]
        %v375 = vld [vmem:[#allocation2 + $0xc9] sm:$0xff]
        %v376 = vld [vmem:[#allocation2 + $0xd9] sm:$0xff]
        %v377 = vld [vmem:[#allocation2 + $0xe1] sm:$0xff]
        %v378 = vld [vmem:[#allocation2 + $0xf1] sm:$0xff]
        %v379 = vld [vmem:[#allocation2 + $0xf9] sm:$0xff]
        %v380 = vld [vmem:[#allocation2 + $0x109] sm:$0xff]
        %v381 = vld [vmem:[#allocation2 + $0x111] sm:$0xff]
        %v382 = vld [vmem:[#allocation2 + $0x121] sm:$0xff]
        %v383 = vld [vmem:[#allocation2 + $0x129] sm:$0xff]
        %v384 = vld [vmem:[#allocation2 + $0x139] sm:$0xff]
        %v385 = vld [vmem:[#allocation2 + $0x141] sm:$0xff]
        %v386 = vld [vmem:[#allocation2 + $0x151] sm:$0xff]
        %v387 = vld [vmem:[#allocation2 + $0x159] sm:$0xff]
        %v388 = vld [vmem:[#allocation2 + $0x169] sm:$0xff]
        %v389 = vld [vmem:[#allocation2 + $0x171] sm:$0xff]
        %s390 = scalar_lea.vmem [#allocation3], 8
        %v391 = vld [vmem:[%s390] sm:$0xff]
        %v393 = vsel %vm203, %v358, 0
        %v396 = vsel %vm203, %v359, 0
        %v399 = vsel %vm203, %v360, 0
        %v402 = vsel %vm203, %v361, 0
        %v405 = vsel %vm203, %v362, 0
        %v408 = vsel %vm203, %v363, 0
        %v411 = vsel %vm203, %v364, 0
        %v414 = vsel %vm203, %v365, 0
        %v417 = vsel %vm203, %v366, 0
        %v420 = vsel %vm203, %v367, 0
        %v423 = vsel %vm203, %v368, 0
        %v426 = vsel %vm203, %v369, 0
        %v429 = vsel %vm203, %v370, 0
        %v432 = vsel %vm203, %v371, 0
        %v435 = vsel %vm203, %v372, 0
        %v438 = vsel %vm203, %v373, 0
        %v441 = vsel %vm203, %v374, 0
        %v444 = vsel %vm203, %v375, 0
        %v447 = vsel %vm203, %v376, 0
        %v450 = vsel %vm203, %v377, 0
        %v453 = vsel %vm203, %v378, 0
        %v456 = vsel %vm203, %v379, 0
        %v459 = vsel %vm203, %v380, 0
        %v462 = vsel %vm203, %v381, 0
        %v465 = vsel %vm203, %v382, 0
        %v468 = vsel %vm203, %v383, 0
        %v471 = vsel %vm203, %v384, 0
        %v474 = vsel %vm203, %v385, 0
        %v477 = vsel %vm203, %v386, 0
        %v480 = vsel %vm203, %v387, 0
        %v483 = vsel %vm203, %v388, 0
        %v486 = vsel %vm203, %v389, 0
        %488 = vmatpush.msra.mxu0 0.0
        %489 = vmatpush.msra.mxu0 0.0
        %490 = vmatpush.msra.mxu0 0.0
        %491 = vmatpush.msra.mxu0 0.0
        %492 = vmatpush.msra.mxu0 0.0
        %493 = vmatpush.msra.mxu0 0.0
        %494 = vmatpush.msra.mxu0 0.0
        %495 = vmatpush.msra.mxu0 0.0
        %496 = vmatpush.msra.mxu0 0.0
        %497 = vmatpush.msra.mxu0 0.0
        %498 = vmatpush.msra.mxu0 0.0
        %499 = vmatpush.msra.mxu0 0.0
        %500 = vmatpush.msra.mxu0 0.0
        %501 = vmatpush.msra.mxu0 0.0
        %502 = vmatpush.msra.mxu0 0.0
        %503 = vmatpush.msra.mxu0 %v391
        %504 = vmatmul.f32.gmra.mxu0 %v393
        %v505 = vpop.f32.mrf.mxu0
        %v506 = vadd.f32 0.0, %v505
        %507 = vmatmul.f32.gmra.mxu0 %v396
        %v508 = vpop.f32.mrf.mxu0
        %v509 = vadd.f32 0.0, %v508
        %510 = vmatmul.f32.gmra.mxu0 %v399
        %v511 = vpop.f32.mrf.mxu0
        %v512 = vadd.f32 0.0, %v511
        %513 = vmatmul.f32.gmra.mxu0 %v402
        %v514 = vpop.f32.mrf.mxu0
        %v515 = vadd.f32 0.0, %v514
        %516 = vmatmul.f32.gmra.mxu0 %v405
        %v517 = vpop.f32.mrf.mxu0
        %v518 = vadd.f32 0.0, %v517
        %519 = vmatmul.f32.gmra.mxu0 %v408
        %v520 = vpop.f32.mrf.mxu0
        %v521 = vadd.f32 0.0, %v520
        %522 = vmatmul.f32.gmra.mxu0 %v411
        %v523 = vpop.f32.mrf.mxu0
        %v524 = vadd.f32 0.0, %v523
        %525 = vmatmul.f32.gmra.mxu0 %v414
        %v526 = vpop.f32.mrf.mxu0
        %v527 = vadd.f32 0.0, %v526
        %528 = vmatmul.f32.gmra.mxu0 %v417
        %v529 = vpop.f32.mrf.mxu0
        %v530 = vadd.f32 0.0, %v529
        %531 = vmatmul.f32.gmra.mxu0 %v420
        %v532 = vpop.f32.mrf.mxu0
        %v533 = vadd.f32 0.0, %v532
        %534 = vmatmul.f32.gmra.mxu0 %v423
        %v535 = vpop.f32.mrf.mxu0
        %v536 = vadd.f32 0.0, %v535
        %537 = vmatmul.f32.gmra.mxu0 %v426
        %v538 = vpop.f32.mrf.mxu0
        %v539 = vadd.f32 0.0, %v538
        %540 = vmatmul.f32.gmra.mxu0 %v429
        %v541 = vpop.f32.mrf.mxu0
        %v542 = vadd.f32 0.0, %v541
        %543 = vmatmul.f32.gmra.mxu0 %v432
        %v544 = vpop.f32.mrf.mxu0
        %v545 = vadd.f32 0.0, %v544
        %546 = vmatmul.f32.gmra.mxu0 %v435
        %v547 = vpop.f32.mrf.mxu0
        %v548 = vadd.f32 0.0, %v547
        %549 = vmatmul.f32.gmra.mxu0 %v438
        %v550 = vpop.f32.mrf.mxu0
        %v551 = vadd.f32 0.0, %v550
        %552 = vmatmul.f32.gmra.mxu0 %v441
        %v553 = vpop.f32.mrf.mxu0
        %v554 = vadd.f32 0.0, %v553
        %555 = vmatmul.f32.gmra.mxu0 %v444
        %v556 = vpop.f32.mrf.mxu0
        %v557 = vadd.f32 0.0, %v556
        %558 = vmatmul.f32.gmra.mxu0 %v447
        %v559 = vpop.f32.mrf.mxu0
        %v560 = vadd.f32 0.0, %v559
        %561 = vmatmul.f32.gmra.mxu0 %v450
        %v562 = vpop.f32.mrf.mxu0
        %v563 = vadd.f32 0.0, %v562
        %564 = vmatmul.f32.gmra.mxu0 %v453
        %v565 = vpop.f32.mrf.mxu0
        %v566 = vadd.f32 0.0, %v565
        %567 = vmatmul.f32.gmra.mxu0 %v456
        %v568 = vpop.f32.mrf.mxu0
        %v569 = vadd.f32 0.0, %v568
        %570 = vmatmul.f32.gmra.mxu0 %v459
        %v571 = vpop.f32.mrf.mxu0
        %v572 = vadd.f32 0.0, %v571
        %573 = vmatmul.f32.gmra.mxu0 %v462
        %v574 = vpop.f32.mrf.mxu0
        %v575 = vadd.f32 0.0, %v574
        %576 = vmatmul.f32.gmra.mxu0 %v465
        %v577 = vpop.f32.mrf.mxu0
        %v578 = vadd.f32 0.0, %v577
        %579 = vmatmul.f32.gmra.mxu0 %v468
        %v580 = vpop.f32.mrf.mxu0
        %v581 = vadd.f32 0.0, %v580
        %582 = vmatmul.f32.gmra.mxu0 %v471
        %v583 = vpop.f32.mrf.mxu0
        %v584 = vadd.f32 0.0, %v583
        %585 = vmatmul.f32.gmra.mxu0 %v474
        %v586 = vpop.f32.mrf.mxu0
        %v587 = vadd.f32 0.0, %v586
        %588 = vmatmul.f32.gmra.mxu0 %v477
        %v589 = vpop.f32.mrf.mxu0
        %v590 = vadd.f32 0.0, %v589
        %591 = vmatmul.f32.gmra.mxu0 %v480
        %v592 = vpop.f32.mrf.mxu0
        %v593 = vadd.f32 0.0, %v592
        %594 = vmatmul.f32.gmra.mxu0 %v483
        %v595 = vpop.f32.mrf.mxu0
        %v596 = vadd.f32 0.0, %v595
        %597 = vmatmul.f32.gmra.mxu0 %v486
        %v598 = vpop.f32.mrf.mxu0
        %v599 = vadd.f32 0.0, %v598
        %600 = vdwg.mxu0
        %v602 = vsel %vm203, %v325, 0
        %v605 = vsel %vm203, %v326, 0
        %v608 = vsel %vm203, %v327, 0
        %v611 = vsel %vm203, %v328, 0
        %v614 = vsel %vm203, %v329, 0
        %v617 = vsel %vm203, %v330, 0
        %v620 = vsel %vm203, %v331, 0
        %v623 = vsel %vm203, %v332, 0
        %v626 = vsel %vm203, %v333, 0
        %v629 = vsel %vm203, %v334, 0
        %v632 = vsel %vm203, %v335, 0
        %v635 = vsel %vm203, %v336, 0
        %v638 = vsel %vm203, %v337, 0
        %v641 = vsel %vm203, %v338, 0
        %v644 = vsel %vm203, %v339, 0
        %v647 = vsel %vm203, %v340, 0
        %v650 = vsel %vm203, %v341, 0
        %v653 = vsel %vm203, %v342, 0
        %v656 = vsel %vm203, %v343, 0
        %v659 = vsel %vm203, %v344, 0
        %v662 = vsel %vm203, %v345, 0
        %v665 = vsel %vm203, %v346, 0
        %v668 = vsel %vm203, %v347, 0
        %v671 = vsel %vm203, %v348, 0
        %v674 = vsel %vm203, %v349, 0
        %v677 = vsel %vm203, %v350, 0
        %v680 = vsel %vm203, %v351, 0
        %v683 = vsel %vm203, %v352, 0
        %v686 = vsel %vm203, %v353, 0
        %v689 = vsel %vm203, %v354, 0
        %v692 = vsel %vm203, %v355, 0
        %v695 = vsel %vm203, %v356, 0
        %697 = vmatpush.msra.mxu0 0.0
        %698 = vmatpush.msra.mxu0 0.0
        %699 = vmatpush.msra.mxu0 0.0
        %700 = vmatpush.msra.mxu0 0.0
        %701 = vmatpush.msra.mxu0 0.0
        %702 = vmatpush.msra.mxu0 0.0
        %703 = vmatpush.msra.mxu0 0.0
        %704 = vmatpush.msra.mxu0 0.0
        %705 = vmatpush.msra.mxu0 0.0
        %706 = vmatpush.msra.mxu0 0.0
        %707 = vmatpush.msra.mxu0 0.0
        %708 = vmatpush.msra.mxu0 0.0
        %709 = vmatpush.msra.mxu0 0.0
        %710 = vmatpush.msra.mxu0 0.0
        %711 = vmatpush.msra.mxu0 0.0
        %712 = vmatpush.msra.mxu0 %v357
        %713 = vmatmul.f32.gmra.mxu0 %v602
        %v714 = vpop.f32.mrf.mxu0
        %v715 = vadd.f32 %v506, %v714
        %716 = vmatmul.f32.gmra.mxu0 %v605
        %v717 = vpop.f32.mrf.mxu0
        %v718 = vadd.f32 %v509, %v717
        %719 = vmatmul.f32.gmra.mxu0 %v608
        %v720 = vpop.f32.mrf.mxu0
        %v721 = vadd.f32 %v512, %v720
        %722 = vmatmul.f32.gmra.mxu0 %v611
        %v723 = vpop.f32.mrf.mxu0
        %v724 = vadd.f32 %v515, %v723
        %725 = vmatmul.f32.gmra.mxu0 %v614
        %v726 = vpop.f32.mrf.mxu0
        %v727 = vadd.f32 %v518, %v726
        %728 = vmatmul.f32.gmra.mxu0 %v617
        %v729 = vpop.f32.mrf.mxu0
        %v730 = vadd.f32 %v521, %v729
        %731 = vmatmul.f32.gmra.mxu0 %v620
        %v732 = vpop.f32.mrf.mxu0
        %v733 = vadd.f32 %v524, %v732
        %734 = vmatmul.f32.gmra.mxu0 %v623
        %v735 = vpop.f32.mrf.mxu0
        %v736 = vadd.f32 %v527, %v735
        %737 = vmatmul.f32.gmra.mxu0 %v626
        %v738 = vpop.f32.mrf.mxu0
        %v739 = vadd.f32 %v530, %v738
        %740 = vmatmul.f32.gmra.mxu0 %v629
        %v741 = vpop.f32.mrf.mxu0
        %v742 = vadd.f32 %v533, %v741
        %743 = vmatmul.f32.gmra.mxu0 %v632
        %v744 = vpop.f32.mrf.mxu0
        %v745 = vadd.f32 %v536, %v744
        %746 = vmatmul.f32.gmra.mxu0 %v635
        %v747 = vpop.f32.mrf.mxu0
        %v748 = vadd.f32 %v539, %v747
        %749 = vmatmul.f32.gmra.mxu0 %v638
        %v750 = vpop.f32.mrf.mxu0
        %v751 = vadd.f32 %v542, %v750
        %752 = vmatmul.f32.gmra.mxu0 %v641
        %v753 = vpop.f32.mrf.mxu0
        %v754 = vadd.f32 %v545, %v753
        %755 = vmatmul.f32.gmra.mxu0 %v644
        %v756 = vpop.f32.mrf.mxu0
        %v757 = vadd.f32 %v548, %v756
        %758 = vmatmul.f32.gmra.mxu0 %v647
        %v759 = vpop.f32.mrf.mxu0
        %v760 = vadd.f32 %v551, %v759
        %761 = vmatmul.f32.gmra.mxu0 %v650
        %v762 = vpop.f32.mrf.mxu0
        %v763 = vadd.f32 %v554, %v762
        %764 = vmatmul.f32.gmra.mxu0 %v653
        %v765 = vpop.f32.mrf.mxu0
        %v766 = vadd.f32 %v557, %v765
        %767 = vmatmul.f32.gmra.mxu0 %v656
        %v768 = vpop.f32.mrf.mxu0
        %v769 = vadd.f32 %v560, %v768
        %770 = vmatmul.f32.gmra.mxu0 %v659
        %v771 = vpop.f32.mrf.mxu0
        %v772 = vadd.f32 %v563, %v771
        %773 = vmatmul.f32.gmra.mxu0 %v662
        %v774 = vpop.f32.mrf.mxu0
        %v775 = vadd.f32 %v566, %v774
        %776 = vmatmul.f32.gmra.mxu0 %v665
        %v777 = vpop.f32.mrf.mxu0
        %v778 = vadd.f32 %v569, %v777
        %779 = vmatmul.f32.gmra.mxu0 %v668
        %v780 = vpop.f32.mrf.mxu0
        %v781 = vadd.f32 %v572, %v780
        %782 = vmatmul.f32.gmra.mxu0 %v671
        %v783 = vpop.f32.mrf.mxu0
        %v784 = vadd.f32 %v575, %v783
        %785 = vmatmul.f32.gmra.mxu0 %v674
        %v786 = vpop.f32.mrf.mxu0
        %v787 = vadd.f32 %v578, %v786
        %788 = vmatmul.f32.gmra.mxu0 %v677
        %v789 = vpop.f32.mrf.mxu0
        %v790 = vadd.f32 %v581, %v789
        %791 = vmatmul.f32.gmra.mxu0 %v680
        %v792 = vpop.f32.mrf.mxu0
        %v793 = vadd.f32 %v584, %v792
        %794 = vmatmul.f32.gmra.mxu0 %v683
        %v795 = vpop.f32.mrf.mxu0
        %v796 = vadd.f32 %v587, %v795
        %797 = vmatmul.f32.gmra.mxu0 %v686
        %v798 = vpop.f32.mrf.mxu0
        %v799 = vadd.f32 %v590, %v798
        %800 = vmatmul.f32.gmra.mxu0 %v689
        %v801 = vpop.f32.mrf.mxu0
        %v802 = vadd.f32 %v593, %v801
        %803 = vmatmul.f32.gmra.mxu0 %v692
        %v804 = vpop.f32.mrf.mxu0
        %v805 = vadd.f32 %v596, %v804
        %806 = vmatmul.f32.gmra.mxu0 %v695
        %v807 = vpop.f32.mrf.mxu0
        %v808 = vadd.f32 %v599, %v807
        %809 = vdwg.mxu0
        %v810 = vld [vmem:[#allocation2 + $0x2] sm:$0xff]
        %v811 = vld [vmem:[#allocation2 + $0xa] sm:$0xff]
        %v812 = vld [vmem:[#allocation2 + $0x1a] sm:$0xff]
        %v813 = vld [vmem:[#allocation2 + $0x22] sm:$0xff]
        %v814 = vld [vmem:[#allocation2 + $0x32] sm:$0xff]
        %v815 = vld [vmem:[#allocation2 + $0x3a] sm:$0xff]
        %v816 = vld [vmem:[#allocation2 + $0x4a] sm:$0xff]
        %v817 = vld [vmem:[#allocation2 + $0x52] sm:$0xff]
        %v818 = vld [vmem:[#allocation2 + $0x62] sm:$0xff]
        %v819 = vld [vmem:[#allocation2 + $0x6a] sm:$0xff]
        %v820 = vld [vmem:[#allocation2 + $0x7a] sm:$0xff]
        %v821 = vld [vmem:[#allocation2 + $0x82] sm:$0xff]
        %v822 = vld [vmem:[#allocation2 + $0x92] sm:$0xff]
        %v823 = vld [vmem:[#allocation2 + $0x9a] sm:$0xff]
        %v824 = vld [vmem:[#allocation2 + $0xaa] sm:$0xff]
        %v825 = vld [vmem:[#allocation2 + $0xb2] sm:$0xff]
        %v826 = vld [vmem:[#allocation2 + $0xc2] sm:$0xff]
        %v827 = vld [vmem:[#allocation2 + $0xca] sm:$0xff]
        %v828 = vld [vmem:[#allocation2 + $0xda] sm:$0xff]
        %v829 = vld [vmem:[#allocation2 + $0xe2] sm:$0xff]
        %v830 = vld [vmem:[#allocation2 + $0xf2] sm:$0xff]
        %v831 = vld [vmem:[#allocation2 + $0xfa] sm:$0xff]
        %v832 = vld [vmem:[#allocation2 + $0x10a] sm:$0xff]
        %v833 = vld [vmem:[#allocation2 + $0x112] sm:$0xff]
        %v834 = vld [vmem:[#allocation2 + $0x122] sm:$0xff]
        %v835 = vld [vmem:[#allocation2 + $0x12a] sm:$0xff]
        %v836 = vld [vmem:[#allocation2 + $0x13a] sm:$0xff]
        %v837 = vld [vmem:[#allocation2 + $0x142] sm:$0xff]
        %v838 = vld [vmem:[#allocation2 + $0x152] sm:$0xff]
        %v839 = vld [vmem:[#allocation2 + $0x15a] sm:$0xff]
        %v840 = vld [vmem:[#allocation2 + $0x16a] sm:$0xff]
        %v841 = vld [vmem:[#allocation2 + $0x172] sm:$0xff]
        %s842 = scalar_lea.vmem [#allocation3], 16
        %v843 = vld [vmem:[%s842] sm:$0xff]
        %v845 = vsel %vm203, %v810, 0
        %v848 = vsel %vm203, %v811, 0
        %v851 = vsel %vm203, %v812, 0
        %v854 = vsel %vm203, %v813, 0
        %v857 = vsel %vm203, %v814, 0
        %v860 = vsel %vm203, %v815, 0
        %v863 = vsel %vm203, %v816, 0
        %v866 = vsel %vm203, %v817, 0
        %v869 = vsel %vm203, %v818, 0
        %v872 = vsel %vm203, %v819, 0
        %v875 = vsel %vm203, %v820, 0
        %v878 = vsel %vm203, %v821, 0
        %v881 = vsel %vm203, %v822, 0
        %v884 = vsel %vm203, %v823, 0
        %v887 = vsel %vm203, %v824, 0
        %v890 = vsel %vm203, %v825, 0
        %v893 = vsel %vm203, %v826, 0
        %v896 = vsel %vm203, %v827, 0
        %v899 = vsel %vm203, %v828, 0
        %v902 = vsel %vm203, %v829, 0
        %v905 = vsel %vm203, %v830, 0
        %v908 = vsel %vm203, %v831, 0
        %v911 = vsel %vm203, %v832, 0
        %v914 = vsel %vm203, %v833, 0
        %v917 = vsel %vm203, %v834, 0
        %v920 = vsel %vm203, %v835, 0
        %v923 = vsel %vm203, %v836, 0
        %v926 = vsel %vm203, %v837, 0
        %v929 = vsel %vm203, %v838, 0
        %v932 = vsel %vm203, %v839, 0
        %v935 = vsel %vm203, %v840, 0
        %v938 = vsel %vm203, %v841, 0
        %940 = vmatpush.msra.mxu0 0.0
        %941 = vmatpush.msra.mxu0 0.0
        %942 = vmatpush.msra.mxu0 0.0
        %943 = vmatpush.msra.mxu0 0.0
        %944 = vmatpush.msra.mxu0 0.0
        %945 = vmatpush.msra.mxu0 0.0
        %946 = vmatpush.msra.mxu0 0.0
        %947 = vmatpush.msra.mxu0 0.0
        %948 = vmatpush.msra.mxu0 0.0
        %949 = vmatpush.msra.mxu0 0.0
        %950 = vmatpush.msra.mxu0 0.0
        %951 = vmatpush.msra.mxu0 0.0
        %952 = vmatpush.msra.mxu0 0.0
        %953 = vmatpush.msra.mxu0 0.0
        %954 = vmatpush.msra.mxu0 0.0
        %955 = vmatpush.msra.mxu0 %v843
        %956 = vmatmul.f32.gmra.mxu0 %v845
        %v957 = vpop.f32.mrf.mxu0
        %v958 = vadd.f32 0.0, %v957
        %959 = vmatmul.f32.gmra.mxu0 %v848
        %v960 = vpop.f32.mrf.mxu0
        %v961 = vadd.f32 0.0, %v960
        %962 = vmatmul.f32.gmra.mxu0 %v851
        %v963 = vpop.f32.mrf.mxu0
        %v964 = vadd.f32 0.0, %v963
        %965 = vmatmul.f32.gmra.mxu0 %v854
        %v966 = vpop.f32.mrf.mxu0
        %v967 = vadd.f32 0.0, %v966
        %968 = vmatmul.f32.gmra.mxu0 %v857
        %v969 = vpop.f32.mrf.mxu0
        %v970 = vadd.f32 0.0, %v969
        %971 = vmatmul.f32.gmra.mxu0 %v860
        %v972 = vpop.f32.mrf.mxu0
        %v973 = vadd.f32 0.0, %v972
        %974 = vmatmul.f32.gmra.mxu0 %v863
        %v975 = vpop.f32.mrf.mxu0
        %v976 = vadd.f32 0.0, %v975
        %977 = vmatmul.f32.gmra.mxu0 %v866
        %v978 = vpop.f32.mrf.mxu0
        %v979 = vadd.f32 0.0, %v978
        %980 = vmatmul.f32.gmra.mxu0 %v869
        %v981 = vpop.f32.mrf.mxu0
        %v982 = vadd.f32 0.0, %v981
        %983 = vmatmul.f32.gmra.mxu0 %v872
        %v984 = vpop.f32.mrf.mxu0
        %v985 = vadd.f32 0.0, %v984
        %986 = vmatmul.f32.gmra.mxu0 %v875
        %v987 = vpop.f32.mrf.mxu0
        %v988 = vadd.f32 0.0, %v987
        %989 = vmatmul.f32.gmra.mxu0 %v878
        %v990 = vpop.f32.mrf.mxu0
        %v991 = vadd.f32 0.0, %v990
        %992 = vmatmul.f32.gmra.mxu0 %v881
        %v993 = vpop.f32.mrf.mxu0
        %v994 = vadd.f32 0.0, %v993
        %995 = vmatmul.f32.gmra.mxu0 %v884
        %v996 = vpop.f32.mrf.mxu0
        %v997 = vadd.f32 0.0, %v996
        %998 = vmatmul.f32.gmra.mxu0 %v887
        %v999 = vpop.f32.mrf.mxu0
        %v1000 = vadd.f32 0.0, %v999
        %1001 = vmatmul.f32.gmra.mxu0 %v890
        %v1002 = vpop.f32.mrf.mxu0
        %v1003 = vadd.f32 0.0, %v1002
        %1004 = vmatmul.f32.gmra.mxu0 %v893
        %v1005 = vpop.f32.mrf.mxu0
        %v1006 = vadd.f32 0.0, %v1005
        %1007 = vmatmul.f32.gmra.mxu0 %v896
        %v1008 = vpop.f32.mrf.mxu0
        %v1009 = vadd.f32 0.0, %v1008
        %1010 = vmatmul.f32.gmra.mxu0 %v899
        %v1011 = vpop.f32.mrf.mxu0
        %v1012 = vadd.f32 0.0, %v1011
        %1013 = vmatmul.f32.gmra.mxu0 %v902
        %v1014 = vpop.f32.mrf.mxu0
        %v1015 = vadd.f32 0.0, %v1014
        %1016 = vmatmul.f32.gmra.mxu0 %v905
        %v1017 = vpop.f32.mrf.mxu0
        %v1018 = vadd.f32 0.0, %v1017
        %1019 = vmatmul.f32.gmra.mxu0 %v908
        %v1020 = vpop.f32.mrf.mxu0
        %v1021 = vadd.f32 0.0, %v1020
        %1022 = vmatmul.f32.gmra.mxu0 %v911
        %v1023 = vpop.f32.mrf.mxu0
        %v1024 = vadd.f32 0.0, %v1023
        %1025 = vmatmul.f32.gmra.mxu0 %v914
        %v1026 = vpop.f32.mrf.mxu0
        %v1027 = vadd.f32 0.0, %v1026
        %1028 = vmatmul.f32.gmra.mxu0 %v917
        %v1029 = vpop.f32.mrf.mxu0
        %v1030 = vadd.f32 0.0, %v1029
        %1031 = vmatmul.f32.gmra.mxu0 %v920
        %v1032 = vpop.f32.mrf.mxu0
        %v1033 = vadd.f32 0.0, %v1032
        %1034 = vmatmul.f32.gmra.mxu0 %v923
        %v1035 = vpop.f32.mrf.mxu0
        %v1036 = vadd.f32 0.0, %v1035
        %1037 = vmatmul.f32.gmra.mxu0 %v926
        %v1038 = vpop.f32.mrf.mxu0
        %v1039 = vadd.f32 0.0, %v1038
        %1040 = vmatmul.f32.gmra.mxu0 %v929
        %v1041 = vpop.f32.mrf.mxu0
        %v1042 = vadd.f32 0.0, %v1041
        %1043 = vmatmul.f32.gmra.mxu0 %v932
        %v1044 = vpop.f32.mrf.mxu0
        %v1045 = vadd.f32 0.0, %v1044
        %1046 = vmatmul.f32.gmra.mxu0 %v935
        %v1047 = vpop.f32.mrf.mxu0
        %v1048 = vadd.f32 0.0, %v1047
        %1049 = vmatmul.f32.gmra.mxu0 %v938
        %v1050 = vpop.f32.mrf.mxu0
        %v1051 = vadd.f32 0.0, %v1050
        %1052 = vdwg.mxu0
        %v1053 = vadd.f32 %v715, %v958
        %v1054 = vadd.f32 %v718, %v961
        %v1055 = vadd.f32 %v721, %v964
        %v1056 = vadd.f32 %v724, %v967
        %v1057 = vadd.f32 %v727, %v970
        %v1058 = vadd.f32 %v730, %v973
        %v1059 = vadd.f32 %v733, %v976
        %v1060 = vadd.f32 %v736, %v979
        %v1061 = vadd.f32 %v739, %v982
        %v1062 = vadd.f32 %v742, %v985
        %v1063 = vadd.f32 %v745, %v988
        %v1064 = vadd.f32 %v748, %v991
        %v1065 = vadd.f32 %v751, %v994
        %v1066 = vadd.f32 %v754, %v997
        %v1067 = vadd.f32 %v757, %v1000
        %v1068 = vadd.f32 %v760, %v1003
        %v1069 = vadd.f32 %v763, %v1006
        %v1070 = vadd.f32 %v766, %v1009
        %v1071 = vadd.f32 %v769, %v1012
        %v1072 = vadd.f32 %v772, %v1015
        %v1073 = vadd.f32 %v775, %v1018
        %v1074 = vadd.f32 %v778, %v1021
        %v1075 = vadd.f32 %v781, %v1024
        %v1076 = vadd.f32 %v784, %v1027
        %v1077 = vadd.f32 %v787, %v1030
        %v1078 = vadd.f32 %v790, %v1033
        %v1079 = vadd.f32 %v793, %v1036
        %v1080 = vadd.f32 %v796, %v1039
        %v1081 = vadd.f32 %v799, %v1042
        %v1082 = vadd.f32 %v802, %v1045
        %v1083 = vadd.f32 %v805, %v1048
        %v1084 = vadd.f32 %v808, %v1051
        %v1085 = vld [vmem:[%s291] sm:$0xff]
        %v1086 = vld [vmem:[%s291 + $0x8] sm:$0xff]
        %v1087 = vld [vmem:[%s291 + $0x18] sm:$0xff]
        %v1088 = vld [vmem:[%s291 + $0x20] sm:$0xff]
        %v1089 = vld [vmem:[%s291 + $0x30] sm:$0xff]
        %v1090 = vld [vmem:[%s291 + $0x38] sm:$0xff]
        %v1091 = vld [vmem:[%s291 + $0x48] sm:$0xff]
        %v1092 = vld [vmem:[%s291 + $0x50] sm:$0xff]
        %v1093 = vld [vmem:[%s291 + $0x60] sm:$0xff]
        %v1094 = vld [vmem:[%s291 + $0x68] sm:$0xff]
        %v1095 = vld [vmem:[%s291 + $0x78] sm:$0xff]
        %v1096 = vld [vmem:[%s291 + $0x80] sm:$0xff]
        %v1097 = vld [vmem:[%s291 + $0x90] sm:$0xff]
        %v1098 = vld [vmem:[%s291 + $0x98] sm:$0xff]
        %v1099 = vld [vmem:[%s291 + $0xa8] sm:$0xff]
        %v1100 = vld [vmem:[%s291 + $0xb0] sm:$0xff]
        %v1101 = vld [vmem:[%s291 + $0xc0] sm:$0xff]
        %v1102 = vld [vmem:[%s291 + $0xc8] sm:$0xff]
        %v1103 = vld [vmem:[%s291 + $0xd8] sm:$0xff]
        %v1104 = vld [vmem:[%s291 + $0xe0] sm:$0xff]
        %v1105 = vld [vmem:[%s291 + $0xf0] sm:$0xff]
        %v1106 = vld [vmem:[%s291 + $0xf8] sm:$0xff]
        %v1107 = vld [vmem:[%s291 + $0x108] sm:$0xff]
        %v1108 = vld [vmem:[%s291 + $0x110] sm:$0xff]
        %v1109 = vld [vmem:[%s291 + $0x120] sm:$0xff]
        %v1110 = vld [vmem:[%s291 + $0x128] sm:$0xff]
        %v1111 = vld [vmem:[%s291 + $0x138] sm:$0xff]
        %v1112 = vld [vmem:[%s291 + $0x140] sm:$0xff]
        %v1113 = vld [vmem:[%s291 + $0x150] sm:$0xff]
        %v1114 = vld [vmem:[%s291 + $0x158] sm:$0xff]
        %v1115 = vld [vmem:[%s291 + $0x168] sm:$0xff]
        %v1116 = vld [vmem:[%s291 + $0x170] sm:$0xff]
        %s1117 = scalar_lea.vmem [#allocation3], 24
        %v1118 = vld [vmem:[%s1117] sm:$0xff]
        %v1120 = vsel %vm203, %v1085, 0
        %v1123 = vsel %vm203, %v1086, 0
        %v1126 = vsel %vm203, %v1087, 0
        %v1129 = vsel %vm203, %v1088, 0
        %v1132 = vsel %vm203, %v1089, 0
        %v1135 = vsel %vm203, %v1090, 0
        %v1138 = vsel %vm203, %v1091, 0
        %v1141 = vsel %vm203, %v1092, 0
        %v1144 = vsel %vm203, %v1093, 0
        %v1147 = vsel %vm203, %v1094, 0
        %v1150 = vsel %vm203, %v1095, 0
        %v1153 = vsel %vm203, %v1096, 0
        %v1156 = vsel %vm203, %v1097, 0
        %v1159 = vsel %vm203, %v1098, 0
        %v1162 = vsel %vm203, %v1099, 0
        %v1165 = vsel %vm203, %v1100, 0
        %v1168 = vsel %vm203, %v1101, 0
        %v1171 = vsel %vm203, %v1102, 0
        %v1174 = vsel %vm203, %v1103, 0
        %v1177 = vsel %vm203, %v1104, 0
        %v1180 = vsel %vm203, %v1105, 0
        %v1183 = vsel %vm203, %v1106, 0
        %v1186 = vsel %vm203, %v1107, 0
        %v1189 = vsel %vm203, %v1108, 0
        %v1192 = vsel %vm203, %v1109, 0
        %v1195 = vsel %vm203, %v1110, 0
        %v1198 = vsel %vm203, %v1111, 0
        %v1201 = vsel %vm203, %v1112, 0
        %v1204 = vsel %vm203, %v1113, 0
        %v1207 = vsel %vm203, %v1114, 0
        %v1210 = vsel %vm203, %v1115, 0
        %v1213 = vsel %vm203, %v1116, 0
        %1215 = vmatpush.msra.mxu0 0.0
        %1216 = vmatpush.msra.mxu0 0.0
        %1217 = vmatpush.msra.mxu0 0.0
        %1218 = vmatpush.msra.mxu0 0.0
        %1219 = vmatpush.msra.mxu0 0.0
        %1220 = vmatpush.msra.mxu0 0.0
        %1221 = vmatpush.msra.mxu0 0.0
        %1222 = vmatpush.msra.mxu0 0.0
        %1223 = vmatpush.msra.mxu0 0.0
        %1224 = vmatpush.msra.mxu0 0.0
        %1225 = vmatpush.msra.mxu0 0.0
        %1226 = vmatpush.msra.mxu0 0.0
        %1227 = vmatpush.msra.mxu0 0.0
        %1228 = vmatpush.msra.mxu0 0.0
        %1229 = vmatpush.msra.mxu0 0.0
        %1230 = vmatpush.msra.mxu0 %v1118
        %1231 = vmatmul.f32.gmra.mxu0 %v1120
        %v1232 = vpop.f32.mrf.mxu0
        %v1233 = vadd.f32 0.0, %v1232
        %1234 = vmatmul.f32.gmra.mxu0 %v1123
        %v1235 = vpop.f32.mrf.mxu0
        %v1236 = vadd.f32 0.0, %v1235
        %1237 = vmatmul.f32.gmra.mxu0 %v1126
        %v1238 = vpop.f32.mrf.mxu0
        %v1239 = vadd.f32 0.0, %v1238
        %1240 = vmatmul.f32.gmra.mxu0 %v1129
        %v1241 = vpop.f32.mrf.mxu0
        %v1242 = vadd.f32 0.0, %v1241
        %1243 = vmatmul.f32.gmra.mxu0 %v1132
        %v1244 = vpop.f32.mrf.mxu0
        %v1245 = vadd.f32 0.0, %v1244
        %1246 = vmatmul.f32.gmra.mxu0 %v1135
        %v1247 = vpop.f32.mrf.mxu0
        %v1248 = vadd.f32 0.0, %v1247
        %1249 = vmatmul.f32.gmra.mxu0 %v1138
        %v1250 = vpop.f32.mrf.mxu0
        %v1251 = vadd.f32 0.0, %v1250
        %1252 = vmatmul.f32.gmra.mxu0 %v1141
        %v1253 = vpop.f32.mrf.mxu0
        %v1254 = vadd.f32 0.0, %v1253
        %1255 = vmatmul.f32.gmra.mxu0 %v1144
        %v1256 = vpop.f32.mrf.mxu0
        %v1257 = vadd.f32 0.0, %v1256
        %1258 = vmatmul.f32.gmra.mxu0 %v1147
        %v1259 = vpop.f32.mrf.mxu0
        %v1260 = vadd.f32 0.0, %v1259
        %1261 = vmatmul.f32.gmra.mxu0 %v1150
        %v1262 = vpop.f32.mrf.mxu0
        %v1263 = vadd.f32 0.0, %v1262
        %1264 = vmatmul.f32.gmra.mxu0 %v1153
        %v1265 = vpop.f32.mrf.mxu0
        %v1266 = vadd.f32 0.0, %v1265
        %1267 = vmatmul.f32.gmra.mxu0 %v1156
        %v1268 = vpop.f32.mrf.mxu0
        %v1269 = vadd.f32 0.0, %v1268
        %1270 = vmatmul.f32.gmra.mxu0 %v1159
        %v1271 = vpop.f32.mrf.mxu0
        %v1272 = vadd.f32 0.0, %v1271
        %1273 = vmatmul.f32.gmra.mxu0 %v1162
        %v1274 = vpop.f32.mrf.mxu0
        %v1275 = vadd.f32 0.0, %v1274
        %1276 = vmatmul.f32.gmra.mxu0 %v1165
        %v1277 = vpop.f32.mrf.mxu0
        %v1278 = vadd.f32 0.0, %v1277
        %1279 = vmatmul.f32.gmra.mxu0 %v1168
        %v1280 = vpop.f32.mrf.mxu0
        %v1281 = vadd.f32 0.0, %v1280
        %1282 = vmatmul.f32.gmra.mxu0 %v1171
        %v1283 = vpop.f32.mrf.mxu0
        %v1284 = vadd.f32 0.0, %v1283
        %1285 = vmatmul.f32.gmra.mxu0 %v1174
        %v1286 = vpop.f32.mrf.mxu0
        %v1287 = vadd.f32 0.0, %v1286
        %1288 = vmatmul.f32.gmra.mxu0 %v1177
        %v1289 = vpop.f32.mrf.mxu0
        %v1290 = vadd.f32 0.0, %v1289
        %1291 = vmatmul.f32.gmra.mxu0 %v1180
        %v1292 = vpop.f32.mrf.mxu0
        %v1293 = vadd.f32 0.0, %v1292
        %1294 = vmatmul.f32.gmra.mxu0 %v1183
        %v1295 = vpop.f32.mrf.mxu0
        %v1296 = vadd.f32 0.0, %v1295
        %1297 = vmatmul.f32.gmra.mxu0 %v1186
        %v1298 = vpop.f32.mrf.mxu0
        %v1299 = vadd.f32 0.0, %v1298
        %1300 = vmatmul.f32.gmra.mxu0 %v1189
        %v1301 = vpop.f32.mrf.mxu0
        %v1302 = vadd.f32 0.0, %v1301
        %1303 = vmatmul.f32.gmra.mxu0 %v1192
        %v1304 = vpop.f32.mrf.mxu0
        %v1305 = vadd.f32 0.0, %v1304
        %1306 = vmatmul.f32.gmra.mxu0 %v1195
        %v1307 = vpop.f32.mrf.mxu0
        %v1308 = vadd.f32 0.0, %v1307
        %1309 = vmatmul.f32.gmra.mxu0 %v1198
        %v1310 = vpop.f32.mrf.mxu0
        %v1311 = vadd.f32 0.0, %v1310
        %1312 = vmatmul.f32.gmra.mxu0 %v1201
        %v1313 = vpop.f32.mrf.mxu0
        %v1314 = vadd.f32 0.0, %v1313
        %1315 = vmatmul.f32.gmra.mxu0 %v1204
        %v1316 = vpop.f32.mrf.mxu0
        %v1317 = vadd.f32 0.0, %v1316
        %1318 = vmatmul.f32.gmra.mxu0 %v1207
        %v1319 = vpop.f32.mrf.mxu0
        %v1320 = vadd.f32 0.0, %v1319
        %1321 = vmatmul.f32.gmra.mxu0 %v1210
        %v1322 = vpop.f32.mrf.mxu0
        %v1323 = vadd.f32 0.0, %v1322
        %1324 = vmatmul.f32.gmra.mxu0 %v1213
        %v1325 = vpop.f32.mrf.mxu0
        %v1326 = vadd.f32 0.0, %v1325
        %1327 = vdwg.mxu0
        %v1328 = vadd.f32 %v1053, %v1233
        %v1329 = vadd.f32 %v1054, %v1236
        %v1330 = vadd.f32 %v1055, %v1239
        %v1331 = vadd.f32 %v1056, %v1242
        %v1332 = vadd.f32 %v1057, %v1245
        %v1333 = vadd.f32 %v1058, %v1248
        %v1334 = vadd.f32 %v1059, %v1251
        %v1335 = vadd.f32 %v1060, %v1254
        %v1336 = vadd.f32 %v1061, %v1257
        %v1337 = vadd.f32 %v1062, %v1260
        %v1338 = vadd.f32 %v1063, %v1263
        %v1339 = vadd.f32 %v1064, %v1266
        %v1340 = vadd.f32 %v1065, %v1269
        %v1341 = vadd.f32 %v1066, %v1272
        %v1342 = vadd.f32 %v1067, %v1275
        %v1343 = vadd.f32 %v1068, %v1278
        %v1344 = vadd.f32 %v1069, %v1281
        %v1345 = vadd.f32 %v1070, %v1284
        %v1346 = vadd.f32 %v1071, %v1287
        %v1347 = vadd.f32 %v1072, %v1290
        %v1348 = vadd.f32 %v1073, %v1293
        %v1349 = vadd.f32 %v1074, %v1296
        %v1350 = vadd.f32 %v1075, %v1299
        %v1351 = vadd.f32 %v1076, %v1302
        %v1352 = vadd.f32 %v1077, %v1305
        %v1353 = vadd.f32 %v1078, %v1308
        %v1354 = vadd.f32 %v1079, %v1311
        %v1355 = vadd.f32 %v1080, %v1314
        %v1356 = vadd.f32 %v1081, %v1317
        %v1357 = vadd.f32 %v1082, %v1320
        %v1358 = vadd.f32 %v1083, %v1323
        %v1359 = vadd.f32 %v1084, %v1326
        %v1360 = vld [vmem:[%s291 + $0x1] sm:$0xff]
        %v1361 = vld [vmem:[%s291 + $0x9] sm:$0xff]
        %v1362 = vld [vmem:[%s291 + $0x19] sm:$0xff]
        %v1363 = vld [vmem:[%s291 + $0x21] sm:$0xff]
        %v1364 = vld [vmem:[%s291 + $0x31] sm:$0xff]
        %v1365 = vld [vmem:[%s291 + $0x39] sm:$0xff]
        %v1366 = vld [vmem:[%s291 + $0x49] sm:$0xff]
        %v1367 = vld [vmem:[%s291 + $0x51] sm:$0xff]
        %v1368 = vld [vmem:[%s291 + $0x61] sm:$0xff]
        %v1369 = vld [vmem:[%s291 + $0x69] sm:$0xff]
        %v1370 = vld [vmem:[%s291 + $0x79] sm:$0xff]
        %v1371 = vld [vmem:[%s291 + $0x81] sm:$0xff]
        %v1372 = vld [vmem:[%s291 + $0x91] sm:$0xff]
        %v1373 = vld [vmem:[%s291 + $0x99] sm:$0xff]
        %v1374 = vld [vmem:[%s291 + $0xa9] sm:$0xff]
        %v1375 = vld [vmem:[%s291 + $0xb1] sm:$0xff]
        %v1376 = vld [vmem:[%s291 + $0xc1] sm:$0xff]
        %v1377 = vld [vmem:[%s291 + $0xc9] sm:$0xff]
        %v1378 = vld [vmem:[%s291 + $0xd9] sm:$0xff]
        %v1379 = vld [vmem:[%s291 + $0xe1] sm:$0xff]
        %v1380 = vld [vmem:[%s291 + $0xf1] sm:$0xff]
        %v1381 = vld [vmem:[%s291 + $0xf9] sm:$0xff]
        %v1382 = vld [vmem:[%s291 + $0x109] sm:$0xff]
        %v1383 = vld [vmem:[%s291 + $0x111] sm:$0xff]
        %v1384 = vld [vmem:[%s291 + $0x121] sm:$0xff]
        %v1385 = vld [vmem:[%s291 + $0x129] sm:$0xff]
        %v1386 = vld [vmem:[%s291 + $0x139] sm:$0xff]
        %v1387 = vld [vmem:[%s291 + $0x141] sm:$0xff]
        %v1388 = vld [vmem:[%s291 + $0x151] sm:$0xff]
        %v1389 = vld [vmem:[%s291 + $0x159] sm:$0xff]
        %v1390 = vld [vmem:[%s291 + $0x169] sm:$0xff]
        %v1391 = vld [vmem:[%s291 + $0x171] sm:$0xff]
        %s1392 = scalar_lea.vmem [#allocation3], 32
        %v1393 = vld [vmem:[%s1392] sm:$0xff]
        %v1395 = vsel %vm203, %v1360, 0
        %v1398 = vsel %vm203, %v1361, 0
        %v1401 = vsel %vm203, %v1362, 0
        %v1404 = vsel %vm203, %v1363, 0
        %v1407 = vsel %vm203, %v1364, 0
        %v1410 = vsel %vm203, %v1365, 0
        %v1413 = vsel %vm203, %v1366, 0
        %v1416 = vsel %vm203, %v1367, 0
        %v1419 = vsel %vm203, %v1368, 0
        %v1422 = vsel %vm203, %v1369, 0
        %v1425 = vsel %vm203, %v1370, 0
        %v1428 = vsel %vm203, %v1371, 0
        %v1431 = vsel %vm203, %v1372, 0
        %v1434 = vsel %vm203, %v1373, 0
        %v1437 = vsel %vm203, %v1374, 0
        %v1440 = vsel %vm203, %v1375, 0
        %v1443 = vsel %vm203, %v1376, 0
        %v1446 = vsel %vm203, %v1377, 0
        %v1449 = vsel %vm203, %v1378, 0
        %v1452 = vsel %vm203, %v1379, 0
        %v1455 = vsel %vm203, %v1380, 0
        %v1458 = vsel %vm203, %v1381, 0
        %v1461 = vsel %vm203, %v1382, 0
        %v1464 = vsel %vm203, %v1383, 0
        %v1467 = vsel %vm203, %v1384, 0
        %v1470 = vsel %vm203, %v1385, 0
        %v1473 = vsel %vm203, %v1386, 0
        %v1476 = vsel %vm203, %v1387, 0
        %v1479 = vsel %vm203, %v1388, 0
        %v1482 = vsel %vm203, %v1389, 0
        %v1485 = vsel %vm203, %v1390, 0
        %v1488 = vsel %vm203, %v1391, 0
        %1490 = vmatpush.msra.mxu0 0.0
        %1491 = vmatpush.msra.mxu0 0.0
        %1492 = vmatpush.msra.mxu0 0.0
        %1493 = vmatpush.msra.mxu0 0.0
        %1494 = vmatpush.msra.mxu0 0.0
        %1495 = vmatpush.msra.mxu0 0.0
        %1496 = vmatpush.msra.mxu0 0.0
        %1497 = vmatpush.msra.mxu0 0.0
        %1498 = vmatpush.msra.mxu0 0.0
        %1499 = vmatpush.msra.mxu0 0.0
        %1500 = vmatpush.msra.mxu0 0.0
        %1501 = vmatpush.msra.mxu0 0.0
        %1502 = vmatpush.msra.mxu0 0.0
        %1503 = vmatpush.msra.mxu0 0.0
        %1504 = vmatpush.msra.mxu0 0.0
        %1505 = vmatpush.msra.mxu0 %v1393
        %1506 = vmatmul.f32.gmra.mxu0 %v1395
        %v1507 = vpop.f32.mrf.mxu0
        %v1508 = vadd.f32 0.0, %v1507
        %1509 = vmatmul.f32.gmra.mxu0 %v1398
        %v1510 = vpop.f32.mrf.mxu0
        %v1511 = vadd.f32 0.0, %v1510
        %1512 = vmatmul.f32.gmra.mxu0 %v1401
        %v1513 = vpop.f32.mrf.mxu0
        %v1514 = vadd.f32 0.0, %v1513
        %1515 = vmatmul.f32.gmra.mxu0 %v1404
        %v1516 = vpop.f32.mrf.mxu0
        %v1517 = vadd.f32 0.0, %v1516
        %1518 = vmatmul.f32.gmra.mxu0 %v1407
        %v1519 = vpop.f32.mrf.mxu0
        %v1520 = vadd.f32 0.0, %v1519
        %1521 = vmatmul.f32.gmra.mxu0 %v1410
        %v1522 = vpop.f32.mrf.mxu0
        %v1523 = vadd.f32 0.0, %v1522
        %1524 = vmatmul.f32.gmra.mxu0 %v1413
        %v1525 = vpop.f32.mrf.mxu0
        %v1526 = vadd.f32 0.0, %v1525
        %1527 = vmatmul.f32.gmra.mxu0 %v1416
        %v1528 = vpop.f32.mrf.mxu0
        %v1529 = vadd.f32 0.0, %v1528
        %1530 = vmatmul.f32.gmra.mxu0 %v1419
        %v1531 = vpop.f32.mrf.mxu0
        %v1532 = vadd.f32 0.0, %v1531
        %1533 = vmatmul.f32.gmra.mxu0 %v1422
        %v1534 = vpop.f32.mrf.mxu0
        %v1535 = vadd.f32 0.0, %v1534
        %1536 = vmatmul.f32.gmra.mxu0 %v1425
        %v1537 = vpop.f32.mrf.mxu0
        %v1538 = vadd.f32 0.0, %v1537
        %1539 = vmatmul.f32.gmra.mxu0 %v1428
        %v1540 = vpop.f32.mrf.mxu0
        %v1541 = vadd.f32 0.0, %v1540
        %1542 = vmatmul.f32.gmra.mxu0 %v1431
        %v1543 = vpop.f32.mrf.mxu0
        %v1544 = vadd.f32 0.0, %v1543
        %1545 = vmatmul.f32.gmra.mxu0 %v1434
        %v1546 = vpop.f32.mrf.mxu0
        %v1547 = vadd.f32 0.0, %v1546
        %1548 = vmatmul.f32.gmra.mxu0 %v1437
        %v1549 = vpop.f32.mrf.mxu0
        %v1550 = vadd.f32 0.0, %v1549
        %1551 = vmatmul.f32.gmra.mxu0 %v1440
        %v1552 = vpop.f32.mrf.mxu0
        %v1553 = vadd.f32 0.0, %v1552
        %1554 = vmatmul.f32.gmra.mxu0 %v1443
        %v1555 = vpop.f32.mrf.mxu0
        %v1556 = vadd.f32 0.0, %v1555
        %1557 = vmatmul.f32.gmra.mxu0 %v1446
        %v1558 = vpop.f32.mrf.mxu0
        %v1559 = vadd.f32 0.0, %v1558
        %1560 = vmatmul.f32.gmra.mxu0 %v1449
        %v1561 = vpop.f32.mrf.mxu0
        %v1562 = vadd.f32 0.0, %v1561
        %1563 = vmatmul.f32.gmra.mxu0 %v1452
        %v1564 = vpop.f32.mrf.mxu0
        %v1565 = vadd.f32 0.0, %v1564
        %1566 = vmatmul.f32.gmra.mxu0 %v1455
        %v1567 = vpop.f32.mrf.mxu0
        %v1568 = vadd.f32 0.0, %v1567
        %1569 = vmatmul.f32.gmra.mxu0 %v1458
        %v1570 = vpop.f32.mrf.mxu0
        %v1571 = vadd.f32 0.0, %v1570
        %1572 = vmatmul.f32.gmra.mxu0 %v1461
        %v1573 = vpop.f32.mrf.mxu0
        %v1574 = vadd.f32 0.0, %v1573
        %1575 = vmatmul.f32.gmra.mxu0 %v1464
        %v1576 = vpop.f32.mrf.mxu0
        %v1577 = vadd.f32 0.0, %v1576
        %1578 = vmatmul.f32.gmra.mxu0 %v1467
        %v1579 = vpop.f32.mrf.mxu0
        %v1580 = vadd.f32 0.0, %v1579
        %1581 = vmatmul.f32.gmra.mxu0 %v1470
        %v1582 = vpop.f32.mrf.mxu0
        %v1583 = vadd.f32 0.0, %v1582
        %1584 = vmatmul.f32.gmra.mxu0 %v1473
        %v1585 = vpop.f32.mrf.mxu0
        %v1586 = vadd.f32 0.0, %v1585
        %1587 = vmatmul.f32.gmra.mxu0 %v1476
        %v1588 = vpop.f32.mrf.mxu0
        %v1589 = vadd.f32 0.0, %v1588
        %1590 = vmatmul.f32.gmra.mxu0 %v1479
        %v1591 = vpop.f32.mrf.mxu0
        %v1592 = vadd.f32 0.0, %v1591
        %1593 = vmatmul.f32.gmra.mxu0 %v1482
        %v1594 = vpop.f32.mrf.mxu0
        %v1595 = vadd.f32 0.0, %v1594
        %1596 = vmatmul.f32.gmra.mxu0 %v1485
        %v1597 = vpop.f32.mrf.mxu0
        %v1598 = vadd.f32 0.0, %v1597
        %1599 = vmatmul.f32.gmra.mxu0 %v1488
        %v1600 = vpop.f32.mrf.mxu0
        %v1601 = vadd.f32 0.0, %v1600
        %1602 = vdwg.mxu0
        %v1603 = vadd.f32 %v1328, %v1508
        %v1604 = vadd.f32 %v1329, %v1511
        %v1605 = vadd.f32 %v1330, %v1514
        %v1606 = vadd.f32 %v1331, %v1517
        %v1607 = vadd.f32 %v1332, %v1520
        %v1608 = vadd.f32 %v1333, %v1523
        %v1609 = vadd.f32 %v1334, %v1526
        %v1610 = vadd.f32 %v1335, %v1529
        %v1611 = vadd.f32 %v1336, %v1532
        %v1612 = vadd.f32 %v1337, %v1535
        %v1613 = vadd.f32 %v1338, %v1538
        %v1614 = vadd.f32 %v1339, %v1541
        %v1615 = vadd.f32 %v1340, %v1544
        %v1616 = vadd.f32 %v1341, %v1547
        %v1617 = vadd.f32 %v1342, %v1550
        %v1618 = vadd.f32 %v1343, %v1553
        %v1619 = vadd.f32 %v1344, %v1556
        %v1620 = vadd.f32 %v1345, %v1559
        %v1621 = vadd.f32 %v1346, %v1562
        %v1622 = vadd.f32 %v1347, %v1565
        %v1623 = vadd.f32 %v1348, %v1568
        %v1624 = vadd.f32 %v1349, %v1571
        %v1625 = vadd.f32 %v1350, %v1574
        %v1626 = vadd.f32 %v1351, %v1577
        %v1627 = vadd.f32 %v1352, %v1580
        %v1628 = vadd.f32 %v1353, %v1583
        %v1629 = vadd.f32 %v1354, %v1586
        %v1630 = vadd.f32 %v1355, %v1589
        %v1631 = vadd.f32 %v1356, %v1592
        %v1632 = vadd.f32 %v1357, %v1595
        %v1633 = vadd.f32 %v1358, %v1598
        %v1634 = vadd.f32 %v1359, %v1601
        %v1635 = vld [vmem:[%s291 + $0x2] sm:$0xff]
        %v1636 = vld [vmem:[%s291 + $0xa] sm:$0xff]
        %v1637 = vld [vmem:[%s291 + $0x1a] sm:$0xff]
        %v1638 = vld [vmem:[%s291 + $0x22] sm:$0xff]
        %v1639 = vld [vmem:[%s291 + $0x32] sm:$0xff]
        %v1640 = vld [vmem:[%s291 + $0x3a] sm:$0xff]
        %v1641 = vld [vmem:[%s291 + $0x4a] sm:$0xff]
        %v1642 = vld [vmem:[%s291 + $0x52] sm:$0xff]
        %v1643 = vld [vmem:[%s291 + $0x62] sm:$0xff]
        %v1644 = vld [vmem:[%s291 + $0x6a] sm:$0xff]
        %v1645 = vld [vmem:[%s291 + $0x7a] sm:$0xff]
        %v1646 = vld [vmem:[%s291 + $0x82] sm:$0xff]
        %v1647 = vld [vmem:[%s291 + $0x92] sm:$0xff]
        %v1648 = vld [vmem:[%s291 + $0x9a] sm:$0xff]
        %v1649 = vld [vmem:[%s291 + $0xaa] sm:$0xff]
        %v1650 = vld [vmem:[%s291 + $0xb2] sm:$0xff]
        %v1651 = vld [vmem:[%s291 + $0xc2] sm:$0xff]
        %v1652 = vld [vmem:[%s291 + $0xca] sm:$0xff]
        %v1653 = vld [vmem:[%s291 + $0xda] sm:$0xff]
        %v1654 = vld [vmem:[%s291 + $0xe2] sm:$0xff]
        %v1655 = vld [vmem:[%s291 + $0xf2] sm:$0xff]
        %v1656 = vld [vmem:[%s291 + $0xfa] sm:$0xff]
        %v1657 = vld [vmem:[%s291 + $0x10a] sm:$0xff]
        %v1658 = vld [vmem:[%s291 + $0x112] sm:$0xff]
        %v1659 = vld [vmem:[%s291 + $0x122] sm:$0xff]
        %v1660 = vld [vmem:[%s291 + $0x12a] sm:$0xff]
        %v1661 = vld [vmem:[%s291 + $0x13a] sm:$0xff]
        %v1662 = vld [vmem:[%s291 + $0x142] sm:$0xff]
        %v1663 = vld [vmem:[%s291 + $0x152] sm:$0xff]
        %v1664 = vld [vmem:[%s291 + $0x15a] sm:$0xff]
        %v1665 = vld [vmem:[%s291 + $0x16a] sm:$0xff]
        %v1666 = vld [vmem:[%s291 + $0x172] sm:$0xff]
        %s1667 = scalar_lea.vmem [#allocation3], 40
        %v1668 = vld [vmem:[%s1667] sm:$0xff]
        %v1670 = vsel %vm203, %v1635, 0
        %v1673 = vsel %vm203, %v1636, 0
        %v1676 = vsel %vm203, %v1637, 0
        %v1679 = vsel %vm203, %v1638, 0
        %v1682 = vsel %vm203, %v1639, 0
        %v1685 = vsel %vm203, %v1640, 0
        %v1688 = vsel %vm203, %v1641, 0
        %v1691 = vsel %vm203, %v1642, 0
        %v1694 = vsel %vm203, %v1643, 0
        %v1697 = vsel %vm203, %v1644, 0
        %v1700 = vsel %vm203, %v1645, 0
        %v1703 = vsel %vm203, %v1646, 0
        %v1706 = vsel %vm203, %v1647, 0
        %v1709 = vsel %vm203, %v1648, 0
        %v1712 = vsel %vm203, %v1649, 0
        %v1715 = vsel %vm203, %v1650, 0
        %v1718 = vsel %vm203, %v1651, 0
        %v1721 = vsel %vm203, %v1652, 0
        %v1724 = vsel %vm203, %v1653, 0
        %v1727 = vsel %vm203, %v1654, 0
        %v1730 = vsel %vm203, %v1655, 0
        %v1733 = vsel %vm203, %v1656, 0
        %v1736 = vsel %vm203, %v1657, 0
        %v1739 = vsel %vm203, %v1658, 0
        %v1742 = vsel %vm203, %v1659, 0
        %v1745 = vsel %vm203, %v1660, 0
        %v1748 = vsel %vm203, %v1661, 0
        %v1751 = vsel %vm203, %v1662, 0
        %v1754 = vsel %vm203, %v1663, 0
        %v1757 = vsel %vm203, %v1664, 0
        %v1760 = vsel %vm203, %v1665, 0
        %v1763 = vsel %vm203, %v1666, 0
        %1765 = vmatpush.msra.mxu0 0.0
        %1766 = vmatpush.msra.mxu0 0.0
        %1767 = vmatpush.msra.mxu0 0.0
        %1768 = vmatpush.msra.mxu0 0.0
        %1769 = vmatpush.msra.mxu0 0.0
        %1770 = vmatpush.msra.mxu0 0.0
        %1771 = vmatpush.msra.mxu0 0.0
        %1772 = vmatpush.msra.mxu0 0.0
        %1773 = vmatpush.msra.mxu0 0.0
        %1774 = vmatpush.msra.mxu0 0.0
        %1775 = vmatpush.msra.mxu0 0.0
        %1776 = vmatpush.msra.mxu0 0.0
        %1777 = vmatpush.msra.mxu0 0.0
        %1778 = vmatpush.msra.mxu0 0.0
        %1779 = vmatpush.msra.mxu0 0.0
        %1780 = vmatpush.msra.mxu0 %v1668
        %1781 = vmatmul.f32.gmra.mxu0 %v1670
        %v1782 = vpop.f32.mrf.mxu0
        %v1783 = vadd.f32 0.0, %v1782
        %1784 = vmatmul.f32.gmra.mxu0 %v1673
        %v1785 = vpop.f32.mrf.mxu0
        %v1786 = vadd.f32 0.0, %v1785
        %1787 = vmatmul.f32.gmra.mxu0 %v1676
        %v1788 = vpop.f32.mrf.mxu0
        %v1789 = vadd.f32 0.0, %v1788
        %1790 = vmatmul.f32.gmra.mxu0 %v1679
        %v1791 = vpop.f32.mrf.mxu0
        %v1792 = vadd.f32 0.0, %v1791
        %1793 = vmatmul.f32.gmra.mxu0 %v1682
        %v1794 = vpop.f32.mrf.mxu0
        %v1795 = vadd.f32 0.0, %v1794
        %1796 = vmatmul.f32.gmra.mxu0 %v1685
        %v1797 = vpop.f32.mrf.mxu0
        %v1798 = vadd.f32 0.0, %v1797
        %1799 = vmatmul.f32.gmra.mxu0 %v1688
        %v1800 = vpop.f32.mrf.mxu0
        %v1801 = vadd.f32 0.0, %v1800
        %1802 = vmatmul.f32.gmra.mxu0 %v1691
        %v1803 = vpop.f32.mrf.mxu0
        %v1804 = vadd.f32 0.0, %v1803
        %1805 = vmatmul.f32.gmra.mxu0 %v1694
        %v1806 = vpop.f32.mrf.mxu0
        %v1807 = vadd.f32 0.0, %v1806
        %1808 = vmatmul.f32.gmra.mxu0 %v1697
        %v1809 = vpop.f32.mrf.mxu0
        %v1810 = vadd.f32 0.0, %v1809
        %1811 = vmatmul.f32.gmra.mxu0 %v1700
        %v1812 = vpop.f32.mrf.mxu0
        %v1813 = vadd.f32 0.0, %v1812
        %1814 = vmatmul.f32.gmra.mxu0 %v1703
        %v1815 = vpop.f32.mrf.mxu0
        %v1816 = vadd.f32 0.0, %v1815
        %1817 = vmatmul.f32.gmra.mxu0 %v1706
        %v1818 = vpop.f32.mrf.mxu0
        %v1819 = vadd.f32 0.0, %v1818
        %1820 = vmatmul.f32.gmra.mxu0 %v1709
        %v1821 = vpop.f32.mrf.mxu0
        %v1822 = vadd.f32 0.0, %v1821
        %1823 = vmatmul.f32.gmra.mxu0 %v1712
        %v1824 = vpop.f32.mrf.mxu0
        %v1825 = vadd.f32 0.0, %v1824
        %1826 = vmatmul.f32.gmra.mxu0 %v1715
        %v1827 = vpop.f32.mrf.mxu0
        %v1828 = vadd.f32 0.0, %v1827
        %1829 = vmatmul.f32.gmra.mxu0 %v1718
        %v1830 = vpop.f32.mrf.mxu0
        %v1831 = vadd.f32 0.0, %v1830
        %1832 = vmatmul.f32.gmra.mxu0 %v1721
        %v1833 = vpop.f32.mrf.mxu0
        %v1834 = vadd.f32 0.0, %v1833
        %1835 = vmatmul.f32.gmra.mxu0 %v1724
        %v1836 = vpop.f32.mrf.mxu0
        %v1837 = vadd.f32 0.0, %v1836
        %1838 = vmatmul.f32.gmra.mxu0 %v1727
        %v1839 = vpop.f32.mrf.mxu0
        %v1840 = vadd.f32 0.0, %v1839
        %1841 = vmatmul.f32.gmra.mxu0 %v1730
        %v1842 = vpop.f32.mrf.mxu0
        %v1843 = vadd.f32 0.0, %v1842
        %1844 = vmatmul.f32.gmra.mxu0 %v1733
        %v1845 = vpop.f32.mrf.mxu0
        %v1846 = vadd.f32 0.0, %v1845
        %1847 = vmatmul.f32.gmra.mxu0 %v1736
        %v1848 = vpop.f32.mrf.mxu0
        %v1849 = vadd.f32 0.0, %v1848
        %1850 = vmatmul.f32.gmra.mxu0 %v1739
        %v1851 = vpop.f32.mrf.mxu0
        %v1852 = vadd.f32 0.0, %v1851
        %1853 = vmatmul.f32.gmra.mxu0 %v1742
        %v1854 = vpop.f32.mrf.mxu0
        %v1855 = vadd.f32 0.0, %v1854
        %1856 = vmatmul.f32.gmra.mxu0 %v1745
        %v1857 = vpop.f32.mrf.mxu0
        %v1858 = vadd.f32 0.0, %v1857
        %1859 = vmatmul.f32.gmra.mxu0 %v1748
        %v1860 = vpop.f32.mrf.mxu0
        %v1861 = vadd.f32 0.0, %v1860
        %1862 = vmatmul.f32.gmra.mxu0 %v1751
        %v1863 = vpop.f32.mrf.mxu0
        %v1864 = vadd.f32 0.0, %v1863
        %1865 = vmatmul.f32.gmra.mxu0 %v1754
        %v1866 = vpop.f32.mrf.mxu0
        %v1867 = vadd.f32 0.0, %v1866
        %1868 = vmatmul.f32.gmra.mxu0 %v1757
        %v1869 = vpop.f32.mrf.mxu0
        %v1870 = vadd.f32 0.0, %v1869
        %1871 = vmatmul.f32.gmra.mxu0 %v1760
        %v1872 = vpop.f32.mrf.mxu0
        %v1873 = vadd.f32 0.0, %v1872
        %1874 = vmatmul.f32.gmra.mxu0 %v1763
        %v1875 = vpop.f32.mrf.mxu0
        %v1876 = vadd.f32 0.0, %v1875
        %1877 = vdwg.mxu0
        %v1878 = vadd.f32 %v1603, %v1783
        %v1879 = vadd.f32 %v1604, %v1786
        %v1880 = vadd.f32 %v1605, %v1789
        %v1881 = vadd.f32 %v1606, %v1792
        %v1882 = vadd.f32 %v1607, %v1795
        %v1883 = vadd.f32 %v1608, %v1798
        %v1884 = vadd.f32 %v1609, %v1801
        %v1885 = vadd.f32 %v1610, %v1804
        %v1886 = vadd.f32 %v1611, %v1807
        %v1887 = vadd.f32 %v1612, %v1810
        %v1888 = vadd.f32 %v1613, %v1813
        %v1889 = vadd.f32 %v1614, %v1816
        %v1890 = vadd.f32 %v1615, %v1819
        %v1891 = vadd.f32 %v1616, %v1822
        %v1892 = vadd.f32 %v1617, %v1825
        %v1893 = vadd.f32 %v1618, %v1828
        %v1894 = vadd.f32 %v1619, %v1831
        %v1895 = vadd.f32 %v1620, %v1834
        %v1896 = vadd.f32 %v1621, %v1837
        %v1897 = vadd.f32 %v1622, %v1840
        %v1898 = vadd.f32 %v1623, %v1843
        %v1899 = vadd.f32 %v1624, %v1846
        %v1900 = vadd.f32 %v1625, %v1849
        %v1901 = vadd.f32 %v1626, %v1852
        %v1902 = vadd.f32 %v1627, %v1855
        %v1903 = vadd.f32 %v1628, %v1858
        %v1904 = vadd.f32 %v1629, %v1861
        %v1905 = vadd.f32 %v1630, %v1864
        %v1906 = vadd.f32 %v1631, %v1867
        %v1907 = vadd.f32 %v1632, %v1870
        %v1908 = vadd.f32 %v1633, %v1873
        %v1909 = vadd.f32 %v1634, %v1876
        %s1910 = scalar_lea.vmem [#allocation2], 48
        %v1911 = vld [vmem:[%s1910] sm:$0xff]
        %v1912 = vld [vmem:[%s1910 + $0x8] sm:$0xff]
        %v1913 = vld [vmem:[%s1910 + $0x18] sm:$0xff]
        %v1914 = vld [vmem:[%s1910 + $0x20] sm:$0xff]
        %v1915 = vld [vmem:[%s1910 + $0x30] sm:$0xff]
        %v1916 = vld [vmem:[%s1910 + $0x38] sm:$0xff]
        %v1917 = vld [vmem:[%s1910 + $0x48] sm:$0xff]
        %v1918 = vld [vmem:[%s1910 + $0x50] sm:$0xff]
        %v1919 = vld [vmem:[%s1910 + $0x60] sm:$0xff]
        %v1920 = vld [vmem:[%s1910 + $0x68] sm:$0xff]
        %v1921 = vld [vmem:[%s1910 + $0x78] sm:$0xff]
        %v1922 = vld [vmem:[%s1910 + $0x80] sm:$0xff]
        %v1923 = vld [vmem:[%s1910 + $0x90] sm:$0xff]
        %v1924 = vld [vmem:[%s1910 + $0x98] sm:$0xff]
        %v1925 = vld [vmem:[%s1910 + $0xa8] sm:$0xff]
        %v1926 = vld [vmem:[%s1910 + $0xb0] sm:$0xff]
        %v1927 = vld [vmem:[%s1910 + $0xc0] sm:$0xff]
        %v1928 = vld [vmem:[%s1910 + $0xc8] sm:$0xff]
        %v1929 = vld [vmem:[%s1910 + $0xd8] sm:$0xff]
        %v1930 = vld [vmem:[%s1910 + $0xe0] sm:$0xff]
        %v1931 = vld [vmem:[%s1910 + $0xf0] sm:$0xff]
        %v1932 = vld [vmem:[%s1910 + $0xf8] sm:$0xff]
        %v1933 = vld [vmem:[%s1910 + $0x108] sm:$0xff]
        %v1934 = vld [vmem:[%s1910 + $0x110] sm:$0xff]
        %v1935 = vld [vmem:[%s1910 + $0x120] sm:$0xff]
        %v1936 = vld [vmem:[%s1910 + $0x128] sm:$0xff]
        %v1937 = vld [vmem:[%s1910 + $0x138] sm:$0xff]
        %v1938 = vld [vmem:[%s1910 + $0x140] sm:$0xff]
        %v1939 = vld [vmem:[%s1910 + $0x150] sm:$0xff]
        %v1940 = vld [vmem:[%s1910 + $0x158] sm:$0xff]
        %v1941 = vld [vmem:[%s1910 + $0x168] sm:$0xff]
        %v1942 = vld [vmem:[%s1910 + $0x170] sm:$0xff]
        %s1943 = scalar_lea.vmem [#allocation3], 48
        %v1944 = vld [vmem:[%s1943] sm:$0xff]
        %v1946 = vsel %vm203, %v1911, 0
        %v1949 = vsel %vm203, %v1912, 0
        %v1952 = vsel %vm203, %v1913, 0
        %v1955 = vsel %vm203, %v1914, 0
        %v1958 = vsel %vm203, %v1915, 0
        %v1961 = vsel %vm203, %v1916, 0
        %v1964 = vsel %vm203, %v1917, 0
        %v1967 = vsel %vm203, %v1918, 0
        %v1970 = vsel %vm203, %v1919, 0
        %v1973 = vsel %vm203, %v1920, 0
        %v1976 = vsel %vm203, %v1921, 0
        %v1979 = vsel %vm203, %v1922, 0
        %v1982 = vsel %vm203, %v1923, 0
        %v1985 = vsel %vm203, %v1924, 0
        %v1988 = vsel %vm203, %v1925, 0
        %v1991 = vsel %vm203, %v1926, 0
        %v1994 = vsel %vm203, %v1927, 0
        %v1997 = vsel %vm203, %v1928, 0
        %v2000 = vsel %vm203, %v1929, 0
        %v2003 = vsel %vm203, %v1930, 0
        %v2006 = vsel %vm203, %v1931, 0
        %v2009 = vsel %vm203, %v1932, 0
        %v2012 = vsel %vm203, %v1933, 0
        %v2015 = vsel %vm203, %v1934, 0
        %v2018 = vsel %vm203, %v1935, 0
        %v2021 = vsel %vm203, %v1936, 0
        %v2024 = vsel %vm203, %v1937, 0
        %v2027 = vsel %vm203, %v1938, 0
        %v2030 = vsel %vm203, %v1939, 0
        %v2033 = vsel %vm203, %v1940, 0
        %v2036 = vsel %vm203, %v1941, 0
        %v2039 = vsel %vm203, %v1942, 0
        %2041 = vmatpush.msra.mxu0 0.0
        %2042 = vmatpush.msra.mxu0 0.0
        %2043 = vmatpush.msra.mxu0 0.0
        %2044 = vmatpush.msra.mxu0 0.0
        %2045 = vmatpush.msra.mxu0 0.0
        %2046 = vmatpush.msra.mxu0 0.0
        %2047 = vmatpush.msra.mxu0 0.0
        %2048 = vmatpush.msra.mxu0 0.0
        %2049 = vmatpush.msra.mxu0 0.0
        %2050 = vmatpush.msra.mxu0 0.0
        %2051 = vmatpush.msra.mxu0 0.0
        %2052 = vmatpush.msra.mxu0 0.0
        %2053 = vmatpush.msra.mxu0 0.0
        %2054 = vmatpush.msra.mxu0 0.0
        %2055 = vmatpush.msra.mxu0 0.0
        %2056 = vmatpush.msra.mxu0 %v1944
        %2057 = vmatmul.f32.gmra.mxu0 %v1946
        %v2058 = vpop.f32.mrf.mxu0
        %v2059 = vadd.f32 0.0, %v2058
        %2060 = vmatmul.f32.gmra.mxu0 %v1949
        %v2061 = vpop.f32.mrf.mxu0
        %v2062 = vadd.f32 0.0, %v2061
        %2063 = vmatmul.f32.gmra.mxu0 %v1952
        %v2064 = vpop.f32.mrf.mxu0
        %v2065 = vadd.f32 0.0, %v2064
        %2066 = vmatmul.f32.gmra.mxu0 %v1955
        %v2067 = vpop.f32.mrf.mxu0
        %v2068 = vadd.f32 0.0, %v2067
        %2069 = vmatmul.f32.gmra.mxu0 %v1958
        %v2070 = vpop.f32.mrf.mxu0
        %v2071 = vadd.f32 0.0, %v2070
        %2072 = vmatmul.f32.gmra.mxu0 %v1961
        %v2073 = vpop.f32.mrf.mxu0
        %v2074 = vadd.f32 0.0, %v2073
        %2075 = vmatmul.f32.gmra.mxu0 %v1964
        %v2076 = vpop.f32.mrf.mxu0
        %v2077 = vadd.f32 0.0, %v2076
        %2078 = vmatmul.f32.gmra.mxu0 %v1967
        %v2079 = vpop.f32.mrf.mxu0
        %v2080 = vadd.f32 0.0, %v2079
        %2081 = vmatmul.f32.gmra.mxu0 %v1970
        %v2082 = vpop.f32.mrf.mxu0
        %v2083 = vadd.f32 0.0, %v2082
        %2084 = vmatmul.f32.gmra.mxu0 %v1973
        %v2085 = vpop.f32.mrf.mxu0
        %v2086 = vadd.f32 0.0, %v2085
        %2087 = vmatmul.f32.gmra.mxu0 %v1976
        %v2088 = vpop.f32.mrf.mxu0
        %v2089 = vadd.f32 0.0, %v2088
        %2090 = vmatmul.f32.gmra.mxu0 %v1979
        %v2091 = vpop.f32.mrf.mxu0
        %v2092 = vadd.f32 0.0, %v2091
        %2093 = vmatmul.f32.gmra.mxu0 %v1982
        %v2094 = vpop.f32.mrf.mxu0
        %v2095 = vadd.f32 0.0, %v2094
        %2096 = vmatmul.f32.gmra.mxu0 %v1985
        %v2097 = vpop.f32.mrf.mxu0
        %v2098 = vadd.f32 0.0, %v2097
        %2099 = vmatmul.f32.gmra.mxu0 %v1988
        %v2100 = vpop.f32.mrf.mxu0
        %v2101 = vadd.f32 0.0, %v2100
        %2102 = vmatmul.f32.gmra.mxu0 %v1991
        %v2103 = vpop.f32.mrf.mxu0
        %v2104 = vadd.f32 0.0, %v2103
        %2105 = vmatmul.f32.gmra.mxu0 %v1994
        %v2106 = vpop.f32.mrf.mxu0
        %v2107 = vadd.f32 0.0, %v2106
        %2108 = vmatmul.f32.gmra.mxu0 %v1997
        %v2109 = vpop.f32.mrf.mxu0
        %v2110 = vadd.f32 0.0, %v2109
        %2111 = vmatmul.f32.gmra.mxu0 %v2000
        %v2112 = vpop.f32.mrf.mxu0
        %v2113 = vadd.f32 0.0, %v2112
        %2114 = vmatmul.f32.gmra.mxu0 %v2003
        %v2115 = vpop.f32.mrf.mxu0
        %v2116 = vadd.f32 0.0, %v2115
        %2117 = vmatmul.f32.gmra.mxu0 %v2006
        %v2118 = vpop.f32.mrf.mxu0
        %v2119 = vadd.f32 0.0, %v2118
        %2120 = vmatmul.f32.gmra.mxu0 %v2009
        %v2121 = vpop.f32.mrf.mxu0
        %v2122 = vadd.f32 0.0, %v2121
        %2123 = vmatmul.f32.gmra.mxu0 %v2012
        %v2124 = vpop.f32.mrf.mxu0
        %v2125 = vadd.f32 0.0, %v2124
        %2126 = vmatmul.f32.gmra.mxu0 %v2015
        %v2127 = vpop.f32.mrf.mxu0
        %v2128 = vadd.f32 0.0, %v2127
        %2129 = vmatmul.f32.gmra.mxu0 %v2018
        %v2130 = vpop.f32.mrf.mxu0
        %v2131 = vadd.f32 0.0, %v2130
        %2132 = vmatmul.f32.gmra.mxu0 %v2021
        %v2133 = vpop.f32.mrf.mxu0
        %v2134 = vadd.f32 0.0, %v2133
        %2135 = vmatmul.f32.gmra.mxu0 %v2024
        %v2136 = vpop.f32.mrf.mxu0
        %v2137 = vadd.f32 0.0, %v2136
        %2138 = vmatmul.f32.gmra.mxu0 %v2027
        %v2139 = vpop.f32.mrf.mxu0
        %v2140 = vadd.f32 0.0, %v2139
        %2141 = vmatmul.f32.gmra.mxu0 %v2030
        %v2142 = vpop.f32.mrf.mxu0
        %v2143 = vadd.f32 0.0, %v2142
        %2144 = vmatmul.f32.gmra.mxu0 %v2033
        %v2145 = vpop.f32.mrf.mxu0
        %v2146 = vadd.f32 0.0, %v2145
        %2147 = vmatmul.f32.gmra.mxu0 %v2036
        %v2148 = vpop.f32.mrf.mxu0
        %v2149 = vadd.f32 0.0, %v2148
        %2150 = vmatmul.f32.gmra.mxu0 %v2039
        %v2151 = vpop.f32.mrf.mxu0
        %v2152 = vadd.f32 0.0, %v2151
        %2153 = vdwg.mxu0
        %v2154 = vadd.f32 %v1878, %v2059
        %v2155 = vadd.f32 %v1879, %v2062
        %v2156 = vadd.f32 %v1880, %v2065
        %v2157 = vadd.f32 %v1881, %v2068
        %v2158 = vadd.f32 %v1882, %v2071
        %v2159 = vadd.f32 %v1883, %v2074
        %v2160 = vadd.f32 %v1884, %v2077
        %v2161 = vadd.f32 %v1885, %v2080
        %v2162 = vadd.f32 %v1886, %v2083
        %v2163 = vadd.f32 %v1887, %v2086
        %v2164 = vadd.f32 %v1888, %v2089
        %v2165 = vadd.f32 %v1889, %v2092
        %v2166 = vadd.f32 %v1890, %v2095
        %v2167 = vadd.f32 %v1891, %v2098
        %v2168 = vadd.f32 %v1892, %v2101
        %v2169 = vadd.f32 %v1893, %v2104
        %v2170 = vadd.f32 %v1894, %v2107
        %v2171 = vadd.f32 %v1895, %v2110
        %v2172 = vadd.f32 %v1896, %v2113
        %v2173 = vadd.f32 %v1897, %v2116
        %v2174 = vadd.f32 %v1898, %v2119
        %v2175 = vadd.f32 %v1899, %v2122
        %v2176 = vadd.f32 %v1900, %v2125
        %v2177 = vadd.f32 %v1901, %v2128
        %v2178 = vadd.f32 %v1902, %v2131
        %v2179 = vadd.f32 %v1903, %v2134
        %v2180 = vadd.f32 %v1904, %v2137
        %v2181 = vadd.f32 %v1905, %v2140
        %v2182 = vadd.f32 %v1906, %v2143
        %v2183 = vadd.f32 %v1907, %v2146
        %v2184 = vadd.f32 %v1908, %v2149
        %v2185 = vadd.f32 %v1909, %v2152
        %v2186 = vld [vmem:[%s1910 + $0x1] sm:$0xff]
        %v2187 = vld [vmem:[%s1910 + $0x9] sm:$0xff]
        %v2188 = vld [vmem:[%s1910 + $0x19] sm:$0xff]
        %v2189 = vld [vmem:[%s1910 + $0x21] sm:$0xff]
        %v2190 = vld [vmem:[%s1910 + $0x31] sm:$0xff]
        %v2191 = vld [vmem:[%s1910 + $0x39] sm:$0xff]
        %v2192 = vld [vmem:[%s1910 + $0x49] sm:$0xff]
        %v2193 = vld [vmem:[%s1910 + $0x51] sm:$0xff]
        %v2194 = vld [vmem:[%s1910 + $0x61] sm:$0xff]
        %v2195 = vld [vmem:[%s1910 + $0x69] sm:$0xff]
        %v2196 = vld [vmem:[%s1910 + $0x79] sm:$0xff]
        %v2197 = vld [vmem:[%s1910 + $0x81] sm:$0xff]
        %v2198 = vld [vmem:[%s1910 + $0x91] sm:$0xff]
        %v2199 = vld [vmem:[%s1910 + $0x99] sm:$0xff]
        %v2200 = vld [vmem:[%s1910 + $0xa9] sm:$0xff]
        %v2201 = vld [vmem:[%s1910 + $0xb1] sm:$0xff]
        %v2202 = vld [vmem:[%s1910 + $0xc1] sm:$0xff]
        %v2203 = vld [vmem:[%s1910 + $0xc9] sm:$0xff]
        %v2204 = vld [vmem:[%s1910 + $0xd9] sm:$0xff]
        %v2205 = vld [vmem:[%s1910 + $0xe1] sm:$0xff]
        %v2206 = vld [vmem:[%s1910 + $0xf1] sm:$0xff]
        %v2207 = vld [vmem:[%s1910 + $0xf9] sm:$0xff]
        %v2208 = vld [vmem:[%s1910 + $0x109] sm:$0xff]
        %v2209 = vld [vmem:[%s1910 + $0x111] sm:$0xff]
        %v2210 = vld [vmem:[%s1910 + $0x121] sm:$0xff]
        %v2211 = vld [vmem:[%s1910 + $0x129] sm:$0xff]
        %v2212 = vld [vmem:[%s1910 + $0x139] sm:$0xff]
        %v2213 = vld [vmem:[%s1910 + $0x141] sm:$0xff]
        %v2214 = vld [vmem:[%s1910 + $0x151] sm:$0xff]
        %v2215 = vld [vmem:[%s1910 + $0x159] sm:$0xff]
        %v2216 = vld [vmem:[%s1910 + $0x169] sm:$0xff]
        %v2217 = vld [vmem:[%s1910 + $0x171] sm:$0xff]
        %s2218 = scalar_lea.vmem [#allocation3], 56
        %v2219 = vld [vmem:[%s2218] sm:$0xff]
        %v2221 = vsel %vm203, %v2186, 0
        %v2224 = vsel %vm203, %v2187, 0
        %v2227 = vsel %vm203, %v2188, 0
        %v2230 = vsel %vm203, %v2189, 0
        %v2233 = vsel %vm203, %v2190, 0
        %v2236 = vsel %vm203, %v2191, 0
        %v2239 = vsel %vm203, %v2192, 0
        %v2242 = vsel %vm203, %v2193, 0
        %v2245 = vsel %vm203, %v2194, 0
        %v2248 = vsel %vm203, %v2195, 0
        %v2251 = vsel %vm203, %v2196, 0
        %v2254 = vsel %vm203, %v2197, 0
        %v2257 = vsel %vm203, %v2198, 0
        %v2260 = vsel %vm203, %v2199, 0
        %v2263 = vsel %vm203, %v2200, 0
        %v2266 = vsel %vm203, %v2201, 0
        %v2269 = vsel %vm203, %v2202, 0
        %v2272 = vsel %vm203, %v2203, 0
        %v2275 = vsel %vm203, %v2204, 0
        %v2278 = vsel %vm203, %v2205, 0
        %v2281 = vsel %vm203, %v2206, 0
        %v2284 = vsel %vm203, %v2207, 0
        %v2287 = vsel %vm203, %v2208, 0
        %v2290 = vsel %vm203, %v2209, 0
        %v2293 = vsel %vm203, %v2210, 0
        %v2296 = vsel %vm203, %v2211, 0
        %v2299 = vsel %vm203, %v2212, 0
        %v2302 = vsel %vm203, %v2213, 0
        %v2305 = vsel %vm203, %v2214, 0
        %v2308 = vsel %vm203, %v2215, 0
        %v2311 = vsel %vm203, %v2216, 0
        %v2314 = vsel %vm203, %v2217, 0
        %2316 = vmatpush.msra.mxu0 0.0
        %2317 = vmatpush.msra.mxu0 0.0
        %2318 = vmatpush.msra.mxu0 0.0
        %2319 = vmatpush.msra.mxu0 0.0
        %2320 = vmatpush.msra.mxu0 0.0
        %2321 = vmatpush.msra.mxu0 0.0
        %2322 = vmatpush.msra.mxu0 0.0
        %2323 = vmatpush.msra.mxu0 0.0
        %2324 = vmatpush.msra.mxu0 0.0
        %2325 = vmatpush.msra.mxu0 0.0
        %2326 = vmatpush.msra.mxu0 0.0
        %2327 = vmatpush.msra.mxu0 0.0
        %2328 = vmatpush.msra.mxu0 0.0
        %2329 = vmatpush.msra.mxu0 0.0
        %2330 = vmatpush.msra.mxu0 0.0
        %2331 = vmatpush.msra.mxu0 %v2219
        %2332 = vmatmul.f32.gmra.mxu0 %v2221
        %v2333 = vpop.f32.mrf.mxu0
        %v2334 = vadd.f32 0.0, %v2333
        %2335 = vmatmul.f32.gmra.mxu0 %v2224
        %v2336 = vpop.f32.mrf.mxu0
        %v2337 = vadd.f32 0.0, %v2336
        %2338 = vmatmul.f32.gmra.mxu0 %v2227
        %v2339 = vpop.f32.mrf.mxu0
        %v2340 = vadd.f32 0.0, %v2339
        %2341 = vmatmul.f32.gmra.mxu0 %v2230
        %v2342 = vpop.f32.mrf.mxu0
        %v2343 = vadd.f32 0.0, %v2342
        %2344 = vmatmul.f32.gmra.mxu0 %v2233
        %v2345 = vpop.f32.mrf.mxu0
        %v2346 = vadd.f32 0.0, %v2345
        %2347 = vmatmul.f32.gmra.mxu0 %v2236
        %v2348 = vpop.f32.mrf.mxu0
        %v2349 = vadd.f32 0.0, %v2348
        %2350 = vmatmul.f32.gmra.mxu0 %v2239
        %v2351 = vpop.f32.mrf.mxu0
        %v2352 = vadd.f32 0.0, %v2351
        %2353 = vmatmul.f32.gmra.mxu0 %v2242
        %v2354 = vpop.f32.mrf.mxu0
        %v2355 = vadd.f32 0.0, %v2354
        %2356 = vmatmul.f32.gmra.mxu0 %v2245
        %v2357 = vpop.f32.mrf.mxu0
        %v2358 = vadd.f32 0.0, %v2357
        %2359 = vmatmul.f32.gmra.mxu0 %v2248
        %v2360 = vpop.f32.mrf.mxu0
        %v2361 = vadd.f32 0.0, %v2360
        %2362 = vmatmul.f32.gmra.mxu0 %v2251
        %v2363 = vpop.f32.mrf.mxu0
        %v2364 = vadd.f32 0.0, %v2363
        %2365 = vmatmul.f32.gmra.mxu0 %v2254
        %v2366 = vpop.f32.mrf.mxu0
        %v2367 = vadd.f32 0.0, %v2366
        %2368 = vmatmul.f32.gmra.mxu0 %v2257
        %v2369 = vpop.f32.mrf.mxu0
        %v2370 = vadd.f32 0.0, %v2369
        %2371 = vmatmul.f32.gmra.mxu0 %v2260
        %v2372 = vpop.f32.mrf.mxu0
        %v2373 = vadd.f32 0.0, %v2372
        %2374 = vmatmul.f32.gmra.mxu0 %v2263
        %v2375 = vpop.f32.mrf.mxu0
        %v2376 = vadd.f32 0.0, %v2375
        %2377 = vmatmul.f32.gmra.mxu0 %v2266
        %v2378 = vpop.f32.mrf.mxu0
        %v2379 = vadd.f32 0.0, %v2378
        %2380 = vmatmul.f32.gmra.mxu0 %v2269
        %v2381 = vpop.f32.mrf.mxu0
        %v2382 = vadd.f32 0.0, %v2381
        %2383 = vmatmul.f32.gmra.mxu0 %v2272
        %v2384 = vpop.f32.mrf.mxu0
        %v2385 = vadd.f32 0.0, %v2384
        %2386 = vmatmul.f32.gmra.mxu0 %v2275
        %v2387 = vpop.f32.mrf.mxu0
        %v2388 = vadd.f32 0.0, %v2387
        %2389 = vmatmul.f32.gmra.mxu0 %v2278
        %v2390 = vpop.f32.mrf.mxu0
        %v2391 = vadd.f32 0.0, %v2390
        %2392 = vmatmul.f32.gmra.mxu0 %v2281
        %v2393 = vpop.f32.mrf.mxu0
        %v2394 = vadd.f32 0.0, %v2393
        %2395 = vmatmul.f32.gmra.mxu0 %v2284
        %v2396 = vpop.f32.mrf.mxu0
        %v2397 = vadd.f32 0.0, %v2396
        %2398 = vmatmul.f32.gmra.mxu0 %v2287
        %v2399 = vpop.f32.mrf.mxu0
        %v2400 = vadd.f32 0.0, %v2399
        %2401 = vmatmul.f32.gmra.mxu0 %v2290
        %v2402 = vpop.f32.mrf.mxu0
        %v2403 = vadd.f32 0.0, %v2402
        %2404 = vmatmul.f32.gmra.mxu0 %v2293
        %v2405 = vpop.f32.mrf.mxu0
        %v2406 = vadd.f32 0.0, %v2405
        %2407 = vmatmul.f32.gmra.mxu0 %v2296
        %v2408 = vpop.f32.mrf.mxu0
        %v2409 = vadd.f32 0.0, %v2408
        %2410 = vmatmul.f32.gmra.mxu0 %v2299
        %v2411 = vpop.f32.mrf.mxu0
        %v2412 = vadd.f32 0.0, %v2411
        %2413 = vmatmul.f32.gmra.mxu0 %v2302
        %v2414 = vpop.f32.mrf.mxu0
        %v2415 = vadd.f32 0.0, %v2414
        %2416 = vmatmul.f32.gmra.mxu0 %v2305
        %v2417 = vpop.f32.mrf.mxu0
        %v2418 = vadd.f32 0.0, %v2417
        %2419 = vmatmul.f32.gmra.mxu0 %v2308
        %v2420 = vpop.f32.mrf.mxu0
        %v2421 = vadd.f32 0.0, %v2420
        %2422 = vmatmul.f32.gmra.mxu0 %v2311
        %v2423 = vpop.f32.mrf.mxu0
        %v2424 = vadd.f32 0.0, %v2423
        %2425 = vmatmul.f32.gmra.mxu0 %v2314
        %v2426 = vpop.f32.mrf.mxu0
        %v2427 = vadd.f32 0.0, %v2426
        %2428 = vdwg.mxu0
        %v2429 = vadd.f32 %v2154, %v2334
        %v2430 = vadd.f32 %v2155, %v2337
        %v2431 = vadd.f32 %v2156, %v2340
        %v2432 = vadd.f32 %v2157, %v2343
        %v2433 = vadd.f32 %v2158, %v2346
        %v2434 = vadd.f32 %v2159, %v2349
        %v2435 = vadd.f32 %v2160, %v2352
        %v2436 = vadd.f32 %v2161, %v2355
        %v2437 = vadd.f32 %v2162, %v2358
        %v2438 = vadd.f32 %v2163, %v2361
        %v2439 = vadd.f32 %v2164, %v2364
        %v2440 = vadd.f32 %v2165, %v2367
        %v2441 = vadd.f32 %v2166, %v2370
        %v2442 = vadd.f32 %v2167, %v2373
        %v2443 = vadd.f32 %v2168, %v2376
        %v2444 = vadd.f32 %v2169, %v2379
        %v2445 = vadd.f32 %v2170, %v2382
        %v2446 = vadd.f32 %v2171, %v2385
        %v2447 = vadd.f32 %v2172, %v2388
        %v2448 = vadd.f32 %v2173, %v2391
        %v2449 = vadd.f32 %v2174, %v2394
        %v2450 = vadd.f32 %v2175, %v2397
        %v2451 = vadd.f32 %v2176, %v2400
        %v2452 = vadd.f32 %v2177, %v2403
        %v2453 = vadd.f32 %v2178, %v2406
        %v2454 = vadd.f32 %v2179, %v2409
        %v2455 = vadd.f32 %v2180, %v2412
        %v2456 = vadd.f32 %v2181, %v2415
        %v2457 = vadd.f32 %v2182, %v2418
        %v2458 = vadd.f32 %v2183, %v2421
        %v2459 = vadd.f32 %v2184, %v2424
        %v2460 = vadd.f32 %v2185, %v2427
        %v2461 = vld [vmem:[%s1910 + $0x2] sm:$0xff]
        %v2462 = vld [vmem:[%s1910 + $0xa] sm:$0xff]
        %v2463 = vld [vmem:[%s1910 + $0x1a] sm:$0xff]
        %v2464 = vld [vmem:[%s1910 + $0x22] sm:$0xff]
        %v2465 = vld [vmem:[%s1910 + $0x32] sm:$0xff]
        %v2466 = vld [vmem:[%s1910 + $0x3a] sm:$0xff]
        %v2467 = vld [vmem:[%s1910 + $0x4a] sm:$0xff]
        %v2468 = vld [vmem:[%s1910 + $0x52] sm:$0xff]
        %v2469 = vld [vmem:[%s1910 + $0x62] sm:$0xff]
        %v2470 = vld [vmem:[%s1910 + $0x6a] sm:$0xff]
        %v2471 = vld [vmem:[%s1910 + $0x7a] sm:$0xff]
        %v2472 = vld [vmem:[%s1910 + $0x82] sm:$0xff]
        %v2473 = vld [vmem:[%s1910 + $0x92] sm:$0xff]
        %v2474 = vld [vmem:[%s1910 + $0x9a] sm:$0xff]
        %v2475 = vld [vmem:[%s1910 + $0xaa] sm:$0xff]
        %v2476 = vld [vmem:[%s1910 + $0xb2] sm:$0xff]
        %v2477 = vld [vmem:[%s1910 + $0xc2] sm:$0xff]
        %v2478 = vld [vmem:[%s1910 + $0xca] sm:$0xff]
        %v2479 = vld [vmem:[%s1910 + $0xda] sm:$0xff]
        %v2480 = vld [vmem:[%s1910 + $0xe2] sm:$0xff]
        %v2481 = vld [vmem:[%s1910 + $0xf2] sm:$0xff]
        %v2482 = vld [vmem:[%s1910 + $0xfa] sm:$0xff]
        %v2483 = vld [vmem:[%s1910 + $0x10a] sm:$0xff]
        %v2484 = vld [vmem:[%s1910 + $0x112] sm:$0xff]
        %v2485 = vld [vmem:[%s1910 + $0x122] sm:$0xff]
        %v2486 = vld [vmem:[%s1910 + $0x12a] sm:$0xff]
        %v2487 = vld [vmem:[%s1910 + $0x13a] sm:$0xff]
        %v2488 = vld [vmem:[%s1910 + $0x142] sm:$0xff]
        %v2489 = vld [vmem:[%s1910 + $0x152] sm:$0xff]
        %v2490 = vld [vmem:[%s1910 + $0x15a] sm:$0xff]
        %v2491 = vld [vmem:[%s1910 + $0x16a] sm:$0xff]
        %v2492 = vld [vmem:[%s1910 + $0x172] sm:$0xff]
        %s2493 = scalar_lea.vmem [#allocation3], 64
        %v2494 = vld [vmem:[%s2493] sm:$0xff]
        %v2496 = vsel %vm203, %v2461, 0
        %v2499 = vsel %vm203, %v2462, 0
        %v2502 = vsel %vm203, %v2463, 0
        %v2505 = vsel %vm203, %v2464, 0
        %v2508 = vsel %vm203, %v2465, 0
        %v2511 = vsel %vm203, %v2466, 0
        %v2514 = vsel %vm203, %v2467, 0
        %v2517 = vsel %vm203, %v2468, 0
        %v2520 = vsel %vm203, %v2469, 0
        %v2523 = vsel %vm203, %v2470, 0
        %v2526 = vsel %vm203, %v2471, 0
        %v2529 = vsel %vm203, %v2472, 0
        %v2532 = vsel %vm203, %v2473, 0
        %v2535 = vsel %vm203, %v2474, 0
        %v2538 = vsel %vm203, %v2475, 0
        %v2541 = vsel %vm203, %v2476, 0
        %v2544 = vsel %vm203, %v2477, 0
        %v2547 = vsel %vm203, %v2478, 0
        %v2550 = vsel %vm203, %v2479, 0
        %v2553 = vsel %vm203, %v2480, 0
        %v2556 = vsel %vm203, %v2481, 0
        %v2559 = vsel %vm203, %v2482, 0
        %v2562 = vsel %vm203, %v2483, 0
        %v2565 = vsel %vm203, %v2484, 0
        %v2568 = vsel %vm203, %v2485, 0
        %v2571 = vsel %vm203, %v2486, 0
        %v2574 = vsel %vm203, %v2487, 0
        %v2577 = vsel %vm203, %v2488, 0
        %v2580 = vsel %vm203, %v2489, 0
        %v2583 = vsel %vm203, %v2490, 0
        %v2586 = vsel %vm203, %v2491, 0
        %v2589 = vsel %vm203, %v2492, 0
        %2591 = vmatpush.msra.mxu0 0.0
        %2592 = vmatpush.msra.mxu0 0.0
        %2593 = vmatpush.msra.mxu0 0.0
        %2594 = vmatpush.msra.mxu0 0.0
        %2595 = vmatpush.msra.mxu0 0.0
        %2596 = vmatpush.msra.mxu0 0.0
        %2597 = vmatpush.msra.mxu0 0.0
        %2598 = vmatpush.msra.mxu0 0.0
        %2599 = vmatpush.msra.mxu0 0.0
        %2600 = vmatpush.msra.mxu0 0.0
        %2601 = vmatpush.msra.mxu0 0.0
        %2602 = vmatpush.msra.mxu0 0.0
        %2603 = vmatpush.msra.mxu0 0.0
        %2604 = vmatpush.msra.mxu0 0.0
        %2605 = vmatpush.msra.mxu0 0.0
        %2606 = vmatpush.msra.mxu0 %v2494
        %2607 = vmatmul.f32.gmra.mxu0 %v2496
        %v2608 = vpop.f32.mrf.mxu0
        %v2609 = vadd.f32 0.0, %v2608
        %2610 = vmatmul.f32.gmra.mxu0 %v2499
        %v2611 = vpop.f32.mrf.mxu0
        %v2612 = vadd.f32 0.0, %v2611
        %2613 = vmatmul.f32.gmra.mxu0 %v2502
        %v2614 = vpop.f32.mrf.mxu0
        %v2615 = vadd.f32 0.0, %v2614
        %2616 = vmatmul.f32.gmra.mxu0 %v2505
        %v2617 = vpop.f32.mrf.mxu0
        %v2618 = vadd.f32 0.0, %v2617
        %2619 = vmatmul.f32.gmra.mxu0 %v2508
        %v2620 = vpop.f32.mrf.mxu0
        %v2621 = vadd.f32 0.0, %v2620
        %2622 = vmatmul.f32.gmra.mxu0 %v2511
        %v2623 = vpop.f32.mrf.mxu0
        %v2624 = vadd.f32 0.0, %v2623
        %2625 = vmatmul.f32.gmra.mxu0 %v2514
        %v2626 = vpop.f32.mrf.mxu0
        %v2627 = vadd.f32 0.0, %v2626
        %2628 = vmatmul.f32.gmra.mxu0 %v2517
        %v2629 = vpop.f32.mrf.mxu0
        %v2630 = vadd.f32 0.0, %v2629
        %2631 = vmatmul.f32.gmra.mxu0 %v2520
        %v2632 = vpop.f32.mrf.mxu0
        %v2633 = vadd.f32 0.0, %v2632
        %2634 = vmatmul.f32.gmra.mxu0 %v2523
        %v2635 = vpop.f32.mrf.mxu0
        %v2636 = vadd.f32 0.0, %v2635
        %2637 = vmatmul.f32.gmra.mxu0 %v2526
        %v2638 = vpop.f32.mrf.mxu0
        %v2639 = vadd.f32 0.0, %v2638
        %2640 = vmatmul.f32.gmra.mxu0 %v2529
        %v2641 = vpop.f32.mrf.mxu0
        %v2642 = vadd.f32 0.0, %v2641
        %2643 = vmatmul.f32.gmra.mxu0 %v2532
        %v2644 = vpop.f32.mrf.mxu0
        %v2645 = vadd.f32 0.0, %v2644
        %2646 = vmatmul.f32.gmra.mxu0 %v2535
        %v2647 = vpop.f32.mrf.mxu0
        %v2648 = vadd.f32 0.0, %v2647
        %2649 = vmatmul.f32.gmra.mxu0 %v2538
        %v2650 = vpop.f32.mrf.mxu0
        %v2651 = vadd.f32 0.0, %v2650
        %2652 = vmatmul.f32.gmra.mxu0 %v2541
        %v2653 = vpop.f32.mrf.mxu0
        %v2654 = vadd.f32 0.0, %v2653
        %2655 = vmatmul.f32.gmra.mxu0 %v2544
        %v2656 = vpop.f32.mrf.mxu0
        %v2657 = vadd.f32 0.0, %v2656
        %2658 = vmatmul.f32.gmra.mxu0 %v2547
        %v2659 = vpop.f32.mrf.mxu0
        %v2660 = vadd.f32 0.0, %v2659
        %2661 = vmatmul.f32.gmra.mxu0 %v2550
        %v2662 = vpop.f32.mrf.mxu0
        %v2663 = vadd.f32 0.0, %v2662
        %2664 = vmatmul.f32.gmra.mxu0 %v2553
        %v2665 = vpop.f32.mrf.mxu0
        %v2666 = vadd.f32 0.0, %v2665
        %2667 = vmatmul.f32.gmra.mxu0 %v2556
        %v2668 = vpop.f32.mrf.mxu0
        %v2669 = vadd.f32 0.0, %v2668
        %2670 = vmatmul.f32.gmra.mxu0 %v2559
        %v2671 = vpop.f32.mrf.mxu0
        %v2672 = vadd.f32 0.0, %v2671
        %2673 = vmatmul.f32.gmra.mxu0 %v2562
        %v2674 = vpop.f32.mrf.mxu0
        %v2675 = vadd.f32 0.0, %v2674
        %2676 = vmatmul.f32.gmra.mxu0 %v2565
        %v2677 = vpop.f32.mrf.mxu0
        %v2678 = vadd.f32 0.0, %v2677
        %2679 = vmatmul.f32.gmra.mxu0 %v2568
        %v2680 = vpop.f32.mrf.mxu0
        %v2681 = vadd.f32 0.0, %v2680
        %2682 = vmatmul.f32.gmra.mxu0 %v2571
        %v2683 = vpop.f32.mrf.mxu0
        %v2684 = vadd.f32 0.0, %v2683
        %2685 = vmatmul.f32.gmra.mxu0 %v2574
        %v2686 = vpop.f32.mrf.mxu0
        %v2687 = vadd.f32 0.0, %v2686
        %2688 = vmatmul.f32.gmra.mxu0 %v2577
        %v2689 = vpop.f32.mrf.mxu0
        %v2690 = vadd.f32 0.0, %v2689
        %2691 = vmatmul.f32.gmra.mxu0 %v2580
        %v2692 = vpop.f32.mrf.mxu0
        %v2693 = vadd.f32 0.0, %v2692
        %2694 = vmatmul.f32.gmra.mxu0 %v2583
        %v2695 = vpop.f32.mrf.mxu0
        %v2696 = vadd.f32 0.0, %v2695
        %2697 = vmatmul.f32.gmra.mxu0 %v2586
        %v2698 = vpop.f32.mrf.mxu0
        %v2699 = vadd.f32 0.0, %v2698
        %2700 = vmatmul.f32.gmra.mxu0 %v2589
        %v2701 = vpop.f32.mrf.mxu0
        %v2702 = vadd.f32 0.0, %v2701
        %2703 = vdwg.mxu0
        %v2704 = vadd.f32 %v2429, %v2609
        %v2705 = vadd.f32 %v2430, %v2612
        %v2706 = vadd.f32 %v2431, %v2615
        %v2707 = vadd.f32 %v2432, %v2618
        %v2708 = vadd.f32 %v2433, %v2621
        %v2709 = vadd.f32 %v2434, %v2624
        %v2710 = vadd.f32 %v2435, %v2627
        %v2711 = vadd.f32 %v2436, %v2630
        %v2712 = vadd.f32 %v2437, %v2633
        %v2713 = vadd.f32 %v2438, %v2636
        %v2714 = vadd.f32 %v2439, %v2639
        %v2715 = vadd.f32 %v2440, %v2642
        %v2716 = vadd.f32 %v2441, %v2645
        %v2717 = vadd.f32 %v2442, %v2648
        %v2718 = vadd.f32 %v2443, %v2651
        %v2719 = vadd.f32 %v2444, %v2654
        %v2720 = vadd.f32 %v2445, %v2657
        %v2721 = vadd.f32 %v2446, %v2660
        %v2722 = vadd.f32 %v2447, %v2663
        %v2723 = vadd.f32 %v2448, %v2666
        %v2724 = vadd.f32 %v2449, %v2669
        %v2725 = vadd.f32 %v2450, %v2672
        %v2726 = vadd.f32 %v2451, %v2675
        %v2727 = vadd.f32 %v2452, %v2678
        %v2728 = vadd.f32 %v2453, %v2681
        %v2729 = vadd.f32 %v2454, %v2684
        %v2730 = vadd.f32 %v2455, %v2687
        %v2731 = vadd.f32 %v2456, %v2690
        %v2732 = vadd.f32 %v2457, %v2693
        %v2733 = vadd.f32 %v2458, %v2696
        %v2734 = vadd.f32 %v2459, %v2699
        %v2735 = vadd.f32 %v2460, %v2702
        %v2737 = vperm.slane %v324, 0
        %v2739 = vadd.f32 %v2704, %v2737
        %v2740 = vadd.f32 %v2705, %v2737
        %v2741 = vadd.f32 %v2706, %v2737
        %v2742 = vadd.f32 %v2707, %v2737
        %v2743 = vadd.f32 %v2708, %v2737
        %v2744 = vadd.f32 %v2709, %v2737
        %v2745 = vadd.f32 %v2710, %v2737
        %v2746 = vadd.f32 %v2711, %v2737
        %v2747 = vadd.f32 %v2712, %v2737
        %v2748 = vadd.f32 %v2713, %v2737
        %v2749 = vadd.f32 %v2714, %v2737
        %v2750 = vadd.f32 %v2715, %v2737
        %v2751 = vadd.f32 %v2716, %v2737
        %v2752 = vadd.f32 %v2717, %v2737
        %v2753 = vadd.f32 %v2718, %v2737
        %v2754 = vadd.f32 %v2719, %v2737
        %v2755 = vadd.f32 %v2720, %v2737
        %v2756 = vadd.f32 %v2721, %v2737
        %v2757 = vadd.f32 %v2722, %v2737
        %v2758 = vadd.f32 %v2723, %v2737
        %v2759 = vadd.f32 %v2724, %v2737
        %v2760 = vadd.f32 %v2725, %v2737
        %v2761 = vadd.f32 %v2726, %v2737
        %v2762 = vadd.f32 %v2727, %v2737
        %v2763 = vadd.f32 %v2728, %v2737
        %v2764 = vadd.f32 %v2729, %v2737
        %v2765 = vadd.f32 %v2730, %v2737
        %v2766 = vadd.f32 %v2731, %v2737
        %v2767 = vadd.f32 %v2732, %v2737
        %v2768 = vadd.f32 %v2733, %v2737
        %v2769 = vadd.f32 %v2734, %v2737
        %v2770 = vadd.f32 %v2735, %v2737
        %v2771 = vtanh.pop %v2739
        %v2772 = vtanh.pop %v2740
        %v2773 = vtanh.pop %v2741
        %v2774 = vtanh.pop %v2742
        %v2775 = vtanh.pop %v2743
        %v2776 = vtanh.pop %v2744
        %v2777 = vtanh.pop %v2745
        %v2778 = vtanh.pop %v2746
        %v2779 = vtanh.pop %v2747
        %v2780 = vtanh.pop %v2748
        %v2781 = vtanh.pop %v2749
        %v2782 = vtanh.pop %v2750
        %v2783 = vtanh.pop %v2751
        %v2784 = vtanh.pop %v2752
        %v2785 = vtanh.pop %v2753
        %v2786 = vtanh.pop %v2754
        %v2787 = vtanh.pop %v2755
        %v2788 = vtanh.pop %v2756
        %v2789 = vtanh.pop %v2757
        %v2790 = vtanh.pop %v2758
        %v2791 = vtanh.pop %v2759
        %v2792 = vtanh.pop %v2760
        %v2793 = vtanh.pop %v2761
        %v2794 = vtanh.pop %v2762
        %v2795 = vtanh.pop %v2763
        %v2796 = vtanh.pop %v2764
        %v2797 = vtanh.pop %v2765
        %v2798 = vtanh.pop %v2766
        %v2799 = vtanh.pop %v2767
        %v2800 = vtanh.pop %v2768
        %v2801 = vtanh.pop %v2769
        %v2802 = vtanh.pop %v2770
        %2803 = vst [vmem:[%s202] sm:$0xff] %v2771
        %2804 = vst [vmem:[%s202 + $0x8] sm:$0xff] %v2772
        %2805 = vst [vmem:[%s202 + $0x10] sm:$0xff] %v2773
        %2806 = vst [vmem:[%s202 + $0x18] sm:$0xff] %v2774
        %2807 = vst [vmem:[%s202 + $0x20] sm:$0xff] %v2775
        %2808 = vst [vmem:[%s202 + $0x28] sm:$0xff] %v2776
        %2809 = vst [vmem:[%s202 + $0x30] sm:$0xff] %v2777
        %2810 = vst [vmem:[%s202 + $0x38] sm:$0xff] %v2778
        %2811 = vst [vmem:[%s202 + $0x40] sm:$0xff] %v2779
        %2812 = vst [vmem:[%s202 + $0x48] sm:$0xff] %v2780
        %2813 = vst [vmem:[%s202 + $0x50] sm:$0xff] %v2781
        %2814 = vst [vmem:[%s202 + $0x58] sm:$0xff] %v2782
        %2815 = vst [vmem:[%s202 + $0x60] sm:$0xff] %v2783
        %2816 = vst [vmem:[%s202 + $0x68] sm:$0xff] %v2784
        %2817 = vst [vmem:[%s202 + $0x70] sm:$0xff] %v2785
        %2818 = vst [vmem:[%s202 + $0x78] sm:$0xff] %v2786
        %2819 = vst [vmem:[%s202 + $0x80] sm:$0xff] %v2787
        %2820 = vst [vmem:[%s202 + $0x88] sm:$0xff] %v2788
        %2821 = vst [vmem:[%s202 + $0x90] sm:$0xff] %v2789
        %2822 = vst [vmem:[%s202 + $0x98] sm:$0xff] %v2790
        %2823 = vst [vmem:[%s202 + $0xa0] sm:$0xff] %v2791
        %2824 = vst [vmem:[%s202 + $0xa8] sm:$0xff] %v2792
        %2825 = vst [vmem:[%s202 + $0xb0] sm:$0xff] %v2793
        %2826 = vst [vmem:[%s202 + $0xb8] sm:$0xff] %v2794
        %2827 = vst [vmem:[%s202 + $0xc0] sm:$0xff] %v2795
        %2828 = vst [vmem:[%s202 + $0xc8] sm:$0xff] %v2796
        %2829 = vst [vmem:[%s202 + $0xd0] sm:$0xff] %v2797
        %2830 = vst [vmem:[%s202 + $0xd8] sm:$0xff] %v2798
        %2831 = vst [vmem:[%s202 + $0xe0] sm:$0xff] %v2799
        %2832 = vst [vmem:[%s202 + $0xe8] sm:$0xff] %v2800
        %2833 = vst [vmem:[%s202 + $0xf0] sm:$0xff] %v2801
        %2834 = vst [vmem:[%s202 + $0xf8] sm:$0xff] %v2802
        %p2835 = scmp.lt.s32.totalorder %s16, 1
        %s2836 = scalar_select %p2835, %s16, 1
        %s2837 = smul.addr %s2836, 32
        %s2838 = smul.addr %s2837, 8
        %s2839 = scalar_lea.vmem %s3, %s2838
        // Predicated region
        $region41: #{deep_cnn_forward.4} parent=31 // pred_check
          %p2840 = pneg %p102
        $region42: #{deep_cnn_forward.4} parent=31 // pred_check_branch
          %2842 = sbr.rel (%p2840) target = $region44
        $region43: #{deep_cnn_forward.4} parent=31 // pred_region
          _
        $region44: #{deep_cnn_forward.4} parent=31 // pred_fallthru
          _
      $region32: #{deep_cnn_forward.4} parent=5 // pred_fallthru
        _
      %p2843 = scmp.le.s32.totalorder 2, %s11
      // Predicated region
      $region45: #{deep_cnn_forward.4} parent=5 // pred_check
        %p2844 = pneg %p2843
      $region46: #{deep_cnn_forward.4} parent=5 // pred_check_branch
        %2846 = sbr.rel (%p2844) target = $region48
      $region47: #{deep_cnn_forward.4} parent=5 // pred_region
        %s2847 = ssub.s32 %s11, 2
        // Predicated region
        $region49: #{deep_cnn_forward.4} parent=47 // pred_check
          %p2848 = pneg %p108
        $region50: #{deep_cnn_forward.4} parent=47 // pred_check_branch
          %2850 = sbr.rel (%p2848) target = $region52
        $region51: #{deep_cnn_forward.4} parent=47 // pred_region
          %p2851 = scmp.lt.s32.totalorder %s17, 1
          %s2852 = scalar_select %p2851, %s17, 1
          %s2853 = smul.addr %s2852, 32
          %s2854 = smul.addr %s2853, 8
          %s2855 = scalar_lea.vmem %s3, %s2854
        $region52: #{deep_cnn_forward.4} parent=47 // pred_fallthru
          _
      $region48: #{deep_cnn_forward.4} parent=5 // pred_fallthru
        _
    $region6: #{deep_cnn_forward.4} parent=1 // loop_footer
      %s15 = sadd.s32 1, %s11
    $region7: #{deep_cnn_forward.4} parent=1 // loop_footer_branch
      %10 = sbr.rel target = $region3
    $region8: #{deep_cnn_forward.4} parent=1 // loop_exit
      _
    %2856 = vsyncpa [#allocation4], 1
    %s2857 = scalar_lea.sflag [#allocation4], 1
    %2858 = vsyncpa %s2857, 1
    %2859 = vsyncpa [#allocation6], 1

// kernel: deep_cnn_forward.7
$region0: #{deep_cnn_forward.7}
  #allocation0 [shape = 'u32[]', space=smem, size = 0x4, offset = 0x4, fixed_abs, tag = 'smem constant byte address 0x4 - core index']
  #allocation1 [shape = 'u32[72,128]{1,0:T(1,128)}', space=vmem, size = 0x9000, scoped, tag = 'internal scratch']
  %s0 = inlined_call_operand.vmem [shape: f32[2,4,4,128], index: 0, kind: input, shape index: {}]
  %s1 = inlined_call_operand.vmem [shape: f32[128,10], index: 1, kind: input, shape index: {}]
  %s2 = inlined_call_operand.hbm [shape: f32[1,10], index: 2, kind: input, shape index: {}]
  %s3 = inlined_call_operand.hbm [shape: f32[2,10], index: 3, kind: output, shape index: {}]
  %s4 = sld [smem:[#allocation0]]
  $region26: #{deep_cnn_forward.7} parent=0
    _
  %s6 = ssub.s32 1, %s4
  %s7 = scalar_select 0, %s6, %s4
  $region1: #{deep_cnn_forward.7} parent=0
    #allocation2 [shape = 'u8[512]{0}', space=vmem, size = 0x400, scoped, tag = 'input window, operand 2, single buffered']
    #allocation3 [shape = 's32[1]{0}', space=sflag, size = 0x4, scoped, tag = 'scoped memory for deep_cnn_forward.7']
    #allocation4 [shape = 's32[1]{0}', space=sflag, size = 0x4, scoped, tag = 'scoped memory for deep_cnn_forward.7']
    #allocation5 [shape = 'u8[1024]{0}', space=vmem, size = 0x400, scoped, tag = 'output window, operand 0, single buffered']
    %8 = vsyncpa [#allocation3], 0
    %9 = vsyncpa [#allocation4], 0
    // Predicated region
    $region2: #{deep_cnn_forward.7} parent=1 // pred_check
      _
    $region3: #{deep_cnn_forward.7} parent=1 // pred_check_branch
      %11 = sbr.rel (0) target = $region5
    $region4: #{deep_cnn_forward.7} parent=1 // pred_region
      _
    $region5: #{deep_cnn_forward.7} parent=1 // pred_fallthru
      _
    // Predicated region
    $region6: #{deep_cnn_forward.7} parent=1 // pred_check
      _
    $region7: #{deep_cnn_forward.7} parent=1 // pred_check_branch
      %13 = sbr.rel (0) target = $region9
    $region8: #{deep_cnn_forward.7} parent=1 // pred_region
      _
    $region9: #{deep_cnn_forward.7} parent=1 // pred_fallthru
      _
    // Predicated region
    $region10: #{deep_cnn_forward.7} parent=1 // pred_check
      _
    $region11: #{deep_cnn_forward.7} parent=1 // pred_check_branch
      %15 = sbr.rel (0) target = $region13
    $region12: #{deep_cnn_forward.7} parent=1 // pred_region
      %17 = vsyncadd [#allocation3], 0
      %s19 = sshll.u32 %s2, 4
      %s20 = int_to_ptr.hbm [resolvable:$true] %s19
      %s21 = sshll.u32 [#allocation2], 4
      %s22 = int_to_ptr.vmem [resolvable:$true] %s21
      %24 = dma.hbm_to_vmem [thread:$0]  %s20, 16, %s22, [#allocation3]
    $region13: #{deep_cnn_forward.7} parent=1 // pred_fallthru
      _
    // Predicated region
    $region14: #{deep_cnn_forward.7} parent=1 // pred_check
      _
    $region15: #{deep_cnn_forward.7} parent=1 // pred_check_branch
      %26 = sbr.rel (0) target = $region17
    $region16: #{deep_cnn_forward.7} parent=1 // pred_region
      %28 = dma.done [#allocation3], 16
    $region17: #{deep_cnn_forward.7} parent=1 // pred_fallthru
      _
    %v29 = vld [vmem:[%s0] sm:$0xf]
    %v30 = vld [vmem:[%s0 + $0x4] sm:$0xf]
    %v31 = vld [vmem:[%s0 + $0x8] sm:$0xf]
    %v32 = vld [vmem:[%s0 + $0xc] sm:$0xf]
    %v33 = vld [vmem:[%s0 + $0x10] sm:$0xf]
    %v34 = vld [vmem:[%s0 + $0x14] sm:$0xf]
    %v35 = vld [vmem:[%s0 + $0x18] sm:$0xf]
    %v36 = vld [vmem:[%s0 + $0x1c] sm:$0xf]
    %v37 = vadd.f32 %v29, 0.0
    %v38 = vadd.f32 %v33, 0.0
    %v41 = vrot.slane %v29, 1
    %v42 = vrot.slane %v33, 1
    %v45 = vadd.f32 %v37, %v41
    %v46 = vadd.f32 %v38, %v42
    %v47 = vrot.slane %v29, 2
    %v48 = vrot.slane %v33, 2
    %v51 = vadd.f32 %v45, %v47
    %v52 = vadd.f32 %v46, %v48
    %v53 = vrot.slane %v29, 3
    %v54 = vrot.slane %v33, 3
    %v57 = vadd.f32 %v51, %v53
    %v58 = vadd.f32 %v52, %v54
    %v59 = vadd.f32 %v57, %v30
    %v60 = vadd.f32 %v58, %v34
    %v63 = vrot.slane %v30, 1
    %v64 = vrot.slane %v34, 1
    %v67 = vadd.f32 %v59, %v63
    %v68 = vadd.f32 %v60, %v64
    %v69 = vrot.slane %v30, 2
    %v70 = vrot.slane %v34, 2
    %v73 = vadd.f32 %v67, %v69
    %v74 = vadd.f32 %v68, %v70
    %v75 = vrot.slane %v30, 3
    %v76 = vrot.slane %v34, 3
    %v79 = vadd.f32 %v73, %v75
    %v80 = vadd.f32 %v74, %v76
    %v81 = vadd.f32 %v79, %v31
    %v82 = vadd.f32 %v80, %v35
    %v85 = vrot.slane %v31, 1
    %v86 = vrot.slane %v35, 1
    %v89 = vadd.f32 %v81, %v85
    %v90 = vadd.f32 %v82, %v86
    %v91 = vrot.slane %v31, 2
    %v92 = vrot.slane %v35, 2
    %v95 = vadd.f32 %v89, %v91
    %v96 = vadd.f32 %v90, %v92
    %v97 = vrot.slane %v31, 3
    %v98 = vrot.slane %v35, 3
    %v101 = vadd.f32 %v95, %v97
    %v102 = vadd.f32 %v96, %v98
    %v103 = vadd.f32 %v101, %v32
    %v104 = vadd.f32 %v102, %v36
    %v107 = vrot.slane %v32, 1
    %v108 = vrot.slane %v36, 1
    %v111 = vadd.f32 %v103, %v107
    %v112 = vadd.f32 %v104, %v108
    %v113 = vrot.slane %v32, 2
    %v114 = vrot.slane %v36, 2
    %v117 = vadd.f32 %v111, %v113
    %v118 = vadd.f32 %v112, %v114
    %v119 = vrot.slane %v32, 3
    %v120 = vrot.slane %v36, 3
    %v123 = vadd.f32 %v117, %v119
    %v124 = vadd.f32 %v118, %v120
    %v125 = vmul.f32 %v123, 0.0625
    %v126 = vmul.f32 %v124, 0.0625
    %v127 = vld [vmem:[%s1] sm:$0xff]
    %v128 = vld [vmem:[%s1 + $0x8] sm:$0xff]
    %v129 = vld [vmem:[%s1 + $0x10] sm:$0xff]
    %v130 = vld [vmem:[%s1 + $0x18] sm:$0xff]
    %v131 = vld [vmem:[%s1 + $0x20] sm:$0xff]
    %v132 = vld [vmem:[%s1 + $0x28] sm:$0xff]
    %v133 = vld [vmem:[%s1 + $0x30] sm:$0xff]
    %v134 = vld [vmem:[%s1 + $0x38] sm:$0xff]
    %v135 = vld [vmem:[%s1 + $0x40] sm:$0xff]
    %v136 = vld [vmem:[%s1 + $0x48] sm:$0xff]
    %v137 = vld [vmem:[%s1 + $0x50] sm:$0xff]
    %v138 = vld [vmem:[%s1 + $0x58] sm:$0xff]
    %v139 = vld [vmem:[%s1 + $0x60] sm:$0xff]
    %v140 = vld [vmem:[%s1 + $0x68] sm:$0xff]
    %v141 = vld [vmem:[%s1 + $0x70] sm:$0xff]
    %v142 = vld [vmem:[%s1 + $0x78] sm:$0xff]
    %v143 = vld [vmem:[#allocation2] sm:$0x1]
    %v145 = vperm.slane %v143, 0
    %v149 = vrot.slane %v126, 7
    %vm150 = vcmask 1041409
    %v151 = vsel %vm150, %v149, %v125
    %153 = vmatpush.msra.mxu0 %v142
    %154 = vmatpush.msra.mxu0 %v141
    %155 = vmatpush.msra.mxu0 %v140
    %156 = vmatpush.msra.mxu0 %v139
    %157 = vmatpush.msra.mxu0 %v138
    %158 = vmatpush.msra.mxu0 %v137
    %159 = vmatpush.msra.mxu0 %v136
    %160 = vmatpush.msra.mxu0 %v135
    %161 = vmatpush.msra.mxu0 %v134
    %162 = vmatpush.msra.mxu0 %v133
    %163 = vmatpush.msra.mxu0 %v132
    %164 = vmatpush.msra.mxu0 %v131
    %165 = vmatpush.msra.mxu0 %v130
    %166 = vmatpush.msra.mxu0 %v129
    %167 = vmatpush.msra.mxu0 %v128
    %168 = vmatpush.msra.mxu0 %v127
    %169 = vmatmul.f32.gmra.mxu0 %v151
    %v170 = vpop.f32.mrf.mxu0
    %v171 = vadd.f32 %v145, %v170
    %172 = vdwg.mxu0
    %vm173 = vcmask 74752
    %174 = vst.msk [vmem:[#allocation5] sm:$0x3] %vm173, %v171
    // Predicated region
    $region18: #{deep_cnn_forward.7} parent=1 // pred_check
      _
    $region19: #{deep_cnn_forward.7} parent=1 // pred_check_branch
      %176 = sbr.rel (0) target = $region21
    $region20: #{deep_cnn_forward.7} parent=1 // pred_region
      %178 = vsyncadd [#allocation4], 0
      %s180 = sshll.u32 [#allocation5], 4
      %s181 = int_to_ptr.vmem [resolvable:$true] %s180
      %s182 = sshll.u32 %s3, 4
      %s183 = int_to_ptr.hbm [resolvable:$true] %s182
      %185 = dma.vmem_to_hbm [thread:$0]  %s181, 32, %s183, [#allocation4]
    $region21: #{deep_cnn_forward.7} parent=1 // pred_fallthru
      _
    // Predicated region
    $region22: #{deep_cnn_forward.7} parent=1 // pred_check
      _
    $region23: #{deep_cnn_forward.7} parent=1 // pred_check_branch
      %187 = sbr.rel (0) target = $region25
    $region24: #{deep_cnn_forward.7} parent=1 // pred_region
      %189 = dma.done [#allocation4], 32
    $region25: #{deep_cnn_forward.7} parent=1 // pred_fallthru
      _
    %190 = vsyncpa [#allocation3], 1
    %191 = vsyncpa [#allocation4], 1

// kernel: closed_call.4
$region0: #{closed_call.4}
  #allocation0 [shape = 'u32[]', space=smem, size = 0x4, offset = 0x4, fixed_abs, tag = 'smem constant byte address 0x4 - core index']
  #allocation1 [shape = 'u32[72,128]{1,0:T(1,128)}', space=vmem, size = 0x9000, scoped, tag = 'internal scratch']
  #allocation2 [shape = 'f32[1,6,6,128]{3,2,1,0:T(8,128)}', space=vmem, size = 0x6000, scoped, tag = 'scratch operand']
  %s0 = inlined_call_operand.vmem [shape: f32[2,4,4,128], index: 0, kind: input, shape index: {}]
  %s1 = inlined_call_operand.vmem [shape: f32[3,3,128,128], index: 1, kind: input, shape index: {}]
  %s2 = inlined_call_operand.vmem [shape: f32[1,128], index: 2, kind: input, shape index: {}]
  %s3 = inlined_call_operand.vmem [shape: f32[2,4,4,128], index: 3, kind: output, shape index: {}]
  %s4 = sld [smem:[#allocation0]]
  $region45: #{closed_call.4} parent=0
    _
  %s6 = ssub.s32 1, %s4
  %s7 = scalar_select 0, %s6, %s4
  loop: start=0, step=1, limit=4
  $region2: #{closed_call.4} parent=0 // loop_pre_header
    _
  $region3: #{closed_call.4} parent=0 // loop_header
    %s9 = sphi 0, %s13
    %p10 = scmp.ge.s32.totalorder %s9, 4
    %s19 = sphi 0, %s21
    %s22 = sphi 0, %s19
    %s23 = sphi 0, %s22
    %s39 = sphi 0, %s23
    %s43 = sphi 0, %s43
    %s45 = sphi 0, %s43
    %s46 = sphi 0, %s45
    %s60 = sphi 0, %s46
    %s64 = sphi 0, %s64
    %s66 = sphi 0, %s64
    %s67 = sphi 0, %s66
    %s81 = sphi 0, %s67
    %s87 = sphi 0, %s89
    %s90 = sphi 0, %s87
    %s91 = sphi 0, %s90
    %s107 = sphi 0, %s91
  $region4: #{closed_call.4} parent=0 // loop_header_branch
    %12 = sbr.rel (%p10) target = $region8
  $region5: #{closed_call.4} parent=0 // loop_body
    %s14 = ssub.s32 %s9, 1
    %s15 = ssub.s32 %s9, 2
    %s16 = sadd.s32 %s9, 1
    %s17 = ssub.s32 %s9, %s16
    %p18 = scmp.eq.s32.totalorder %s17, 0
    %s20 = sadd.s32 %s19, 1
    %s21 = scalar_select %p18, %s19, %s20
    %p24 = pneg %p18
    %p25 = scmp.eq.s32.totalorder %s9, 1
    %p26 = por %p24, %p25
    %p27 = scmp.ne.s32.totalorder %s19, %s22
    %p28 = scmp.eq.s32.totalorder %s9, 0
    %p29 = por %p27, %p28
    %p30 = scmp.ne.s32.totalorder %s19, %s22
    %p31 = scmp.eq.s32.totalorder %s14, 1
    %p32 = por %p30, %p31
    %p33 = scmp.ne.s32.totalorder %s22, %s23
    %p34 = scmp.eq.s32.totalorder %s14, 0
    %p35 = por %p33, %p34
    %p36 = scmp.ne.s32.totalorder %s22, %s23
    %p37 = scmp.eq.s32.totalorder %s15, 1
    %p38 = por %p36, %p37
    %p40 = scmp.ne.s32.totalorder %s23, %s39
    %p41 = scmp.eq.s32.totalorder %s15, 0
    %p42 = por %p40, %p41
    %s44 = sadd.s32 %s43, 1
    %p47 = scmp.eq.s32.totalorder %s9, 1
    %p48 = scmp.ne.s32.totalorder %s43, %s45
    %p49 = scmp.eq.s32.totalorder %s9, 0
    %p50 = por %p48, %p49
    %p51 = scmp.ne.s32.totalorder %s43, %s45
    %p52 = scmp.eq.s32.totalorder %s14, 1
    %p53 = por %p51, %p52
    %p54 = scmp.ne.s32.totalorder %s45, %s46
    %p55 = scmp.eq.s32.totalorder %s14, 0
    %p56 = por %p54, %p55
    %p57 = scmp.ne.s32.totalorder %s45, %s46
    %p58 = scmp.eq.s32.totalorder %s15, 1
    %p59 = por %p57, %p58
    %p61 = scmp.ne.s32.totalorder %s46, %s60
    %p62 = scmp.eq.s32.totalorder %s15, 0
    %p63 = por %p61, %p62
    %s65 = sadd.s32 %s64, 1
    %p68 = scmp.eq.s32.totalorder %s9, 1
    %p69 = scmp.ne.s32.totalorder %s64, %s66
    %p70 = scmp.eq.s32.totalorder %s9, 0
    %p71 = por %p69, %p70
    %p72 = scmp.ne.s32.totalorder %s64, %s66
    %p73 = scmp.eq.s32.totalorder %s14, 1
    %p74 = por %p72, %p73
    %p75 = scmp.ne.s32.totalorder %s66, %s67
    %p76 = scmp.eq.s32.totalorder %s14, 0
    %p77 = por %p75, %p76
    %p78 = scmp.ne.s32.totalorder %s66, %s67
    %p79 = scmp.eq.s32.totalorder %s15, 1
    %p80 = por %p78, %p79
    %p82 = scmp.ne.s32.totalorder %s67, %s81
    %p83 = scmp.eq.s32.totalorder %s15, 0
    %p84 = por %p82, %p83
    %s85 = ssub.s32 %s9, %s16
    %p86 = scmp.eq.s32.totalorder %s85, 0
    %s88 = sadd.s32 %s87, 1
    %s89 = scalar_select %p86, %s87, %s88
    %p92 = pneg %p86
    %p93 = scmp.eq.s32.totalorder %s9, 1
    %p94 = por %p92, %p93
    %p95 = scmp.ne.s32.totalorder %s87, %s90
    %p96 = scmp.eq.s32.totalorder %s9, 0
    %p97 = por %p95, %p96
    %p98 = scmp.ne.s32.totalorder %s87, %s90
    %p99 = scmp.eq.s32.totalorder %s14, 1
    %p100 = por %p98, %p99
    %p101 = scmp.ne.s32.totalorder %s90, %s91
    %p102 = scmp.eq.s32.totalorder %s14, 0
    %p103 = por %p101, %p102
    %p104 = scmp.ne.s32.totalorder %s90, %s91
    %p105 = scmp.eq.s32.totalorder %s15, 1
    %p106 = por %p104, %p105
    %p108 = scmp.ne.s32.totalorder %s91, %s107
    %p109 = scmp.eq.s32.totalorder %s15, 0
    %p110 = por %p108, %p109
    %p111 = scmp.le.s32.totalorder 1, %s9
    %p112 = scmp.lt.s32.totalorder %s9, 3
    %p113 = pnand %p111, %p112
    %p114 = pneg %p113
    // Predicated region
    $region9: #{closed_call.4} parent=5 // pred_check
      _
    $region10: #{closed_call.4} parent=5 // pred_check_branch
      %116 = sbr.rel (%p113) target = $region12
    $region11: #{closed_call.4} parent=5 // pred_region
      %s117 = ssub.s32 %s9, 1
      // Predicated region
      $region13: #{closed_call.4} parent=11 // pred_check
        %p118 = pneg %p56
      $region14: #{closed_call.4} parent=11 // pred_check_branch
        %120 = sbr.rel (%p118) target = $region16
      $region15: #{closed_call.4} parent=11 // pred_region
        _
      $region16: #{closed_call.4} parent=11 // pred_fallthru
        _
      // Predicated region
      $region17: #{closed_call.4} parent=11 // pred_check
        %p121 = pneg %p77
      $region18: #{closed_call.4} parent=11 // pred_check_branch
        %123 = sbr.rel (%p121) target = $region20
      $region19: #{closed_call.4} parent=11 // pred_region
        _
      $region20: #{closed_call.4} parent=11 // pred_fallthru
        _
    $region12: #{closed_call.4} parent=5 // pred_fallthru
      _
    %p124 = scmp.lt.s32.totalorder %s9, 2
    // Predicated region
    $region21: #{closed_call.4} parent=5 // pred_check
      %p125 = pneg %p124
    $region22: #{closed_call.4} parent=5 // pred_check_branch
      %127 = sbr.rel (%p125) target = $region24
    $region23: #{closed_call.4} parent=5 // pred_region
      // Predicated region
      $region25: #{closed_call.4} parent=23 // pred_check
        %p128 = pneg %p29
      $region26: #{closed_call.4} parent=23 // pred_check_branch
        %130 = sbr.rel (%p128) target = $region28
      $region27: #{closed_call.4} parent=23 // pred_region
        %p131 = scmp.lt.s32.totalorder %s9, 1
        %s132 = scalar_select %p131, %s9, 1
        %s133 = smul.addr %s132, 4
        %s134 = smul.addr %s133, 4
        %s135 = scalar_lea.vmem %s0, %s134
      $region28: #{closed_call.4} parent=23 // pred_fallthru
        _
    $region24: #{closed_call.4} parent=5 // pred_fallthru
      _
    %p136 = scmp.le.s32.totalorder 1, %s9
    %p137 = scmp.lt.s32.totalorder %s9, 3
    %p138 = pnand %p136, %p137
    %p139 = pneg %p138
    // Predicated region
    $region29: #{closed_call.4} parent=5 // pred_check
      _
    $region30: #{closed_call.4} parent=5 // pred_check_branch
      %141 = sbr.rel (%p138) target = $region32
    $region31: #{closed_call.4} parent=5 // pred_region
      %s142 = ssub.s32 %s9, 1
      %p143 = scmp.lt.s32.totalorder %s14, 1
      %s144 = scalar_select %p143, %s14, 1
      %s145 = smul.addr %s144, 4
      %s146 = smul.addr %s145, 4
      %s147 = scalar_lea.vmem %s0, %s146
      %p148 = pneg %p35
      %p149 = pneg %p32
      %p150 = pneg %p56
      %p151 = pneg %p53
      %p152 = pneg %p77
      %p153 = pneg %p74
      %p154 = pneg %p103
      %p155 = pneg %p100
      %p156 = scmp.lt.s32.totalorder %s14, 1
      %s157 = scalar_select %p156, %s14, 1
      %s158 = smul.addr %s157, 4
      %s159 = smul.addr %s158, 4
      %s160 = scalar_lea.vmem %s3, %s159
      %p161 = scmp.lt.s32.totalorder %s14, 1
      %s162 = scalar_select %p161, %s14, 1
      %s163 = smul.addr %s162, 4
      %s164 = smul.addr %s163, 4
      %s165 = scalar_lea.vmem %s0, %s164
      %p166 = scmp.lt.s32.totalorder %s14, 1
      %s167 = scalar_select %p166, %s14, 1
      %s168 = smul.addr %s167, 4
      %s169 = smul.addr %s168, 4
      %s170 = scalar_lea.vmem %s3, %s169
      %171 = vst [vmem:[#allocation2] sm:$0x3f] 0.0
      %172 = vst [vmem:[#allocation2 + $0x8] sm:$0x3f] 0.0
      %173 = vst [vmem:[#allocation2 + $0x10] sm:$0x3f] 0.0
      %174 = vst [vmem:[#allocation2 + $0x18] sm:$0x3f] 0.0
      %175 = vst [vmem:[#allocation2 + $0x20] sm:$0x3f] 0.0
      %176 = vst [vmem:[#allocation2 + $0x28] sm:$0x3f] 0.0
      %v177 = vld [vmem:[%s165] sm:$0xf]
      %v178 = vld [vmem:[%s165 + $0x4] sm:$0xf]
      %v179 = vld [vmem:[%s165 + $0x8] sm:$0xf]
      %v180 = vld [vmem:[%s165 + $0xc] sm:$0xf]
      %s181 = scalar_lea.vmem [#allocation2], 8
      %182 = vst [vmem:[%s181 + $0x1] sm:$0xf] %v177
      %183 = vst [vmem:[%s181 + $0x9] sm:$0xf] %v178
      %184 = vst [vmem:[%s181 + $0x11] sm:$0xf] %v179
      %185 = vst [vmem:[%s181 + $0x19] sm:$0xf] %v180
      %v186 = vld [vmem:[%s2] sm:$0x1]
      %v187 = vld [vmem:[#allocation2] sm:$0xf]
      %v188 = vld [vmem:[%s1] sm:$0xff]
      %v189 = vld [vmem:[%s1 + $0x8] sm:$0xff]
      %v190 = vld [vmem:[%s1 + $0x10] sm:$0xff]
      %v191 = vld [vmem:[%s1 + $0x18] sm:$0xff]
      %v192 = vld [vmem:[%s1 + $0x20] sm:$0xff]
      %v193 = vld [vmem:[%s1 + $0x28] sm:$0xff]
      %v194 = vld [vmem:[%s1 + $0x30] sm:$0xff]
      %v195 = vld [vmem:[%s1 + $0x38] sm:$0xff]
      %v196 = vld [vmem:[%s1 + $0x40] sm:$0xff]
      %v197 = vld [vmem:[%s1 + $0x48] sm:$0xff]
      %v198 = vld [vmem:[%s1 + $0x50] sm:$0xff]
      %v199 = vld [vmem:[%s1 + $0x58] sm:$0xff]
      %v200 = vld [vmem:[%s1 + $0x60] sm:$0xff]
      %v201 = vld [vmem:[%s1 + $0x68] sm:$0xff]
      %v202 = vld [vmem:[%s1 + $0x70] sm:$0xff]
      %v203 = vld [vmem:[%s1 + $0x78] sm:$0xff]
      %v204 = vld [vmem:[#allocation2 + $0x1] sm:$0xf]
      %s205 = scalar_lea.vmem %s1, 128
      %v206 = vld [vmem:[%s205] sm:$0xff]
      %v207 = vld [vmem:[%s205 + $0x8] sm:$0xff]
      %v208 = vld [vmem:[%s205 + $0x10] sm:$0xff]
      %v209 = vld [vmem:[%s205 + $0x18] sm:$0xff]
      %v210 = vld [vmem:[%s205 + $0x20] sm:$0xff]
      %v211 = vld [vmem:[%s205 + $0x28] sm:$0xff]
      %v212 = vld [vmem:[%s205 + $0x30] sm:$0xff]
      %v213 = vld [vmem:[%s205 + $0x38] sm:$0xff]
      %v214 = vld [vmem:[%s205 + $0x40] sm:$0xff]
      %v215 = vld [vmem:[%s205 + $0x48] sm:$0xff]
      %v216 = vld [vmem:[%s205 + $0x50] sm:$0xff]
      %v217 = vld [vmem:[%s205 + $0x58] sm:$0xff]
      %v218 = vld [vmem:[%s205 + $0x60] sm:$0xff]
      %v219 = vld [vmem:[%s205 + $0x68] sm:$0xff]
      %v220 = vld [vmem:[%s205 + $0x70] sm:$0xff]
      %v221 = vld [vmem:[%s205 + $0x78] sm:$0xff]
      %222 = vmatpush.msra.mxu0 %v221
      %223 = vmatpush.msra.mxu0 %v220
      %224 = vmatpush.msra.mxu0 %v219
      %225 = vmatpush.msra.mxu0 %v218
      %226 = vmatpush.msra.mxu0 %v217
      %227 = vmatpush.msra.mxu0 %v216
      %228 = vmatpush.msra.mxu0 %v215
      %229 = vmatpush.msra.mxu0 %v214
      %230 = vmatpush.msra.mxu0 %v213
      %231 = vmatpush.msra.mxu0 %v212
      %232 = vmatpush.msra.mxu0 %v211
      %233 = vmatpush.msra.mxu0 %v210
      %234 = vmatpush.msra.mxu0 %v209
      %235 = vmatpush.msra.mxu0 %v208
      %236 = vmatpush.msra.mxu0 %v207
      %237 = vmatpush.msra.mxu0 %v206
      %238 = vmatmul.f32.gmra.mxu0 %v204
      %v239 = vpop.f32.mrf.mxu0
      %v240 = vadd.f32 0.0, %v239
      %241 = vdwg.mxu0
      %242 = vmatpush.msra.mxu0 %v203
      %243 = vmatpush.msra.mxu0 %v202
      %244 = vmatpush.msra.mxu0 %v201
      %245 = vmatpush.msra.mxu0 %v200
      %246 = vmatpush.msra.mxu0 %v199
      %247 = vmatpush.msra.mxu0 %v198
      %248 = vmatpush.msra.mxu0 %v197
      %249 = vmatpush.msra.mxu0 %v196
      %250 = vmatpush.msra.mxu0 %v195
      %251 = vmatpush.msra.mxu0 %v194
      %252 = vmatpush.msra.mxu0 %v193
      %253 = vmatpush.msra.mxu0 %v192
      %254 = vmatpush.msra.mxu0 %v191
      %255 = vmatpush.msra.mxu0 %v190
      %256 = vmatpush.msra.mxu0 %v189
      %257 = vmatpush.msra.mxu0 %v188
      %258 = vmatmul.f32.gmra.mxu0 %v187
      %v259 = vpop.f32.mrf.mxu0
      %v260 = vadd.f32 %v240, %v259
      %261 = vdwg.mxu0
      %v262 = vld [vmem:[#allocation2 + $0x2] sm:$0xf]
      %s263 = scalar_lea.vmem %s1, 256
      %v264 = vld [vmem:[%s263] sm:$0xff]
      %v265 = vld [vmem:[%s263 + $0x8] sm:$0xff]
      %v266 = vld [vmem:[%s263 + $0x10] sm:$0xff]
      %v267 = vld [vmem:[%s263 + $0x18] sm:$0xff]
      %v268 = vld [vmem:[%s263 + $0x20] sm:$0xff]
      %v269 = vld [vmem:[%s263 + $0x28] sm:$0xff]
      %v270 = vld [vmem:[%s263 + $0x30] sm:$0xff]
      %v271 = vld [vmem:[%s263 + $0x38] sm:$0xff]
      %v272 = vld [vmem:[%s263 + $0x40] sm:$0xff]
      %v273 = vld [vmem:[%s263 + $0x48] sm:$0xff]
      %v274 = vld [vmem:[%s263 + $0x50] sm:$0xff]
      %v275 = vld [vmem:[%s263 + $0x58] sm:$0xff]
      %v276 = vld [vmem:[%s263 + $0x60] sm:$0xff]
      %v277 = vld [vmem:[%s263 + $0x68] sm:$0xff]
      %v278 = vld [vmem:[%s263 + $0x70] sm:$0xff]
      %v279 = vld [vmem:[%s263 + $0x78] sm:$0xff]
      %280 = vmatpush.msra.mxu0 %v279
      %281 = vmatpush.msra.mxu0 %v278
      %282 = vmatpush.msra.mxu0 %v277
      %283 = vmatpush.msra.mxu0 %v276
      %284 = vmatpush.msra.mxu0 %v275
      %285 = vmatpush.msra.mxu0 %v274
      %286 = vmatpush.msra.mxu0 %v273
      %287 = vmatpush.msra.mxu0 %v272
      %288 = vmatpush.msra.mxu0 %v271
      %289 = vmatpush.msra.mxu0 %v270
      %290 = vmatpush.msra.mxu0 %v269
      %291 = vmatpush.msra.mxu0 %v268
      %292 = vmatpush.msra.mxu0 %v267
      %293 = vmatpush.msra.mxu0 %v266
      %294 = vmatpush.msra.mxu0 %v265
      %295 = vmatpush.msra.mxu0 %v264
      %296 = vmatmul.f32.gmra.mxu0 %v262
      %v297 = vpop.f32.mrf.mxu0
      %v298 = vadd.f32 0.0, %v297
      %299 = vdwg.mxu0
      %v300 = vadd.f32 %v260, %v298
      %v301 = vld [vmem:[%s181] sm:$0xf]
      %s302 = scalar_lea.vmem %s1, 384
      %v303 = vld [vmem:[%s302] sm:$0xff]
      %v304 = vld [vmem:[%s302 + $0x8] sm:$0xff]
      %v305 = vld [vmem:[%s302 + $0x10] sm:$0xff]
      %v306 = vld [vmem:[%s302 + $0x18] sm:$0xff]
      %v307 = vld [vmem:[%s302 + $0x20] sm:$0xff]
      %v308 = vld [vmem:[%s302 + $0x28] sm:$0xff]
      %v309 = vld [vmem:[%s302 + $0x30] sm:$0xff]
      %v310 = vld [vmem:[%s302 + $0x38] sm:$0xff]
      %v311 = vld [vmem:[%s302 + $0x40] sm:$0xff]
      %v312 = vld [vmem:[%s302 + $0x48] sm:$0xff]
      %v313 = vld [vmem:[%s302 + $0x50] sm:$0xff]
      %v314 = vld [vmem:[%s302 + $0x58] sm:$0xff]
      %v315 = vld [vmem:[%s302 + $0x60] sm:$0xff]
      %v316 = vld [vmem:[%s302 + $0x68] sm:$0xff]
      %v317 = vld [vmem:[%s302 + $0x70] sm:$0xff]
      %v318 = vld [vmem:[%s302 + $0x78] sm:$0xff]
      %319 = vmatpush.msra.mxu0 %v318
      %320 = vmatpush.msra.mxu0 %v317
      %321 = vmatpush.msra.mxu0 %v316
      %322 = vmatpush.msra.mxu0 %v315
      %323 = vmatpush.msra.mxu0 %v314
      %324 = vmatpush.msra.mxu0 %v313
      %325 = vmatpush.msra.mxu0 %v312
      %326 = vmatpush.msra.mxu0 %v311
      %327 = vmatpush.msra.mxu0 %v310
      %328 = vmatpush.msra.mxu0 %v309
      %329 = vmatpush.msra.mxu0 %v308
      %330 = vmatpush.msra.mxu0 %v307
      %331 = vmatpush.msra.mxu0 %v306
      %332 = vmatpush.msra.mxu0 %v305
      %333 = vmatpush.msra.mxu0 %v304
      %334 = vmatpush.msra.mxu0 %v303
      %335 = vmatmul.f32.gmra.mxu0 %v301
      %v336 = vpop.f32.mrf.mxu0
      %v337 = vadd.f32 0.0, %v336
      %338 = vdwg.mxu0
      %v339 = vadd.f32 %v300, %v337
      %v340 = vld [vmem:[%s181 + $0x1] sm:$0xf]
      %s341 = scalar_lea.vmem %s1, 512
      %v342 = vld [vmem:[%s341] sm:$0xff]
      %v343 = vld [vmem:[%s341 + $0x8] sm:$0xff]
      %v344 = vld [vmem:[%s341 + $0x10] sm:$0xff]
      %v345 = vld [vmem:[%s341 + $0x18] sm:$0xff]
      %v346 = vld [vmem:[%s341 + $0x20] sm:$0xff]
      %v347 = vld [vmem:[%s341 + $0x28] sm:$0xff]
      %v348 = vld [vmem:[%s341 + $0x30] sm:$0xff]
      %v349 = vld [vmem:[%s341 + $0x38] sm:$0xff]
      %v350 = vld [vmem:[%s341 + $0x40] sm:$0xff]
      %v351 = vld [vmem:[%s341 + $0x48] sm:$0xff]
      %v352 = vld [vmem:[%s341 + $0x50] sm:$0xff]
      %v353 = vld [vmem:[%s341 + $0x58] sm:$0xff]
      %v354 = vld [vmem:[%s341 + $0x60] sm:$0xff]
      %v355 = vld [vmem:[%s341 + $0x68] sm:$0xff]
      %v356 = vld [vmem:[%s341 + $0x70] sm:$0xff]
      %v357 = vld [vmem:[%s341 + $0x78] sm:$0xff]
      %358 = vmatpush.msra.mxu0 %v357
      %359 = vmatpush.msra.mxu0 %v356
      %360 = vmatpush.msra.mxu0 %v355
      %361 = vmatpush.msra.mxu0 %v354
      %362 = vmatpush.msra.mxu0 %v353
      %363 = vmatpush.msra.mxu0 %v352
      %364 = vmatpush.msra.mxu0 %v351
      %365 = vmatpush.msra.mxu0 %v350
      %366 = vmatpush.msra.mxu0 %v349
      %367 = vmatpush.msra.mxu0 %v348
      %368 = vmatpush.msra.mxu0 %v347
      %369 = vmatpush.msra.mxu0 %v346
      %370 = vmatpush.msra.mxu0 %v345
      %371 = vmatpush.msra.mxu0 %v344
      %372 = vmatpush.msra.mxu0 %v343
      %373 = vmatpush.msra.mxu0 %v342
      %374 = vmatmul.f32.gmra.mxu0 %v340
      %v375 = vpop.f32.mrf.mxu0
      %v376 = vadd.f32 0.0, %v375
      %377 = vdwg.mxu0
      %v378 = vadd.f32 %v339, %v376
      %v379 = vld [vmem:[%s181 + $0x2] sm:$0xf]
      %s380 = scalar_lea.vmem %s1, 640
      %v381 = vld [vmem:[%s380] sm:$0xff]
      %v382 = vld [vmem:[%s380 + $0x8] sm:$0xff]
      %v383 = vld [vmem:[%s380 + $0x10] sm:$0xff]
      %v384 = vld [vmem:[%s380 + $0x18] sm:$0xff]
      %v385 = vld [vmem:[%s380 + $0x20] sm:$0xff]
      %v386 = vld [vmem:[%s380 + $0x28] sm:$0xff]
      %v387 = vld [vmem:[%s380 + $0x30] sm:$0xff]
      %v388 = vld [vmem:[%s380 + $0x38] sm:$0xff]
      %v389 = vld [vmem:[%s380 + $0x40] sm:$0xff]
      %v390 = vld [vmem:[%s380 + $0x48] sm:$0xff]
      %v391 = vld [vmem:[%s380 + $0x50] sm:$0xff]
      %v392 = vld [vmem:[%s380 + $0x58] sm:$0xff]
      %v393 = vld [vmem:[%s380 + $0x60] sm:$0xff]
      %v394 = vld [vmem:[%s380 + $0x68] sm:$0xff]
      %v395 = vld [vmem:[%s380 + $0x70] sm:$0xff]
      %v396 = vld [vmem:[%s380 + $0x78] sm:$0xff]
      %397 = vmatpush.msra.mxu0 %v396
      %398 = vmatpush.msra.mxu0 %v395
      %399 = vmatpush.msra.mxu0 %v394
      %400 = vmatpush.msra.mxu0 %v393
      %401 = vmatpush.msra.mxu0 %v392
      %402 = vmatpush.msra.mxu0 %v391
      %403 = vmatpush.msra.mxu0 %v390
      %404 = vmatpush.msra.mxu0 %v389
      %405 = vmatpush.msra.mxu0 %v388
      %406 = vmatpush.msra.mxu0 %v387
      %407 = vmatpush.msra.mxu0 %v386
      %408 = vmatpush.msra.mxu0 %v385
      %409 = vmatpush.msra.mxu0 %v384
      %410 = vmatpush.msra.mxu0 %v383
      %411 = vmatpush.msra.mxu0 %v382
      %412 = vmatpush.msra.mxu0 %v381
      %413 = vmatmul.f32.gmra.mxu0 %v379
      %v414 = vpop.f32.mrf.mxu0
      %v415 = vadd.f32 0.0, %v414
      %416 = vdwg.mxu0
      %v417 = vadd.f32 %v378, %v415
      %s418 = scalar_lea.vmem [#allocation2], 16
      %v419 = vld [vmem:[%s418] sm:$0xf]
      %s420 = scalar_lea.vmem %s1, 768
      %v421 = vld [vmem:[%s420] sm:$0xff]
      %v422 = vld [vmem:[%s420 + $0x8] sm:$0xff]
      %v423 = vld [vmem:[%s420 + $0x10] sm:$0xff]
      %v424 = vld [vmem:[%s420 + $0x18] sm:$0xff]
      %v425 = vld [vmem:[%s420 + $0x20] sm:$0xff]
      %v426 = vld [vmem:[%s420 + $0x28] sm:$0xff]
      %v427 = vld [vmem:[%s420 + $0x30] sm:$0xff]
      %v428 = vld [vmem:[%s420 + $0x38] sm:$0xff]
      %v429 = vld [vmem:[%s420 + $0x40] sm:$0xff]
      %v430 = vld [vmem:[%s420 + $0x48] sm:$0xff]
      %v431 = vld [vmem:[%s420 + $0x50] sm:$0xff]
      %v432 = vld [vmem:[%s420 + $0x58] sm:$0xff]
      %v433 = vld [vmem:[%s420 + $0x60] sm:$0xff]
      %v434 = vld [vmem:[%s420 + $0x68] sm:$0xff]
      %v435 = vld [vmem:[%s420 + $0x70] sm:$0xff]
      %v436 = vld [vmem:[%s420 + $0x78] sm:$0xff]
      %437 = vmatpush.msra.mxu0 %v436
      %438 = vmatpush.msra.mxu0 %v435
      %439 = vmatpush.msra.mxu0 %v434
      %440 = vmatpush.msra.mxu0 %v433
      %441 = vmatpush.msra.mxu0 %v432
      %442 = vmatpush.msra.mxu0 %v431
      %443 = vmatpush.msra.mxu0 %v430
      %444 = vmatpush.msra.mxu0 %v429
      %445 = vmatpush.msra.mxu0 %v428
      %446 = vmatpush.msra.mxu0 %v427
      %447 = vmatpush.msra.mxu0 %v426
      %448 = vmatpush.msra.mxu0 %v425
      %449 = vmatpush.msra.mxu0 %v424
      %450 = vmatpush.msra.mxu0 %v423
      %451 = vmatpush.msra.mxu0 %v422
      %452 = vmatpush.msra.mxu0 %v421
      %453 = vmatmul.f32.gmra.mxu0 %v419
      %v454 = vpop.f32.mrf.mxu0
      %v455 = vadd.f32 0.0, %v454
      %456 = vdwg.mxu0
      %v457 = vadd.f32 %v417, %v455
      %v458 = vld [vmem:[%s418 + $0x1] sm:$0xf]
      %s459 = scalar_lea.vmem %s1, 896
      %v460 = vld [vmem:[%s459] sm:$0xff]
      %v461 = vld [vmem:[%s459 + $0x8] sm:$0xff]
      %v462 = vld [vmem:[%s459 + $0x10] sm:$0xff]
      %v463 = vld [vmem:[%s459 + $0x18] sm:$0xff]
      %v464 = vld [vmem:[%s459 + $0x20] sm:$0xff]
      %v465 = vld [vmem:[%s459 + $0x28] sm:$0xff]
      %v466 = vld [vmem:[%s459 + $0x30] sm:$0xff]
      %v467 = vld [vmem:[%s459 + $0x38] sm:$0xff]
      %v468 = vld [vmem:[%s459 + $0x40] sm:$0xff]
      %v469 = vld [vmem:[%s459 + $0x48] sm:$0xff]
      %v470 = vld [vmem:[%s459 + $0x50] sm:$0xff]
      %v471 = vld [vmem:[%s459 + $0x58] sm:$0xff]
      %v472 = vld [vmem:[%s459 + $0x60] sm:$0xff]
      %v473 = vld [vmem:[%s459 + $0x68] sm:$0xff]
      %v474 = vld [vmem:[%s459 + $0x70] sm:$0xff]
      %v475 = vld [vmem:[%s459 + $0x78] sm:$0xff]
      %476 = vmatpush.msra.mxu0 %v475
      %477 = vmatpush.msra.mxu0 %v474
      %478 = vmatpush.msra.mxu0 %v473
      %479 = vmatpush.msra.mxu0 %v472
      %480 = vmatpush.msra.mxu0 %v471
      %481 = vmatpush.msra.mxu0 %v470
      %482 = vmatpush.msra.mxu0 %v469
      %483 = vmatpush.msra.mxu0 %v468
      %484 = vmatpush.msra.mxu0 %v467
      %485 = vmatpush.msra.mxu0 %v466
      %486 = vmatpush.msra.mxu0 %v465
      %487 = vmatpush.msra.mxu0 %v464
      %488 = vmatpush.msra.mxu0 %v463
      %489 = vmatpush.msra.mxu0 %v462
      %490 = vmatpush.msra.mxu0 %v461
      %491 = vmatpush.msra.mxu0 %v460
      %492 = vmatmul.f32.gmra.mxu0 %v458
      %v493 = vpop.f32.mrf.mxu0
      %v494 = vadd.f32 0.0, %v493
      %495 = vdwg.mxu0
      %v496 = vadd.f32 %v457, %v494
      %v497 = vld [vmem:[%s418 + $0x2] sm:$0xf]
      %s498 = scalar_lea.vmem %s1, 1024
      %v499 = vld [vmem:[%s498] sm:$0xff]
      %v500 = vld [vmem:[%s498 + $0x8] sm:$0xff]
      %v501 = vld [vmem:[%s498 + $0x10] sm:$0xff]
      %v502 = vld [vmem:[%s498 + $0x18] sm:$0xff]
      %v503 = vld [vmem:[%s498 + $0x20] sm:$0xff]
      %v504 = vld [vmem:[%s498 + $0x28] sm:$0xff]
      %v505 = vld [vmem:[%s498 + $0x30] sm:$0xff]
      %v506 = vld [vmem:[%s498 + $0x38] sm:$0xff]
      %v507 = vld [vmem:[%s498 + $0x40] sm:$0xff]
      %v508 = vld [vmem:[%s498 + $0x48] sm:$0xff]
      %v509 = vld [vmem:[%s498 + $0x50] sm:$0xff]
      %v510 = vld [vmem:[%s498 + $0x58] sm:$0xff]
      %v511 = vld [vmem:[%s498 + $0x60] sm:$0xff]
      %v512 = vld [vmem:[%s498 + $0x68] sm:$0xff]
      %v513 = vld [vmem:[%s498 + $0x70] sm:$0xff]
      %v514 = vld [vmem:[%s498 + $0x78] sm:$0xff]
      %515 = vmatpush.msra.mxu0 %v514
      %516 = vmatpush.msra.mxu0 %v513
      %517 = vmatpush.msra.mxu0 %v512
      %518 = vmatpush.msra.mxu0 %v511
      %519 = vmatpush.msra.mxu0 %v510
      %520 = vmatpush.msra.mxu0 %v509
      %521 = vmatpush.msra.mxu0 %v508
      %522 = vmatpush.msra.mxu0 %v507
      %523 = vmatpush.msra.mxu0 %v506
      %524 = vmatpush.msra.mxu0 %v505
      %525 = vmatpush.msra.mxu0 %v504
      %526 = vmatpush.msra.mxu0 %v503
      %527 = vmatpush.msra.mxu0 %v502
      %528 = vmatpush.msra.mxu0 %v501
      %529 = vmatpush.msra.mxu0 %v500
      %530 = vmatpush.msra.mxu0 %v499
      %531 = vmatmul.f32.gmra.mxu0 %v497
      %v532 = vpop.f32.mrf.mxu0
      %v533 = vadd.f32 0.0, %v532
      %534 = vdwg.mxu0
      %v535 = vadd.f32 %v496, %v533
      %v537 = vperm.slane %v186, 0
      %v539 = vadd.f32 %v535, %v537
      %v540 = vtanh.pop %v539
      %541 = vst [vmem:[%s170] sm:$0xf] %v540
      %v542 = vld [vmem:[%s181] sm:$0xf]
      %v543 = vld [vmem:[%s1] sm:$0xff]
      %v544 = vld [vmem:[%s1 + $0x8] sm:$0xff]
      %v545 = vld [vmem:[%s1 + $0x10] sm:$0xff]
      %v546 = vld [vmem:[%s1 + $0x18] sm:$0xff]
      %v547 = vld [vmem:[%s1 + $0x20] sm:$0xff]
      %v548 = vld [vmem:[%s1 + $0x28] sm:$0xff]
      %v549 = vld [vmem:[%s1 + $0x30] sm:$0xff]
      %v550 = vld [vmem:[%s1 + $0x38] sm:$0xff]
      %v551 = vld [vmem:[%s1 + $0x40] sm:$0xff]
      %v552 = vld [vmem:[%s1 + $0x48] sm:$0xff]
      %v553 = vld [vmem:[%s1 + $0x50] sm:$0xff]
      %v554 = vld [vmem:[%s1 + $0x58] sm:$0xff]
      %v555 = vld [vmem:[%s1 + $0x60] sm:$0xff]
      %v556 = vld [vmem:[%s1 + $0x68] sm:$0xff]
      %v557 = vld [vmem:[%s1 + $0x70] sm:$0xff]
      %v558 = vld [vmem:[%s1 + $0x78] sm:$0xff]
      %v559 = vld [vmem:[%s181 + $0x1] sm:$0xf]
      %v560 = vld [vmem:[%s205] sm:$0xff]
      %v561 = vld [vmem:[%s205 + $0x8] sm:$0xff]
      %v562 = vld [vmem:[%s205 + $0x10] sm:$0xff]
      %v563 = vld [vmem:[%s205 + $0x18] sm:$0xff]
      %v564 = vld [vmem:[%s205 + $0x20] sm:$0xff]
      %v565 = vld [vmem:[%s205 + $0x28] sm:$0xff]
      %v566 = vld [vmem:[%s205 + $0x30] sm:$0xff]
      %v567 = vld [vmem:[%s205 + $0x38] sm:$0xff]
      %v568 = vld [vmem:[%s205 + $0x40] sm:$0xff]
      %v569 = vld [vmem:[%s205 + $0x48] sm:$0xff]
      %v570 = vld [vmem:[%s205 + $0x50] sm:$0xff]
      %v571 = vld [vmem:[%s205 + $0x58] sm:$0xff]
      %v572 = vld [vmem:[%s205 + $0x60] sm:$0xff]
      %v573 = vld [vmem:[%s205 + $0x68] sm:$0xff]
      %v574 = vld [vmem:[%s205 + $0x70] sm:$0xff]
      %v575 = vld [vmem:[%s205 + $0x78] sm:$0xff]
      %576 = vmatpush.msra.mxu0 %v575
      %577 = vmatpush.msra.mxu0 %v574
      %578 = vmatpush.msra.mxu0 %v573
      %579 = vmatpush.msra.mxu0 %v572
      %580 = vmatpush.msra.mxu0 %v571
      %581 = vmatpush.msra.mxu0 %v570
      %582 = vmatpush.msra.mxu0 %v569
      %583 = vmatpush.msra.mxu0 %v568
      %584 = vmatpush.msra.mxu0 %v567
      %585 = vmatpush.msra.mxu0 %v566
      %586 = vmatpush.msra.mxu0 %v565
      %587 = vmatpush.msra.mxu0 %v564
      %588 = vmatpush.msra.mxu0 %v563
      %589 = vmatpush.msra.mxu0 %v562
      %590 = vmatpush.msra.mxu0 %v561
      %591 = vmatpush.msra.mxu0 %v560
      %592 = vmatmul.f32.gmra.mxu0 %v559
      %v593 = vpop.f32.mrf.mxu0
      %v594 = vadd.f32 0.0, %v593
      %595 = vdwg.mxu0
      %596 = vmatpush.msra.mxu0 %v558
      %597 = vmatpush.msra.mxu0 %v557
      %598 = vmatpush.msra.mxu0 %v556
      %599 = vmatpush.msra.mxu0 %v555
      %600 = vmatpush.msra.mxu0 %v554
      %601 = vmatpush.msra.mxu0 %v553
      %602 = vmatpush.msra.mxu0 %v552
      %603 = vmatpush.msra.mxu0 %v551
      %604 = vmatpush.msra.mxu0 %v550
      %605 = vmatpush.msra.mxu0 %v549
      %606 = vmatpush.msra.mxu0 %v548
      %607 = vmatpush.msra.mxu0 %v547
      %608 = vmatpush.msra.mxu0 %v546
      %609 = vmatpush.msra.mxu0 %v545
      %610 = vmatpush.msra.mxu0 %v544
      %611 = vmatpush.msra.mxu0 %v543
      %612 = vmatmul.f32.gmra.mxu0 %v542
      %v613 = vpop.f32.mrf.mxu0
      %v614 = vadd.f32 %v594, %v613
      %615 = vdwg.mxu0
      %v616 = vld [vmem:[%s181 + $0x2] sm:$0xf]
      %v617 = vld [vmem:[%s263] sm:$0xff]
      %v618 = vld [vmem:[%s263 + $0x8] sm:$0xff]
      %v619 = vld [vmem:[%s263 + $0x10] sm:$0xff]
      %v620 = vld [vmem:[%s263 + $0x18] sm:$0xff]
      %v621 = vld [vmem:[%s263 + $0x20] sm:$0xff]
      %v622 = vld [vmem:[%s263 + $0x28] sm:$0xff]
      %v623 = vld [vmem:[%s263 + $0x30] sm:$0xff]
      %v624 = vld [vmem:[%s263 + $0x38] sm:$0xff]
      %v625 = vld [vmem:[%s263 + $0x40] sm:$0xff]
      %v626 = vld [vmem:[%s263 + $0x48] sm:$0xff]
      %v627 = vld [vmem:[%s263 + $0x50] sm:$0xff]
      %v628 = vld [vmem:[%s263 + $0x58] sm:$0xff]
      %v629 = vld [vmem:[%s263 + $0x60] sm:$0xff]
      %v630 = vld [vmem:[%s263 + $0x68] sm:$0xff]
      %v631 = vld [vmem:[%s263 + $0x70] sm:$0xff]
      %v632 = vld [vmem:[%s263 + $0x78] sm:$0xff]
      %633 = vmatpush.msra.mxu0 %v632
      %634 = vmatpush.msra.mxu0 %v631
      %635 = vmatpush.msra.mxu0 %v630
      %636 = vmatpush.msra.mxu0 %v629
      %637 = vmatpush.msra.mxu0 %v628
      %638 = vmatpush.msra.mxu0 %v627
      %639 = vmatpush.msra.mxu0 %v626
      %640 = vmatpush.msra.mxu0 %v625
      %641 = vmatpush.msra.mxu0 %v624
      %642 = vmatpush.msra.mxu0 %v623
      %643 = vmatpush.msra.mxu0 %v622
      %644 = vmatpush.msra.mxu0 %v621
      %645 = vmatpush.msra.mxu0 %v620
      %646 = vmatpush.msra.mxu0 %v619
      %647 = vmatpush.msra.mxu0 %v618
      %648 = vmatpush.msra.mxu0 %v617
      %649 = vmatmul.f32.gmra.mxu0 %v616
      %v650 = vpop.f32.mrf.mxu0
      %v651 = vadd.f32 0.0, %v650
      %652 = vdwg.mxu0
      %v653 = vadd.f32 %v614, %v651
      %v654 = vld [vmem:[%s418] sm:$0xf]
      %v655 = vld [vmem:[%s302] sm:$0xff]
      %v656 = vld [vmem:[%s302 + $0x8] sm:$0xff]
      %v657 = vld [vmem:[%s302 + $0x10] sm:$0xff]
      %v658 = vld [vmem:[%s302 + $0x18] sm:$0xff]
      %v659 = vld [vmem:[%s302 + $0x20] sm:$0xff]
      %v660 = vld [vmem:[%s302 + $0x28] sm:$0xff]
      %v661 = vld [vmem:[%s302 + $0x30] sm:$0xff]
      %v662 = vld [vmem:[%s302 + $0x38] sm:$0xff]
      %v663 = vld [vmem:[%s302 + $0x40] sm:$0xff]
      %v664 = vld [vmem:[%s302 + $0x48] sm:$0xff]
      %v665 = vld [vmem:[%s302 + $0x50] sm:$0xff]
      %v666 = vld [vmem:[%s302 + $0x58] sm:$0xff]
      %v667 = vld [vmem:[%s302 + $0x60] sm:$0xff]
      %v668 = vld [vmem:[%s302 + $0x68] sm:$0xff]
      %v669 = vld [vmem:[%s302 + $0x70] sm:$0xff]
      %v670 = vld [vmem:[%s302 + $0x78] sm:$0xff]
      %671 = vmatpush.msra.mxu0 %v670
      %672 = vmatpush.msra.mxu0 %v669
      %673 = vmatpush.msra.mxu0 %v668
      %674 = vmatpush.msra.mxu0 %v667
      %675 = vmatpush.msra.mxu0 %v666
      %676 = vmatpush.msra.mxu0 %v665
      %677 = vmatpush.msra.mxu0 %v664
      %678 = vmatpush.msra.mxu0 %v663
      %679 = vmatpush.msra.mxu0 %v662
      %680 = vmatpush.msra.mxu0 %v661
      %681 = vmatpush.msra.mxu0 %v660
      %682 = vmatpush.msra.mxu0 %v659
      %683 = vmatpush.msra.mxu0 %v658
      %684 = vmatpush.msra.mxu0 %v657
      %685 = vmatpush.msra.mxu0 %v656
      %686 = vmatpush.msra.mxu0 %v655
      %687 = vmatmul.f32.gmra.mxu0 %v654
      %v688 = vpop.f32.mrf.mxu0
      %v689 = vadd.f32 0.0, %v688
      %690 = vdwg.mxu0
      %v691 = vadd.f32 %v653, %v689
      %v692 = vld [vmem:[%s418 + $0x1] sm:$0xf]
      %v693 = vld [vmem:[%s341] sm:$0xff]
      %v694 = vld [vmem:[%s341 + $0x8] sm:$0xff]
      %v695 = vld [vmem:[%s341 + $0x10] sm:$0xff]
      %v696 = vld [vmem:[%s341 + $0x18] sm:$0xff]
      %v697 = vld [vmem:[%s341 + $0x20] sm:$0xff]
      %v698 = vld [vmem:[%s341 + $0x28] sm:$0xff]
      %v699 = vld [vmem:[%s341 + $0x30] sm:$0xff]
      %v700 = vld [vmem:[%s341 + $0x38] sm:$0xff]
      %v701 = vld [vmem:[%s341 + $0x40] sm:$0xff]
      %v702 = vld [vmem:[%s341 + $0x48] sm:$0xff]
      %v703 = vld [vmem:[%s341 + $0x50] sm:$0xff]
      %v704 = vld [vmem:[%s341 + $0x58] sm:$0xff]
      %v705 = vld [vmem:[%s341 + $0x60] sm:$0xff]
      %v706 = vld [vmem:[%s341 + $0x68] sm:$0xff]
      %v707 = vld [vmem:[%s341 + $0x70] sm:$0xff]
      %v708 = vld [vmem:[%s341 + $0x78] sm:$0xff]
      %709 = vmatpush.msra.mxu0 %v708
      %710 = vmatpush.msra.mxu0 %v707
      %711 = vmatpush.msra.mxu0 %v706
      %712 = vmatpush.msra.mxu0 %v705
      %713 = vmatpush.msra.mxu0 %v704
      %714 = vmatpush.msra.mxu0 %v703
      %715 = vmatpush.msra.mxu0 %v702
      %716 = vmatpush.msra.mxu0 %v701
      %717 = vmatpush.msra.mxu0 %v700
      %718 = vmatpush.msra.mxu0 %v699
      %719 = vmatpush.msra.mxu0 %v698
      %720 = vmatpush.msra.mxu0 %v697
      %721 = vmatpush.msra.mxu0 %v696
      %722 = vmatpush.msra.mxu0 %v695
      %723 = vmatpush.msra.mxu0 %v694
      %724 = vmatpush.msra.mxu0 %v693
      %725 = vmatmul.f32.gmra.mxu0 %v692
      %v726 = vpop.f32.mrf.mxu0
      %v727 = vadd.f32 0.0, %v726
      %728 = vdwg.mxu0
      %v729 = vadd.f32 %v691, %v727
      %v730 = vld [vmem:[%s418 + $0x2] sm:$0xf]
      %v731 = vld [vmem:[%s380] sm:$0xff]
      %v732 = vld [vmem:[%s380 + $0x8] sm:$0xff]
      %v733 = vld [vmem:[%s380 + $0x10] sm:$0xff]
      %v734 = vld [vmem:[%s380 + $0x18] sm:$0xff]
      %v735 = vld [vmem:[%s380 + $0x20] sm:$0xff]
      %v736 = vld [vmem:[%s380 + $0x28] sm:$0xff]
      %v737 = vld [vmem:[%s380 + $0x30] sm:$0xff]
      %v738 = vld [vmem:[%s380 + $0x38] sm:$0xff]
      %v739 = vld [vmem:[%s380 + $0x40] sm:$0xff]
      %v740 = vld [vmem:[%s380 + $0x48] sm:$0xff]
      %v741 = vld [vmem:[%s380 + $0x50] sm:$0xff]
      %v742 = vld [vmem:[%s380 + $0x58] sm:$0xff]
      %v743 = vld [vmem:[%s380 + $0x60] sm:$0xff]
      %v744 = vld [vmem:[%s380 + $0x68] sm:$0xff]
      %v745 = vld [vmem:[%s380 + $0x70] sm:$0xff]
      %v746 = vld [vmem:[%s380 + $0x78] sm:$0xff]
      %747 = vmatpush.msra.mxu0 %v746
      %748 = vmatpush.msra.mxu0 %v745
      %749 = vmatpush.msra.mxu0 %v744
      %750 = vmatpush.msra.mxu0 %v743
      %751 = vmatpush.msra.mxu0 %v742
      %752 = vmatpush.msra.mxu0 %v741
      %753 = vmatpush.msra.mxu0 %v740
      %754 = vmatpush.msra.mxu0 %v739
      %755 = vmatpush.msra.mxu0 %v738
      %756 = vmatpush.msra.mxu0 %v737
      %757 = vmatpush.msra.mxu0 %v736
      %758 = vmatpush.msra.mxu0 %v735
      %759 = vmatpush.msra.mxu0 %v734
      %760 = vmatpush.msra.mxu0 %v733
      %761 = vmatpush.msra.mxu0 %v732
      %762 = vmatpush.msra.mxu0 %v731
      %763 = vmatmul.f32.gmra.mxu0 %v730
      %v764 = vpop.f32.mrf.mxu0
      %v765 = vadd.f32 0.0, %v764
      %766 = vdwg.mxu0
      %v767 = vadd.f32 %v729, %v765
      %s768 = scalar_lea.vmem [#allocation2], 24
      %v769 = vld [vmem:[%s768] sm:$0xf]
      %v770 = vld [vmem:[%s420] sm:$0xff]
      %v771 = vld [vmem:[%s420 + $0x8] sm:$0xff]
      %v772 = vld [vmem:[%s420 + $0x10] sm:$0xff]
      %v773 = vld [vmem:[%s420 + $0x18] sm:$0xff]
      %v774 = vld [vmem:[%s420 + $0x20] sm:$0xff]
      %v775 = vld [vmem:[%s420 + $0x28] sm:$0xff]
      %v776 = vld [vmem:[%s420 + $0x30] sm:$0xff]
      %v777 = vld [vmem:[%s420 + $0x38] sm:$0xff]
      %v778 = vld [vmem:[%s420 + $0x40] sm:$0xff]
      %v779 = vld [vmem:[%s420 + $0x48] sm:$0xff]
      %v780 = vld [vmem:[%s420 + $0x50] sm:$0xff]
      %v781 = vld [vmem:[%s420 + $0x58] sm:$0xff]
      %v782 = vld [vmem:[%s420 + $0x60] sm:$0xff]
      %v783 = vld [vmem:[%s420 + $0x68] sm:$0xff]
      %v784 = vld [vmem:[%s420 + $0x70] sm:$0xff]
      %v785 = vld [vmem:[%s420 + $0x78] sm:$0xff]
      %786 = vmatpush.msra.mxu0 %v785
      %787 = vmatpush.msra.mxu0 %v784
      %788 = vmatpush.msra.mxu0 %v783
      %789 = vmatpush.msra.mxu0 %v782
      %790 = vmatpush.msra.mxu0 %v781
      %791 = vmatpush.msra.mxu0 %v780
      %792 = vmatpush.msra.mxu0 %v779
      %793 = vmatpush.msra.mxu0 %v778
      %794 = vmatpush.msra.mxu0 %v777
      %795 = vmatpush.msra.mxu0 %v776
      %796 = vmatpush.msra.mxu0 %v775
      %797 = vmatpush.msra.mxu0 %v774
      %798 = vmatpush.msra.mxu0 %v773
      %799 = vmatpush.msra.mxu0 %v772
      %800 = vmatpush.msra.mxu0 %v771
      %801 = vmatpush.msra.mxu0 %v770
      %802 = vmatmul.f32.gmra.mxu0 %v769
      %v803 = vpop.f32.mrf.mxu0
      %v804 = vadd.f32 0.0, %v803
      %805 = vdwg.mxu0
      %v806 = vadd.f32 %v767, %v804
      %v807 = vld [vmem:[%s768 + $0x1] sm:$0xf]
      %v808 = vld [vmem:[%s459] sm:$0xff]
      %v809 = vld [vmem:[%s459 + $0x8] sm:$0xff]
      %v810 = vld [vmem:[%s459 + $0x10] sm:$0xff]
      %v811 = vld [vmem:[%s459 + $0x18] sm:$0xff]
      %v812 = vld [vmem:[%s459 + $0x20] sm:$0xff]
      %v813 = vld [vmem:[%s459 + $0x28] sm:$0xff]
      %v814 = vld [vmem:[%s459 + $0x30] sm:$0xff]
      %v815 = vld [vmem:[%s459 + $0x38] sm:$0xff]
      %v816 = vld [vmem:[%s459 + $0x40] sm:$0xff]
      %v817 = vld [vmem:[%s459 + $0x48] sm:$0xff]
      %v818 = vld [vmem:[%s459 + $0x50] sm:$0xff]
      %v819 = vld [vmem:[%s459 + $0x58] sm:$0xff]
      %v820 = vld [vmem:[%s459 + $0x60] sm:$0xff]
      %v821 = vld [vmem:[%s459 + $0x68] sm:$0xff]
      %v822 = vld [vmem:[%s459 + $0x70] sm:$0xff]
      %v823 = vld [vmem:[%s459 + $0x78] sm:$0xff]
      %824 = vmatpush.msra.mxu0 %v823
      %825 = vmatpush.msra.mxu0 %v822
      %826 = vmatpush.msra.mxu0 %v821
      %827 = vmatpush.msra.mxu0 %v820
      %828 = vmatpush.msra.mxu0 %v819
      %829 = vmatpush.msra.mxu0 %v818
      %830 = vmatpush.msra.mxu0 %v817
      %831 = vmatpush.msra.mxu0 %v816
      %832 = vmatpush.msra.mxu0 %v815
      %833 = vmatpush.msra.mxu0 %v814
      %834 = vmatpush.msra.mxu0 %v813
      %835 = vmatpush.msra.mxu0 %v812
      %836 = vmatpush.msra.mxu0 %v811
      %837 = vmatpush.msra.mxu0 %v810
      %838 = vmatpush.msra.mxu0 %v809
      %839 = vmatpush.msra.mxu0 %v808
      %840 = vmatmul.f32.gmra.mxu0 %v807
      %v841 = vpop.f32.mrf.mxu0
      %v842 = vadd.f32 0.0, %v841
      %843 = vdwg.mxu0
      %v844 = vadd.f32 %v806, %v842
      %v845 = vld [vmem:[%s768 + $0x2] sm:$0xf]
      %v846 = vld [vmem:[%s498] sm:$0xff]
      %v847 = vld [vmem:[%s498 + $0x8] sm:$0xff]
      %v848 = vld [vmem:[%s498 + $0x10] sm:$0xff]
      %v849 = vld [vmem:[%s498 + $0x18] sm:$0xff]
      %v850 = vld [vmem:[%s498 + $0x20] sm:$0xff]
      %v851 = vld [vmem:[%s498 + $0x28] sm:$0xff]
      %v852 = vld [vmem:[%s498 + $0x30] sm:$0xff]
      %v853 = vld [vmem:[%s498 + $0x38] sm:$0xff]
      %v854 = vld [vmem:[%s498 + $0x40] sm:$0xff]
      %v855 = vld [vmem:[%s498 + $0x48] sm:$0xff]
      %v856 = vld [vmem:[%s498 + $0x50] sm:$0xff]
      %v857 = vld [vmem:[%s498 + $0x58] sm:$0xff]
      %v858 = vld [vmem:[%s498 + $0x60] sm:$0xff]
      %v859 = vld [vmem:[%s498 + $0x68] sm:$0xff]
      %v860 = vld [vmem:[%s498 + $0x70] sm:$0xff]
      %v861 = vld [vmem:[%s498 + $0x78] sm:$0xff]
      %862 = vmatpush.msra.mxu0 %v861
      %863 = vmatpush.msra.mxu0 %v860
      %864 = vmatpush.msra.mxu0 %v859
      %865 = vmatpush.msra.mxu0 %v858
      %866 = vmatpush.msra.mxu0 %v857
      %867 = vmatpush.msra.mxu0 %v856
      %868 = vmatpush.msra.mxu0 %v855
      %869 = vmatpush.msra.mxu0 %v854
      %870 = vmatpush.msra.mxu0 %v853
      %871 = vmatpush.msra.mxu0 %v852
      %872 = vmatpush.msra.mxu0 %v851
      %873 = vmatpush.msra.mxu0 %v850
      %874 = vmatpush.msra.mxu0 %v849
      %875 = vmatpush.msra.mxu0 %v848
      %876 = vmatpush.msra.mxu0 %v847
      %877 = vmatpush.msra.mxu0 %v846
      %878 = vmatmul.f32.gmra.mxu0 %v845
      %v879 = vpop.f32.mrf.mxu0
      %v880 = vadd.f32 0.0, %v879
      %881 = vdwg.mxu0
      %v882 = vadd.f32 %v844, %v880
      %v883 = vadd.f32 %v882, %v537
      %v884 = vtanh.pop %v883
      %s885 = scalar_lea.vmem %s170, 4
      %886 = vst [vmem:[%s885] sm:$0xf] %v884
      %v887 = vld [vmem:[%s418] sm:$0xf]
      %v888 = vld [vmem:[%s1] sm:$0xff]
      %v889 = vld [vmem:[%s1 + $0x8] sm:$0xff]
      %v890 = vld [vmem:[%s1 + $0x10] sm:$0xff]
      %v891 = vld [vmem:[%s1 + $0x18] sm:$0xff]
      %v892 = vld [vmem:[%s1 + $0x20] sm:$0xff]
      %v893 = vld [vmem:[%s1 + $0x28] sm:$0xff]
      %v894 = vld [vmem:[%s1 + $0x30] sm:$0xff]
      %v895 = vld [vmem:[%s1 + $0x38] sm:$0xff]
      %v896 = vld [vmem:[%s1 + $0x40] sm:$0xff]
      %v897 = vld [vmem:[%s1 + $0x48] sm:$0xff]
      %v898 = vld [vmem:[%s1 + $0x50] sm:$0xff]
      %v899 = vld [vmem:[%s1 + $0x58] sm:$0xff]
      %v900 = vld [vmem:[%s1 + $0x60] sm:$0xff]
      %v901 = vld [vmem:[%s1 + $0x68] sm:$0xff]
      %v902 = vld [vmem:[%s1 + $0x70] sm:$0xff]
      %v903 = vld [vmem:[%s1 + $0x78] sm:$0xff]
      %v904 = vld [vmem:[%s418 + $0x1] sm:$0xf]
      %v905 = vld [vmem:[%s205] sm:$0xff]
      %v906 = vld [vmem:[%s205 + $0x8] sm:$0xff]
      %v907 = vld [vmem:[%s205 + $0x10] sm:$0xff]
      %v908 = vld [vmem:[%s205 + $0x18] sm:$0xff]
      %v909 = vld [vmem:[%s205 + $0x20] sm:$0xff]
      %v910 = vld [vmem:[%s205 + $0x28] sm:$0xff]
      %v911 = vld [vmem:[%s205 + $0x30] sm:$0xff]
      %v912 = vld [vmem:[%s205 + $0x38] sm:$0xff]
      %v913 = vld [vmem:[%s205 + $0x40] sm:$0xff]
      %v914 = vld [vmem:[%s205 + $0x48] sm:$0xff]
      %v915 = vld [vmem:[%s205 + $0x50] sm:$0xff]
      %v916 = vld [vmem:[%s205 + $0x58] sm:$0xff]
      %v917 = vld [vmem:[%s205 + $0x60] sm:$0xff]
      %v918 = vld [vmem:[%s205 + $0x68] sm:$0xff]
      %v919 = vld [vmem:[%s205 + $0x70] sm:$0xff]
      %v920 = vld [vmem:[%s205 + $0x78] sm:$0xff]
      %921 = vmatpush.msra.mxu0 %v920
      %922 = vmatpush.msra.mxu0 %v919
      %923 = vmatpush.msra.mxu0 %v918
      %924 = vmatpush.msra.mxu0 %v917
      %925 = vmatpush.msra.mxu0 %v916
      %926 = vmatpush.msra.mxu0 %v915
      %927 = vmatpush.msra.mxu0 %v914
      %928 = vmatpush.msra.mxu0 %v913
      %929 = vmatpush.msra.mxu0 %v912
      %930 = vmatpush.msra.mxu0 %v911
      %931 = vmatpush.msra.mxu0 %v910
      %932 = vmatpush.msra.mxu0 %v909
      %933 = vmatpush.msra.mxu0 %v908
      %934 = vmatpush.msra.mxu0 %v907
      %935 = vmatpush.msra.mxu0 %v906
      %936 = vmatpush.msra.mxu0 %v905
      %937 = vmatmul.f32.gmra.mxu0 %v904
      %v938 = vpop.f32.mrf.mxu0
      %v939 = vadd.f32 0.0, %v938
      %940 = vdwg.mxu0
      %941 = vmatpush.msra.mxu0 %v903
      %942 = vmatpush.msra.mxu0 %v902
      %943 = vmatpush.msra.mxu0 %v901
      %944 = vmatpush.msra.mxu0 %v900
      %945 = vmatpush.msra.mxu0 %v899
      %946 = vmatpush.msra.mxu0 %v898
      %947 = vmatpush.msra.mxu0 %v897
      %948 = vmatpush.msra.mxu0 %v896
      %949 = vmatpush.msra.mxu0 %v895
      %950 = vmatpush.msra.mxu0 %v894
      %951 = vmatpush.msra.mxu0 %v893
      %952 = vmatpush.msra.mxu0 %v892
      %953 = vmatpush.msra.mxu0 %v891
      %954 = vmatpush.msra.mxu0 %v890
      %955 = vmatpush.msra.mxu0 %v889
      %956 = vmatpush.msra.mxu0 %v888
      %957 = vmatmul.f32.gmra.mxu0 %v887
      %v958 = vpop.f32.mrf.mxu0
      %v959 = vadd.f32 %v939, %v958
      %960 = vdwg.mxu0
      %v961 = vld [vmem:[%s418 + $0x2] sm:$0xf]
      %v962 = vld [vmem:[%s263] sm:$0xff]
      %v963 = vld [vmem:[%s263 + $0x8] sm:$0xff]
      %v964 = vld [vmem:[%s263 + $0x10] sm:$0xff]
      %v965 = vld [vmem:[%s263 + $0x18] sm:$0xff]
      %v966 = vld [vmem:[%s263 + $0x20] sm:$0xff]
      %v967 = vld [vmem:[%s263 + $0x28] sm:$0xff]
      %v968 = vld [vmem:[%s263 + $0x30] sm:$0xff]
      %v969 = vld [vmem:[%s263 + $0x38] sm:$0xff]
      %v970 = vld [vmem:[%s263 + $0x40] sm:$0xff]
      %v971 = vld [vmem:[%s263 + $0x48] sm:$0xff]
      %v972 = vld [vmem:[%s263 + $0x50] sm:$0xff]
      %v973 = vld [vmem:[%s263 + $0x58] sm:$0xff]
      %v974 = vld [vmem:[%s263 + $0x60] sm:$0xff]
      %v975 = vld [vmem:[%s263 + $0x68] sm:$0xff]
      %v976 = vld [vmem:[%s263 + $0x70] sm:$0xff]
      %v977 = vld [vmem:[%s263 + $0x78] sm:$0xff]
      %978 = vmatpush.msra.mxu0 %v977
      %979 = vmatpush.msra.mxu0 %v976
      %980 = vmatpush.msra.mxu0 %v975
      %981 = vmatpush.msra.mxu0 %v974
      %982 = vmatpush.msra.mxu0 %v973
      %983 = vmatpush.msra.mxu0 %v972
      %984 = vmatpush.msra.mxu0 %v971
      %985 = vmatpush.msra.mxu0 %v970
      %986 = vmatpush.msra.mxu0 %v969
      %987 = vmatpush.msra.mxu0 %v968
      %988 = vmatpush.msra.mxu0 %v967
      %989 = vmatpush.msra.mxu0 %v966
      %990 = vmatpush.msra.mxu0 %v965
      %991 = vmatpush.msra.mxu0 %v964
      %992 = vmatpush.msra.mxu0 %v963
      %993 = vmatpush.msra.mxu0 %v962
      %994 = vmatmul.f32.gmra.mxu0 %v961
      %v995 = vpop.f32.mrf.mxu0
      %v996 = vadd.f32 0.0, %v995
      %997 = vdwg.mxu0
      %v998 = vadd.f32 %v959, %v996
      %v999 = vld [vmem:[%s768] sm:$0xf]
      %v1000 = vld [vmem:[%s302] sm:$0xff]
      %v1001 = vld [vmem:[%s302 + $0x8] sm:$0xff]
      %v1002 = vld [vmem:[%s302 + $0x10] sm:$0xff]
      %v1003 = vld [vmem:[%s302 + $0x18] sm:$0xff]
      %v1004 = vld [vmem:[%s302 + $0x20] sm:$0xff]
      %v1005 = vld [vmem:[%s302 + $0x28] sm:$0xff]
      %v1006 = vld [vmem:[%s302 + $0x30] sm:$0xff]
      %v1007 = vld [vmem:[%s302 + $0x38] sm:$0xff]
      %v1008 = vld [vmem:[%s302 + $0x40] sm:$0xff]
      %v1009 = vld [vmem:[%s302 + $0x48] sm:$0xff]
      %v1010 = vld [vmem:[%s302 + $0x50] sm:$0xff]
      %v1011 = vld [vmem:[%s302 + $0x58] sm:$0xff]
      %v1012 = vld [vmem:[%s302 + $0x60] sm:$0xff]
      %v1013 = vld [vmem:[%s302 + $0x68] sm:$0xff]
      %v1014 = vld [vmem:[%s302 + $0x70] sm:$0xff]
      %v1015 = vld [vmem:[%s302 + $0x78] sm:$0xff]
      %1016 = vmatpush.msra.mxu0 %v1015
      %1017 = vmatpush.msra.mxu0 %v1014
      %1018 = vmatpush.msra.mxu0 %v1013
      %1019 = vmatpush.msra.mxu0 %v1012
      %1020 = vmatpush.msra.mxu0 %v1011
      %1021 = vmatpush.msra.mxu0 %v1010
      %1022 = vmatpush.msra.mxu0 %v1009
      %1023 = vmatpush.msra.mxu0 %v1008
      %1024 = vmatpush.msra.mxu0 %v1007
      %1025 = vmatpush.msra.mxu0 %v1006
      %1026 = vmatpush.msra.mxu0 %v1005
      %1027 = vmatpush.msra.mxu0 %v1004
      %1028 = vmatpush.msra.mxu0 %v1003
      %1029 = vmatpush.msra.mxu0 %v1002
      %1030 = vmatpush.msra.mxu0 %v1001
      %1031 = vmatpush.msra.mxu0 %v1000
      %1032 = vmatmul.f32.gmra.mxu0 %v999
      %v1033 = vpop.f32.mrf.mxu0
      %v1034 = vadd.f32 0.0, %v1033
      %1035 = vdwg.mxu0
      %v1036 = vadd.f32 %v998, %v1034
      %v1037 = vld [vmem:[%s768 + $0x1] sm:$0xf]
      %v1038 = vld [vmem:[%s341] sm:$0xff]
      %v1039 = vld [vmem:[%s341 + $0x8] sm:$0xff]
      %v1040 = vld [vmem:[%s341 + $0x10] sm:$0xff]
      %v1041 = vld [vmem:[%s341 + $0x18] sm:$0xff]
      %v1042 = vld [vmem:[%s341 + $0x20] sm:$0xff]
      %v1043 = vld [vmem:[%s341 + $0x28] sm:$0xff]
      %v1044 = vld [vmem:[%s341 + $0x30] sm:$0xff]
      %v1045 = vld [vmem:[%s341 + $0x38] sm:$0xff]
      %v1046 = vld [vmem:[%s341 + $0x40] sm:$0xff]
      %v1047 = vld [vmem:[%s341 + $0x48] sm:$0xff]
      %v1048 = vld [vmem:[%s341 + $0x50] sm:$0xff]
      %v1049 = vld [vmem:[%s341 + $0x58] sm:$0xff]
      %v1050 = vld [vmem:[%s341 + $0x60] sm:$0xff]
      %v1051 = vld [vmem:[%s341 + $0x68] sm:$0xff]
      %v1052 = vld [vmem:[%s341 + $0x70] sm:$0xff]
      %v1053 = vld [vmem:[%s341 + $0x78] sm:$0xff]
      %1054 = vmatpush.msra.mxu0 %v1053
      %1055 = vmatpush.msra.mxu0 %v1052
      %1056 = vmatpush.msra.mxu0 %v1051
      %1057 = vmatpush.msra.mxu0 %v1050
      %1058 = vmatpush.msra.mxu0 %v1049
      %1059 = vmatpush.msra.mxu0 %v1048
      %1060 = vmatpush.msra.mxu0 %v1047
      %1061 = vmatpush.msra.mxu0 %v1046
      %1062 = vmatpush.msra.mxu0 %v1045
      %1063 = vmatpush.msra.mxu0 %v1044
      %1064 = vmatpush.msra.mxu0 %v1043
      %1065 = vmatpush.msra.mxu0 %v1042
      %1066 = vmatpush.msra.mxu0 %v1041
      %1067 = vmatpush.msra.mxu0 %v1040
      %1068 = vmatpush.msra.mxu0 %v1039
      %1069 = vmatpush.msra.mxu0 %v1038
      %1070 = vmatmul.f32.gmra.mxu0 %v1037
      %v1071 = vpop.f32.mrf.mxu0
      %v1072 = vadd.f32 0.0, %v1071
      %1073 = vdwg.mxu0
      %v1074 = vadd.f32 %v1036, %v1072
      %v1075 = vld [vmem:[%s768 + $0x2] sm:$0xf]
      %v1076 = vld [vmem:[%s380] sm:$0xff]
      %v1077 = vld [vmem:[%s380 + $0x8] sm:$0xff]
      %v1078 = vld [vmem:[%s380 + $0x10] sm:$0xff]
      %v1079 = vld [vmem:[%s380 + $0x18] sm:$0xff]
      %v1080 = vld [vmem:[%s380 + $0x20] sm:$0xff]
      %v1081 = vld [vmem:[%s380 + $0x28] sm:$0xff]
      %v1082 = vld [vmem:[%s380 + $0x30] sm:$0xff]
      %v1083 = vld [vmem:[%s380 + $0x38] sm:$0xff]
      %v1084 = vld [vmem:[%s380 + $0x40] sm:$0xff]
      %v1085 = vld [vmem:[%s380 + $0x48] sm:$0xff]
      %v1086 = vld [vmem:[%s380 + $0x50] sm:$0xff]
      %v1087 = vld [vmem:[%s380 + $0x58] sm:$0xff]
      %v1088 = vld [vmem:[%s380 + $0x60] sm:$0xff]
      %v1089 = vld [vmem:[%s380 + $0x68] sm:$0xff]
      %v1090 = vld [vmem:[%s380 + $0x70] sm:$0xff]
      %v1091 = vld [vmem:[%s380 + $0x78] sm:$0xff]
      %1092 = vmatpush.msra.mxu0 %v1091
      %1093 = vmatpush.msra.mxu0 %v1090
      %1094 = vmatpush.msra.mxu0 %v1089
      %1095 = vmatpush.msra.mxu0 %v1088
      %1096 = vmatpush.msra.mxu0 %v1087
      %1097 = vmatpush.msra.mxu0 %v1086
      %1098 = vmatpush.msra.mxu0 %v1085
      %1099 = vmatpush.msra.mxu0 %v1084
      %1100 = vmatpush.msra.mxu0 %v1083
      %1101 = vmatpush.msra.mxu0 %v1082
      %1102 = vmatpush.msra.mxu0 %v1081
      %1103 = vmatpush.msra.mxu0 %v1080
      %1104 = vmatpush.msra.mxu0 %v1079
      %1105 = vmatpush.msra.mxu0 %v1078
      %1106 = vmatpush.msra.mxu0 %v1077
      %1107 = vmatpush.msra.mxu0 %v1076
      %1108 = vmatmul.f32.gmra.mxu0 %v1075
      %v1109 = vpop.f32.mrf.mxu0
      %v1110 = vadd.f32 0.0, %v1109
      %1111 = vdwg.mxu0
      %v1112 = vadd.f32 %v1074, %v1110
      %s1113 = scalar_lea.vmem [#allocation2], 32
      %v1114 = vld [vmem:[%s1113] sm:$0xf]
      %v1115 = vld [vmem:[%s420] sm:$0xff]
      %v1116 = vld [vmem:[%s420 + $0x8] sm:$0xff]
      %v1117 = vld [vmem:[%s420 + $0x10] sm:$0xff]
      %v1118 = vld [vmem:[%s420 + $0x18] sm:$0xff]
      %v1119 = vld [vmem:[%s420 + $0x20] sm:$0xff]
      %v1120 = vld [vmem:[%s420 + $0x28] sm:$0xff]
      %v1121 = vld [vmem:[%s420 + $0x30] sm:$0xff]
      %v1122 = vld [vmem:[%s420 + $0x38] sm:$0xff]
      %v1123 = vld [vmem:[%s420 + $0x40] sm:$0xff]
      %v1124 = vld [vmem:[%s420 + $0x48] sm:$0xff]
      %v1125 = vld [vmem:[%s420 + $0x50] sm:$0xff]
      %v1126 = vld [vmem:[%s420 + $0x58] sm:$0xff]
      %v1127 = vld [vmem:[%s420 + $0x60] sm:$0xff]
      %v1128 = vld [vmem:[%s420 + $0x68] sm:$0xff]
      %v1129 = vld [vmem:[%s420 + $0x70] sm:$0xff]
      %v1130 = vld [vmem:[%s420 + $0x78] sm:$0xff]
      %1131 = vmatpush.msra.mxu0 %v1130
      %1132 = vmatpush.msra.mxu0 %v1129
      %1133 = vmatpush.msra.mxu0 %v1128
      %1134 = vmatpush.msra.mxu0 %v1127
      %1135 = vmatpush.msra.mxu0 %v1126
      %1136 = vmatpush.msra.mxu0 %v1125
      %1137 = vmatpush.msra.mxu0 %v1124
      %1138 = vmatpush.msra.mxu0 %v1123
      %1139 = vmatpush.msra.mxu0 %v1122
      %1140 = vmatpush.msra.mxu0 %v1121
      %1141 = vmatpush.msra.mxu0 %v1120
      %1142 = vmatpush.msra.mxu0 %v1119
      %1143 = vmatpush.msra.mxu0 %v1118
      %1144 = vmatpush.msra.mxu0 %v1117
      %1145 = vmatpush.msra.mxu0 %v1116
      %1146 = vmatpush.msra.mxu0 %v1115
      %1147 = vmatmul.f32.gmra.mxu0 %v1114
      %v1148 = vpop.f32.mrf.mxu0
      %v1149 = vadd.f32 0.0, %v1148
      %1150 = vdwg.mxu0
      %v1151 = vadd.f32 %v1112, %v1149
      %v1152 = vld [vmem:[%s1113 + $0x1] sm:$0xf]
      %v1153 = vld [vmem:[%s459] sm:$0xff]
      %v1154 = vld [vmem:[%s459 + $0x8] sm:$0xff]
      %v1155 = vld [vmem:[%s459 + $0x10] sm:$0xff]
      %v1156 = vld [vmem:[%s459 + $0x18] sm:$0xff]
      %v1157 = vld [vmem:[%s459 + $0x20] sm:$0xff]
      %v1158 = vld [vmem:[%s459 + $0x28] sm:$0xff]
      %v1159 = vld [vmem:[%s459 + $0x30] sm:$0xff]
      %v1160 = vld [vmem:[%s459 + $0x38] sm:$0xff]
      %v1161 = vld [vmem:[%s459 + $0x40] sm:$0xff]
      %v1162 = vld [vmem:[%s459 + $0x48] sm:$0xff]
      %v1163 = vld [vmem:[%s459 + $0x50] sm:$0xff]
      %v1164 = vld [vmem:[%s459 + $0x58] sm:$0xff]
      %v1165 = vld [vmem:[%s459 + $0x60] sm:$0xff]
      %v1166 = vld [vmem:[%s459 + $0x68] sm:$0xff]
      %v1167 = vld [vmem:[%s459 + $0x70] sm:$0xff]
      %v1168 = vld [vmem:[%s459 + $0x78] sm:$0xff]
      %1169 = vmatpush.msra.mxu0 %v1168
      %1170 = vmatpush.msra.mxu0 %v1167
      %1171 = vmatpush.msra.mxu0 %v1166
      %1172 = vmatpush.msra.mxu0 %v1165
      %1173 = vmatpush.msra.mxu0 %v1164
      %1174 = vmatpush.msra.mxu0 %v1163
      %1175 = vmatpush.msra.mxu0 %v1162
      %1176 = vmatpush.msra.mxu0 %v1161
      %1177 = vmatpush.msra.mxu0 %v1160
      %1178 = vmatpush.msra.mxu0 %v1159
      %1179 = vmatpush.msra.mxu0 %v1158
      %1180 = vmatpush.msra.mxu0 %v1157
      %1181 = vmatpush.msra.mxu0 %v1156
      %1182 = vmatpush.msra.mxu0 %v1155
      %1183 = vmatpush.msra.mxu0 %v1154
      %1184 = vmatpush.msra.mxu0 %v1153
      %1185 = vmatmul.f32.gmra.mxu0 %v1152
      %v1186 = vpop.f32.mrf.mxu0
      %v1187 = vadd.f32 0.0, %v1186
      %1188 = vdwg.mxu0
      %v1189 = vadd.f32 %v1151, %v1187
      %v1190 = vld [vmem:[%s1113 + $0x2] sm:$0xf]
      %v1191 = vld [vmem:[%s498] sm:$0xff]
      %v1192 = vld [vmem:[%s498 + $0x8] sm:$0xff]
      %v1193 = vld [vmem:[%s498 + $0x10] sm:$0xff]
      %v1194 = vld [vmem:[%s498 + $0x18] sm:$0xff]
      %v1195 = vld [vmem:[%s498 + $0x20] sm:$0xff]
      %v1196 = vld [vmem:[%s498 + $0x28] sm:$0xff]
      %v1197 = vld [vmem:[%s498 + $0x30] sm:$0xff]
      %v1198 = vld [vmem:[%s498 + $0x38] sm:$0xff]
      %v1199 = vld [vmem:[%s498 + $0x40] sm:$0xff]
      %v1200 = vld [vmem:[%s498 + $0x48] sm:$0xff]
      %v1201 = vld [vmem:[%s498 + $0x50] sm:$0xff]
      %v1202 = vld [vmem:[%s498 + $0x58] sm:$0xff]
      %v1203 = vld [vmem:[%s498 + $0x60] sm:$0xff]
      %v1204 = vld [vmem:[%s498 + $0x68] sm:$0xff]
      %v1205 = vld [vmem:[%s498 + $0x70] sm:$0xff]
      %v1206 = vld [vmem:[%s498 + $0x78] sm:$0xff]
      %1207 = vmatpush.msra.mxu0 %v1206
      %1208 = vmatpush.msra.mxu0 %v1205
      %1209 = vmatpush.msra.mxu0 %v1204
      %1210 = vmatpush.msra.mxu0 %v1203
      %1211 = vmatpush.msra.mxu0 %v1202
      %1212 = vmatpush.msra.mxu0 %v1201
      %1213 = vmatpush.msra.mxu0 %v1200
      %1214 = vmatpush.msra.mxu0 %v1199
      %1215 = vmatpush.msra.mxu0 %v1198
      %1216 = vmatpush.msra.mxu0 %v1197
      %1217 = vmatpush.msra.mxu0 %v1196
      %1218 = vmatpush.msra.mxu0 %v1195
      %1219 = vmatpush.msra.mxu0 %v1194
      %1220 = vmatpush.msra.mxu0 %v1193
      %1221 = vmatpush.msra.mxu0 %v1192
      %1222 = vmatpush.msra.mxu0 %v1191
      %1223 = vmatmul.f32.gmra.mxu0 %v1190
      %v1224 = vpop.f32.mrf.mxu0
      %v1225 = vadd.f32 0.0, %v1224
      %1226 = vdwg.mxu0
      %v1227 = vadd.f32 %v1189, %v1225
      %v1228 = vadd.f32 %v1227, %v537
      %v1229 = vtanh.pop %v1228
      %s1230 = scalar_lea.vmem %s170, 8
      %1231 = vst [vmem:[%s1230] sm:$0xf] %v1229
      %v1232 = vld [vmem:[%s768] sm:$0xf]
      %v1233 = vld [vmem:[%s1] sm:$0xff]
      %v1234 = vld [vmem:[%s1 + $0x8] sm:$0xff]
      %v1235 = vld [vmem:[%s1 + $0x10] sm:$0xff]
      %v1236 = vld [vmem:[%s1 + $0x18] sm:$0xff]
      %v1237 = vld [vmem:[%s1 + $0x20] sm:$0xff]
      %v1238 = vld [vmem:[%s1 + $0x28] sm:$0xff]
      %v1239 = vld [vmem:[%s1 + $0x30] sm:$0xff]
      %v1240 = vld [vmem:[%s1 + $0x38] sm:$0xff]
      %v1241 = vld [vmem:[%s1 + $0x40] sm:$0xff]
      %v1242 = vld [vmem:[%s1 + $0x48] sm:$0xff]
      %v1243 = vld [vmem:[%s1 + $0x50] sm:$0xff]
      %v1244 = vld [vmem:[%s1 + $0x58] sm:$0xff]
      %v1245 = vld [vmem:[%s1 + $0x60] sm:$0xff]
      %v1246 = vld [vmem:[%s1 + $0x68] sm:$0xff]
      %v1247 = vld [vmem:[%s1 + $0x70] sm:$0xff]
      %v1248 = vld [vmem:[%s1 + $0x78] sm:$0xff]
      %v1249 = vld [vmem:[%s768 + $0x1] sm:$0xf]
      %v1250 = vld [vmem:[%s205] sm:$0xff]
      %v1251 = vld [vmem:[%s205 + $0x8] sm:$0xff]
      %v1252 = vld [vmem:[%s205 + $0x10] sm:$0xff]
      %v1253 = vld [vmem:[%s205 + $0x18] sm:$0xff]
      %v1254 = vld [vmem:[%s205 + $0x20] sm:$0xff]
      %v1255 = vld [vmem:[%s205 + $0x28] sm:$0xff]
      %v1256 = vld [vmem:[%s205 + $0x30] sm:$0xff]
      %v1257 = vld [vmem:[%s205 + $0x38] sm:$0xff]
      %v1258 = vld [vmem:[%s205 + $0x40] sm:$0xff]
      %v1259 = vld [vmem:[%s205 + $0x48] sm:$0xff]
      %v1260 = vld [vmem:[%s205 + $0x50] sm:$0xff]
      %v1261 = vld [vmem:[%s205 + $0x58] sm:$0xff]
      %v1262 = vld [vmem:[%s205 + $0x60] sm:$0xff]
      %v1263 = vld [vmem:[%s205 + $0x68] sm:$0xff]
      %v1264 = vld [vmem:[%s205 + $0x70] sm:$0xff]
      %v1265 = vld [vmem:[%s205 + $0x78] sm:$0xff]
      %1266 = vmatpush.msra.mxu0 %v1265
      %1267 = vmatpush.msra.mxu0 %v1264
      %1268 = vmatpush.msra.mxu0 %v1263
      %1269 = vmatpush.msra.mxu0 %v1262
      %1270 = vmatpush.msra.mxu0 %v1261
      %1271 = vmatpush.msra.mxu0 %v1260
      %1272 = vmatpush.msra.mxu0 %v1259
      %1273 = vmatpush.msra.mxu0 %v1258
      %1274 = vmatpush.msra.mxu0 %v1257
      %1275 = vmatpush.msra.mxu0 %v1256
      %1276 = vmatpush.msra.mxu0 %v1255
      %1277 = vmatpush.msra.mxu0 %v1254
      %1278 = vmatpush.msra.mxu0 %v1253
      %1279 = vmatpush.msra.mxu0 %v1252
      %1280 = vmatpush.msra.mxu0 %v1251
      %1281 = vmatpush.msra.mxu0 %v1250
      %1282 = vmatmul.f32.gmra.mxu0 %v1249
      %v1283 = vpop.f32.mrf.mxu0
      %v1284 = vadd.f32 0.0, %v1283
      %1285 = vdwg.mxu0
      %1286 = vmatpush.msra.mxu0 %v1248
      %1287 = vmatpush.msra.mxu0 %v1247
      %1288 = vmatpush.msra.mxu0 %v1246
      %1289 = vmatpush.msra.mxu0 %v1245
      %1290 = vmatpush.msra.mxu0 %v1244
      %1291 = vmatpush.msra.mxu0 %v1243
      %1292 = vmatpush.msra.mxu0 %v1242
      %1293 = vmatpush.msra.mxu0 %v1241
      %1294 = vmatpush.msra.mxu0 %v1240
      %1295 = vmatpush.msra.mxu0 %v1239
      %1296 = vmatpush.msra.mxu0 %v1238
      %1297 = vmatpush.msra.mxu0 %v1237
      %1298 = vmatpush.msra.mxu0 %v1236
      %1299 = vmatpush.msra.mxu0 %v1235
      %1300 = vmatpush.msra.mxu0 %v1234
      %1301 = vmatpush.msra.mxu0 %v1233
      %1302 = vmatmul.f32.gmra.mxu0 %v1232
      %v1303 = vpop.f32.mrf.mxu0
      %v1304 = vadd.f32 %v1284, %v1303
      %1305 = vdwg.mxu0
      %v1306 = vld [vmem:[%s768 + $0x2] sm:$0xf]
      %v1307 = vld [vmem:[%s263] sm:$0xff]
      %v1308 = vld [vmem:[%s263 + $0x8] sm:$0xff]
      %v1309 = vld [vmem:[%s263 + $0x10] sm:$0xff]
      %v1310 = vld [vmem:[%s263 + $0x18] sm:$0xff]
      %v1311 = vld [vmem:[%s263 + $0x20] sm:$0xff]
      %v1312 = vld [vmem:[%s263 + $0x28] sm:$0xff]
      %v1313 = vld [vmem:[%s263 + $0x30] sm:$0xff]
      %v1314 = vld [vmem:[%s263 + $0x38] sm:$0xff]
      %v1315 = vld [vmem:[%s263 + $0x40] sm:$0xff]
      %v1316 = vld [vmem:[%s263 + $0x48] sm:$0xff]
      %v1317 = vld [vmem:[%s263 + $0x50] sm:$0xff]
      %v1318 = vld [vmem:[%s263 + $0x58] sm:$0xff]
      %v1319 = vld [vmem:[%s263 + $0x60] sm:$0xff]
      %v1320 = vld [vmem:[%s263 + $0x68] sm:$0xff]
      %v1321 = vld [vmem:[%s263 + $0x70] sm:$0xff]
      %v1322 = vld [vmem:[%s263 + $0x78] sm:$0xff]
      %1323 = vmatpush.msra.mxu0 %v1322
      %1324 = vmatpush.msra.mxu0 %v1321
      %1325 = vmatpush.msra.mxu0 %v1320
      %1326 = vmatpush.msra.mxu0 %v1319
      %1327 = vmatpush.msra.mxu0 %v1318
      %1328 = vmatpush.msra.mxu0 %v1317
      %1329 = vmatpush.msra.mxu0 %v1316
      %1330 = vmatpush.msra.mxu0 %v1315
      %1331 = vmatpush.msra.mxu0 %v1314
      %1332 = vmatpush.msra.mxu0 %v1313
      %1333 = vmatpush.msra.mxu0 %v1312
      %1334 = vmatpush.msra.mxu0 %v1311
      %1335 = vmatpush.msra.mxu0 %v1310
      %1336 = vmatpush.msra.mxu0 %v1309
      %1337 = vmatpush.msra.mxu0 %v1308
      %1338 = vmatpush.msra.mxu0 %v1307
      %1339 = vmatmul.f32.gmra.mxu0 %v1306
      %v1340 = vpop.f32.mrf.mxu0
      %v1341 = vadd.f32 0.0, %v1340
      %1342 = vdwg.mxu0
      %v1343 = vadd.f32 %v1304, %v1341
      %v1344 = vld [vmem:[%s1113] sm:$0xf]
      %v1345 = vld [vmem:[%s302] sm:$0xff]
      %v1346 = vld [vmem:[%s302 + $0x8] sm:$0xff]
      %v1347 = vld [vmem:[%s302 + $0x10] sm:$0xff]
      %v1348 = vld [vmem:[%s302 + $0x18] sm:$0xff]
      %v1349 = vld [vmem:[%s302 + $0x20] sm:$0xff]
      %v1350 = vld [vmem:[%s302 + $0x28] sm:$0xff]
      %v1351 = vld [vmem:[%s302 + $0x30] sm:$0xff]
      %v1352 = vld [vmem:[%s302 + $0x38] sm:$0xff]
      %v1353 = vld [vmem:[%s302 + $0x40] sm:$0xff]
      %v1354 = vld [vmem:[%s302 + $0x48] sm:$0xff]
      %v1355 = vld [vmem:[%s302 + $0x50] sm:$0xff]
      %v1356 = vld [vmem:[%s302 + $0x58] sm:$0xff]
      %v1357 = vld [vmem:[%s302 + $0x60] sm:$0xff]
      %v1358 = vld [vmem:[%s302 + $0x68] sm:$0xff]
      %v1359 = vld [vmem:[%s302 + $0x70] sm:$0xff]
      %v1360 = vld [vmem:[%s302 + $0x78] sm:$0xff]
      %1361 = vmatpush.msra.mxu0 %v1360
      %1362 = vmatpush.msra.mxu0 %v1359
      %1363 = vmatpush.msra.mxu0 %v1358
      %1364 = vmatpush.msra.mxu0 %v1357
      %1365 = vmatpush.msra.mxu0 %v1356
      %1366 = vmatpush.msra.mxu0 %v1355
      %1367 = vmatpush.msra.mxu0 %v1354
      %1368 = vmatpush.msra.mxu0 %v1353
      %1369 = vmatpush.msra.mxu0 %v1352
      %1370 = vmatpush.msra.mxu0 %v1351
      %1371 = vmatpush.msra.mxu0 %v1350
      %1372 = vmatpush.msra.mxu0 %v1349
      %1373 = vmatpush.msra.mxu0 %v1348
      %1374 = vmatpush.msra.mxu0 %v1347
      %1375 = vmatpush.msra.mxu0 %v1346
      %1376 = vmatpush.msra.mxu0 %v1345
      %1377 = vmatmul.f32.gmra.mxu0 %v1344
      %v1378 = vpop.f32.mrf.mxu0
      %v1379 = vadd.f32 0.0, %v1378
      %1380 = vdwg.mxu0
      %v1381 = vadd.f32 %v1343, %v1379
      %v1382 = vld [vmem:[%s1113 + $0x1] sm:$0xf]
      %v1383 = vld [vmem:[%s341] sm:$0xff]
      %v1384 = vld [vmem:[%s341 + $0x8] sm:$0xff]
      %v1385 = vld [vmem:[%s341 + $0x10] sm:$0xff]
      %v1386 = vld [vmem:[%s341 + $0x18] sm:$0xff]
      %v1387 = vld [vmem:[%s341 + $0x20] sm:$0xff]
      %v1388 = vld [vmem:[%s341 + $0x28] sm:$0xff]
      %v1389 = vld [vmem:[%s341 + $0x30] sm:$0xff]
      %v1390 = vld [vmem:[%s341 + $0x38] sm:$0xff]
      %v1391 = vld [vmem:[%s341 + $0x40] sm:$0xff]
      %v1392 = vld [vmem:[%s341 + $0x48] sm:$0xff]
      %v1393 = vld [vmem:[%s341 + $0x50] sm:$0xff]
      %v1394 = vld [vmem:[%s341 + $0x58] sm:$0xff]
      %v1395 = vld [vmem:[%s341 + $0x60] sm:$0xff]
      %v1396 = vld [vmem:[%s341 + $0x68] sm:$0xff]
      %v1397 = vld [vmem:[%s341 + $0x70] sm:$0xff]
      %v1398 = vld [vmem:[%s341 + $0x78] sm:$0xff]
      %1399 = vmatpush.msra.mxu0 %v1398
      %1400 = vmatpush.msra.mxu0 %v1397
      %1401 = vmatpush.msra.mxu0 %v1396
      %1402 = vmatpush.msra.mxu0 %v1395
      %1403 = vmatpush.msra.mxu0 %v1394
      %1404 = vmatpush.msra.mxu0 %v1393
      %1405 = vmatpush.msra.mxu0 %v1392
      %1406 = vmatpush.msra.mxu0 %v1391
      %1407 = vmatpush.msra.mxu0 %v1390
      %1408 = vmatpush.msra.mxu0 %v1389
      %1409 = vmatpush.msra.mxu0 %v1388
      %1410 = vmatpush.msra.mxu0 %v1387
      %1411 = vmatpush.msra.mxu0 %v1386
      %1412 = vmatpush.msra.mxu0 %v1385
      %1413 = vmatpush.msra.mxu0 %v1384
      %1414 = vmatpush.msra.mxu0 %v1383
      %1415 = vmatmul.f32.gmra.mxu0 %v1382
      %v1416 = vpop.f32.mrf.mxu0
      %v1417 = vadd.f32 0.0, %v1416
      %1418 = vdwg.mxu0
      %v1419 = vadd.f32 %v1381, %v1417
      %v1420 = vld [vmem:[%s1113 + $0x2] sm:$0xf]
      %v1421 = vld [vmem:[%s380] sm:$0xff]
      %v1422 = vld [vmem:[%s380 + $0x8] sm:$0xff]
      %v1423 = vld [vmem:[%s380 + $0x10] sm:$0xff]
      %v1424 = vld [vmem:[%s380 + $0x18] sm:$0xff]
      %v1425 = vld [vmem:[%s380 + $0x20] sm:$0xff]
      %v1426 = vld [vmem:[%s380 + $0x28] sm:$0xff]
      %v1427 = vld [vmem:[%s380 + $0x30] sm:$0xff]
      %v1428 = vld [vmem:[%s380 + $0x38] sm:$0xff]
      %v1429 = vld [vmem:[%s380 + $0x40] sm:$0xff]
      %v1430 = vld [vmem:[%s380 + $0x48] sm:$0xff]
      %v1431 = vld [vmem:[%s380 + $0x50] sm:$0xff]
      %v1432 = vld [vmem:[%s380 + $0x58] sm:$0xff]
      %v1433 = vld [vmem:[%s380 + $0x60] sm:$0xff]
      %v1434 = vld [vmem:[%s380 + $0x68] sm:$0xff]
      %v1435 = vld [vmem:[%s380 + $0x70] sm:$0xff]
      %v1436 = vld [vmem:[%s380 + $0x78] sm:$0xff]
      %1437 = vmatpush.msra.mxu0 %v1436
      %1438 = vmatpush.msra.mxu0 %v1435
      %1439 = vmatpush.msra.mxu0 %v1434
      %1440 = vmatpush.msra.mxu0 %v1433
      %1441 = vmatpush.msra.mxu0 %v1432
      %1442 = vmatpush.msra.mxu0 %v1431
      %1443 = vmatpush.msra.mxu0 %v1430
      %1444 = vmatpush.msra.mxu0 %v1429
      %1445 = vmatpush.msra.mxu0 %v1428
      %1446 = vmatpush.msra.mxu0 %v1427
      %1447 = vmatpush.msra.mxu0 %v1426
      %1448 = vmatpush.msra.mxu0 %v1425
      %1449 = vmatpush.msra.mxu0 %v1424
      %1450 = vmatpush.msra.mxu0 %v1423
      %1451 = vmatpush.msra.mxu0 %v1422
      %1452 = vmatpush.msra.mxu0 %v1421
      %1453 = vmatmul.f32.gmra.mxu0 %v1420
      %v1454 = vpop.f32.mrf.mxu0
      %v1455 = vadd.f32 0.0, %v1454
      %1456 = vdwg.mxu0
      %v1457 = vadd.f32 %v1419, %v1455
      %s1458 = scalar_lea.vmem [#allocation2], 40
      %v1459 = vld [vmem:[%s1458] sm:$0xf]
      %v1460 = vld [vmem:[%s420] sm:$0xff]
      %v1461 = vld [vmem:[%s420 + $0x8] sm:$0xff]
      %v1462 = vld [vmem:[%s420 + $0x10] sm:$0xff]
      %v1463 = vld [vmem:[%s420 + $0x18] sm:$0xff]
      %v1464 = vld [vmem:[%s420 + $0x20] sm:$0xff]
      %v1465 = vld [vmem:[%s420 + $0x28] sm:$0xff]
      %v1466 = vld [vmem:[%s420 + $0x30] sm:$0xff]
      %v1467 = vld [vmem:[%s420 + $0x38] sm:$0xff]
      %v1468 = vld [vmem:[%s420 + $0x40] sm:$0xff]
      %v1469 = vld [vmem:[%s420 + $0x48] sm:$0xff]
      %v1470 = vld [vmem:[%s420 + $0x50] sm:$0xff]
      %v1471 = vld [vmem:[%s420 + $0x58] sm:$0xff]
      %v1472 = vld [vmem:[%s420 + $0x60] sm:$0xff]
      %v1473 = vld [vmem:[%s420 + $0x68] sm:$0xff]
      %v1474 = vld [vmem:[%s420 + $0x70] sm:$0xff]
      %v1475 = vld [vmem:[%s420 + $0x78] sm:$0xff]
      %1476 = vmatpush.msra.mxu0 %v1475
      %1477 = vmatpush.msra.mxu0 %v1474
      %1478 = vmatpush.msra.mxu0 %v1473
      %1479 = vmatpush.msra.mxu0 %v1472
      %1480 = vmatpush.msra.mxu0 %v1471
      %1481 = vmatpush.msra.mxu0 %v1470
      %1482 = vmatpush.msra.mxu0 %v1469
      %1483 = vmatpush.msra.mxu0 %v1468
      %1484 = vmatpush.msra.mxu0 %v1467
      %1485 = vmatpush.msra.mxu0 %v1466
      %1486 = vmatpush.msra.mxu0 %v1465
      %1487 = vmatpush.msra.mxu0 %v1464
      %1488 = vmatpush.msra.mxu0 %v1463
      %1489 = vmatpush.msra.mxu0 %v1462
      %1490 = vmatpush.msra.mxu0 %v1461
      %1491 = vmatpush.msra.mxu0 %v1460
      %1492 = vmatmul.f32.gmra.mxu0 %v1459
      %v1493 = vpop.f32.mrf.mxu0
      %v1494 = vadd.f32 0.0, %v1493
      %1495 = vdwg.mxu0
      %v1496 = vadd.f32 %v1457, %v1494
      %v1497 = vld [vmem:[%s1458 + $0x1] sm:$0xf]
      %v1498 = vld [vmem:[%s459] sm:$0xff]
      %v1499 = vld [vmem:[%s459 + $0x8] sm:$0xff]
      %v1500 = vld [vmem:[%s459 + $0x10] sm:$0xff]
      %v1501 = vld [vmem:[%s459 + $0x18] sm:$0xff]
      %v1502 = vld [vmem:[%s459 + $0x20] sm:$0xff]
      %v1503 = vld [vmem:[%s459 + $0x28] sm:$0xff]
      %v1504 = vld [vmem:[%s459 + $0x30] sm:$0xff]
      %v1505 = vld [vmem:[%s459 + $0x38] sm:$0xff]
      %v1506 = vld [vmem:[%s459 + $0x40] sm:$0xff]
      %v1507 = vld [vmem:[%s459 + $0x48] sm:$0xff]
      %v1508 = vld [vmem:[%s459 + $0x50] sm:$0xff]
      %v1509 = vld [vmem:[%s459 + $0x58] sm:$0xff]
      %v1510 = vld [vmem:[%s459 + $0x60] sm:$0xff]
      %v1511 = vld [vmem:[%s459 + $0x68] sm:$0xff]
      %v1512 = vld [vmem:[%s459 + $0x70] sm:$0xff]
      %v1513 = vld [vmem:[%s459 + $0x78] sm:$0xff]
      %1514 = vmatpush.msra.mxu0 %v1513
      %1515 = vmatpush.msra.mxu0 %v1512
      %1516 = vmatpush.msra.mxu0 %v1511
      %1517 = vmatpush.msra.mxu0 %v1510
      %1518 = vmatpush.msra.mxu0 %v1509
      %1519 = vmatpush.msra.mxu0 %v1508
      %1520 = vmatpush.msra.mxu0 %v1507
      %1521 = vmatpush.msra.mxu0 %v1506
      %1522 = vmatpush.msra.mxu0 %v1505
      %1523 = vmatpush.msra.mxu0 %v1504
      %1524 = vmatpush.msra.mxu0 %v1503
      %1525 = vmatpush.msra.mxu0 %v1502
      %1526 = vmatpush.msra.mxu0 %v1501
      %1527 = vmatpush.msra.mxu0 %v1500
      %1528 = vmatpush.msra.mxu0 %v1499
      %1529 = vmatpush.msra.mxu0 %v1498
      %1530 = vmatmul.f32.gmra.mxu0 %v1497
      %v1531 = vpop.f32.mrf.mxu0
      %v1532 = vadd.f32 0.0, %v1531
      %1533 = vdwg.mxu0
      %v1534 = vadd.f32 %v1496, %v1532
      %v1535 = vld [vmem:[%s1458 + $0x2] sm:$0xf]
      %v1536 = vld [vmem:[%s498] sm:$0xff]
      %v1537 = vld [vmem:[%s498 + $0x8] sm:$0xff]
      %v1538 = vld [vmem:[%s498 + $0x10] sm:$0xff]
      %v1539 = vld [vmem:[%s498 + $0x18] sm:$0xff]
      %v1540 = vld [vmem:[%s498 + $0x20] sm:$0xff]
      %v1541 = vld [vmem:[%s498 + $0x28] sm:$0xff]
      %v1542 = vld [vmem:[%s498 + $0x30] sm:$0xff]
      %v1543 = vld [vmem:[%s498 + $0x38] sm:$0xff]
      %v1544 = vld [vmem:[%s498 + $0x40] sm:$0xff]
      %v1545 = vld [vmem:[%s498 + $0x48] sm:$0xff]
      %v1546 = vld [vmem:[%s498 + $0x50] sm:$0xff]
      %v1547 = vld [vmem:[%s498 + $0x58] sm:$0xff]
      %v1548 = vld [vmem:[%s498 + $0x60] sm:$0xff]
      %v1549 = vld [vmem:[%s498 + $0x68] sm:$0xff]
      %v1550 = vld [vmem:[%s498 + $0x70] sm:$0xff]
      %v1551 = vld [vmem:[%s498 + $0x78] sm:$0xff]
      %1552 = vmatpush.msra.mxu0 %v1551
      %1553 = vmatpush.msra.mxu0 %v1550
      %1554 = vmatpush.msra.mxu0 %v1549
      %1555 = vmatpush.msra.mxu0 %v1548
      %1556 = vmatpush.msra.mxu0 %v1547
      %1557 = vmatpush.msra.mxu0 %v1546
      %1558 = vmatpush.msra.mxu0 %v1545
      %1559 = vmatpush.msra.mxu0 %v1544
      %1560 = vmatpush.msra.mxu0 %v1543
      %1561 = vmatpush.msra.mxu0 %v1542
      %1562 = vmatpush.msra.mxu0 %v1541
      %1563 = vmatpush.msra.mxu0 %v1540
      %1564 = vmatpush.msra.mxu0 %v1539
      %1565 = vmatpush.msra.mxu0 %v1538
      %1566 = vmatpush.msra.mxu0 %v1537
      %1567 = vmatpush.msra.mxu0 %v1536
      %1568 = vmatmul.f32.gmra.mxu0 %v1535
      %v1569 = vpop.f32.mrf.mxu0
      %v1570 = vadd.f32 0.0, %v1569
      %1571 = vdwg.mxu0
      %v1572 = vadd.f32 %v1534, %v1570
      %v1573 = vadd.f32 %v1572, %v537
      %v1574 = vtanh.pop %v1573
      %s1575 = scalar_lea.vmem %s170, 12
      %1576 = vst [vmem:[%s1575] sm:$0xf] %v1574
      %p1577 = scmp.lt.s32.totalorder %s14, 1
      %s1578 = scalar_select %p1577, %s14, 1
      %s1579 = smul.addr %s1578, 4
      %s1580 = smul.addr %s1579, 4
      %s1581 = scalar_lea.vmem %s3, %s1580
      // Predicated region
      $region33: #{closed_call.4} parent=31 // pred_check
        %p1582 = pneg %p100
      $region34: #{closed_call.4} parent=31 // pred_check_branch
        %1584 = sbr.rel (%p1582) target = $region36
      $region35: #{closed_call.4} parent=31 // pred_region
        _
      $region36: #{closed_call.4} parent=31 // pred_fallthru
        _
    $region32: #{closed_call.4} parent=5 // pred_fallthru
      _
    %p1585 = scmp.le.s32.totalorder 2, %s9
    // Predicated region
    $region37: #{closed_call.4} parent=5 // pred_check
      %p1586 = pneg %p1585
    $region38: #{closed_call.4} parent=5 // pred_check_branch
      %1588 = sbr.rel (%p1586) target = $region40
    $region39: #{closed_call.4} parent=5 // pred_region
      %s1589 = ssub.s32 %s9, 2
      // Predicated region
      $region41: #{closed_call.4} parent=39 // pred_check
        %p1590 = pneg %p106
      $region42: #{closed_call.4} parent=39 // pred_check_branch
        %1592 = sbr.rel (%p1590) target = $region44
      $region43: #{closed_call.4} parent=39 // pred_region
        %p1593 = scmp.lt.s32.totalorder %s15, 1
        %s1594 = scalar_select %p1593, %s15, 1
        %s1595 = smul.addr %s1594, 4
        %s1596 = smul.addr %s1595, 4
        %s1597 = scalar_lea.vmem %s3, %s1596
      $region44: #{closed_call.4} parent=39 // pred_fallthru
        _
    $region40: #{closed_call.4} parent=5 // pred_fallthru
      _
  $region6: #{closed_call.4} parent=0 // loop_footer
    %s13 = sadd.s32 1, %s9
  $region7: #{closed_call.4} parent=0 // loop_footer_branch
    %8 = sbr.rel target = $region3
  $region8: #{closed_call.4} parent=0 // loop_exit
    _

</llo_original>
